<compile_context>
chip_gen: v7x
topology: tpu7x:2x2x1
jax: 0.10.0
libtpu: 0.0.40
codegen_flags: <defaults>
</compile_context>

<pallas_src>
import functools
import math

import jax
import jax.numpy as jnp
from jax.experimental import pallas as pl
from jax.experimental.pallas import tpu as pltpu

LEAKY_SLOPE = 0.2
VMEM_LIMIT = 32 * 1024 * 1024   # explicit scoped-VMEM limit (safe on v5e/v6e/v7x)


# ----------------------------------------------------------------------------
# Glue: phase-split a NHWC activation for a 3x3 / stride-2 / pad-1 conv so the
# kernel's 9 tap reads are contiguous row slices (implicit GEMM, 1x traffic).
# ----------------------------------------------------------------------------
def _phase_inputs(x, ho, wo):
    """x: (N,H,W,C) -> 4 tensors (N, (ho+2)*(wo+2), C), phase (a,b) holds
    over-padded input rows 2h'+a, cols 2w'+b.  Pure XLA, fuses with pad."""
    n, h, w, c = x.shape
    hp, wp = ho + 2, wo + 2
    xo = jnp.pad(x, ((0, 0), (1, 2 * hp - h - 1), (1, 2 * wp - w - 1), (0, 0)))
    phases = []
    for a in (0, 1):
        for b in (0, 1):
            phases.append(xo[:, a::2, b::2, :].reshape(n, hp * wp, c))
    return phases


# ----------------------------------------------------------------------------
# Pallas kernel: standalone 3x3 stride-2 conv + bias + LeakyReLU (model1 layer)
# Output rows are laid out on a (ho, wo+2) grid; the 2 junk columns per row
# are sliced off in the caller's (fused) glue.
# ----------------------------------------------------------------------------
def _conv_s2_kernel(p00, p01, p10, p11, w_ref, b_ref, o_ref, *,
                    h_out, pitch, slope):
    phases = ((p00, p01), (p10, p11))
    m = h_out * pitch
    cout = o_ref.shape[-1]
    acc = jnp.zeros((m, cout), jnp.float32)
    for i in range(3):
        for j in range(3):
            src = phases[i % 2][j % 2]
            off = (i // 2) * pitch + (j // 2)          # static contiguous slice
            acc = acc + jnp.dot(src[pl.ds(off, m), :], w_ref[i * 3 + j],
                                preferred_element_type=jnp.float32)
    acc = acc + b_ref[...].astype(jnp.float32)
    if slope is not None:
        acc = jnp.where(acc >= 0.0, acc, slope * acc)
    o_ref[...] = acc.astype(o_ref.dtype)


def conv2d_s2(x, layer, *, slope):
    """x: (N,H,W,Cin) bf16 -> (N,Ho,Wo,Cout) bf16; one pallas_call per layer."""
    n, h, w, cin = x.shape
    assert cin == layer["cin"], (cin, layer["cin"])
    ho, wo = (h + 1) // 2, (w + 1) // 2
    pitch = wo + 2
    m = ho * pitch
    cout = layer["cout"]
    rows_in = (ho + 2) * pitch

    phases = _phase_inputs(x, ho, wo)

    flops = int(2 * n * m * 9 * cin * cout)
    bytes_acc = int(4 * n * rows_in * cin * 2 + 9 * cin * cout * 2
                    + cout * 4 + n * m * cout * 2)

    kern = functools.partial(_conv_s2_kernel, h_out=ho, pitch=pitch, slope=slope)
    out = pl.pallas_call(
        kern,
        out_shape=jax.ShapeDtypeStruct((n, m, cout), jnp.bfloat16),
        grid_spec=pltpu.PrefetchScalarGridSpec(
            num_scalar_prefetch=0,
            grid=(n,),                                  # >=2 steps at batch>=2
            in_specs=[pl.BlockSpec((None, rows_in, cin), lambda b: (b, 0, 0))] * 4
                     + [pl.BlockSpec((9, cin, cout), lambda b: (0, 0, 0)),
                        pl.BlockSpec((1, cout), lambda b: (0, 0))],
            out_specs=pl.BlockSpec((None, m, cout), lambda b: (b, 0, 0)),
        ),
        compiler_params=pltpu.CompilerParams(
            dimension_semantics=("parallel",),
            vmem_limit_bytes=VMEM_LIMIT),
        cost_estimate=pl.CostEstimate(flops=flops, transcendentals=0,
                                      bytes_accessed=bytes_acc),
    )(*phases, layer["w"], layer["b"])
    # drop the 2 junk columns per output row (fuses into next layer's glue)
    return out.reshape(n, ho, pitch, cout)[:, :, :wo, :]


# ----------------------------------------------------------------------------
# Pallas kernel: the WHOLE of model2 fused.
#   head (stride-2 conv + LeakyReLU)  -> VMEM "FP" buffer
#   n_blocks x [conv+LeakyReLU, conv + skip-add]  -> ping-pong VMEM buffers
#   score conv (1 channel)            -> HBM
# FP form: activation with valid (H,W) stored flattened on a (H+2, W+2)
# padded grid (+2 trailing zero rows), so every 3x3 stride-1 tap is a
# contiguous row-slice at offset i*(W+2)+j.
# ----------------------------------------------------------------------------
def _model2_kernel(*refs, n_blocks, h2, p2, slope):
    it = iter(refs)
    p00, p01, p10, p11 = (next(it) for _ in range(4))
    mask_ref = next(it)                       # (m,1) 1.0 valid col / 0.0 junk col
    w_hd, b_hd = next(it), next(it)
    blocks = [(next(it), next(it), next(it), next(it)) for _ in range(n_blocks)]
    w_sc, b_sc = next(it), next(it)
    o_ref = next(it)
    fp_x, fp_y = next(it), next(it)           # VMEM scratch, f32

    m = h2 * p2
    mask = mask_ref[...].astype(jnp.float32)

    # zero both FP buffers once: padding ring + trailing rows stay 0 forever
    fp_x[...] = jnp.zeros_like(fp_x)
    fp_y[...] = jnp.zeros_like(fp_y)

    def conv9(read_tap, w_ref, b_ref):
        acc = jnp.zeros((m, w_ref.shape[-1]), jnp.float32)
        for i in range(3):
            for j in range(3):
                acc = acc + jnp.dot(read_tap(i, j), w_ref[i * 3 + j],
                                    preferred_element_type=jnp.float32)
        return acc + b_ref[...].astype(jnp.float32)

    def leaky(v):
        return jnp.where(v >= 0.0, v, slope * v)

    phases = ((p00, p01), (p10, p11))

    def tap_phase(i, j):                      # stride-2 head conv taps
        return phases[i % 2][j % 2][pl.ds((i // 2) * p2 + (j // 2), m), :]

    def tap_fp(ref):                          # stride-1 conv taps from FP scratch
        def read(i, j):
            return ref[pl.ds(i * p2 + j, m), :]
        return read

    # --- model2 head: 3x3 stride-2 conv + LeakyReLU, written in FP form ---
    x = leaky(conv9(tap_phase, w_hd, b_hd)) * mask
    fp_x[pl.ds(p2 + 1, m), :] = x

    # --- residual blocks: everything stays in VMEM, skip-add fused ---
    for (wa, ba, wb, bb) in blocks:
        y = leaky(conv9(tap_fp(fp_x), wa, ba)) * mask
        fp_y[pl.ds(p2 + 1, m), :] = y
        z = conv9(tap_fp(fp_y), wb, bb) + fp_x[pl.ds(p2 + 1, m), :]
        fp_x[pl.ds(p2 + 1, m), :] = z * mask

    # --- score conv (Cout=1); junk columns dropped by the caller ---
    o_ref[...] = conv9(tap_fp(fp_x), w_sc, b_sc)


def model2_forward(x, m2, *, slope):
    """x: (N,H1,W1,Cin) bf16 -> score (N,H2,W2,1) f32, one fused pallas_call."""
    n, h1, w1, cin = x.shape
    h2, w2 = (h1 + 1) // 2, (w1 + 1) // 2
    p2 = w2 + 2
    m = h2 * p2
    c2 = m2["head"]["cout"]
    rows_in = (h2 + 2) * p2
    rows_fp = rows_in + 2
    n_blocks = len(m2["blocks"])

    phases = _phase_inputs(x, h2, w2)
    col = jnp.arange(m, dtype=jnp.int32) % p2
    mask = (col < w2).astype(jnp.float32).reshape(m, 1)

    inputs = list(phases) + [mask, m2["head"]["w"], m2["head"]["b"]]
    in_specs = ([pl.BlockSpec((None, rows_in, cin), lambda b: (b, 0, 0))] * 4
                + [pl.BlockSpec((m, 1), lambda b: (0, 0)),
                   pl.BlockSpec((9, cin, c2), lambda b: (0, 0, 0)),
                   pl.BlockSpec((1, c2), lambda b: (0, 0))])
    for (ca, cb) in m2["blocks"]:
        inputs += [ca["w"], ca["b"], cb["w"], cb["b"]]
        in_specs += [pl.BlockSpec((9, c2, c2), lambda b: (0, 0, 0)),
                     pl.BlockSpec((1, c2), lambda b: (0, 0)),
                     pl.BlockSpec((9, c2, c2), lambda b: (0, 0, 0)),
                     pl.BlockSpec((1, c2), lambda b: (0, 0))]
    inputs += [m2["score"]["w"], m2["score"]["b"]]
    in_specs += [pl.BlockSpec((9, c2, 1), lambda b: (0, 0, 0)),
                 pl.BlockSpec((1, 1), lambda b: (0, 0))]

    flops = int(2 * n * m * 9 * (cin * c2 + n_blocks * 2 * c2 * c2 + c2))
    bytes_acc = int(4 * n * rows_in * cin * 2 + n * m * 4 + n * m * 4
                    + 9 * (cin * c2 + 2 * n_blocks * c2 * c2 + c2) * 2)

    kern = functools.partial(_model2_kernel, n_blocks=n_blocks,
                             h2=h2, p2=p2, slope=slope)
    out = pl.pallas_call(
        kern,
        out_shape=jax.ShapeDtypeStruct((n, m, 1), jnp.float32),
        grid_spec=pltpu.PrefetchScalarGridSpec(
            num_scalar_prefetch=0,
            grid=(n,),
            in_specs=in_specs,
            out_specs=pl.BlockSpec((None, m, 1), lambda b: (b, 0, 0)),
            scratch_shapes=[pltpu.VMEM((rows_fp, c2), jnp.float32),
                            pltpu.VMEM((rows_fp, c2), jnp.float32)],
        ),
        compiler_params=pltpu.CompilerParams(
            dimension_semantics=("parallel",),
            vmem_limit_bytes=VMEM_LIMIT),
        cost_estimate=pl.CostEstimate(flops=flops, transcendentals=0,
                                      bytes_accessed=bytes_acc),
    )(*inputs)
    return out.reshape(n, h2, p2, 1)[:, :, :w2, :]


# ----------------------------------------------------------------------------
# Parameter construction (deterministic, synthetic; stored per-tap, unpadded)
# ----------------------------------------------------------------------------
def _conv_params(key, kh, kw, cin, cout):
    kw_, kb_ = jax.random.split(key)
    scale = 1.0 / math.sqrt(kh * kw * cin)
    w = jax.random.normal(kw_, (kh * kw, cin, cout), jnp.float32) * scale
    b = jax.random.normal(kb_, (1, cout), jnp.float32) * 0.01
    return {"w": w.astype(jnp.bfloat16), "b": b,
            "kh": kh, "kw": kw, "cin": cin, "cout": cout}


def init_netD(key, *, in_ch=3, hint_ch=3, ngf=8, n_downsampling=2, n_blocks=1):
    keys = iter(jax.random.split(key, 64))
    params = {"model1": [], "model2": {"blocks": []}}

    # model1: stride-2 convs, input -> features at H/2^n_downsampling
    c = ngf
    params["model1"].append(_conv_params(next(keys), 3, 3, in_ch, c))
    for _ in range(n_downsampling - 1):
        params["model1"].append(_conv_params(next(keys), 3, 3, c, c * 2))
        c = c * 2
    c1 = c

    # model2: conv on [features ++ hints], resblocks, 1-channel score conv
    c2 = c1 * 2
    params["model2"]["head"] = _conv_params(next(keys), 3, 3, c1 + hint_ch, c2)
    for _ in range(n_blocks):
        params["model2"]["blocks"].append(
            (_conv_params(next(keys), 3, 3, c2, c2),
             _conv_params(next(keys), 3, 3, c2, c2)))
    params["model2"]["score"] = _conv_params(next(keys), 3, 3, c2, 1)
    params["meta"] = dict(in_ch=in_ch, hint_ch=hint_ch,
                          n_downsampling=n_downsampling)
    return params


# ----------------------------------------------------------------------------
# Forward pass (mirrors netD.forward)
# ----------------------------------------------------------------------------
def netD_forward(params, x_nchw, hints_nchw=None):
    slope = LEAKY_SLOPE
    meta = params["meta"]

    # single layout conversion at the API boundary; bf16 NHWC inside
    x = jnp.transpose(x_nchw, (0, 2, 3, 1)).astype(jnp.bfloat16)

    # --- x = self.D.model1(input) ---
    for layer in params["model1"]:
        x = conv2d_s2(x, layer, slope=slope)

    n, h, w, _ = x.shape
    # --- if hints is None: hints = get_hints(input) ---
    if hints_nchw is None:
        # TODO(synk): real get_hints() draws random color-hint masks on the CPU
        # (PIL / torchvision) — replaced with deterministic synthetic hints.
        hints_nhwc = jax.random.uniform(
            jax.random.PRNGKey(1), (n, h, w, meta["hint_ch"]),
            jnp.float32) * 2.0 - 1.0
        hints_nchw = jnp.transpose(hints_nhwc, (0, 3, 1, 2))
    else:
        hints_nhwc = jnp.transpose(hints_nchw, (0, 2, 3, 1)).astype(jnp.float32)

    # --- x = torch.cat([x, hints], 1)  (channel axis == last in NHWC) ---
    x = jnp.concatenate([x, hints_nhwc.astype(jnp.bfloat16)], axis=-1)

    # --- score = self.D.model2(x): single fused Pallas kernel ---
    score = model2_forward(x, params["model2"], slope=slope)

    score_nchw = jnp.transpose(score, (0, 3, 1, 2))
    return score_nchw, hints_nchw


# ----------------------------------------------------------------------------
if __name__ == "__main__":
    key = jax.random.PRNGKey(0)
    k_param, k_input = jax.random.split(key)

    hp = {"D_n_downsampling": 2, "D_n_blocks": 1}
    params = init_netD(k_param, in_ch=3, hint_ch=3, ngf=8,
                       n_downsampling=hp["D_n_downsampling"],
                       n_blocks=hp["D_n_blocks"])

    # small NCHW input consistent with the module (normalized RGB image)
    x = jax.random.normal(k_input, (2, 3, 16, 16), jnp.float32)

    fwd = jax.jit(functools.partial(netD_forward, params))
    score, hints = fwd(x)
    score = jax.block_until_ready(score)
    hints = jax.block_until_ready(hints)

    assert score.shape == (2, 1, 2, 2), score.shape
    assert hints.shape == (2, 3, 4, 4), hints.shape
    print("KERNEL_OK")
</pallas_src>

<mosaic_0001>
module attributes {stable_mosaic.version = 11 : i64} {
  func.func @_conv_s2_kernel(%arg0: i32, %arg1: memref<1x100x3xbf16, #tpu.memory_space<vmem>>, %arg2: memref<1x100x3xbf16, #tpu.memory_space<vmem>>, %arg3: memref<1x100x3xbf16, #tpu.memory_space<vmem>>, %arg4: memref<1x100x3xbf16, #tpu.memory_space<vmem>>, %arg5: memref<9x3x8xbf16, #tpu.memory_space<vmem>>, %arg6: memref<1x8xf32, #tpu.memory_space<vmem>>, %arg7: memref<1x80x8xbf16, #tpu.memory_space<vmem>>) attributes {dimension_semantics = [#tpu.dimension_semantics<parallel>], iteration_bounds = array<i64: 2>, scalar_prefetch = 0 : i64, scratch_operands = 0 : i64, tpu.core_type = #tpu.core_type<tc>, window_params = [{transform_indices = @transform_0, window_bounds = array<i64: 1, 100, 3>}, {transform_indices = @transform_1, window_bounds = array<i64: 1, 100, 3>}, {transform_indices = @transform_2, window_bounds = array<i64: 1, 100, 3>}, {transform_indices = @transform_3, window_bounds = array<i64: 1, 100, 3>}, {pipeline_mode = #tpu.pipeline_mode<synchronous>, transform_indices = @transform_4, window_bounds = array<i64: 9, 3, 8>}, {pipeline_mode = #tpu.pipeline_mode<synchronous>, transform_indices = @transform_5, window_bounds = array<i64: 1, 8>}, {transform_indices = @transform_6, window_bounds = array<i64: 1, 80, 8>}]} {
    %cst = arith.constant 0.000000e+00 : f32
    %0 = vector.broadcast %cst : f32 to vector<80x8xf32>
    %c0 = arith.constant 0 : index
    %c0_0 = arith.constant 0 : index
    %c0_1 = arith.constant 0 : index
    %1 = vector.load %arg1[%c0, %c0_0, %c0_1] : memref<1x100x3xbf16, #tpu.memory_space<vmem>>, vector<1x80x3xbf16>
    %2 = vector.shape_cast %1 : vector<1x80x3xbf16> to vector<80x3xbf16>
    %c0_2 = arith.constant 0 : index
    %c0_3 = arith.constant 0 : index
    %c0_4 = arith.constant 0 : index
    %3 = vector.load %arg5[%c0_2, %c0_3, %c0_4] : memref<9x3x8xbf16, #tpu.memory_space<vmem>>, vector<1x3x8xbf16>
    %4 = vector.shape_cast %3 : vector<1x3x8xbf16> to vector<3x8xbf16>
    %cst_5 = arith.constant dense<0.000000e+00> : vector<80x8xf32>
    %5 = tpu.matmul %2, %4, %cst_5 {dimension_numbers = #tpu.dot_dimension_numbers<[1], [0], [0], [1], [0, 0, 1, 1], [], []>} : vector<80x3xbf16>, vector<3x8xbf16>, vector<80x8xf32> -> vector<80x8xf32>
    %6 = arith.addf %0, %5 : vector<80x8xf32>
    %c0_6 = arith.constant 0 : index
    %c0_7 = arith.constant 0 : index
    %c0_8 = arith.constant 0 : index
    %7 = vector.load %arg2[%c0_6, %c0_7, %c0_8] : memref<1x100x3xbf16, #tpu.memory_space<vmem>>, vector<1x80x3xbf16>
    %8 = vector.shape_cast %7 : vector<1x80x3xbf16> to vector<80x3xbf16>
    %c1 = arith.constant 1 : index
    %c0_9 = arith.constant 0 : index
    %c0_10 = arith.constant 0 : index
    %9 = vector.load %arg5[%c1, %c0_9, %c0_10] : memref<9x3x8xbf16, #tpu.memory_space<vmem>>, vector<1x3x8xbf16>
    %10 = vector.shape_cast %9 : vector<1x3x8xbf16> to vector<3x8xbf16>
    %cst_11 = arith.constant dense<0.000000e+00> : vector<80x8xf32>
    %11 = tpu.matmul %8, %10, %cst_11 {dimension_numbers = #tpu.dot_dimension_numbers<[1], [0], [0], [1], [0, 0, 1, 1], [], []>} : vector<80x3xbf16>, vector<3x8xbf16>, vector<80x8xf32> -> vector<80x8xf32>
    %12 = arith.addf %6, %11 : vector<80x8xf32>
    %c0_12 = arith.constant 0 : index
    %c1_13 = arith.constant 1 : index
    %c0_14 = arith.constant 0 : index
    %13 = vector.load %arg1[%c0_12, %c1_13, %c0_14] : memref<1x100x3xbf16, #tpu.memory_space<vmem>>, vector<1x80x3xbf16>
    %14 = vector.shape_cast %13 : vector<1x80x3xbf16> to vector<80x3xbf16>
    %c2 = arith.constant 2 : index
    %c0_15 = arith.constant 0 : index
    %c0_16 = arith.constant 0 : index
    %15 = vector.load %arg5[%c2, %c0_15, %c0_16] : memref<9x3x8xbf16, #tpu.memory_space<vmem>>, vector<1x3x8xbf16>
    %16 = vector.shape_cast %15 : vector<1x3x8xbf16> to vector<3x8xbf16>
    %cst_17 = arith.constant dense<0.000000e+00> : vector<80x8xf32>
    %17 = tpu.matmul %14, %16, %cst_17 {dimension_numbers = #tpu.dot_dimension_numbers<[1], [0], [0], [1], [0, 0, 1, 1], [], []>} : vector<80x3xbf16>, vector<3x8xbf16>, vector<80x8xf32> -> vector<80x8xf32>
    %18 = arith.addf %12, %17 : vector<80x8xf32>
    %c0_18 = arith.constant 0 : index
    %c0_19 = arith.constant 0 : index
    %c0_20 = arith.constant 0 : index
    %19 = vector.load %arg3[%c0_18, %c0_19, %c0_20] : memref<1x100x3xbf16, #tpu.memory_space<vmem>>, vector<1x80x3xbf16>
    %20 = vector.shape_cast %19 : vector<1x80x3xbf16> to vector<80x3xbf16>
    %c3 = arith.constant 3 : index
    %c0_21 = arith.constant 0 : index
    %c0_22 = arith.constant 0 : index
    %21 = vector.load %arg5[%c3, %c0_21, %c0_22] : memref<9x3x8xbf16, #tpu.memory_space<vmem>>, vector<1x3x8xbf16>
    %22 = vector.shape_cast %21 : vector<1x3x8xbf16> to vector<3x8xbf16>
    %cst_23 = arith.constant dense<0.000000e+00> : vector<80x8xf32>
    %23 = tpu.matmul %20, %22, %cst_23 {dimension_numbers = #tpu.dot_dimension_numbers<[1], [0], [0], [1], [0, 0, 1, 1], [], []>} : vector<80x3xbf16>, vector<3x8xbf16>, vector<80x8xf32> -> vector<80x8xf32>
    %24 = arith.addf %18, %23 : vector<80x8xf32>
    %c0_24 = arith.constant 0 : index
    %c0_25 = arith.constant 0 : index
    %c0_26 = arith.constant 0 : index
    %25 = vector.load %arg4[%c0_24, %c0_25, %c0_26] : memref<1x100x3xbf16, #tpu.memory_space<vmem>>, vector<1x80x3xbf16>
    %26 = vector.shape_cast %25 : vector<1x80x3xbf16> to vector<80x3xbf16>
    %c4 = arith.constant 4 : index
    %c0_27 = arith.constant 0 : index
    %c0_28 = arith.constant 0 : index
    %27 = vector.load %arg5[%c4, %c0_27, %c0_28] : memref<9x3x8xbf16, #tpu.memory_space<vmem>>, vector<1x3x8xbf16>
    %28 = vector.shape_cast %27 : vector<1x3x8xbf16> to vector<3x8xbf16>
    %cst_29 = arith.constant dense<0.000000e+00> : vector<80x8xf32>
    %29 = tpu.matmul %26, %28, %cst_29 {dimension_numbers = #tpu.dot_dimension_numbers<[1], [0], [0], [1], [0, 0, 1, 1], [], []>} : vector<80x3xbf16>, vector<3x8xbf16>, vector<80x8xf32> -> vector<80x8xf32>
    %30 = arith.addf %24, %29 : vector<80x8xf32>
    %c0_30 = arith.constant 0 : index
    %c1_31 = arith.constant 1 : index
    %c0_32 = arith.constant 0 : index
    %31 = vector.load %arg3[%c0_30, %c1_31, %c0_32] : memref<1x100x3xbf16, #tpu.memory_space<vmem>>, vector<1x80x3xbf16>
    %32 = vector.shape_cast %31 : vector<1x80x3xbf16> to vector<80x3xbf16>
    %c5 = arith.constant 5 : index
    %c0_33 = arith.constant 0 : index
    %c0_34 = arith.constant 0 : index
    %33 = vector.load %arg5[%c5, %c0_33, %c0_34] : memref<9x3x8xbf16, #tpu.memory_space<vmem>>, vector<1x3x8xbf16>
    %34 = vector.shape_cast %33 : vector<1x3x8xbf16> to vector<3x8xbf16>
    %cst_35 = arith.constant dense<0.000000e+00> : vector<80x8xf32>
    %35 = tpu.matmul %32, %34, %cst_35 {dimension_numbers = #tpu.dot_dimension_numbers<[1], [0], [0], [1], [0, 0, 1, 1], [], []>} : vector<80x3xbf16>, vector<3x8xbf16>, vector<80x8xf32> -> vector<80x8xf32>
    %36 = arith.addf %30, %35 : vector<80x8xf32>
    %c0_36 = arith.constant 0 : index
    %c10 = arith.constant 10 : index
    %c0_37 = arith.constant 0 : index
    %37 = vector.load %arg1[%c0_36, %c10, %c0_37] : memref<1x100x3xbf16, #tpu.memory_space<vmem>>, vector<1x80x3xbf16>
    %38 = vector.shape_cast %37 : vector<1x80x3xbf16> to vector<80x3xbf16>
    %c6 = arith.constant 6 : index
    %c0_38 = arith.constant 0 : index
    %c0_39 = arith.constant 0 : index
    %39 = vector.load %arg5[%c6, %c0_38, %c0_39] : memref<9x3x8xbf16, #tpu.memory_space<vmem>>, vector<1x3x8xbf16>
    %40 = vector.shape_cast %39 : vector<1x3x8xbf16> to vector<3x8xbf16>
    %cst_40 = arith.constant dense<0.000000e+00> : vector<80x8xf32>
    %41 = tpu.matmul %38, %40, %cst_40 {dimension_numbers = #tpu.dot_dimension_numbers<[1], [0], [0], [1], [0, 0, 1, 1], [], []>} : vector<80x3xbf16>, vector<3x8xbf16>, vector<80x8xf32> -> vector<80x8xf32>
    %42 = arith.addf %36, %41 : vector<80x8xf32>
    %c0_41 = arith.constant 0 : index
    %c10_42 = arith.constant 10 : index
    %c0_43 = arith.constant 0 : index
    %43 = vector.load %arg2[%c0_41, %c10_42, %c0_43] : memref<1x100x3xbf16, #tpu.memory_space<vmem>>, vector<1x80x3xbf16>
    %44 = vector.shape_cast %43 : vector<1x80x3xbf16> to vector<80x3xbf16>
    %c7 = arith.constant 7 : index
    %c0_44 = arith.constant 0 : index
    %c0_45 = arith.constant 0 : index
    %45 = vector.load %arg5[%c7, %c0_44, %c0_45] : memref<9x3x8xbf16, #tpu.memory_space<vmem>>, vector<1x3x8xbf16>
    %46 = vector.shape_cast %45 : vector<1x3x8xbf16> to vector<3x8xbf16>
    %cst_46 = arith.constant dense<0.000000e+00> : vector<80x8xf32>
    %47 = tpu.matmul %44, %46, %cst_46 {dimension_numbers = #tpu.dot_dimension_numbers<[1], [0], [0], [1], [0, 0, 1, 1], [], []>} : vector<80x3xbf16>, vector<3x8xbf16>, vector<80x8xf32> -> vector<80x8xf32>
    %48 = arith.addf %42, %47 : vector<80x8xf32>
    %c0_47 = arith.constant 0 : index
    %c11 = arith.constant 11 : index
    %c0_48 = arith.constant 0 : index
    %49 = vector.load %arg1[%c0_47, %c11, %c0_48] : memref<1x100x3xbf16, #tpu.memory_space<vmem>>, vector<1x80x3xbf16>
    %50 = vector.shape_cast %49 : vector<1x80x3xbf16> to vector<80x3xbf16>
    %c8 = arith.constant 8 : index
    %c0_49 = arith.constant 0 : index
    %c0_50 = arith.constant 0 : index
    %51 = vector.load %arg5[%c8, %c0_49, %c0_50] : memref<9x3x8xbf16, #tpu.memory_space<vmem>>, vector<1x3x8xbf16>
    %52 = vector.shape_cast %51 : vector<1x3x8xbf16> to vector<3x8xbf16>
    %cst_51 = arith.constant dense<0.000000e+00> : vector<80x8xf32>
    %53 = tpu.matmul %50, %52, %cst_51 {dimension_numbers = #tpu.dot_dimension_numbers<[1], [0], [0], [1], [0, 0, 1, 1], [], []>} : vector<80x3xbf16>, vector<3x8xbf16>, vector<80x8xf32> -> vector<80x8xf32>
    %54 = arith.addf %48, %53 : vector<80x8xf32>
    %c0_52 = arith.constant 0 : index
    %c0_53 = arith.constant 0 : index
    %55 = vector.load %arg6[%c0_52, %c0_53] : memref<1x8xf32, #tpu.memory_space<vmem>>, vector<1x8xf32>
    %56 = vector.broadcast %55 : vector<1x8xf32> to vector<80x8xf32>
    %57 = arith.addf %54, %56 : vector<80x8xf32>
    %cst_54 = arith.constant 0.000000e+00 : f32
    %58 = vector.broadcast %cst_54 : f32 to vector<80x8xf32>
    %59 = arith.cmpf oge, %57, %58 : vector<80x8xf32>
    %cst_55 = arith.constant 2.000000e-01 : f32
    %60 = vector.broadcast %cst_55 : f32 to vector<80x8xf32>
    %61 = arith.mulf %60, %57 : vector<80x8xf32>
    %62 = arith.select %59, %57, %61 : vector<80x8xi1>, vector<80x8xf32>
    %63 = arith.truncf %62 : vector<80x8xf32> to vector<80x8xbf16>
    %c0_56 = arith.constant 0 : index
    %c0_57 = arith.constant 0 : index
    %c0_58 = arith.constant 0 : index
    %64 = vector.load %arg7[%c0_56, %c0_57, %c0_58] : memref<1x80x8xbf16, #tpu.memory_space<vmem>>, vector<1x80x8xbf16>
    %65 = vector.shape_cast %64 : vector<1x80x8xbf16> to vector<80x8xbf16>
    %66 = vector.shape_cast %63 : vector<80x8xbf16> to vector<1x80x8xbf16>
    tpu.vector_store %arg7[%c0_56, %c0_57, %c0_58], %66 {strides = array<i32>} : memref<1x80x8xbf16, #tpu.memory_space<vmem>>, vector<1x80x8xbf16>,
    return
  }
  func.func @transform_0(%arg0: i32) -> (i32, i32, i32) {
    %c0_i32 = arith.constant 0 : i32
    %c0_i32_0 = arith.constant 0 : i32
    %c0_i32_1 = arith.constant 0 : i32
    return %arg0, %c0_i32, %c0_i32_0 : i32, i32, i32
  }
  func.func @transform_1(%arg0: i32) -> (i32, i32, i32) {
    %c0_i32 = arith.constant 0 : i32
    %c0_i32_0 = arith.constant 0 : i32
    %c0_i32_1 = arith.constant 0 : i32
    return %arg0, %c0_i32, %c0_i32_0 : i32, i32, i32
  }
  func.func @transform_2(%arg0: i32) -> (i32, i32, i32) {
    %c0_i32 = arith.constant 0 : i32
    %c0_i32_0 = arith.constant 0 : i32
    %c0_i32_1 = arith.constant 0 : i32
    return %arg0, %c0_i32, %c0_i32_0 : i32, i32, i32
  }
  func.func @transform_3(%arg0: i32) -> (i32, i32, i32) {
    %c0_i32 = arith.constant 0 : i32
    %c0_i32_0 = arith.constant 0 : i32
    %c0_i32_1 = arith.constant 0 : i32
    return %arg0, %c0_i32, %c0_i32_0 : i32, i32, i32
  }
  func.func @transform_4(%arg0: i32) -> (i32, i32, i32) {
    %c0_i32 = arith.constant 0 : i32
    %c0_i32_0 = arith.constant 0 : i32
    %c0_i32_1 = arith.constant 0 : i32
    %c0_i32_2 = arith.constant 0 : i32
    return %c0_i32, %c0_i32_0, %c0_i32_1 : i32, i32, i32
  }
  func.func @transform_5(%arg0: i32) -> (i32, i32) {
    %c0_i32 = arith.constant 0 : i32
    %c0_i32_0 = arith.constant 0 : i32
    %c0_i32_1 = arith.constant 0 : i32
    return %c0_i32, %c0_i32_0 : i32, i32
  }
  func.func @transform_6(%arg0: i32) -> (i32, i32, i32) {
    %c0_i32 = arith.constant 0 : i32
    %c0_i32_0 = arith.constant 0 : i32
    %c0_i32_1 = arith.constant 0 : i32
    return %arg0, %c0_i32, %c0_i32_0 : i32, i32, i32
  }
}

module attributes {stable_mosaic.version = 11 : i64} {
  func.func @_conv_s2_kernel(%arg0: i32, %arg1: memref<1x36x8xbf16, #tpu.memory_space<vmem>>, %arg2: memref<1x36x8xbf16, #tpu.memory_space<vmem>>, %arg3: memref<1x36x8xbf16, #tpu.memory_space<vmem>>, %arg4: memref<1x36x8xbf16, #tpu.memory_space<vmem>>, %arg5: memref<9x8x16xbf16, #tpu.memory_space<vmem>>, %arg6: memref<1x16xf32, #tpu.memory_space<vmem>>, %arg7: memref<1x24x16xbf16, #tpu.memory_space<vmem>>) attributes {dimension_semantics = [#tpu.dimension_semantics<parallel>], iteration_bounds = array<i64: 2>, scalar_prefetch = 0 : i64, scratch_operands = 0 : i64, tpu.core_type = #tpu.core_type<tc>, window_params = [{transform_indices = @transform_0, window_bounds = array<i64: 1, 36, 8>}, {transform_indices = @transform_1, window_bounds = array<i64: 1, 36, 8>}, {transform_indices = @transform_2, window_bounds = array<i64: 1, 36, 8>}, {transform_indices = @transform_3, window_bounds = array<i64: 1, 36, 8>}, {pipeline_mode = #tpu.pipeline_mode<synchronous>, transform_indices = @transform_4, window_bounds = array<i64: 9, 8, 16>}, {pipeline_mode = #tpu.pipeline_mode<synchronous>, transform_indices = @transform_5, window_bounds = array<i64: 1, 16>}, {transform_indices = @transform_6, window_bounds = array<i64: 1, 24, 16>}]} {
    %cst = arith.constant 0.000000e+00 : f32
    %0 = vector.broadcast %cst : f32 to vector<24x16xf32>
    %c0 = arith.constant 0 : index
    %c0_0 = arith.constant 0 : index
    %c0_1 = arith.constant 0 : index
    %1 = vector.load %arg1[%c0, %c0_0, %c0_1] : memref<1x36x8xbf16, #tpu.memory_space<vmem>>, vector<1x24x8xbf16>
    %2 = vector.shape_cast %1 : vector<1x24x8xbf16> to vector<24x8xbf16>
    %c0_2 = arith.constant 0 : index
    %c0_3 = arith.constant 0 : index
    %c0_4 = arith.constant 0 : index
    %3 = vector.load %arg5[%c0_2, %c0_3, %c0_4] : memref<9x8x16xbf16, #tpu.memory_space<vmem>>, vector<1x8x16xbf16>
    %4 = vector.shape_cast %3 : vector<1x8x16xbf16> to vector<8x16xbf16>
    %cst_5 = arith.constant dense<0.000000e+00> : vector<24x16xf32>
    %5 = tpu.matmul %2, %4, %cst_5 {dimension_numbers = #tpu.dot_dimension_numbers<[1], [0], [0], [1], [0, 0, 1, 1], [], []>} : vector<24x8xbf16>, vector<8x16xbf16>, vector<24x16xf32> -> vector<24x16xf32>
    %6 = arith.addf %0, %5 : vector<24x16xf32>
    %c0_6 = arith.constant 0 : index
    %c0_7 = arith.constant 0 : index
    %c0_8 = arith.constant 0 : index
    %7 = vector.load %arg2[%c0_6, %c0_7, %c0_8] : memref<1x36x8xbf16, #tpu.memory_space<vmem>>, vector<1x24x8xbf16>
    %8 = vector.shape_cast %7 : vector<1x24x8xbf16> to vector<24x8xbf16>
    %c1 = arith.constant 1 : index
    %c0_9 = arith.constant 0 : index
    %c0_10 = arith.constant 0 : index
    %9 = vector.load %arg5[%c1, %c0_9, %c0_10] : memref<9x8x16xbf16, #tpu.memory_space<vmem>>, vector<1x8x16xbf16>
    %10 = vector.shape_cast %9 : vector<1x8x16xbf16> to vector<8x16xbf16>
    %cst_11 = arith.constant dense<0.000000e+00> : vector<24x16xf32>
    %11 = tpu.matmul %8, %10, %cst_11 {dimension_numbers = #tpu.dot_dimension_numbers<[1], [0], [0], [1], [0, 0, 1, 1], [], []>} : vector<24x8xbf16>, vector<8x16xbf16>, vector<24x16xf32> -> vector<24x16xf32>
    %12 = arith.addf %6, %11 : vector<24x16xf32>
    %c0_12 = arith.constant 0 : index
    %c1_13 = arith.constant 1 : index
    %c0_14 = arith.constant 0 : index
    %13 = vector.load %arg1[%c0_12, %c1_13, %c0_14] : memref<1x36x8xbf16, #tpu.memory_space<vmem>>, vector<1x24x8xbf16>
    %14 = vector.shape_cast %13 : vector<1x24x8xbf16> to vector<24x8xbf16>
    %c2 = arith.constant 2 : index
    %c0_15 = arith.constant 0 : index
    %c0_16 = arith.constant 0 : index
    %15 = vector.load %arg5[%c2, %c0_15, %c0_16] : memref<9x8x16xbf16, #tpu.memory_space<vmem>>, vector<1x8x16xbf16>
    %16 = vector.shape_cast %15 : vector<1x8x16xbf16> to vector<8x16xbf16>
    %cst_17 = arith.constant dense<0.000000e+00> : vector<24x16xf32>
    %17 = tpu.matmul %14, %16, %cst_17 {dimension_numbers = #tpu.dot_dimension_numbers<[1], [0], [0], [1], [0, 0, 1, 1], [], []>} : vector<24x8xbf16>, vector<8x16xbf16>, vector<24x16xf32> -> vector<24x16xf32>
    %18 = arith.addf %12, %17 : vector<24x16xf32>
    %c0_18 = arith.constant 0 : index
    %c0_19 = arith.constant 0 : index
    %c0_20 = arith.constant 0 : index
    %19 = vector.load %arg3[%c0_18, %c0_19, %c0_20] : memref<1x36x8xbf16, #tpu.memory_space<vmem>>, vector<1x24x8xbf16>
    %20 = vector.shape_cast %19 : vector<1x24x8xbf16> to vector<24x8xbf16>
    %c3 = arith.constant 3 : index
    %c0_21 = arith.constant 0 : index
    %c0_22 = arith.constant 0 : index
    %21 = vector.load %arg5[%c3, %c0_21, %c0_22] : memref<9x8x16xbf16, #tpu.memory_space<vmem>>, vector<1x8x16xbf16>
    %22 = vector.shape_cast %21 : vector<1x8x16xbf16> to vector<8x16xbf16>
    %cst_23 = arith.constant dense<0.000000e+00> : vector<24x16xf32>
    %23 = tpu.matmul %20, %22, %cst_23 {dimension_numbers = #tpu.dot_dimension_numbers<[1], [0], [0], [1], [0, 0, 1, 1], [], []>} : vector<24x8xbf16>, vector<8x16xbf16>, vector<24x16xf32> -> vector<24x16xf32>
    %24 = arith.addf %18, %23 : vector<24x16xf32>
    %c0_24 = arith.constant 0 : index
    %c0_25 = arith.constant 0 : index
    %c0_26 = arith.constant 0 : index
    %25 = vector.load %arg4[%c0_24, %c0_25, %c0_26] : memref<1x36x8xbf16, #tpu.memory_space<vmem>>, vector<1x24x8xbf16>
    %26 = vector.shape_cast %25 : vector<1x24x8xbf16> to vector<24x8xbf16>
    %c4 = arith.constant 4 : index
    %c0_27 = arith.constant 0 : index
    %c0_28 = arith.constant 0 : index
    %27 = vector.load %arg5[%c4, %c0_27, %c0_28] : memref<9x8x16xbf16, #tpu.memory_space<vmem>>, vector<1x8x16xbf16>
    %28 = vector.shape_cast %27 : vector<1x8x16xbf16> to vector<8x16xbf16>
    %cst_29 = arith.constant dense<0.000000e+00> : vector<24x16xf32>
    %29 = tpu.matmul %26, %28, %cst_29 {dimension_numbers = #tpu.dot_dimension_numbers<[1], [0], [0], [1], [0, 0, 1, 1], [], []>} : vector<24x8xbf16>, vector<8x16xbf16>, vector<24x16xf32> -> vector<24x16xf32>
    %30 = arith.addf %24, %29 : vector<24x16xf32>
    %c0_30 = arith.constant 0 : index
    %c1_31 = arith.constant 1 : index
    %c0_32 = arith.constant 0 : index
    %31 = vector.load %arg3[%c0_30, %c1_31, %c0_32] : memref<1x36x8xbf16, #tpu.memory_space<vmem>>, vector<1x24x8xbf16>
    %32 = vector.shape_cast %31 : vector<1x24x8xbf16> to vector<24x8xbf16>
    %c5 = arith.constant 5 : index
    %c0_33 = arith.constant 0 : index
    %c0_34 = arith.constant 0 : index
    %33 = vector.load %arg5[%c5, %c0_33, %c0_34] : memref<9x8x16xbf16, #tpu.memory_space<vmem>>, vector<1x8x16xbf16>
    %34 = vector.shape_cast %33 : vector<1x8x16xbf16> to vector<8x16xbf16>
    %cst_35 = arith.constant dense<0.000000e+00> : vector<24x16xf32>
    %35 = tpu.matmul %32, %34, %cst_35 {dimension_numbers = #tpu.dot_dimension_numbers<[1], [0], [0], [1], [0, 0, 1, 1], [], []>} : vector<24x8xbf16>, vector<8x16xbf16>, vector<24x16xf32> -> vector<24x16xf32>
    %36 = arith.addf %30, %35 : vector<24x16xf32>
    %c0_36 = arith.constant 0 : index
    %c6 = arith.constant 6 : index
    %c0_37 = arith.constant 0 : index
    %37 = vector.load %arg1[%c0_36, %c6, %c0_37] : memref<1x36x8xbf16, #tpu.memory_space<vmem>>, vector<1x24x8xbf16>
    %38 = vector.shape_cast %37 : vector<1x24x8xbf16> to vector<24x8xbf16>
    %c6_38 = arith.constant 6 : index
    %c0_39 = arith.constant 0 : index
    %c0_40 = arith.constant 0 : index
    %39 = vector.load %arg5[%c6_38, %c0_39, %c0_40] : memref<9x8x16xbf16, #tpu.memory_space<vmem>>, vector<1x8x16xbf16>
    %40 = vector.shape_cast %39 : vector<1x8x16xbf16> to vector<8x16xbf16>
    %cst_41 = arith.constant dense<0.000000e+00> : vector<24x16xf32>
    %41 = tpu.matmul %38, %40, %cst_41 {dimension_numbers = #tpu.dot_dimension_numbers<[1], [0], [0], [1], [0, 0, 1, 1], [], []>} : vector<24x8xbf16>, vector<8x16xbf16>, vector<24x16xf32> -> vector<24x16xf32>
    %42 = arith.addf %36, %41 : vector<24x16xf32>
    %c0_42 = arith.constant 0 : index
    %c6_43 = arith.constant 6 : index
    %c0_44 = arith.constant 0 : index
    %43 = vector.load %arg2[%c0_42, %c6_43, %c0_44] : memref<1x36x8xbf16, #tpu.memory_space<vmem>>, vector<1x24x8xbf16>
    %44 = vector.shape_cast %43 : vector<1x24x8xbf16> to vector<24x8xbf16>
    %c7 = arith.constant 7 : index
    %c0_45 = arith.constant 0 : index
    %c0_46 = arith.constant 0 : index
    %45 = vector.load %arg5[%c7, %c0_45, %c0_46] : memref<9x8x16xbf16, #tpu.memory_space<vmem>>, vector<1x8x16xbf16>
    %46 = vector.shape_cast %45 : vector<1x8x16xbf16> to vector<8x16xbf16>
    %cst_47 = arith.constant dense<0.000000e+00> : vector<24x16xf32>
    %47 = tpu.matmul %44, %46, %cst_47 {dimension_numbers = #tpu.dot_dimension_numbers<[1], [0], [0], [1], [0, 0, 1, 1], [], []>} : vector<24x8xbf16>, vector<8x16xbf16>, vector<24x16xf32> -> vector<24x16xf32>
    %48 = arith.addf %42, %47 : vector<24x16xf32>
    %c0_48 = arith.constant 0 : index
    %c7_49 = arith.constant 7 : index
    %c0_50 = arith.constant 0 : index
    %49 = vector.load %arg1[%c0_48, %c7_49, %c0_50] : memref<1x36x8xbf16, #tpu.memory_space<vmem>>, vector<1x24x8xbf16>
    %50 = vector.shape_cast %49 : vector<1x24x8xbf16> to vector<24x8xbf16>
    %c8 = arith.constant 8 : index
    %c0_51 = arith.constant 0 : index
    %c0_52 = arith.constant 0 : index
    %51 = vector.load %arg5[%c8, %c0_51, %c0_52] : memref<9x8x16xbf16, #tpu.memory_space<vmem>>, vector<1x8x16xbf16>
    %52 = vector.shape_cast %51 : vector<1x8x16xbf16> to vector<8x16xbf16>
    %cst_53 = arith.constant dense<0.000000e+00> : vector<24x16xf32>
    %53 = tpu.matmul %50, %52, %cst_53 {dimension_numbers = #tpu.dot_dimension_numbers<[1], [0], [0], [1], [0, 0, 1, 1], [], []>} : vector<24x8xbf16>, vector<8x16xbf16>, vector<24x16xf32> -> vector<24x16xf32>
    %54 = arith.addf %48, %53 : vector<24x16xf32>
    %c0_54 = arith.constant 0 : index
    %c0_55 = arith.constant 0 : index
    %55 = vector.load %arg6[%c0_54, %c0_55] : memref<1x16xf32, #tpu.memory_space<vmem>>, vector<1x16xf32>
    %56 = vector.broadcast %55 : vector<1x16xf32> to vector<24x16xf32>
    %57 = arith.addf %54, %56 : vector<24x16xf32>
    %cst_56 = arith.constant 0.000000e+00 : f32
    %58 = vector.broadcast %cst_56 : f32 to vector<24x16xf32>
    %59 = arith.cmpf oge, %57, %58 : vector<24x16xf32>
    %cst_57 = arith.constant 2.000000e-01 : f32
    %60 = vector.broadcast %cst_57 : f32 to vector<24x16xf32>
    %61 = arith.mulf %60, %57 : vector<24x16xf32>
    %62 = arith.select %59, %57, %61 : vector<24x16xi1>, vector<24x16xf32>
    %63 = arith.truncf %62 : vector<24x16xf32> to vector<24x16xbf16>
    %c0_58 = arith.constant 0 : index
    %c0_59 = arith.constant 0 : index
    %c0_60 = arith.constant 0 : index
    %64 = vector.load %arg7[%c0_58, %c0_59, %c0_60] : memref<1x24x16xbf16, #tpu.memory_space<vmem>>, vector<1x24x16xbf16>
    %65 = vector.shape_cast %64 : vector<1x24x16xbf16> to vector<24x16xbf16>
    %66 = vector.shape_cast %63 : vector<24x16xbf16> to vector<1x24x16xbf16>
    tpu.vector_store %arg7[%c0_58, %c0_59, %c0_60], %66 {strides = array<i32>} : memref<1x24x16xbf16, #tpu.memory_space<vmem>>, vector<1x24x16xbf16>,
    return
  }
  func.func @transform_0(%arg0: i32) -> (i32, i32, i32) {
    %c0_i32 = arith.constant 0 : i32
    %c0_i32_0 = arith.constant 0 : i32
    %c0_i32_1 = arith.constant 0 : i32
    return %arg0, %c0_i32, %c0_i32_0 : i32, i32, i32
  }
  func.func @transform_1(%arg0: i32) -> (i32, i32, i32) {
    %c0_i32 = arith.constant 0 : i32
    %c0_i32_0 = arith.constant 0 : i32
    %c0_i32_1 = arith.constant 0 : i32
    return %arg0, %c0_i32, %c0_i32_0 : i32, i32, i32
  }
  func.func @transform_2(%arg0: i32) -> (i32, i32, i32) {
    %c0_i32 = arith.constant 0 : i32
    %c0_i32_0 = arith.constant 0 : i32
    %c0_i32_1 = arith.constant 0 : i32
    return %arg0, %c0_i32, %c0_i32_0 : i32, i32, i32
  }
  func.func @transform_3(%arg0: i32) -> (i32, i32, i32) {
    %c0_i32 = arith.constant 0 : i32
    %c0_i32_0 = arith.constant 0 : i32
    %c0_i32_1 = arith.constant 0 : i32
    return %arg0, %c0_i32, %c0_i32_0 : i32, i32, i32
  }
  func.func @transform_4(%arg0: i32) -> (i32, i32, i32) {
    %c0_i32 = arith.constant 0 : i32
    %c0_i32_0 = arith.constant 0 : i32
    %c0_i32_1 = arith.constant 0 : i32
    %c0_i32_2 = arith.constant 0 : i32
    return %c0_i32, %c0_i32_0, %c0_i32_1 : i32, i32, i32
  }
  func.func @transform_5(%arg0: i32) -> (i32, i32) {
    %c0_i32 = arith.constant 0 : i32
    %c0_i32_0 = arith.constant 0 : i32
    %c0_i32_1 = arith.constant 0 : i32
    return %c0_i32, %c0_i32_0 : i32, i32
  }
  func.func @transform_6(%arg0: i32) -> (i32, i32, i32) {
    %c0_i32 = arith.constant 0 : i32
    %c0_i32_0 = arith.constant 0 : i32
    %c0_i32_1 = arith.constant 0 : i32
    return %arg0, %c0_i32, %c0_i32_0 : i32, i32, i32
  }
}

module attributes {stable_mosaic.version = 11 : i64} {
  func.func @_model2_kernel(%arg0: i32, %arg1: memref<1x16x19xbf16, #tpu.memory_space<vmem>>, %arg2: memref<1x16x19xbf16, #tpu.memory_space<vmem>>, %arg3: memref<1x16x19xbf16, #tpu.memory_space<vmem>>, %arg4: memref<1x16x19xbf16, #tpu.memory_space<vmem>>, %arg5: memref<8x1xf32, #tpu.memory_space<vmem>>, %arg6: memref<9x19x32xbf16, #tpu.memory_space<vmem>>, %arg7: memref<1x32xf32, #tpu.memory_space<vmem>>, %arg8: memref<9x32x32xbf16, #tpu.memory_space<vmem>>, %arg9: memref<1x32xf32, #tpu.memory_space<vmem>>, %arg10: memref<9x32x32xbf16, #tpu.memory_space<vmem>>, %arg11: memref<1x32xf32, #tpu.memory_space<vmem>>, %arg12: memref<9x32x1xbf16, #tpu.memory_space<vmem>>, %arg13: memref<1x1xf32, #tpu.memory_space<vmem>>, %arg14: memref<1x8x1xf32, #tpu.memory_space<vmem>>, %arg15: memref<18x32xf32, #tpu.memory_space<vmem>>, %arg16: memref<18x32xf32, #tpu.memory_space<vmem>>) attributes {dimension_semantics = [#tpu.dimension_semantics<parallel>], iteration_bounds = array<i64: 2>, scalar_prefetch = 0 : i64, scratch_operands = 2 : i64, tpu.core_type = #tpu.core_type<tc>, window_params = [{transform_indices = @transform_0, window_bounds = array<i64: 1, 16, 19>}, {transform_indices = @transform_1, window_bounds = array<i64: 1, 16, 19>}, {transform_indices = @transform_2, window_bounds = array<i64: 1, 16, 19>}, {transform_indices = @transform_3, window_bounds = array<i64: 1, 16, 19>}, {pipeline_mode = #tpu.pipeline_mode<synchronous>, transform_indices = @transform_4, window_bounds = array<i64: 8, 1>}, {pipeline_mode = #tpu.pipeline_mode<synchronous>, transform_indices = @transform_5, window_bounds = array<i64: 9, 19, 32>}, {pipeline_mode = #tpu.pipeline_mode<synchronous>, transform_indices = @transform_6, window_bounds = array<i64: 1, 32>}, {pipeline_mode = #tpu.pipeline_mode<synchronous>, transform_indices = @transform_7, window_bounds = array<i64: 9, 32, 32>}, {pipeline_mode = #tpu.pipeline_mode<synchronous>, transform_indices = @transform_8, window_bounds = array<i64: 1, 32>}, {pipeline_mode = #tpu.pipeline_mode<synchronous>, transform_indices = @transform_9, window_bounds = array<i64: 9, 32, 32>}, {pipeline_mode = #tpu.pipeline_mode<synchronous>, transform_indices = @transform_10, window_bounds = array<i64: 1, 32>}, {pipeline_mode = #tpu.pipeline_mode<synchronous>, transform_indices = @transform_11, window_bounds = array<i64: 9, 32, 1>}, {pipeline_mode = #tpu.pipeline_mode<synchronous>, transform_indices = @transform_12, window_bounds = array<i64: 1, 1>}, {transform_indices = @transform_13, window_bounds = array<i64: 1, 8, 1>}]} {
    %c0 = arith.constant 0 : index
    %c0_0 = arith.constant 0 : index
    %0 = vector.load %arg5[%c0, %c0_0] : memref<8x1xf32, #tpu.memory_space<vmem>>, vector<8x1xf32>
    %cst = arith.constant 0.000000e+00 : f32
    %1 = vector.broadcast %cst : f32 to vector<18x32xf32>
    %c0_1 = arith.constant 0 : index
    %c0_2 = arith.constant 0 : index
    %2 = vector.load %arg15[%c0_1, %c0_2] : memref<18x32xf32, #tpu.memory_space<vmem>>, vector<18x32xf32>
    tpu.vector_store %arg15[%c0_1, %c0_2], %1 {strides = array<i32>} : memref<18x32xf32, #tpu.memory_space<vmem>>, vector<18x32xf32>,
    %cst_3 = arith.constant 0.000000e+00 : f32
    %3 = vector.broadcast %cst_3 : f32 to vector<18x32xf32>
    %c0_4 = arith.constant 0 : index
    %c0_5 = arith.constant 0 : index
    %4 = vector.load %arg16[%c0_4, %c0_5] : memref<18x32xf32, #tpu.memory_space<vmem>>, vector<18x32xf32>
    tpu.vector_store %arg16[%c0_4, %c0_5], %3 {strides = array<i32>} : memref<18x32xf32, #tpu.memory_space<vmem>>, vector<18x32xf32>,
    %cst_6 = arith.constant 0.000000e+00 : f32
    %5 = vector.broadcast %cst_6 : f32 to vector<8x32xf32>
    %c0_7 = arith.constant 0 : index
    %c0_8 = arith.constant 0 : index
    %c0_9 = arith.constant 0 : index
    %6 = vector.load %arg1[%c0_7, %c0_8, %c0_9] : memref<1x16x19xbf16, #tpu.memory_space<vmem>>, vector<1x8x19xbf16>
    %7 = vector.shape_cast %6 : vector<1x8x19xbf16> to vector<8x19xbf16>
    %c0_10 = arith.constant 0 : index
    %c0_11 = arith.constant 0 : index
    %c0_12 = arith.constant 0 : index
    %8 = vector.load %arg6[%c0_10, %c0_11, %c0_12] : memref<9x19x32xbf16, #tpu.memory_space<vmem>>, vector<1x19x32xbf16>
    %9 = vector.shape_cast %8 : vector<1x19x32xbf16> to vector<19x32xbf16>
    %cst_13 = arith.constant dense<0.000000e+00> : vector<8x32xf32>
    %10 = tpu.matmul %7, %9, %cst_13 {dimension_numbers = #tpu.dot_dimension_numbers<[1], [0], [0], [1], [0, 0, 1, 1], [], []>} : vector<8x19xbf16>, vector<19x32xbf16>, vector<8x32xf32> -> vector<8x32xf32>
    %11 = arith.addf %5, %10 : vector<8x32xf32>
    %c0_14 = arith.constant 0 : index
    %c0_15 = arith.constant 0 : index
    %c0_16 = arith.constant 0 : index
    %12 = vector.load %arg2[%c0_14, %c0_15, %c0_16] : memref<1x16x19xbf16, #tpu.memory_space<vmem>>, vector<1x8x19xbf16>
    %13 = vector.shape_cast %12 : vector<1x8x19xbf16> to vector<8x19xbf16>
    %c1 = arith.constant 1 : index
    %c0_17 = arith.constant 0 : index
    %c0_18 = arith.constant 0 : index
    %14 = vector.load %arg6[%c1, %c0_17, %c0_18] : memref<9x19x32xbf16, #tpu.memory_space<vmem>>, vector<1x19x32xbf16>
    %15 = vector.shape_cast %14 : vector<1x19x32xbf16> to vector<19x32xbf16>
    %cst_19 = arith.constant dense<0.000000e+00> : vector<8x32xf32>
    %16 = tpu.matmul %13, %15, %cst_19 {dimension_numbers = #tpu.dot_dimension_numbers<[1], [0], [0], [1], [0, 0, 1, 1], [], []>} : vector<8x19xbf16>, vector<19x32xbf16>, vector<8x32xf32> -> vector<8x32xf32>
    %17 = arith.addf %11, %16 : vector<8x32xf32>
    %c0_20 = arith.constant 0 : index
    %c1_21 = arith.constant 1 : index
    %c0_22 = arith.constant 0 : index
    %18 = vector.load %arg1[%c0_20, %c1_21, %c0_22] : memref<1x16x19xbf16, #tpu.memory_space<vmem>>, vector<1x8x19xbf16>
    %19 = vector.shape_cast %18 : vector<1x8x19xbf16> to vector<8x19xbf16>
    %c2 = arith.constant 2 : index
    %c0_23 = arith.constant 0 : index
    %c0_24 = arith.constant 0 : index
    %20 = vector.load %arg6[%c2, %c0_23, %c0_24] : memref<9x19x32xbf16, #tpu.memory_space<vmem>>, vector<1x19x32xbf16>
    %21 = vector.shape_cast %20 : vector<1x19x32xbf16> to vector<19x32xbf16>
    %cst_25 = arith.constant dense<0.000000e+00> : vector<8x32xf32>
    %22 = tpu.matmul %19, %21, %cst_25 {dimension_numbers = #tpu.dot_dimension_numbers<[1], [0], [0], [1], [0, 0, 1, 1], [], []>} : vector<8x19xbf16>, vector<19x32xbf16>, vector<8x32xf32> -> vector<8x32xf32>
    %23 = arith.addf %17, %22 : vector<8x32xf32>
    %c0_26 = arith.constant 0 : index
    %c0_27 = arith.constant 0 : index
    %c0_28 = arith.constant 0 : index
    %24 = vector.load %arg3[%c0_26, %c0_27, %c0_28] : memref<1x16x19xbf16, #tpu.memory_space<vmem>>, vector<1x8x19xbf16>
    %25 = vector.shape_cast %24 : vector<1x8x19xbf16> to vector<8x19xbf16>
    %c3 = arith.constant 3 : index
    %c0_29 = arith.constant 0 : index
    %c0_30 = arith.constant 0 : index
    %26 = vector.load %arg6[%c3, %c0_29, %c0_30] : memref<9x19x32xbf16, #tpu.memory_space<vmem>>, vector<1x19x32xbf16>
    %27 = vector.shape_cast %26 : vector<1x19x32xbf16> to vector<19x32xbf16>
    %cst_31 = arith.constant dense<0.000000e+00> : vector<8x32xf32>
    %28 = tpu.matmul %25, %27, %cst_31 {dimension_numbers = #tpu.dot_dimension_numbers<[1], [0], [0], [1], [0, 0, 1, 1], [], []>} : vector<8x19xbf16>, vector<19x32xbf16>, vector<8x32xf32> -> vector<8x32xf32>
    %29 = arith.addf %23, %28 : vector<8x32xf32>
    %c0_32 = arith.constant 0 : index
    %c0_33 = arith.constant 0 : index
    %c0_34 = arith.constant 0 : index
    %30 = vector.load %arg4[%c0_32, %c0_33, %c0_34] : memref<1x16x19xbf16, #tpu.memory_space<vmem>>, vector<1x8x19xbf16>
    %31 = vector.shape_cast %30 : vector<1x8x19xbf16> to vector<8x19xbf16>
    %c4 = arith.constant 4 : index
    %c0_35 = arith.constant 0 : index
    %c0_36 = arith.constant 0 : index
    %32 = vector.load %arg6[%c4, %c0_35, %c0_36] : memref<9x19x32xbf16, #tpu.memory_space<vmem>>, vector<1x19x32xbf16>
    %33 = vector.shape_cast %32 : vector<1x19x32xbf16> to vector<19x32xbf16>
    %cst_37 = arith.constant dense<0.000000e+00> : vector<8x32xf32>
    %34 = tpu.matmul %31, %33, %cst_37 {dimension_numbers = #tpu.dot_dimension_numbers<[1], [0], [0], [1], [0, 0, 1, 1], [], []>} : vector<8x19xbf16>, vector<19x32xbf16>, vector<8x32xf32> -> vector<8x32xf32>
    %35 = arith.addf %29, %34 : vector<8x32xf32>
    %c0_38 = arith.constant 0 : index
    %c1_39 = arith.constant 1 : index
    %c0_40 = arith.constant 0 : index
    %36 = vector.load %arg3[%c0_38, %c1_39, %c0_40] : memref<1x16x19xbf16, #tpu.memory_space<vmem>>, vector<1x8x19xbf16>
    %37 = vector.shape_cast %36 : vector<1x8x19xbf16> to vector<8x19xbf16>
    %c5 = arith.constant 5 : index
    %c0_41 = arith.constant 0 : index
    %c0_42 = arith.constant 0 : index
    %38 = vector.load %arg6[%c5, %c0_41, %c0_42] : memref<9x19x32xbf16, #tpu.memory_space<vmem>>, vector<1x19x32xbf16>
    %39 = vector.shape_cast %38 : vector<1x19x32xbf16> to vector<19x32xbf16>
    %cst_43 = arith.constant dense<0.000000e+00> : vector<8x32xf32>
    %40 = tpu.matmul %37, %39, %cst_43 {dimension_numbers = #tpu.dot_dimension_numbers<[1], [0], [0], [1], [0, 0, 1, 1], [], []>} : vector<8x19xbf16>, vector<19x32xbf16>, vector<8x32xf32> -> vector<8x32xf32>
    %41 = arith.addf %35, %40 : vector<8x32xf32>
    %c0_44 = arith.constant 0 : index
    %c4_45 = arith.constant 4 : index
    %c0_46 = arith.constant 0 : index
    %42 = vector.load %arg1[%c0_44, %c4_45, %c0_46] : memref<1x16x19xbf16, #tpu.memory_space<vmem>>, vector<1x8x19xbf16>
    %43 = vector.shape_cast %42 : vector<1x8x19xbf16> to vector<8x19xbf16>
    %c6 = arith.constant 6 : index
    %c0_47 = arith.constant 0 : index
    %c0_48 = arith.constant 0 : index
    %44 = vector.load %arg6[%c6, %c0_47, %c0_48] : memref<9x19x32xbf16, #tpu.memory_space<vmem>>, vector<1x19x32xbf16>
    %45 = vector.shape_cast %44 : vector<1x19x32xbf16> to vector<19x32xbf16>
    %cst_49 = arith.constant dense<0.000000e+00> : vector<8x32xf32>
    %46 = tpu.matmul %43, %45, %cst_49 {dimension_numbers = #tpu.dot_dimension_numbers<[1], [0], [0], [1], [0, 0, 1, 1], [], []>} : vector<8x19xbf16>, vector<19x32xbf16>, vector<8x32xf32> -> vector<8x32xf32>
    %47 = arith.addf %41, %46 : vector<8x32xf32>
    %c0_50 = arith.constant 0 : index
    %c4_51 = arith.constant 4 : index
    %c0_52 = arith.constant 0 : index
    %48 = vector.load %arg2[%c0_50, %c4_51, %c0_52] : memref<1x16x19xbf16, #tpu.memory_space<vmem>>, vector<1x8x19xbf16>
    %49 = vector.shape_cast %48 : vector<1x8x19xbf16> to vector<8x19xbf16>
    %c7 = arith.constant 7 : index
    %c0_53 = arith.constant 0 : index
    %c0_54 = arith.constant 0 : index
    %50 = vector.load %arg6[%c7, %c0_53, %c0_54] : memref<9x19x32xbf16, #tpu.memory_space<vmem>>, vector<1x19x32xbf16>
    %51 = vector.shape_cast %50 : vector<1x19x32xbf16> to vector<19x32xbf16>
    %cst_55 = arith.constant dense<0.000000e+00> : vector<8x32xf32>
    %52 = tpu.matmul %49, %51, %cst_55 {dimension_numbers = #tpu.dot_dimension_numbers<[1], [0], [0], [1], [0, 0, 1, 1], [], []>} : vector<8x19xbf16>, vector<19x32xbf16>, vector<8x32xf32> -> vector<8x32xf32>
    %53 = arith.addf %47, %52 : vector<8x32xf32>
    %c0_56 = arith.constant 0 : index
    %c5_57 = arith.constant 5 : index
    %c0_58 = arith.constant 0 : index
    %54 = vector.load %arg1[%c0_56, %c5_57, %c0_58] : memref<1x16x19xbf16, #tpu.memory_space<vmem>>, vector<1x8x19xbf16>
    %55 = vector.shape_cast %54 : vector<1x8x19xbf16> to vector<8x19xbf16>
    %c8 = arith.constant 8 : index
    %c0_59 = arith.constant 0 : index
    %c0_60 = arith.constant 0 : index
    %56 = vector.load %arg6[%c8, %c0_59, %c0_60] : memref<9x19x32xbf16, #tpu.memory_space<vmem>>, vector<1x19x32xbf16>
    %57 = vector.shape_cast %56 : vector<1x19x32xbf16> to vector<19x32xbf16>
    %cst_61 = arith.constant dense<0.000000e+00> : vector<8x32xf32>
    %58 = tpu.matmul %55, %57, %cst_61 {dimension_numbers = #tpu.dot_dimension_numbers<[1], [0], [0], [1], [0, 0, 1, 1], [], []>} : vector<8x19xbf16>, vector<19x32xbf16>, vector<8x32xf32> -> vector<8x32xf32>
    %59 = arith.addf %53, %58 : vector<8x32xf32>
    %c0_62 = arith.constant 0 : index
    %c0_63 = arith.constant 0 : index
    %60 = vector.load %arg7[%c0_62, %c0_63] : memref<1x32xf32, #tpu.memory_space<vmem>>, vector<1x32xf32>
    %61 = vector.broadcast %60 : vector<1x32xf32> to vector<8x32xf32>
    %62 = arith.addf %59, %61 : vector<8x32xf32>
    %cst_64 = arith.constant 0.000000e+00 : f32
    %63 = vector.broadcast %cst_64 : f32 to vector<8x32xf32>
    %64 = arith.cmpf oge, %62, %63 : vector<8x32xf32>
    %cst_65 = arith.constant 2.000000e-01 : f32
    %65 = vector.broadcast %cst_65 : f32 to vector<8x32xf32>
    %66 = arith.mulf %65, %62 : vector<8x32xf32>
    %67 = arith.select %64, %62, %66 : vector<8x32xi1>, vector<8x32xf32>
    %68 = vector.broadcast %0 : vector<8x1xf32> to vector<8x32xf32>
    %69 = arith.mulf %67, %68 : vector<8x32xf32>
    %c5_66 = arith.constant 5 : index
    %c0_67 = arith.constant 0 : index
    %70 = vector.load %arg15[%c5_66, %c0_67] : memref<18x32xf32, #tpu.memory_space<vmem>>, vector<8x32xf32>
    tpu.vector_store %arg15[%c5_66, %c0_67], %69 {strides = array<i32>} : memref<18x32xf32, #tpu.memory_space<vmem>>, vector<8x32xf32>,
    %cst_68 = arith.constant 0.000000e+00 : f32
    %71 = vector.broadcast %cst_68 : f32 to vector<8x32xf32>
    %c0_69 = arith.constant 0 : index
    %c0_70 = arith.constant 0 : index
    %72 = vector.load %arg15[%c0_69, %c0_70] : memref<18x32xf32, #tpu.memory_space<vmem>>, vector<8x32xf32>
    %c0_71 = arith.constant 0 : index
    %c0_72 = arith.constant 0 : index
    %c0_73 = arith.constant 0 : index
    %73 = vector.load %arg8[%c0_71, %c0_72, %c0_73] : memref<9x32x32xbf16, #tpu.memory_space<vmem>>, vector<1x32x32xbf16>
    %74 = vector.shape_cast %73 : vector<1x32x32xbf16> to vector<32x32xbf16>
    %cst_74 = arith.constant dense<0.000000e+00> : vector<8x32xf32>
    %75 = tpu.matmul %72, %74, %cst_74 {dimension_numbers = #tpu.dot_dimension_numbers<[1], [0], [0], [1], [0, 0, 1, 1], [], []>} : vector<8x32xf32>, vector<32x32xbf16>, vector<8x32xf32> -> vector<8x32xf32>
    %76 = arith.addf %71, %75 : vector<8x32xf32>
    %c1_75 = arith.constant 1 : index
    %c0_76 = arith.constant 0 : index
    %77 = vector.load %arg15[%c1_75, %c0_76] : memref<18x32xf32, #tpu.memory_space<vmem>>, vector<8x32xf32>
    %c1_77 = arith.constant 1 : index
    %c0_78 = arith.constant 0 : index
    %c0_79 = arith.constant 0 : index
    %78 = vector.load %arg8[%c1_77, %c0_78, %c0_79] : memref<9x32x32xbf16, #tpu.memory_space<vmem>>, vector<1x32x32xbf16>
    %79 = vector.shape_cast %78 : vector<1x32x32xbf16> to vector<32x32xbf16>
    %cst_80 = arith.constant dense<0.000000e+00> : vector<8x32xf32>
    %80 = tpu.matmul %77, %79, %cst_80 {dimension_numbers = #tpu.dot_dimension_numbers<[1], [0], [0], [1], [0, 0, 1, 1], [], []>} : vector<8x32xf32>, vector<32x32xbf16>, vector<8x32xf32> -> vector<8x32xf32>
    %81 = arith.addf %76, %80 : vector<8x32xf32>
    %c2_81 = arith.constant 2 : index
    %c0_82 = arith.constant 0 : index
    %82 = vector.load %arg15[%c2_81, %c0_82] : memref<18x32xf32, #tpu.memory_space<vmem>>, vector<8x32xf32>
    %c2_83 = arith.constant 2 : index
    %c0_84 = arith.constant 0 : index
    %c0_85 = arith.constant 0 : index
    %83 = vector.load %arg8[%c2_83, %c0_84, %c0_85] : memref<9x32x32xbf16, #tpu.memory_space<vmem>>, vector<1x32x32xbf16>
    %84 = vector.shape_cast %83 : vector<1x32x32xbf16> to vector<32x32xbf16>
    %cst_86 = arith.constant dense<0.000000e+00> : vector<8x32xf32>
    %85 = tpu.matmul %82, %84, %cst_86 {dimension_numbers = #tpu.dot_dimension_numbers<[1], [0], [0], [1], [0, 0, 1, 1], [], []>} : vector<8x32xf32>, vector<32x32xbf16>, vector<8x32xf32> -> vector<8x32xf32>
    %86 = arith.addf %81, %85 : vector<8x32xf32>
    %c4_87 = arith.constant 4 : index
    %c0_88 = arith.constant 0 : index
    %87 = vector.load %arg15[%c4_87, %c0_88] : memref<18x32xf32, #tpu.memory_space<vmem>>, vector<8x32xf32>
    %c3_89 = arith.constant 3 : index
    %c0_90 = arith.constant 0 : index
    %c0_91 = arith.constant 0 : index
    %88 = vector.load %arg8[%c3_89, %c0_90, %c0_91] : memref<9x32x32xbf16, #tpu.memory_space<vmem>>, vector<1x32x32xbf16>
    %89 = vector.shape_cast %88 : vector<1x32x32xbf16> to vector<32x32xbf16>
    %cst_92 = arith.constant dense<0.000000e+00> : vector<8x32xf32>
    %90 = tpu.matmul %87, %89, %cst_92 {dimension_numbers = #tpu.dot_dimension_numbers<[1], [0], [0], [1], [0, 0, 1, 1], [], []>} : vector<8x32xf32>, vector<32x32xbf16>, vector<8x32xf32> -> vector<8x32xf32>
    %91 = arith.addf %86, %90 : vector<8x32xf32>
    %c5_93 = arith.constant 5 : index
    %c0_94 = arith.constant 0 : index
    %92 = vector.load %arg15[%c5_93, %c0_94] : memref<18x32xf32, #tpu.memory_space<vmem>>, vector<8x32xf32>
    %c4_95 = arith.constant 4 : index
    %c0_96 = arith.constant 0 : index
    %c0_97 = arith.constant 0 : index
    %93 = vector.load %arg8[%c4_95, %c0_96, %c0_97] : memref<9x32x32xbf16, #tpu.memory_space<vmem>>, vector<1x32x32xbf16>
    %94 = vector.shape_cast %93 : vector<1x32x32xbf16> to vector<32x32xbf16>
    %cst_98 = arith.constant dense<0.000000e+00> : vector<8x32xf32>
    %95 = tpu.matmul %92, %94, %cst_98 {dimension_numbers = #tpu.dot_dimension_numbers<[1], [0], [0], [1], [0, 0, 1, 1], [], []>} : vector<8x32xf32>, vector<32x32xbf16>, vector<8x32xf32> -> vector<8x32xf32>
    %96 = arith.addf %91, %95 : vector<8x32xf32>
    %c6_99 = arith.constant 6 : index
    %c0_100 = arith.constant 0 : index
    %97 = vector.load %arg15[%c6_99, %c0_100] : memref<18x32xf32, #tpu.memory_space<vmem>>, vector<8x32xf32>
    %c5_101 = arith.constant 5 : index
    %c0_102 = arith.constant 0 : index
    %c0_103 = arith.constant 0 : index
    %98 = vector.load %arg8[%c5_101, %c0_102, %c0_103] : memref<9x32x32xbf16, #tpu.memory_space<vmem>>, vector<1x32x32xbf16>
    %99 = vector.shape_cast %98 : vector<1x32x32xbf16> to vector<32x32xbf16>
    %cst_104 = arith.constant dense<0.000000e+00> : vector<8x32xf32>
    %100 = tpu.matmul %97, %99, %cst_104 {dimension_numbers = #tpu.dot_dimension_numbers<[1], [0], [0], [1], [0, 0, 1, 1], [], []>} : vector<8x32xf32>, vector<32x32xbf16>, vector<8x32xf32> -> vector<8x32xf32>
    %101 = arith.addf %96, %100 : vector<8x32xf32>
    %c8_105 = arith.constant 8 : index
    %c0_106 = arith.constant 0 : index
    %102 = vector.load %arg15[%c8_105, %c0_106] : memref<18x32xf32, #tpu.memory_space<vmem>>, vector<8x32xf32>
    %c6_107 = arith.constant 6 : index
    %c0_108 = arith.constant 0 : index
    %c0_109 = arith.constant 0 : index
    %103 = vector.load %arg8[%c6_107, %c0_108, %c0_109] : memref<9x32x32xbf16, #tpu.memory_space<vmem>>, vector<1x32x32xbf16>
    %104 = vector.shape_cast %103 : vector<1x32x32xbf16> to vector<32x32xbf16>
    %cst_110 = arith.constant dense<0.000000e+00> : vector<8x32xf32>
    %105 = tpu.matmul %102, %104, %cst_110 {dimension_numbers = #tpu.dot_dimension_numbers<[1], [0], [0], [1], [0, 0, 1, 1], [], []>} : vector<8x32xf32>, vector<32x32xbf16>, vector<8x32xf32> -> vector<8x32xf32>
    %106 = arith.addf %101, %105 : vector<8x32xf32>
    %c9 = arith.constant 9 : index
    %c0_111 = arith.constant 0 : index
    %107 = vector.load %arg15[%c9, %c0_111] : memref<18x32xf32, #tpu.memory_space<vmem>>, vector<8x32xf32>
    %c7_112 = arith.constant 7 : index
    %c0_113 = arith.constant 0 : index
    %c0_114 = arith.constant 0 : index
    %108 = vector.load %arg8[%c7_112, %c0_113, %c0_114] : memref<9x32x32xbf16, #tpu.memory_space<vmem>>, vector<1x32x32xbf16>
    %109 = vector.shape_cast %108 : vector<1x32x32xbf16> to vector<32x32xbf16>
    %cst_115 = arith.constant dense<0.000000e+00> : vector<8x32xf32>
    %110 = tpu.matmul %107, %109, %cst_115 {dimension_numbers = #tpu.dot_dimension_numbers<[1], [0], [0], [1], [0, 0, 1, 1], [], []>} : vector<8x32xf32>, vector<32x32xbf16>, vector<8x32xf32> -> vector<8x32xf32>
    %111 = arith.addf %106, %110 : vector<8x32xf32>
    %c10 = arith.constant 10 : index
    %c0_116 = arith.constant 0 : index
    %112 = vector.load %arg15[%c10, %c0_116] : memref<18x32xf32, #tpu.memory_space<vmem>>, vector<8x32xf32>
    %c8_117 = arith.constant 8 : index
    %c0_118 = arith.constant 0 : index
    %c0_119 = arith.constant 0 : index
    %113 = vector.load %arg8[%c8_117, %c0_118, %c0_119] : memref<9x32x32xbf16, #tpu.memory_space<vmem>>, vector<1x32x32xbf16>
    %114 = vector.shape_cast %113 : vector<1x32x32xbf16> to vector<32x32xbf16>
    %cst_120 = arith.constant dense<0.000000e+00> : vector<8x32xf32>
    %115 = tpu.matmul %112, %114, %cst_120 {dimension_numbers = #tpu.dot_dimension_numbers<[1], [0], [0], [1], [0, 0, 1, 1], [], []>} : vector<8x32xf32>, vector<32x32xbf16>, vector<8x32xf32> -> vector<8x32xf32>
    %116 = arith.addf %111, %115 : vector<8x32xf32>
    %c0_121 = arith.constant 0 : index
    %c0_122 = arith.constant 0 : index
    %117 = vector.load %arg9[%c0_121, %c0_122] : memref<1x32xf32, #tpu.memory_space<vmem>>, vector<1x32xf32>
    %118 = vector.broadcast %117 : vector<1x32xf32> to vector<8x32xf32>
    %119 = arith.addf %116, %118 : vector<8x32xf32>
    %cst_123 = arith.constant 0.000000e+00 : f32
    %120 = vector.broadcast %cst_123 : f32 to vector<8x32xf32>
    %121 = arith.cmpf oge, %119, %120 : vector<8x32xf32>
    %cst_124 = arith.constant 2.000000e-01 : f32
    %122 = vector.broadcast %cst_124 : f32 to vector<8x32xf32>
    %123 = arith.mulf %122, %119 : vector<8x32xf32>
    %124 = arith.select %121, %119, %123 : vector<8x32xi1>, vector<8x32xf32>
    %125 = vector.broadcast %0 : vector<8x1xf32> to vector<8x32xf32>
    %126 = arith.mulf %124, %125 : vector<8x32xf32>
    %c5_125 = arith.constant 5 : index
    %c0_126 = arith.constant 0 : index
    %127 = vector.load %arg16[%c5_125, %c0_126] : memref<18x32xf32, #tpu.memory_space<vmem>>, vector<8x32xf32>
    tpu.vector_store %arg16[%c5_125, %c0_126], %126 {strides = array<i32>} : memref<18x32xf32, #tpu.memory_space<vmem>>, vector<8x32xf32>,
    %cst_127 = arith.constant 0.000000e+00 : f32
    %128 = vector.broadcast %cst_127 : f32 to vector<8x32xf32>
    %c0_128 = arith.constant 0 : index
    %c0_129 = arith.constant 0 : index
    %129 = vector.load %arg16[%c0_128, %c0_129] : memref<18x32xf32, #tpu.memory_space<vmem>>, vector<8x32xf32>
    %c0_130 = arith.constant 0 : index
    %c0_131 = arith.constant 0 : index
    %c0_132 = arith.constant 0 : index
    %130 = vector.load %arg10[%c0_130, %c0_131, %c0_132] : memref<9x32x32xbf16, #tpu.memory_space<vmem>>, vector<1x32x32xbf16>
    %131 = vector.shape_cast %130 : vector<1x32x32xbf16> to vector<32x32xbf16>
    %cst_133 = arith.constant dense<0.000000e+00> : vector<8x32xf32>
    %132 = tpu.matmul %129, %131, %cst_133 {dimension_numbers = #tpu.dot_dimension_numbers<[1], [0], [0], [1], [0, 0, 1, 1], [], []>} : vector<8x32xf32>, vector<32x32xbf16>, vector<8x32xf32> -> vector<8x32xf32>
    %133 = arith.addf %128, %132 : vector<8x32xf32>
    %c1_134 = arith.constant 1 : index
    %c0_135 = arith.constant 0 : index
    %134 = vector.load %arg16[%c1_134, %c0_135] : memref<18x32xf32, #tpu.memory_space<vmem>>, vector<8x32xf32>
    %c1_136 = arith.constant 1 : index
    %c0_137 = arith.constant 0 : index
    %c0_138 = arith.constant 0 : index
    %135 = vector.load %arg10[%c1_136, %c0_137, %c0_138] : memref<9x32x32xbf16, #tpu.memory_space<vmem>>, vector<1x32x32xbf16>
    %136 = vector.shape_cast %135 : vector<1x32x32xbf16> to vector<32x32xbf16>
    %cst_139 = arith.constant dense<0.000000e+00> : vector<8x32xf32>
    %137 = tpu.matmul %134, %136, %cst_139 {dimension_numbers = #tpu.dot_dimension_numbers<[1], [0], [0], [1], [0, 0, 1, 1], [], []>} : vector<8x32xf32>, vector<32x32xbf16>, vector<8x32xf32> -> vector<8x32xf32>
    %138 = arith.addf %133, %137 : vector<8x32xf32>
    %c2_140 = arith.constant 2 : index
    %c0_141 = arith.constant 0 : index
    %139 = vector.load %arg16[%c2_140, %c0_141] : memref<18x32xf32, #tpu.memory_space<vmem>>, vector<8x32xf32>
    %c2_142 = arith.constant 2 : index
    %c0_143 = arith.constant 0 : index
    %c0_144 = arith.constant 0 : index
    %140 = vector.load %arg10[%c2_142, %c0_143, %c0_144] : memref<9x32x32xbf16, #tpu.memory_space<vmem>>, vector<1x32x32xbf16>
    %141 = vector.shape_cast %140 : vector<1x32x32xbf16> to vector<32x32xbf16>
    %cst_145 = arith.constant dense<0.000000e+00> : vector<8x32xf32>
    %142 = tpu.matmul %139, %141, %cst_145 {dimension_numbers = #tpu.dot_dimension_numbers<[1], [0], [0], [1], [0, 0, 1, 1], [], []>} : vector<8x32xf32>, vector<32x32xbf16>, vector<8x32xf32> -> vector<8x32xf32>
    %143 = arith.addf %138, %142 : vector<8x32xf32>
    %c4_146 = arith.constant 4 : index
    %c0_147 = arith.constant 0 : index
    %144 = vector.load %arg16[%c4_146, %c0_147] : memref<18x32xf32, #tpu.memory_space<vmem>>, vector<8x32xf32>
    %c3_148 = arith.constant 3 : index
    %c0_149 = arith.constant 0 : index
    %c0_150 = arith.constant 0 : index
    %145 = vector.load %arg10[%c3_148, %c0_149, %c0_150] : memref<9x32x32xbf16, #tpu.memory_space<vmem>>, vector<1x32x32xbf16>
    %146 = vector.shape_cast %145 : vector<1x32x32xbf16> to vector<32x32xbf16>
    %cst_151 = arith.constant dense<0.000000e+00> : vector<8x32xf32>
    %147 = tpu.matmul %144, %146, %cst_151 {dimension_numbers = #tpu.dot_dimension_numbers<[1], [0], [0], [1], [0, 0, 1, 1], [], []>} : vector<8x32xf32>, vector<32x32xbf16>, vector<8x32xf32> -> vector<8x32xf32>
    %148 = arith.addf %143, %147 : vector<8x32xf32>
    %c5_152 = arith.constant 5 : index
    %c0_153 = arith.constant 0 : index
    %149 = vector.load %arg16[%c5_152, %c0_153] : memref<18x32xf32, #tpu.memory_space<vmem>>, vector<8x32xf32>
    %c4_154 = arith.constant 4 : index
    %c0_155 = arith.constant 0 : index
    %c0_156 = arith.constant 0 : index
    %150 = vector.load %arg10[%c4_154, %c0_155, %c0_156] : memref<9x32x32xbf16, #tpu.memory_space<vmem>>, vector<1x32x32xbf16>
    %151 = vector.shape_cast %150 : vector<1x32x32xbf16> to vector<32x32xbf16>
    %cst_157 = arith.constant dense<0.000000e+00> : vector<8x32xf32>
    %152 = tpu.matmul %149, %151, %cst_157 {dimension_numbers = #tpu.dot_dimension_numbers<[1], [0], [0], [1], [0, 0, 1, 1], [], []>} : vector<8x32xf32>, vector<32x32xbf16>, vector<8x32xf32> -> vector<8x32xf32>
    %153 = arith.addf %148, %152 : vector<8x32xf32>
    %c6_158 = arith.constant 6 : index
    %c0_159 = arith.constant 0 : index
    %154 = vector.load %arg16[%c6_158, %c0_159] : memref<18x32xf32, #tpu.memory_space<vmem>>, vector<8x32xf32>
    %c5_160 = arith.constant 5 : index
    %c0_161 = arith.constant 0 : index
    %c0_162 = arith.constant 0 : index
    %155 = vector.load %arg10[%c5_160, %c0_161, %c0_162] : memref<9x32x32xbf16, #tpu.memory_space<vmem>>, vector<1x32x32xbf16>
    %156 = vector.shape_cast %155 : vector<1x32x32xbf16> to vector<32x32xbf16>
    %cst_163 = arith.constant dense<0.000000e+00> : vector<8x32xf32>
    %157 = tpu.matmul %154, %156, %cst_163 {dimension_numbers = #tpu.dot_dimension_numbers<[1], [0], [0], [1], [0, 0, 1, 1], [], []>} : vector<8x32xf32>, vector<32x32xbf16>, vector<8x32xf32> -> vector<8x32xf32>
    %158 = arith.addf %153, %157 : vector<8x32xf32>
    %c8_164 = arith.constant 8 : index
    %c0_165 = arith.constant 0 : index
    %159 = vector.load %arg16[%c8_164, %c0_165] : memref<18x32xf32, #tpu.memory_space<vmem>>, vector<8x32xf32>
    %c6_166 = arith.constant 6 : index
    %c0_167 = arith.constant 0 : index
    %c0_168 = arith.constant 0 : index
    %160 = vector.load %arg10[%c6_166, %c0_167, %c0_168] : memref<9x32x32xbf16, #tpu.memory_space<vmem>>, vector<1x32x32xbf16>
    %161 = vector.shape_cast %160 : vector<1x32x32xbf16> to vector<32x32xbf16>
    %cst_169 = arith.constant dense<0.000000e+00> : vector<8x32xf32>
    %162 = tpu.matmul %159, %161, %cst_169 {dimension_numbers = #tpu.dot_dimension_numbers<[1], [0], [0], [1], [0, 0, 1, 1], [], []>} : vector<8x32xf32>, vector<32x32xbf16>, vector<8x32xf32> -> vector<8x32xf32>
    %163 = arith.addf %158, %162 : vector<8x32xf32>
    %c9_170 = arith.constant 9 : index
    %c0_171 = arith.constant 0 : index
    %164 = vector.load %arg16[%c9_170, %c0_171] : memref<18x32xf32, #tpu.memory_space<vmem>>, vector<8x32xf32>
    %c7_172 = arith.constant 7 : index
    %c0_173 = arith.constant 0 : index
    %c0_174 = arith.constant 0 : index
    %165 = vector.load %arg10[%c7_172, %c0_173, %c0_174] : memref<9x32x32xbf16, #tpu.memory_space<vmem>>, vector<1x32x32xbf16>
    %166 = vector.shape_cast %165 : vector<1x32x32xbf16> to vector<32x32xbf16>
    %cst_175 = arith.constant dense<0.000000e+00> : vector<8x32xf32>
    %167 = tpu.matmul %164, %166, %cst_175 {dimension_numbers = #tpu.dot_dimension_numbers<[1], [0], [0], [1], [0, 0, 1, 1], [], []>} : vector<8x32xf32>, vector<32x32xbf16>, vector<8x32xf32> -> vector<8x32xf32>
    %168 = arith.addf %163, %167 : vector<8x32xf32>
    %c10_176 = arith.constant 10 : index
    %c0_177 = arith.constant 0 : index
    %169 = vector.load %arg16[%c10_176, %c0_177] : memref<18x32xf32, #tpu.memory_space<vmem>>, vector<8x32xf32>
    %c8_178 = arith.constant 8 : index
    %c0_179 = arith.constant 0 : index
    %c0_180 = arith.constant 0 : index
    %170 = vector.load %arg10[%c8_178, %c0_179, %c0_180] : memref<9x32x32xbf16, #tpu.memory_space<vmem>>, vector<1x32x32xbf16>
    %171 = vector.shape_cast %170 : vector<1x32x32xbf16> to vector<32x32xbf16>
    %cst_181 = arith.constant dense<0.000000e+00> : vector<8x32xf32>
    %172 = tpu.matmul %169, %171, %cst_181 {dimension_numbers = #tpu.dot_dimension_numbers<[1], [0], [0], [1], [0, 0, 1, 1], [], []>} : vector<8x32xf32>, vector<32x32xbf16>, vector<8x32xf32> -> vector<8x32xf32>
    %173 = arith.addf %168, %172 : vector<8x32xf32>
    %c0_182 = arith.constant 0 : index
    %c0_183 = arith.constant 0 : index
    %174 = vector.load %arg11[%c0_182, %c0_183] : memref<1x32xf32, #tpu.memory_space<vmem>>, vector<1x32xf32>
    %175 = vector.broadcast %174 : vector<1x32xf32> to vector<8x32xf32>
    %176 = arith.addf %173, %175 : vector<8x32xf32>
    %c5_184 = arith.constant 5 : index
    %c0_185 = arith.constant 0 : index
    %177 = vector.load %arg15[%c5_184, %c0_185] : memref<18x32xf32, #tpu.memory_space<vmem>>, vector<8x32xf32>
    %178 = arith.addf %176, %177 : vector<8x32xf32>
    %179 = vector.broadcast %0 : vector<8x1xf32> to vector<8x32xf32>
    %180 = arith.mulf %178, %179 : vector<8x32xf32>
    %c5_186 = arith.constant 5 : index
    %c0_187 = arith.constant 0 : index
    %181 = vector.load %arg15[%c5_186, %c0_187] : memref<18x32xf32, #tpu.memory_space<vmem>>, vector<8x32xf32>
    tpu.vector_store %arg15[%c5_186, %c0_187], %180 {strides = array<i32>} : memref<18x32xf32, #tpu.memory_space<vmem>>, vector<8x32xf32>,
    %cst_188 = arith.constant 0.000000e+00 : f32
    %182 = vector.broadcast %cst_188 : f32 to vector<8x1xf32>
    %c0_189 = arith.constant 0 : index
    %c0_190 = arith.constant 0 : index
    %183 = vector.load %arg15[%c0_189, %c0_190] : memref<18x32xf32, #tpu.memory_space<vmem>>, vector<8x32xf32>
    %c0_191 = arith.constant 0 : index
    %c0_192 = arith.constant 0 : index
    %c0_193 = arith.constant 0 : index
    %184 = vector.load %arg12[%c0_191, %c0_192, %c0_193] : memref<9x32x1xbf16, #tpu.memory_space<vmem>>, vector<1x32x1xbf16>
    %185 = vector.shape_cast %184 : vector<1x32x1xbf16> to vector<32x1xbf16>
    %cst_194 = arith.constant dense<0.000000e+00> : vector<8x1xf32>
    %186 = tpu.matmul %183, %185, %cst_194 {dimension_numbers = #tpu.dot_dimension_numbers<[1], [0], [0], [1], [0, 0, 1, 1], [], []>} : vector<8x32xf32>, vector<32x1xbf16>, vector<8x1xf32> -> vector<8x1xf32>
    %187 = arith.addf %182, %186 : vector<8x1xf32>
    %c1_195 = arith.constant 1 : index
    %c0_196 = arith.constant 0 : index
    %188 = vector.load %arg15[%c1_195, %c0_196] : memref<18x32xf32, #tpu.memory_space<vmem>>, vector<8x32xf32>
    %c1_197 = arith.constant 1 : index
    %c0_198 = arith.constant 0 : index
    %c0_199 = arith.constant 0 : index
    %189 = vector.load %arg12[%c1_197, %c0_198, %c0_199] : memref<9x32x1xbf16, #tpu.memory_space<vmem>>, vector<1x32x1xbf16>
    %190 = vector.shape_cast %189 : vector<1x32x1xbf16> to vector<32x1xbf16>
    %cst_200 = arith.constant dense<0.000000e+00> : vector<8x1xf32>
    %191 = tpu.matmul %188, %190, %cst_200 {dimension_numbers = #tpu.dot_dimension_numbers<[1], [0], [0], [1], [0, 0, 1, 1], [], []>} : vector<8x32xf32>, vector<32x1xbf16>, vector<8x1xf32> -> vector<8x1xf32>
    %192 = arith.addf %187, %191 : vector<8x1xf32>
    %c2_201 = arith.constant 2 : index
    %c0_202 = arith.constant 0 : index
    %193 = vector.load %arg15[%c2_201, %c0_202] : memref<18x32xf32, #tpu.memory_space<vmem>>, vector<8x32xf32>
    %c2_203 = arith.constant 2 : index
    %c0_204 = arith.constant 0 : index
    %c0_205 = arith.constant 0 : index
    %194 = vector.load %arg12[%c2_203, %c0_204, %c0_205] : memref<9x32x1xbf16, #tpu.memory_space<vmem>>, vector<1x32x1xbf16>
    %195 = vector.shape_cast %194 : vector<1x32x1xbf16> to vector<32x1xbf16>
    %cst_206 = arith.constant dense<0.000000e+00> : vector<8x1xf32>
    %196 = tpu.matmul %193, %195, %cst_206 {dimension_numbers = #tpu.dot_dimension_numbers<[1], [0], [0], [1], [0, 0, 1, 1], [], []>} : vector<8x32xf32>, vector<32x1xbf16>, vector<8x1xf32> -> vector<8x1xf32>
    %197 = arith.addf %192, %196 : vector<8x1xf32>
    %c4_207 = arith.constant 4 : index
    %c0_208 = arith.constant 0 : index
    %198 = vector.load %arg15[%c4_207, %c0_208] : memref<18x32xf32, #tpu.memory_space<vmem>>, vector<8x32xf32>
    %c3_209 = arith.constant 3 : index
    %c0_210 = arith.constant 0 : index
    %c0_211 = arith.constant 0 : index
    %199 = vector.load %arg12[%c3_209, %c0_210, %c0_211] : memref<9x32x1xbf16, #tpu.memory_space<vmem>>, vector<1x32x1xbf16>
    %200 = vector.shape_cast %199 : vector<1x32x1xbf16> to vector<32x1xbf16>
    %cst_212 = arith.constant dense<0.000000e+00> : vector<8x1xf32>
    %201 = tpu.matmul %198, %200, %cst_212 {dimension_numbers = #tpu.dot_dimension_numbers<[1], [0], [0], [1], [0, 0, 1, 1], [], []>} : vector<8x32xf32>, vector<32x1xbf16>, vector<8x1xf32> -> vector<8x1xf32>
    %202 = arith.addf %197, %201 : vector<8x1xf32>
    %c5_213 = arith.constant 5 : index
    %c0_214 = arith.constant 0 : index
    %203 = vector.load %arg15[%c5_213, %c0_214] : memref<18x32xf32, #tpu.memory_space<vmem>>, vector<8x32xf32>
    %c4_215 = arith.constant 4 : index
    %c0_216 = arith.constant 0 : index
    %c0_217 = arith.constant 0 : index
    %204 = vector.load %arg12[%c4_215, %c0_216, %c0_217] : memref<9x32x1xbf16, #tpu.memory_space<vmem>>, vector<1x32x1xbf16>
    %205 = vector.shape_cast %204 : vector<1x32x1xbf16> to vector<32x1xbf16>
    %cst_218 = arith.constant dense<0.000000e+00> : vector<8x1xf32>
    %206 = tpu.matmul %203, %205, %cst_218 {dimension_numbers = #tpu.dot_dimension_numbers<[1], [0], [0], [1], [0, 0, 1, 1], [], []>} : vector<8x32xf32>, vector<32x1xbf16>, vector<8x1xf32> -> vector<8x1xf32>
    %207 = arith.addf %202, %206 : vector<8x1xf32>
    %c6_219 = arith.constant 6 : index
    %c0_220 = arith.constant 0 : index
    %208 = vector.load %arg15[%c6_219, %c0_220] : memref<18x32xf32, #tpu.memory_space<vmem>>, vector<8x32xf32>
    %c5_221 = arith.constant 5 : index
    %c0_222 = arith.constant 0 : index
    %c0_223 = arith.constant 0 : index
    %209 = vector.load %arg12[%c5_221, %c0_222, %c0_223] : memref<9x32x1xbf16, #tpu.memory_space<vmem>>, vector<1x32x1xbf16>
    %210 = vector.shape_cast %209 : vector<1x32x1xbf16> to vector<32x1xbf16>
    %cst_224 = arith.constant dense<0.000000e+00> : vector<8x1xf32>
    %211 = tpu.matmul %208, %210, %cst_224 {dimension_numbers = #tpu.dot_dimension_numbers<[1], [0], [0], [1], [0, 0, 1, 1], [], []>} : vector<8x32xf32>, vector<32x1xbf16>, vector<8x1xf32> -> vector<8x1xf32>
    %212 = arith.addf %207, %211 : vector<8x1xf32>
    %c8_225 = arith.constant 8 : index
    %c0_226 = arith.constant 0 : index
    %213 = vector.load %arg15[%c8_225, %c0_226] : memref<18x32xf32, #tpu.memory_space<vmem>>, vector<8x32xf32>
    %c6_227 = arith.constant 6 : index
    %c0_228 = arith.constant 0 : index
    %c0_229 = arith.constant 0 : index
    %214 = vector.load %arg12[%c6_227, %c0_228, %c0_229] : memref<9x32x1xbf16, #tpu.memory_space<vmem>>, vector<1x32x1xbf16>
    %215 = vector.shape_cast %214 : vector<1x32x1xbf16> to vector<32x1xbf16>
    %cst_230 = arith.constant dense<0.000000e+00> : vector<8x1xf32>
    %216 = tpu.matmul %213, %215, %cst_230 {dimension_numbers = #tpu.dot_dimension_numbers<[1], [0], [0], [1], [0, 0, 1, 1], [], []>} : vector<8x32xf32>, vector<32x1xbf16>, vector<8x1xf32> -> vector<8x1xf32>
    %217 = arith.addf %212, %216 : vector<8x1xf32>
    %c9_231 = arith.constant 9 : index
    %c0_232 = arith.constant 0 : index
    %218 = vector.load %arg15[%c9_231, %c0_232] : memref<18x32xf32, #tpu.memory_space<vmem>>, vector<8x32xf32>
    %c7_233 = arith.constant 7 : index
    %c0_234 = arith.constant 0 : index
    %c0_235 = arith.constant 0 : index
    %219 = vector.load %arg12[%c7_233, %c0_234, %c0_235] : memref<9x32x1xbf16, #tpu.memory_space<vmem>>, vector<1x32x1xbf16>
    %220 = vector.shape_cast %219 : vector<1x32x1xbf16> to vector<32x1xbf16>
    %cst_236 = arith.constant dense<0.000000e+00> : vector<8x1xf32>
    %221 = tpu.matmul %218, %220, %cst_236 {dimension_numbers = #tpu.dot_dimension_numbers<[1], [0], [0], [1], [0, 0, 1, 1], [], []>} : vector<8x32xf32>, vector<32x1xbf16>, vector<8x1xf32> -> vector<8x1xf32>
    %222 = arith.addf %217, %221 : vector<8x1xf32>
    %c10_237 = arith.constant 10 : index
    %c0_238 = arith.constant 0 : index
    %223 = vector.load %arg15[%c10_237, %c0_238] : memref<18x32xf32, #tpu.memory_space<vmem>>, vector<8x32xf32>
    %c8_239 = arith.constant 8 : index
    %c0_240 = arith.constant 0 : index
    %c0_241 = arith.constant 0 : index
    %224 = vector.load %arg12[%c8_239, %c0_240, %c0_241] : memref<9x32x1xbf16, #tpu.memory_space<vmem>>, vector<1x32x1xbf16>
    %225 = vector.shape_cast %224 : vector<1x32x1xbf16> to vector<32x1xbf16>
    %cst_242 = arith.constant dense<0.000000e+00> : vector<8x1xf32>
    %226 = tpu.matmul %223, %225, %cst_242 {dimension_numbers = #tpu.dot_dimension_numbers<[1], [0], [0], [1], [0, 0, 1, 1], [], []>} : vector<8x32xf32>, vector<32x1xbf16>, vector<8x1xf32> -> vector<8x1xf32>
    %227 = arith.addf %222, %226 : vector<8x1xf32>
    %c0_243 = arith.constant 0 : index
    %c0_244 = arith.constant 0 : index
    %228 = vector.load %arg13[%c0_243, %c0_244] : memref<1x1xf32, #tpu.memory_space<vmem>>, vector<1x1xf32>
    %229 = vector.broadcast %228 : vector<1x1xf32> to vector<8x1xf32>
    %230 = arith.addf %227, %229 : vector<8x1xf32>
    %c0_245 = arith.constant 0 : index
    %c0_246 = arith.constant 0 : index
    %c0_247 = arith.constant 0 : index
    %231 = vector.load %arg14[%c0_245, %c0_246, %c0_247] : memref<1x8x1xf32, #tpu.memory_space<vmem>>, vector<1x8x1xf32>
    %232 = vector.shape_cast %231 : vector<1x8x1xf32> to vector<8x1xf32>
    %233 = vector.shape_cast %230 : vector<8x1xf32> to vector<1x8x1xf32>
    tpu.vector_store %arg14[%c0_245, %c0_246, %c0_247], %233 {strides = array<i32>} : memref<1x8x1xf32, #tpu.memory_space<vmem>>, vector<1x8x1xf32>,
    return
  }
  func.func @transform_0(%arg0: i32) -> (i32, i32, i32) {
    %c0_i32 = arith.constant 0 : i32
    %c0_i32_0 = arith.constant 0 : i32
    %c0_i32_1 = arith.constant 0 : i32
    return %arg0, %c0_i32, %c0_i32_0 : i32, i32, i32
  }
  func.func @transform_1(%arg0: i32) -> (i32, i32, i32) {
    %c0_i32 = arith.constant 0 : i32
    %c0_i32_0 = arith.constant 0 : i32
    %c0_i32_1 = arith.constant 0 : i32
    return %arg0, %c0_i32, %c0_i32_0 : i32, i32, i32
  }
  func.func @transform_2(%arg0: i32) -> (i32, i32, i32) {
    %c0_i32 = arith.constant 0 : i32
    %c0_i32_0 = arith.constant 0 : i32
    %c0_i32_1 = arith.constant 0 : i32
    return %arg0, %c0_i32, %c0_i32_0 : i32, i32, i32
  }
  func.func @transform_3(%arg0: i32) -> (i32, i32, i32) {
    %c0_i32 = arith.constant 0 : i32
    %c0_i32_0 = arith.constant 0 : i32
    %c0_i32_1 = arith.constant 0 : i32
    return %arg0, %c0_i32, %c0_i32_0 : i32, i32, i32
  }
  func.func @transform_4(%arg0: i32) -> (i32, i32) {
    %c0_i32 = arith.constant 0 : i32
    %c0_i32_0 = arith.constant 0 : i32
    %c0_i32_1 = arith.constant 0 : i32
    return %c0_i32, %c0_i32_0 : i32, i32
  }
  func.func @transform_5(%arg0: i32) -> (i32, i32, i32) {
    %c0_i32 = arith.constant 0 : i32
    %c0_i32_0 = arith.constant 0 : i32
    %c0_i32_1 = arith.constant 0 : i32
    %c0_i32_2 = arith.constant 0 : i32
    return %c0_i32, %c0_i32_0, %c0_i32_1 : i32, i32, i32
  }
  func.func @transform_6(%arg0: i32) -> (i32, i32) {
    %c0_i32 = arith.constant 0 : i32
    %c0_i32_0 = arith.constant 0 : i32
    %c0_i32_1 = arith.constant 0 : i32
    return %c0_i32, %c0_i32_0 : i32, i32
  }
  func.func @transform_7(%arg0: i32) -> (i32, i32, i32) {
    %c0_i32 = arith.constant 0 : i32
    %c0_i32_0 = arith.constant 0 : i32
    %c0_i32_1 = arith.constant 0 : i32
    %c0_i32_2 = arith.constant 0 : i32
    return %c0_i32, %c0_i32_0, %c0_i32_1 : i32, i32, i32
  }
  func.func @transform_8(%arg0: i32) -> (i32, i32) {
    %c0_i32 = arith.constant 0 : i32
    %c0_i32_0 = arith.constant 0 : i32
    %c0_i32_1 = arith.constant 0 : i32
    return %c0_i32, %c0_i32_0 : i32, i32
  }
  func.func @transform_9(%arg0: i32) -> (i32, i32, i32) {
    %c0_i32 = arith.constant 0 : i32
    %c0_i32_0 = arith.constant 0 : i32
    %c0_i32_1 = arith.constant 0 : i32
    %c0_i32_2 = arith.constant 0 : i32
    return %c0_i32, %c0_i32_0, %c0_i32_1 : i32, i32, i32
  }
  func.func @transform_10(%arg0: i32) -> (i32, i32) {
    %c0_i32 = arith.constant 0 : i32
    %c0_i32_0 = arith.constant 0 : i32
    %c0_i32_1 = arith.constant 0 : i32
    return %c0_i32, %c0_i32_0 : i32, i32
  }
  func.func @transform_11(%arg0: i32) -> (i32, i32, i32) {
    %c0_i32 = arith.constant 0 : i32
    %c0_i32_0 = arith.constant 0 : i32
    %c0_i32_1 = arith.constant 0 : i32
    %c0_i32_2 = arith.constant 0 : i32
    return %c0_i32, %c0_i32_0, %c0_i32_1 : i32, i32, i32
  }
  func.func @transform_12(%arg0: i32) -> (i32, i32) {
    %c0_i32 = arith.constant 0 : i32
    %c0_i32_0 = arith.constant 0 : i32
    %c0_i32_1 = arith.constant 0 : i32
    return %c0_i32, %c0_i32_0 : i32, i32
  }
  func.func @transform_13(%arg0: i32) -> (i32, i32, i32) {
    %c0_i32 = arith.constant 0 : i32
    %c0_i32_0 = arith.constant 0 : i32
    %c0_i32_1 = arith.constant 0 : i32
    return %arg0, %c0_i32, %c0_i32_0 : i32, i32, i32
  }
}

</mosaic_0001>

<llo_original>
// kernel: netD_forward.4
$region0: #{netD_forward.4}
  #allocation0 [shape = 'u32[]', space=smem, size = 0x4, offset = 0x4, fixed_abs, tag = 'smem constant byte address 0x4 - core index']
  #allocation1 [shape = 'u32[144,128]{1,0:T(1,128)}', space=vmem, size = 0x12000, scoped, tag = 'internal scratch']
  %s0 = inlined_call_operand.vmem [shape: bf16[2,36,8], index: 0, kind: input, shape index: {}]
  %s1 = inlined_call_operand.vmem [shape: bf16[2,36,8], index: 1, kind: input, shape index: {}]
  %s2 = inlined_call_operand.vmem [shape: bf16[2,36,8], index: 2, kind: input, shape index: {}]
  %s3 = inlined_call_operand.vmem [shape: bf16[2,36,8], index: 3, kind: input, shape index: {}]
  %s4 = inlined_call_operand.vmem [shape: bf16[9,8,16], index: 4, kind: input, shape index: {}]
  %s5 = inlined_call_operand.vmem [shape: f32[1,16], index: 5, kind: input, shape index: {}]
  %s6 = inlined_call_operand.vmem [shape: bf16[2,24,16], index: 6, kind: output, shape index: {}]
  %s7 = sld [smem:[#allocation0]]
  $region57: #{netD_forward.4} parent=0
    _
  %s9 = ssub.s32 1, %s7
  %s10 = scalar_select 0, %s9, %s7
  loop: start=0, step=1, limit=4
  $region2: #{netD_forward.4} parent=0 // loop_pre_header
    _
  $region3: #{netD_forward.4} parent=0 // loop_header
    %s12 = sphi 0, %s16
    %p13 = scmp.ge.s32.totalorder %s12, 4
    %s22 = sphi 0, %s24
    %s25 = sphi 0, %s22
    %s26 = sphi 0, %s25
    %s42 = sphi 0, %s26
    %s48 = sphi 0, %s50
    %s51 = sphi 0, %s48
    %s52 = sphi 0, %s51
    %s68 = sphi 0, %s52
    %s74 = sphi 0, %s76
    %s77 = sphi 0, %s74
    %s78 = sphi 0, %s77
    %s94 = sphi 0, %s78
    %s100 = sphi 0, %s102
    %s103 = sphi 0, %s100
    %s104 = sphi 0, %s103
    %s120 = sphi 0, %s104
    %s124 = sphi 0, %s124
    %s126 = sphi 0, %s124
    %s127 = sphi 0, %s126
    %s141 = sphi 0, %s127
    %s145 = sphi 0, %s145
    %s147 = sphi 0, %s145
    %s148 = sphi 0, %s147
    %s162 = sphi 0, %s148
    %s168 = sphi 0, %s170
    %s171 = sphi 0, %s168
    %s172 = sphi 0, %s171
    %s188 = sphi 0, %s172
  $region4: #{netD_forward.4} parent=0 // loop_header_branch
    %15 = sbr.rel (%p13) target = $region8
  $region5: #{netD_forward.4} parent=0 // loop_body
    %s17 = ssub.s32 %s12, 1
    %s18 = ssub.s32 %s12, 2
    %s19 = sadd.s32 %s12, 1
    %s20 = ssub.s32 %s12, %s19
    %p21 = scmp.eq.s32.totalorder %s20, 0
    %s23 = sadd.s32 %s22, 1
    %s24 = scalar_select %p21, %s22, %s23
    %p27 = pneg %p21
    %p28 = scmp.eq.s32.totalorder %s12, 1
    %p29 = por %p27, %p28
    %p30 = scmp.ne.s32.totalorder %s22, %s25
    %p31 = scmp.eq.s32.totalorder %s12, 0
    %p32 = por %p30, %p31
    %p33 = scmp.ne.s32.totalorder %s22, %s25
    %p34 = scmp.eq.s32.totalorder %s17, 1
    %p35 = por %p33, %p34
    %p36 = scmp.ne.s32.totalorder %s25, %s26
    %p37 = scmp.eq.s32.totalorder %s17, 0
    %p38 = por %p36, %p37
    %p39 = scmp.ne.s32.totalorder %s25, %s26
    %p40 = scmp.eq.s32.totalorder %s18, 1
    %p41 = por %p39, %p40
    %p43 = scmp.ne.s32.totalorder %s26, %s42
    %p44 = scmp.eq.s32.totalorder %s18, 0
    %p45 = por %p43, %p44
    %s46 = ssub.s32 %s12, %s19
    %p47 = scmp.eq.s32.totalorder %s46, 0
    %s49 = sadd.s32 %s48, 1
    %s50 = scalar_select %p47, %s48, %s49
    %p53 = pneg %p47
    %p54 = scmp.eq.s32.totalorder %s12, 1
    %p55 = por %p53, %p54
    %p56 = scmp.ne.s32.totalorder %s48, %s51
    %p57 = scmp.eq.s32.totalorder %s12, 0
    %p58 = por %p56, %p57
    %p59 = scmp.ne.s32.totalorder %s48, %s51
    %p60 = scmp.eq.s32.totalorder %s17, 1
    %p61 = por %p59, %p60
    %p62 = scmp.ne.s32.totalorder %s51, %s52
    %p63 = scmp.eq.s32.totalorder %s17, 0
    %p64 = por %p62, %p63
    %p65 = scmp.ne.s32.totalorder %s51, %s52
    %p66 = scmp.eq.s32.totalorder %s18, 1
    %p67 = por %p65, %p66
    %p69 = scmp.ne.s32.totalorder %s52, %s68
    %p70 = scmp.eq.s32.totalorder %s18, 0
    %p71 = por %p69, %p70
    %s72 = ssub.s32 %s12, %s19
    %p73 = scmp.eq.s32.totalorder %s72, 0
    %s75 = sadd.s32 %s74, 1
    %s76 = scalar_select %p73, %s74, %s75
    %p79 = pneg %p73
    %p80 = scmp.eq.s32.totalorder %s12, 1
    %p81 = por %p79, %p80
    %p82 = scmp.ne.s32.totalorder %s74, %s77
    %p83 = scmp.eq.s32.totalorder %s12, 0
    %p84 = por %p82, %p83
    %p85 = scmp.ne.s32.totalorder %s74, %s77
    %p86 = scmp.eq.s32.totalorder %s17, 1
    %p87 = por %p85, %p86
    %p88 = scmp.ne.s32.totalorder %s77, %s78
    %p89 = scmp.eq.s32.totalorder %s17, 0
    %p90 = por %p88, %p89
    %p91 = scmp.ne.s32.totalorder %s77, %s78
    %p92 = scmp.eq.s32.totalorder %s18, 1
    %p93 = por %p91, %p92
    %p95 = scmp.ne.s32.totalorder %s78, %s94
    %p96 = scmp.eq.s32.totalorder %s18, 0
    %p97 = por %p95, %p96
    %s98 = ssub.s32 %s12, %s19
    %p99 = scmp.eq.s32.totalorder %s98, 0
    %s101 = sadd.s32 %s100, 1
    %s102 = scalar_select %p99, %s100, %s101
    %p105 = pneg %p99
    %p106 = scmp.eq.s32.totalorder %s12, 1
    %p107 = por %p105, %p106
    %p108 = scmp.ne.s32.totalorder %s100, %s103
    %p109 = scmp.eq.s32.totalorder %s12, 0
    %p110 = por %p108, %p109
    %p111 = scmp.ne.s32.totalorder %s100, %s103
    %p112 = scmp.eq.s32.totalorder %s17, 1
    %p113 = por %p111, %p112
    %p114 = scmp.ne.s32.totalorder %s103, %s104
    %p115 = scmp.eq.s32.totalorder %s17, 0
    %p116 = por %p114, %p115
    %p117 = scmp.ne.s32.totalorder %s103, %s104
    %p118 = scmp.eq.s32.totalorder %s18, 1
    %p119 = por %p117, %p118
    %p121 = scmp.ne.s32.totalorder %s104, %s120
    %p122 = scmp.eq.s32.totalorder %s18, 0
    %p123 = por %p121, %p122
    %s125 = sadd.s32 %s124, 1
    %p128 = scmp.eq.s32.totalorder %s12, 1
    %p129 = scmp.ne.s32.totalorder %s124, %s126
    %p130 = scmp.eq.s32.totalorder %s12, 0
    %p131 = por %p129, %p130
    %p132 = scmp.ne.s32.totalorder %s124, %s126
    %p133 = scmp.eq.s32.totalorder %s17, 1
    %p134 = por %p132, %p133
    %p135 = scmp.ne.s32.totalorder %s126, %s127
    %p136 = scmp.eq.s32.totalorder %s17, 0
    %p137 = por %p135, %p136
    %p138 = scmp.ne.s32.totalorder %s126, %s127
    %p139 = scmp.eq.s32.totalorder %s18, 1
    %p140 = por %p138, %p139
    %p142 = scmp.ne.s32.totalorder %s127, %s141
    %p143 = scmp.eq.s32.totalorder %s18, 0
    %p144 = por %p142, %p143
    %s146 = sadd.s32 %s145, 1
    %p149 = scmp.eq.s32.totalorder %s12, 1
    %p150 = scmp.ne.s32.totalorder %s145, %s147
    %p151 = scmp.eq.s32.totalorder %s12, 0
    %p152 = por %p150, %p151
    %p153 = scmp.ne.s32.totalorder %s145, %s147
    %p154 = scmp.eq.s32.totalorder %s17, 1
    %p155 = por %p153, %p154
    %p156 = scmp.ne.s32.totalorder %s147, %s148
    %p157 = scmp.eq.s32.totalorder %s17, 0
    %p158 = por %p156, %p157
    %p159 = scmp.ne.s32.totalorder %s147, %s148
    %p160 = scmp.eq.s32.totalorder %s18, 1
    %p161 = por %p159, %p160
    %p163 = scmp.ne.s32.totalorder %s148, %s162
    %p164 = scmp.eq.s32.totalorder %s18, 0
    %p165 = por %p163, %p164
    %s166 = ssub.s32 %s12, %s19
    %p167 = scmp.eq.s32.totalorder %s166, 0
    %s169 = sadd.s32 %s168, 1
    %s170 = scalar_select %p167, %s168, %s169
    %p173 = pneg %p167
    %p174 = scmp.eq.s32.totalorder %s12, 1
    %p175 = por %p173, %p174
    %p176 = scmp.ne.s32.totalorder %s168, %s171
    %p177 = scmp.eq.s32.totalorder %s12, 0
    %p178 = por %p176, %p177
    %p179 = scmp.ne.s32.totalorder %s168, %s171
    %p180 = scmp.eq.s32.totalorder %s17, 1
    %p181 = por %p179, %p180
    %p182 = scmp.ne.s32.totalorder %s171, %s172
    %p183 = scmp.eq.s32.totalorder %s17, 0
    %p184 = por %p182, %p183
    %p185 = scmp.ne.s32.totalorder %s171, %s172
    %p186 = scmp.eq.s32.totalorder %s18, 1
    %p187 = por %p185, %p186
    %p189 = scmp.ne.s32.totalorder %s172, %s188
    %p190 = scmp.eq.s32.totalorder %s18, 0
    %p191 = por %p189, %p190
    %p192 = scmp.le.s32.totalorder 1, %s12
    %p193 = scmp.lt.s32.totalorder %s12, 3
    %p194 = pnand %p192, %p193
    %p195 = pneg %p194
    // Predicated region
    $region9: #{netD_forward.4} parent=5 // pred_check
      _
    $region10: #{netD_forward.4} parent=5 // pred_check_branch
      %197 = sbr.rel (%p194) target = $region12
    $region11: #{netD_forward.4} parent=5 // pred_region
      %s198 = ssub.s32 %s12, 1
      // Predicated region
      $region13: #{netD_forward.4} parent=11 // pred_check
        %p199 = pneg %p137
      $region14: #{netD_forward.4} parent=11 // pred_check_branch
        %201 = sbr.rel (%p199) target = $region16
      $region15: #{netD_forward.4} parent=11 // pred_region
        _
      $region16: #{netD_forward.4} parent=11 // pred_fallthru
        _
      // Predicated region
      $region17: #{netD_forward.4} parent=11 // pred_check
        %p202 = pneg %p158
      $region18: #{netD_forward.4} parent=11 // pred_check_branch
        %204 = sbr.rel (%p202) target = $region20
      $region19: #{netD_forward.4} parent=11 // pred_region
        _
      $region20: #{netD_forward.4} parent=11 // pred_fallthru
        _
    $region12: #{netD_forward.4} parent=5 // pred_fallthru
      _
    %p205 = scmp.lt.s32.totalorder %s12, 2
    // Predicated region
    $region21: #{netD_forward.4} parent=5 // pred_check
      %p206 = pneg %p205
    $region22: #{netD_forward.4} parent=5 // pred_check_branch
      %208 = sbr.rel (%p206) target = $region24
    $region23: #{netD_forward.4} parent=5 // pred_region
      // Predicated region
      $region25: #{netD_forward.4} parent=23 // pred_check
        %p209 = pneg %p32
      $region26: #{netD_forward.4} parent=23 // pred_check_branch
        %211 = sbr.rel (%p209) target = $region28
      $region27: #{netD_forward.4} parent=23 // pred_region
        %p212 = scmp.lt.s32.totalorder %s12, 1
        %s213 = scalar_select %p212, %s12, 1
        %s214 = smul.addr %s213, 5
        %s215 = smul.addr %s214, 4
        %s216 = scalar_lea.vmem %s0, %s215
      $region28: #{netD_forward.4} parent=23 // pred_fallthru
        _
      // Predicated region
      $region29: #{netD_forward.4} parent=23 // pred_check
        %p217 = pneg %p58
      $region30: #{netD_forward.4} parent=23 // pred_check_branch
        %219 = sbr.rel (%p217) target = $region32
      $region31: #{netD_forward.4} parent=23 // pred_region
        %p220 = scmp.lt.s32.totalorder %s12, 1
        %s221 = scalar_select %p220, %s12, 1
        %s222 = smul.addr %s221, 5
        %s223 = smul.addr %s222, 4
        %s224 = scalar_lea.vmem %s1, %s223
      $region32: #{netD_forward.4} parent=23 // pred_fallthru
        _
      // Predicated region
      $region33: #{netD_forward.4} parent=23 // pred_check
        %p225 = pneg %p84
      $region34: #{netD_forward.4} parent=23 // pred_check_branch
        %227 = sbr.rel (%p225) target = $region36
      $region35: #{netD_forward.4} parent=23 // pred_region
        %p228 = scmp.lt.s32.totalorder %s12, 1
        %s229 = scalar_select %p228, %s12, 1
        %s230 = smul.addr %s229, 5
        %s231 = smul.addr %s230, 4
        %s232 = scalar_lea.vmem %s2, %s231
      $region36: #{netD_forward.4} parent=23 // pred_fallthru
        _
      // Predicated region
      $region37: #{netD_forward.4} parent=23 // pred_check
        %p233 = pneg %p110
      $region38: #{netD_forward.4} parent=23 // pred_check_branch
        %235 = sbr.rel (%p233) target = $region40
      $region39: #{netD_forward.4} parent=23 // pred_region
        %p236 = scmp.lt.s32.totalorder %s12, 1
        %s237 = scalar_select %p236, %s12, 1
        %s238 = smul.addr %s237, 5
        %s239 = smul.addr %s238, 4
        %s240 = scalar_lea.vmem %s3, %s239
      $region40: #{netD_forward.4} parent=23 // pred_fallthru
        _
    $region24: #{netD_forward.4} parent=5 // pred_fallthru
      _
    %p241 = scmp.le.s32.totalorder 1, %s12
    %p242 = scmp.lt.s32.totalorder %s12, 3
    %p243 = pnand %p241, %p242
    %p244 = pneg %p243
    // Predicated region
    $region41: #{netD_forward.4} parent=5 // pred_check
      _
    $region42: #{netD_forward.4} parent=5 // pred_check_branch
      %246 = sbr.rel (%p243) target = $region44
    $region43: #{netD_forward.4} parent=5 // pred_region
      %s247 = ssub.s32 %s12, 1
      %p248 = scmp.lt.s32.totalorder %s17, 1
      %s249 = scalar_select %p248, %s17, 1
      %s250 = smul.addr %s249, 5
      %s251 = smul.addr %s250, 4
      %s252 = scalar_lea.vmem %s0, %s251
      %p253 = pneg %p38
      %p254 = pneg %p35
      %p255 = scmp.lt.s32.totalorder %s17, 1
      %s256 = scalar_select %p255, %s17, 1
      %s257 = smul.addr %s256, 5
      %s258 = smul.addr %s257, 4
      %s259 = scalar_lea.vmem %s1, %s258
      %p260 = pneg %p64
      %p261 = pneg %p61
      %p262 = scmp.lt.s32.totalorder %s17, 1
      %s263 = scalar_select %p262, %s17, 1
      %s264 = smul.addr %s263, 5
      %s265 = smul.addr %s264, 4
      %s266 = scalar_lea.vmem %s2, %s265
      %p267 = pneg %p90
      %p268 = pneg %p87
      %p269 = scmp.lt.s32.totalorder %s17, 1
      %s270 = scalar_select %p269, %s17, 1
      %s271 = smul.addr %s270, 5
      %s272 = smul.addr %s271, 4
      %s273 = scalar_lea.vmem %s3, %s272
      %p274 = pneg %p116
      %p275 = pneg %p113
      %p276 = pneg %p137
      %p277 = pneg %p134
      %p278 = pneg %p158
      %p279 = pneg %p155
      %p280 = pneg %p184
      %p281 = pneg %p181
      %p282 = scmp.lt.s32.totalorder %s17, 1
      %s283 = scalar_select %p282, %s17, 1
      %s284 = smul.addr %s283, 3
      %s285 = smul.addr %s284, 4
      %s286 = scalar_lea.vmem %s6, %s285
      %p287 = scmp.lt.s32.totalorder %s17, 1
      %s288 = scalar_select %p287, %s17, 1
      %s289 = smul.addr %s288, 5
      %s290 = smul.addr %s289, 4
      %s291 = scalar_lea.vmem %s0, %s290
      %p292 = scmp.lt.s32.totalorder %s17, 1
      %s293 = scalar_select %p292, %s17, 1
      %s294 = smul.addr %s293, 5
      %s295 = smul.addr %s294, 4
      %s296 = scalar_lea.vmem %s1, %s295
      %p297 = scmp.lt.s32.totalorder %s17, 1
      %s298 = scalar_select %p297, %s17, 1
      %s299 = smul.addr %s298, 5
      %s300 = smul.addr %s299, 4
      %s301 = scalar_lea.vmem %s2, %s300
      %p302 = scmp.lt.s32.totalorder %s17, 1
      %s303 = scalar_select %p302, %s17, 1
      %s304 = smul.addr %s303, 5
      %s305 = smul.addr %s304, 4
      %s306 = scalar_lea.vmem %s3, %s305
      %p307 = scmp.lt.s32.totalorder %s17, 1
      %s308 = scalar_select %p307, %s17, 1
      %s309 = smul.addr %s308, 3
      %s310 = smul.addr %s309, 4
      %s311 = scalar_lea.vmem %s6, %s310
      %v313 = vld [vmem:[%s291] sm:$0xf]
      %v314 = vld [vmem:[%s291 + $0x4] sm:$0xf]
      %v315 = vld [vmem:[%s291 + $0x8] sm:$0xf]
      %v316 = vld [vmem:[%s4] sm:$0xf]
      %v317 = vld [vmem:[%s296] sm:$0xf]
      %v318 = vld [vmem:[%s296 + $0x4] sm:$0xf]
      %v319 = vld [vmem:[%s296 + $0x8] sm:$0xf]
      %s320 = scalar_lea.vmem %s4, 4
      %v321 = vld [vmem:[%s320] sm:$0xf]
      %v325 = vunpack.c.l.b16 %v317
      %v326 = vunpack.c.l.b16 %v318
      %v327 = vunpack.c.l.b16 %v319
      %v328 = vpack.c.b16 %v326, %v325
      %v329 = vpack.c.b16 %v327, %v327
      %vm330 = vcmask 64512
      %v332 = vsel %vm330, %v328, 0
      %v335 = vsel %vm330, %v329, 0
      %vm337 = vcmask 1043456
      %v339 = vsel %vm337, %v321, 0
      %341 = vmatprep.subr.bf16.mxu0 0
      %342 = vmatpush1.bf16.msra.mxu0 %v339
      %343 = vmatprep.subr.bf16.mxu0 0
      %344 = vmatpush1.bf16.msra.mxu0 0
      %345 = vmatprep.subr.bf16.mxu0 0
      %346 = vmatpush1.bf16.msra.mxu0 0
      %347 = vmatprep.subr.bf16.mxu0 0
      %348 = vmatpush1.bf16.msra.mxu0 0
      %349 = vmatprep.subr.bf16.mxu0 0
      %350 = vmatpush1.bf16.msra.mxu0 0
      %351 = vmatprep.subr.bf16.mxu0 0
      %352 = vmatpush1.bf16.msra.mxu0 0
      %353 = vmatprep.subr.bf16.mxu0 0
      %354 = vmatpush1.bf16.msra.mxu0 0
      %355 = vmatprep.subr.bf16.mxu0 0
      %356 = vmatpush1.bf16.msra.mxu0 0
      %357 = vmatprep.subr.bf16.mxu0 0
      %358 = vmatpush1.bf16.msra.mxu0 0
      %359 = vmatprep.subr.bf16.mxu0 0
      %360 = vmatpush1.bf16.msra.mxu0 0
      %361 = vmatprep.subr.bf16.mxu0 0
      %362 = vmatpush1.bf16.msra.mxu0 0
      %363 = vmatprep.subr.bf16.mxu0 0
      %364 = vmatpush1.bf16.msra.mxu0 0
      %365 = vmatprep.subr.bf16.mxu0 0
      %366 = vmatpush1.bf16.msra.mxu0 0
      %367 = vmatprep.subr.bf16.mxu0 0
      %368 = vmatpush1.bf16.msra.mxu0 0
      %369 = vmatprep.subr.bf16.mxu0 0
      %370 = vmatpush1.bf16.msra.mxu0 0
      %371 = vmatprep.subr.bf16.mxu0 0
      %372 = vmatpush1.bf16.msra.mxu0 0
      %373 = vmatprep.mubr.bf16.mxu0 0
      %374 = vmatmul.mubr.bf16.gmra.mrb[0].mxu0 %v332
      %v375 = vpop.f32.mrb[0].mxu0
      %v376 = vadd.f32 0.0, %v375
      %v377 = vpop.f32.mrb[0].mxu0
      %v378 = vpop.f32.mrb[0].mxu0
      %v379 = vadd.f32 0.0, %v378
      %v380 = vpop.f32.mrb[0].mxu0
      %381 = vmatprep.mubr.bf16.mxu0 0
      %382 = vmatmul.mubr.bf16.gmra.mrb[0].mxu0 %v335
      %v383 = vpop.f32.mrb[0].mxu0
      %v384 = vadd.f32 0.0, %v383
      %v385 = vpop.f32.mrb[0].mxu0
      %v386 = vpop.f32.mrb[0].mxu0
      %v387 = vpop.f32.mrb[0].mxu0
      %388 = vdwg.mxu0
      %v392 = vunpack.c.l.b16 %v313
      %v393 = vunpack.c.l.b16 %v314
      %v394 = vunpack.c.l.b16 %v315
      %v395 = vpack.c.b16 %v393, %v392
      %v396 = vpack.c.b16 %v394, %v394
      %v398 = vsel %vm330, %v395, 0
      %v401 = vsel %vm330, %v396, 0
      %v404 = vsel %vm337, %v316, 0
      %406 = vmatprep.subr.bf16.mxu0 0
      %407 = vmatpush1.bf16.msra.mxu0 %v404
      %408 = vmatprep.subr.bf16.mxu0 0
      %409 = vmatpush1.bf16.msra.mxu0 0
      %410 = vmatprep.subr.bf16.mxu0 0
      %411 = vmatpush1.bf16.msra.mxu0 0
      %412 = vmatprep.subr.bf16.mxu0 0
      %413 = vmatpush1.bf16.msra.mxu0 0
      %414 = vmatprep.subr.bf16.mxu0 0
      %415 = vmatpush1.bf16.msra.mxu0 0
      %416 = vmatprep.subr.bf16.mxu0 0
      %417 = vmatpush1.bf16.msra.mxu0 0
      %418 = vmatprep.subr.bf16.mxu0 0
      %419 = vmatpush1.bf16.msra.mxu0 0
      %420 = vmatprep.subr.bf16.mxu0 0
      %421 = vmatpush1.bf16.msra.mxu0 0
      %422 = vmatprep.subr.bf16.mxu0 0
      %423 = vmatpush1.bf16.msra.mxu0 0
      %424 = vmatprep.subr.bf16.mxu0 0
      %425 = vmatpush1.bf16.msra.mxu0 0
      %426 = vmatprep.subr.bf16.mxu0 0
      %427 = vmatpush1.bf16.msra.mxu0 0
      %428 = vmatprep.subr.bf16.mxu0 0
      %429 = vmatpush1.bf16.msra.mxu0 0
      %430 = vmatprep.subr.bf16.mxu0 0
      %431 = vmatpush1.bf16.msra.mxu0 0
      %432 = vmatprep.subr.bf16.mxu0 0
      %433 = vmatpush1.bf16.msra.mxu0 0
      %434 = vmatprep.subr.bf16.mxu0 0
      %435 = vmatpush1.bf16.msra.mxu0 0
      %436 = vmatprep.subr.bf16.mxu0 0
      %437 = vmatpush1.bf16.msra.mxu0 0
      %438 = vmatprep.mubr.bf16.mxu0 0
      %439 = vmatmul.mubr.bf16.gmra.mrb[0].mxu0 %v398
      %v440 = vpop.f32.mrb[0].mxu0
      %v441 = vadd.f32 %v376, %v440
      %v442 = vpop.f32.mrb[0].mxu0
      %v443 = vpop.f32.mrb[0].mxu0
      %v444 = vadd.f32 %v379, %v443
      %v445 = vpop.f32.mrb[0].mxu0
      %446 = vmatprep.mubr.bf16.mxu0 0
      %447 = vmatmul.mubr.bf16.gmra.mrb[0].mxu0 %v401
      %v448 = vpop.f32.mrb[0].mxu0
      %v449 = vadd.f32 %v384, %v448
      %v450 = vpop.f32.mrb[0].mxu0
      %v451 = vpop.f32.mrb[0].mxu0
      %v452 = vpop.f32.mrb[0].mxu0
      %453 = vdwg.mxu0
      %v454 = vld [vmem:[%s291] sm:$0xf]
      %v455 = vld [vmem:[%s291 + $0x4] sm:$0xf]
      %v456 = vld [vmem:[%s291 + $0x8] sm:$0xf]
      %v457 = vld [vmem:[%s291 + $0xc] sm:$0x1]
      %s458 = scalar_lea.vmem %s4, 8
      %v459 = vld [vmem:[%s458] sm:$0xf]
      %v464 = vunpack.c.l.b16 %v454
      %v465 = vunpack.c.l.b16 %v455
      %v466 = vunpack.c.l.b16 %v456
      %v467 = vunpack.c.l.b16 %v457
      %v468 = vpack.c.b16 %v465, %v464
      %v469 = vpack.c.b16 %v467, %v466
      %vm470 = vsmask.f32 7424
      %v472 = vshrl.u32 %v468, 16
      %v474 = vshll.u32 %v468, 16
      %v476 = vrot.slane %v474, 1
      %v477 = vor.u32 %v472, %v476
      %v479 = vshll.u32 %v469, 16
      %v481 = vrot.slane %v479, 1
      %v482 = vsel %vm470, %v477, %v481
      %v483 = vshrl.u32 %v469, 16
      %v485 = vor.u32 %v483, %v481
      %v487 = vsel %vm330, %v482, 0
      %v490 = vsel %vm330, %v485, 0
      %v493 = vsel %vm337, %v459, 0
      %495 = vmatprep.subr.bf16.mxu0 0
      %496 = vmatpush1.bf16.msra.mxu0 %v493
      %497 = vmatprep.subr.bf16.mxu0 0
      %498 = vmatpush1.bf16.msra.mxu0 0
      %499 = vmatprep.subr.bf16.mxu0 0
      %500 = vmatpush1.bf16.msra.mxu0 0
      %501 = vmatprep.subr.bf16.mxu0 0
      %502 = vmatpush1.bf16.msra.mxu0 0
      %503 = vmatprep.subr.bf16.mxu0 0
      %504 = vmatpush1.bf16.msra.mxu0 0
      %505 = vmatprep.subr.bf16.mxu0 0
      %506 = vmatpush1.bf16.msra.mxu0 0
      %507 = vmatprep.subr.bf16.mxu0 0
      %508 = vmatpush1.bf16.msra.mxu0 0
      %509 = vmatprep.subr.bf16.mxu0 0
      %510 = vmatpush1.bf16.msra.mxu0 0
      %511 = vmatprep.subr.bf16.mxu0 0
      %512 = vmatpush1.bf16.msra.mxu0 0
      %513 = vmatprep.subr.bf16.mxu0 0
      %514 = vmatpush1.bf16.msra.mxu0 0
      %515 = vmatprep.subr.bf16.mxu0 0
      %516 = vmatpush1.bf16.msra.mxu0 0
      %517 = vmatprep.subr.bf16.mxu0 0
      %518 = vmatpush1.bf16.msra.mxu0 0
      %519 = vmatprep.subr.bf16.mxu0 0
      %520 = vmatpush1.bf16.msra.mxu0 0
      %521 = vmatprep.subr.bf16.mxu0 0
      %522 = vmatpush1.bf16.msra.mxu0 0
      %523 = vmatprep.subr.bf16.mxu0 0
      %524 = vmatpush1.bf16.msra.mxu0 0
      %525 = vmatprep.subr.bf16.mxu0 0
      %526 = vmatpush1.bf16.msra.mxu0 0
      %527 = vmatprep.mubr.bf16.mxu0 0
      %528 = vmatmul.mubr.bf16.gmra.mrb[0].mxu0 %v487
      %v529 = vpop.f32.mrb[0].mxu0
      %v530 = vadd.f32 0.0, %v529
      %v531 = vpop.f32.mrb[0].mxu0
      %v532 = vpop.f32.mrb[0].mxu0
      %v533 = vadd.f32 0.0, %v532
      %v534 = vpop.f32.mrb[0].mxu0
      %535 = vmatprep.mubr.bf16.mxu0 0
      %536 = vmatmul.mubr.bf16.gmra.mrb[0].mxu0 %v490
      %v537 = vpop.f32.mrb[0].mxu0
      %v538 = vadd.f32 0.0, %v537
      %v539 = vpop.f32.mrb[0].mxu0
      %v540 = vpop.f32.mrb[0].mxu0
      %v541 = vpop.f32.mrb[0].mxu0
      %542 = vdwg.mxu0
      %v543 = vadd.f32 %v441, %v530
      %v544 = vadd.f32 %v444, %v533
      %v545 = vadd.f32 %v449, %v538
      %v546 = vld [vmem:[%s301] sm:$0xf]
      %v547 = vld [vmem:[%s301 + $0x4] sm:$0xf]
      %v548 = vld [vmem:[%s301 + $0x8] sm:$0xf]
      %s549 = scalar_lea.vmem %s4, 12
      %v550 = vld [vmem:[%s549] sm:$0xf]
      %v554 = vunpack.c.l.b16 %v546
      %v555 = vunpack.c.l.b16 %v547
      %v556 = vunpack.c.l.b16 %v548
      %v557 = vpack.c.b16 %v555, %v554
      %v558 = vpack.c.b16 %v556, %v556
      %v560 = vsel %vm330, %v557, 0
      %v563 = vsel %vm330, %v558, 0
      %v566 = vsel %vm337, %v550, 0
      %568 = vmatprep.subr.bf16.mxu0 0
      %569 = vmatpush1.bf16.msra.mxu0 %v566
      %570 = vmatprep.subr.bf16.mxu0 0
      %571 = vmatpush1.bf16.msra.mxu0 0
      %572 = vmatprep.subr.bf16.mxu0 0
      %573 = vmatpush1.bf16.msra.mxu0 0
      %574 = vmatprep.subr.bf16.mxu0 0
      %575 = vmatpush1.bf16.msra.mxu0 0
      %576 = vmatprep.subr.bf16.mxu0 0
      %577 = vmatpush1.bf16.msra.mxu0 0
      %578 = vmatprep.subr.bf16.mxu0 0
      %579 = vmatpush1.bf16.msra.mxu0 0
      %580 = vmatprep.subr.bf16.mxu0 0
      %581 = vmatpush1.bf16.msra.mxu0 0
      %582 = vmatprep.subr.bf16.mxu0 0
      %583 = vmatpush1.bf16.msra.mxu0 0
      %584 = vmatprep.subr.bf16.mxu0 0
      %585 = vmatpush1.bf16.msra.mxu0 0
      %586 = vmatprep.subr.bf16.mxu0 0
      %587 = vmatpush1.bf16.msra.mxu0 0
      %588 = vmatprep.subr.bf16.mxu0 0
      %589 = vmatpush1.bf16.msra.mxu0 0
      %590 = vmatprep.subr.bf16.mxu0 0
      %591 = vmatpush1.bf16.msra.mxu0 0
      %592 = vmatprep.subr.bf16.mxu0 0
      %593 = vmatpush1.bf16.msra.mxu0 0
      %594 = vmatprep.subr.bf16.mxu0 0
      %595 = vmatpush1.bf16.msra.mxu0 0
      %596 = vmatprep.subr.bf16.mxu0 0
      %597 = vmatpush1.bf16.msra.mxu0 0
      %598 = vmatprep.subr.bf16.mxu0 0
      %599 = vmatpush1.bf16.msra.mxu0 0
      %600 = vmatprep.mubr.bf16.mxu0 0
      %601 = vmatmul.mubr.bf16.gmra.mrb[0].mxu0 %v560
      %v602 = vpop.f32.mrb[0].mxu0
      %v603 = vadd.f32 0.0, %v602
      %v604 = vpop.f32.mrb[0].mxu0
      %v605 = vpop.f32.mrb[0].mxu0
      %v606 = vadd.f32 0.0, %v605
      %v607 = vpop.f32.mrb[0].mxu0
      %608 = vmatprep.mubr.bf16.mxu0 0
      %609 = vmatmul.mubr.bf16.gmra.mrb[0].mxu0 %v563
      %v610 = vpop.f32.mrb[0].mxu0
      %v611 = vadd.f32 0.0, %v610
      %v612 = vpop.f32.mrb[0].mxu0
      %v613 = vpop.f32.mrb[0].mxu0
      %v614 = vpop.f32.mrb[0].mxu0
      %615 = vdwg.mxu0
      %v616 = vadd.f32 %v543, %v603
      %v617 = vadd.f32 %v544, %v606
      %v618 = vadd.f32 %v545, %v611
      %v619 = vld [vmem:[%s306] sm:$0xf]
      %v620 = vld [vmem:[%s306 + $0x4] sm:$0xf]
      %v621 = vld [vmem:[%s306 + $0x8] sm:$0xf]
      %s622 = scalar_lea.vmem %s4, 16
      %v623 = vld [vmem:[%s622] sm:$0xf]
      %v627 = vunpack.c.l.b16 %v619
      %v628 = vunpack.c.l.b16 %v620
      %v629 = vunpack.c.l.b16 %v621
      %v630 = vpack.c.b16 %v628, %v627
      %v631 = vpack.c.b16 %v629, %v629
      %v633 = vsel %vm330, %v630, 0
      %v636 = vsel %vm330, %v631, 0
      %v639 = vsel %vm337, %v623, 0
      %641 = vmatprep.subr.bf16.mxu0 0
      %642 = vmatpush1.bf16.msra.mxu0 %v639
      %643 = vmatprep.subr.bf16.mxu0 0
      %644 = vmatpush1.bf16.msra.mxu0 0
      %645 = vmatprep.subr.bf16.mxu0 0
      %646 = vmatpush1.bf16.msra.mxu0 0
      %647 = vmatprep.subr.bf16.mxu0 0
      %648 = vmatpush1.bf16.msra.mxu0 0
      %649 = vmatprep.subr.bf16.mxu0 0
      %650 = vmatpush1.bf16.msra.mxu0 0
      %651 = vmatprep.subr.bf16.mxu0 0
      %652 = vmatpush1.bf16.msra.mxu0 0
      %653 = vmatprep.subr.bf16.mxu0 0
      %654 = vmatpush1.bf16.msra.mxu0 0
      %655 = vmatprep.subr.bf16.mxu0 0
      %656 = vmatpush1.bf16.msra.mxu0 0
      %657 = vmatprep.subr.bf16.mxu0 0
      %658 = vmatpush1.bf16.msra.mxu0 0
      %659 = vmatprep.subr.bf16.mxu0 0
      %660 = vmatpush1.bf16.msra.mxu0 0
      %661 = vmatprep.subr.bf16.mxu0 0
      %662 = vmatpush1.bf16.msra.mxu0 0
      %663 = vmatprep.subr.bf16.mxu0 0
      %664 = vmatpush1.bf16.msra.mxu0 0
      %665 = vmatprep.subr.bf16.mxu0 0
      %666 = vmatpush1.bf16.msra.mxu0 0
      %667 = vmatprep.subr.bf16.mxu0 0
      %668 = vmatpush1.bf16.msra.mxu0 0
      %669 = vmatprep.subr.bf16.mxu0 0
      %670 = vmatpush1.bf16.msra.mxu0 0
      %671 = vmatprep.subr.bf16.mxu0 0
      %672 = vmatpush1.bf16.msra.mxu0 0
      %673 = vmatprep.mubr.bf16.mxu0 0
      %674 = vmatmul.mubr.bf16.gmra.mrb[0].mxu0 %v633
      %v675 = vpop.f32.mrb[0].mxu0
      %v676 = vadd.f32 0.0, %v675
      %v677 = vpop.f32.mrb[0].mxu0
      %v678 = vpop.f32.mrb[0].mxu0
      %v679 = vadd.f32 0.0, %v678
      %v680 = vpop.f32.mrb[0].mxu0
      %681 = vmatprep.mubr.bf16.mxu0 0
      %682 = vmatmul.mubr.bf16.gmra.mrb[0].mxu0 %v636
      %v683 = vpop.f32.mrb[0].mxu0
      %v684 = vadd.f32 0.0, %v683
      %v685 = vpop.f32.mrb[0].mxu0
      %v686 = vpop.f32.mrb[0].mxu0
      %v687 = vpop.f32.mrb[0].mxu0
      %688 = vdwg.mxu0
      %v689 = vadd.f32 %v616, %v676
      %v690 = vadd.f32 %v617, %v679
      %v691 = vadd.f32 %v618, %v684
      %v692 = vld [vmem:[%s301] sm:$0xf]
      %v693 = vld [vmem:[%s301 + $0x4] sm:$0xf]
      %v694 = vld [vmem:[%s301 + $0x8] sm:$0xf]
      %v695 = vld [vmem:[%s301 + $0xc] sm:$0x1]
      %s696 = scalar_lea.vmem %s4, 20
      %v697 = vld [vmem:[%s696] sm:$0xf]
      %v702 = vunpack.c.l.b16 %v692
      %v703 = vunpack.c.l.b16 %v693
      %v704 = vunpack.c.l.b16 %v694
      %v705 = vunpack.c.l.b16 %v695
      %v706 = vpack.c.b16 %v703, %v702
      %v707 = vpack.c.b16 %v705, %v704
      %v709 = vshrl.u32 %v706, 16
      %v711 = vshll.u32 %v706, 16
      %v713 = vrot.slane %v711, 1
      %v714 = vor.u32 %v709, %v713
      %v716 = vshll.u32 %v707, 16
      %v718 = vrot.slane %v716, 1
      %v719 = vsel %vm470, %v714, %v718
      %v720 = vshrl.u32 %v707, 16
      %v722 = vor.u32 %v720, %v718
      %v724 = vsel %vm330, %v719, 0
      %v727 = vsel %vm330, %v722, 0
      %v730 = vsel %vm337, %v697, 0
      %732 = vmatprep.subr.bf16.mxu0 0
      %733 = vmatpush1.bf16.msra.mxu0 %v730
      %734 = vmatprep.subr.bf16.mxu0 0
      %735 = vmatpush1.bf16.msra.mxu0 0
      %736 = vmatprep.subr.bf16.mxu0 0
      %737 = vmatpush1.bf16.msra.mxu0 0
      %738 = vmatprep.subr.bf16.mxu0 0
      %739 = vmatpush1.bf16.msra.mxu0 0
      %740 = vmatprep.subr.bf16.mxu0 0
      %741 = vmatpush1.bf16.msra.mxu0 0
      %742 = vmatprep.subr.bf16.mxu0 0
      %743 = vmatpush1.bf16.msra.mxu0 0
      %744 = vmatprep.subr.bf16.mxu0 0
      %745 = vmatpush1.bf16.msra.mxu0 0
      %746 = vmatprep.subr.bf16.mxu0 0
      %747 = vmatpush1.bf16.msra.mxu0 0
      %748 = vmatprep.subr.bf16.mxu0 0
      %749 = vmatpush1.bf16.msra.mxu0 0
      %750 = vmatprep.subr.bf16.mxu0 0
      %751 = vmatpush1.bf16.msra.mxu0 0
      %752 = vmatprep.subr.bf16.mxu0 0
      %753 = vmatpush1.bf16.msra.mxu0 0
      %754 = vmatprep.subr.bf16.mxu0 0
      %755 = vmatpush1.bf16.msra.mxu0 0
      %756 = vmatprep.subr.bf16.mxu0 0
      %757 = vmatpush1.bf16.msra.mxu0 0
      %758 = vmatprep.subr.bf16.mxu0 0
      %759 = vmatpush1.bf16.msra.mxu0 0
      %760 = vmatprep.subr.bf16.mxu0 0
      %761 = vmatpush1.bf16.msra.mxu0 0
      %762 = vmatprep.subr.bf16.mxu0 0
      %763 = vmatpush1.bf16.msra.mxu0 0
      %764 = vmatprep.mubr.bf16.mxu0 0
      %765 = vmatmul.mubr.bf16.gmra.mrb[0].mxu0 %v724
      %v766 = vpop.f32.mrb[0].mxu0
      %v767 = vadd.f32 0.0, %v766
      %v768 = vpop.f32.mrb[0].mxu0
      %v769 = vpop.f32.mrb[0].mxu0
      %v770 = vadd.f32 0.0, %v769
      %v771 = vpop.f32.mrb[0].mxu0
      %772 = vmatprep.mubr.bf16.mxu0 0
      %773 = vmatmul.mubr.bf16.gmra.mrb[0].mxu0 %v727
      %v774 = vpop.f32.mrb[0].mxu0
      %v775 = vadd.f32 0.0, %v774
      %v776 = vpop.f32.mrb[0].mxu0
      %v777 = vpop.f32.mrb[0].mxu0
      %v778 = vpop.f32.mrb[0].mxu0
      %779 = vdwg.mxu0
      %v780 = vadd.f32 %v689, %v767
      %v781 = vadd.f32 %v690, %v770
      %v782 = vadd.f32 %v691, %v775
      %v783 = vld [vmem:[%s291] sm:$0x8]
      %v784 = vld [vmem:[%s291 + $0xc] sm:$0x7]
      %s785 = scalar_lea.vmem %s4, 24
      %v786 = vld [vmem:[%s785] sm:$0xf]
      %v789 = vunpack.c.l.b16 %v783
      %v790 = vunpack.c.l.b16 %v784
      %v791 = vpack.c.b16 %v465, %v789
      %v792 = vpack.c.b16 %v790, %v466
      %vm793 = vcmask 1044480
      %v794 = vrot.slane %v791, 3
      %v795 = vrot.slane %v792, 3
      %v796 = vsel %vm793, %v794, %v795
      %v798 = vsel %vm330, %v796, 0
      %v801 = vsel %vm330, %v795, 0
      %v804 = vsel %vm337, %v786, 0
      %806 = vmatprep.subr.bf16.mxu0 0
      %807 = vmatpush1.bf16.msra.mxu0 %v804
      %808 = vmatprep.subr.bf16.mxu0 0
      %809 = vmatpush1.bf16.msra.mxu0 0
      %810 = vmatprep.subr.bf16.mxu0 0
      %811 = vmatpush1.bf16.msra.mxu0 0
      %812 = vmatprep.subr.bf16.mxu0 0
      %813 = vmatpush1.bf16.msra.mxu0 0
      %814 = vmatprep.subr.bf16.mxu0 0
      %815 = vmatpush1.bf16.msra.mxu0 0
      %816 = vmatprep.subr.bf16.mxu0 0
      %817 = vmatpush1.bf16.msra.mxu0 0
      %818 = vmatprep.subr.bf16.mxu0 0
      %819 = vmatpush1.bf16.msra.mxu0 0
      %820 = vmatprep.subr.bf16.mxu0 0
      %821 = vmatpush1.bf16.msra.mxu0 0
      %822 = vmatprep.subr.bf16.mxu0 0
      %823 = vmatpush1.bf16.msra.mxu0 0
      %824 = vmatprep.subr.bf16.mxu0 0
      %825 = vmatpush1.bf16.msra.mxu0 0
      %826 = vmatprep.subr.bf16.mxu0 0
      %827 = vmatpush1.bf16.msra.mxu0 0
      %828 = vmatprep.subr.bf16.mxu0 0
      %829 = vmatpush1.bf16.msra.mxu0 0
      %830 = vmatprep.subr.bf16.mxu0 0
      %831 = vmatpush1.bf16.msra.mxu0 0
      %832 = vmatprep.subr.bf16.mxu0 0
      %833 = vmatpush1.bf16.msra.mxu0 0
      %834 = vmatprep.subr.bf16.mxu0 0
      %835 = vmatpush1.bf16.msra.mxu0 0
      %836 = vmatprep.subr.bf16.mxu0 0
      %837 = vmatpush1.bf16.msra.mxu0 0
      %838 = vmatprep.mubr.bf16.mxu0 0
      %839 = vmatmul.mubr.bf16.gmra.mrb[0].mxu0 %v798
      %v840 = vpop.f32.mrb[0].mxu0
      %v841 = vadd.f32 0.0, %v840
      %v842 = vpop.f32.mrb[0].mxu0
      %v843 = vpop.f32.mrb[0].mxu0
      %v844 = vadd.f32 0.0, %v843
      %v845 = vpop.f32.mrb[0].mxu0
      %846 = vmatprep.mubr.bf16.mxu0 0
      %847 = vmatmul.mubr.bf16.gmra.mrb[0].mxu0 %v801
      %v848 = vpop.f32.mrb[0].mxu0
      %v849 = vadd.f32 0.0, %v848
      %v850 = vpop.f32.mrb[0].mxu0
      %v851 = vpop.f32.mrb[0].mxu0
      %v852 = vpop.f32.mrb[0].mxu0
      %853 = vdwg.mxu0
      %v854 = vadd.f32 %v780, %v841
      %v855 = vadd.f32 %v781, %v844
      %v856 = vadd.f32 %v782, %v849
      %v857 = vld [vmem:[%s296] sm:$0x8]
      %v858 = vld [vmem:[%s296 + $0x4] sm:$0xf]
      %v859 = vld [vmem:[%s296 + $0x8] sm:$0xf]
      %v860 = vld [vmem:[%s296 + $0xc] sm:$0x7]
      %s861 = scalar_lea.vmem %s4, 28
      %v862 = vld [vmem:[%s861] sm:$0xf]
      %v867 = vunpack.c.l.b16 %v857
      %v868 = vunpack.c.l.b16 %v858
      %v869 = vunpack.c.l.b16 %v859
      %v870 = vunpack.c.l.b16 %v860
      %v871 = vpack.c.b16 %v868, %v867
      %v872 = vpack.c.b16 %v870, %v869
      %v873 = vrot.slane %v871, 3
      %v874 = vrot.slane %v872, 3
      %v875 = vsel %vm793, %v873, %v874
      %v877 = vsel %vm330, %v875, 0
      %v880 = vsel %vm330, %v874, 0
      %v883 = vsel %vm337, %v862, 0
      %885 = vmatprep.subr.bf16.mxu0 0
      %886 = vmatpush1.bf16.msra.mxu0 %v883
      %887 = vmatprep.subr.bf16.mxu0 0
      %888 = vmatpush1.bf16.msra.mxu0 0
      %889 = vmatprep.subr.bf16.mxu0 0
      %890 = vmatpush1.bf16.msra.mxu0 0
      %891 = vmatprep.subr.bf16.mxu0 0
      %892 = vmatpush1.bf16.msra.mxu0 0
      %893 = vmatprep.subr.bf16.mxu0 0
      %894 = vmatpush1.bf16.msra.mxu0 0
      %895 = vmatprep.subr.bf16.mxu0 0
      %896 = vmatpush1.bf16.msra.mxu0 0
      %897 = vmatprep.subr.bf16.mxu0 0
      %898 = vmatpush1.bf16.msra.mxu0 0
      %899 = vmatprep.subr.bf16.mxu0 0
      %900 = vmatpush1.bf16.msra.mxu0 0
      %901 = vmatprep.subr.bf16.mxu0 0
      %902 = vmatpush1.bf16.msra.mxu0 0
      %903 = vmatprep.subr.bf16.mxu0 0
      %904 = vmatpush1.bf16.msra.mxu0 0
      %905 = vmatprep.subr.bf16.mxu0 0
      %906 = vmatpush1.bf16.msra.mxu0 0
      %907 = vmatprep.subr.bf16.mxu0 0
      %908 = vmatpush1.bf16.msra.mxu0 0
      %909 = vmatprep.subr.bf16.mxu0 0
      %910 = vmatpush1.bf16.msra.mxu0 0
      %911 = vmatprep.subr.bf16.mxu0 0
      %912 = vmatpush1.bf16.msra.mxu0 0
      %913 = vmatprep.subr.bf16.mxu0 0
      %914 = vmatpush1.bf16.msra.mxu0 0
      %915 = vmatprep.subr.bf16.mxu0 0
      %916 = vmatpush1.bf16.msra.mxu0 0
      %917 = vmatprep.mubr.bf16.mxu0 0
      %918 = vmatmul.mubr.bf16.gmra.mrb[0].mxu0 %v877
      %v919 = vpop.f32.mrb[0].mxu0
      %v920 = vadd.f32 0.0, %v919
      %v921 = vpop.f32.mrb[0].mxu0
      %v922 = vpop.f32.mrb[0].mxu0
      %v923 = vadd.f32 0.0, %v922
      %v924 = vpop.f32.mrb[0].mxu0
      %925 = vmatprep.mubr.bf16.mxu0 0
      %926 = vmatmul.mubr.bf16.gmra.mrb[0].mxu0 %v880
      %v927 = vpop.f32.mrb[0].mxu0
      %v928 = vadd.f32 0.0, %v927
      %v929 = vpop.f32.mrb[0].mxu0
      %v930 = vpop.f32.mrb[0].mxu0
      %v931 = vpop.f32.mrb[0].mxu0
      %932 = vdwg.mxu0
      %v933 = vadd.f32 %v854, %v920
      %v934 = vadd.f32 %v855, %v923
      %v935 = vadd.f32 %v856, %v928
      %v936 = vld [vmem:[%s291 + $0xc] sm:$0xf]
      %s937 = scalar_lea.vmem %s4, 32
      %v938 = vld [vmem:[%s937] sm:$0xf]
      %v940 = vunpack.c.l.b16 %v936
      %v941 = vpack.c.b16 %v940, %v466
      %vm942 = vsmask.f32 4352
      %v944 = vshrl.u32 %v791, 16
      %v946 = vrot.slane %v944, 3
      %v947 = vshll.u32 %v791, 16
      %v949 = vrot.slane %v947, 4
      %v950 = vor.u32 %v946, %v949
      %v952 = vshrl.u32 %v941, 16
      %v954 = vrot.slane %v952, 3
      %v955 = vshll.u32 %v941, 16
      %v957 = vrot.slane %v955, 4
      %v958 = vor.u32 %v954, %v957
      %v959 = vsel %vm942, %v950, %v958
      %v961 = vsel %vm330, %v959, 0
      %v964 = vsel %vm330, %v958, 0
      %v967 = vsel %vm337, %v938, 0
      %969 = vmatprep.subr.bf16.mxu0 0
      %970 = vmatpush1.bf16.msra.mxu0 %v967
      %971 = vmatprep.subr.bf16.mxu0 0
      %972 = vmatpush1.bf16.msra.mxu0 0
      %973 = vmatprep.subr.bf16.mxu0 0
      %974 = vmatpush1.bf16.msra.mxu0 0
      %975 = vmatprep.subr.bf16.mxu0 0
      %976 = vmatpush1.bf16.msra.mxu0 0
      %977 = vmatprep.subr.bf16.mxu0 0
      %978 = vmatpush1.bf16.msra.mxu0 0
      %979 = vmatprep.subr.bf16.mxu0 0
      %980 = vmatpush1.bf16.msra.mxu0 0
      %981 = vmatprep.subr.bf16.mxu0 0
      %982 = vmatpush1.bf16.msra.mxu0 0
      %983 = vmatprep.subr.bf16.mxu0 0
      %984 = vmatpush1.bf16.msra.mxu0 0
      %985 = vmatprep.subr.bf16.mxu0 0
      %986 = vmatpush1.bf16.msra.mxu0 0
      %987 = vmatprep.subr.bf16.mxu0 0
      %988 = vmatpush1.bf16.msra.mxu0 0
      %989 = vmatprep.subr.bf16.mxu0 0
      %990 = vmatpush1.bf16.msra.mxu0 0
      %991 = vmatprep.subr.bf16.mxu0 0
      %992 = vmatpush1.bf16.msra.mxu0 0
      %993 = vmatprep.subr.bf16.mxu0 0
      %994 = vmatpush1.bf16.msra.mxu0 0
      %995 = vmatprep.subr.bf16.mxu0 0
      %996 = vmatpush1.bf16.msra.mxu0 0
      %997 = vmatprep.subr.bf16.mxu0 0
      %998 = vmatpush1.bf16.msra.mxu0 0
      %999 = vmatprep.subr.bf16.mxu0 0
      %1000 = vmatpush1.bf16.msra.mxu0 0
      %1001 = vmatprep.mubr.bf16.mxu0 0
      %1002 = vmatmul.mubr.bf16.gmra.mrb[0].mxu0 %v961
      %v1003 = vpop.f32.mrb[0].mxu0
      %v1004 = vadd.f32 0.0, %v1003
      %v1005 = vpop.f32.mrb[0].mxu0
      %v1006 = vpop.f32.mrb[0].mxu0
      %v1007 = vadd.f32 0.0, %v1006
      %v1008 = vpop.f32.mrb[0].mxu0
      %1009 = vmatprep.mubr.bf16.mxu0 0
      %1010 = vmatmul.mubr.bf16.gmra.mrb[0].mxu0 %v964
      %v1011 = vpop.f32.mrb[0].mxu0
      %v1012 = vadd.f32 0.0, %v1011
      %v1013 = vpop.f32.mrb[0].mxu0
      %v1014 = vpop.f32.mrb[0].mxu0
      %v1015 = vpop.f32.mrb[0].mxu0
      %1016 = vdwg.mxu0
      %v1017 = vadd.f32 %v933, %v1004
      %v1018 = vadd.f32 %v934, %v1007
      %v1019 = vadd.f32 %v935, %v1012
      %v1020 = vld [vmem:[%s5] sm:$0x1]
      %v1022 = vlaneseq
      %v1023 = vshrl.u32 %v1022, 7
      %v1024 = vsub.s32 0, %v1023
      %v1025 = vrot.slane %v1020, %v1024
      %v1027 = vadd.f32 %v1017, %v1025
      %v1028 = vadd.f32 %v1018, %v1025
      %v1029 = vadd.f32 %v1019, %v1025
      %vm1030 = vcmp.ge.f32.partialorder %v1027, 0.0
      %vm1031 = vcmp.ge.f32.partialorder %v1028, 0.0
      %vm1032 = vcmp.ge.f32.partialorder %v1029, 0.0
      %v1033 = vmul.f32 %v1027, 0.2
      %v1034 = vmul.f32 %v1028, 0.2
      %v1035 = vmul.f32 %v1029, 0.2
      %v1036 = vsel %vm1030, %v1027, %v1033
      %v1037 = vsel %vm1031, %v1028, %v1034
      %v1038 = vsel %vm1032, %v1029, %v1035
      %v1039 = vpack.c.bf16 %v1037, %v1036
      %v1040 = vpack.c.bf16 %v1038, %v1038
      %v1043 = vunpack.c.l.b16 %v1039
      %v1044 = vunpack.c.h.b16 %v1039
      %v1045 = vunpack.c.l.b16 %v1040
      %v1046 = vpack.c.b16 %v1043, %v1043
      %v1047 = vpack.c.b16 %v1044, %v1044
      %v1048 = vpack.c.b16 %v1045, %v1045
      %vm1052 = vcmask 125952
      %1053 = vst.msk [vmem:[%s311] sm:$0xf] %vm1052, %v1046
      %1054 = vst.msk [vmem:[%s311 + $0x4] sm:$0xf] %vm1052, %v1047
      %1055 = vst.msk [vmem:[%s311 + $0x8] sm:$0xf] %vm1052, %v1048
      %p1056 = scmp.lt.s32.totalorder %s17, 1
      %s1057 = scalar_select %p1056, %s17, 1
      %s1058 = smul.addr %s1057, 3
      %s1059 = smul.addr %s1058, 4
      %s1060 = scalar_lea.vmem %s6, %s1059
      // Predicated region
      $region45: #{netD_forward.4} parent=43 // pred_check
        %p1061 = pneg %p181
      $region46: #{netD_forward.4} parent=43 // pred_check_branch
        %1063 = sbr.rel (%p1061) target = $region48
      $region47: #{netD_forward.4} parent=43 // pred_region
        _
      $region48: #{netD_forward.4} parent=43 // pred_fallthru
        _
    $region44: #{netD_forward.4} parent=5 // pred_fallthru
      _
    %p1064 = scmp.le.s32.totalorder 2, %s12
    // Predicated region
    $region49: #{netD_forward.4} parent=5 // pred_check
      %p1065 = pneg %p1064
    $region50: #{netD_forward.4} parent=5 // pred_check_branch
      %1067 = sbr.rel (%p1065) target = $region52
    $region51: #{netD_forward.4} parent=5 // pred_region
      %s1068 = ssub.s32 %s12, 2
      // Predicated region
      $region53: #{netD_forward.4} parent=51 // pred_check
        %p1069 = pneg %p187
      $region54: #{netD_forward.4} parent=51 // pred_check_branch
        %1071 = sbr.rel (%p1069) target = $region56
      $region55: #{netD_forward.4} parent=51 // pred_region
        %p1072 = scmp.lt.s32.totalorder %s18, 1
        %s1073 = scalar_select %p1072, %s18, 1
        %s1074 = smul.addr %s1073, 3
        %s1075 = smul.addr %s1074, 4
        %s1076 = scalar_lea.vmem %s6, %s1075
      $region56: #{netD_forward.4} parent=51 // pred_fallthru
        _
    $region52: #{netD_forward.4} parent=5 // pred_fallthru
      _
  $region6: #{netD_forward.4} parent=0 // loop_footer
    %s16 = sadd.s32 1, %s12
  $region7: #{netD_forward.4} parent=0 // loop_footer_branch
    %11 = sbr.rel target = $region3
  $region8: #{netD_forward.4} parent=0 // loop_exit
    _

// kernel: netD_forward.3
$region0: #{netD_forward.3}
  #allocation0 [shape = 'u32[]', space=smem, size = 0x4, offset = 0x4, fixed_abs, tag = 'smem constant byte address 0x4 - core index']
  #allocation1 [shape = 'u32[144,128]{1,0:T(1,128)}', space=vmem, size = 0x12000, scoped, tag = 'internal scratch']
  %s0 = inlined_call_operand.vmem [shape: bf16[2,100,3], index: 0, kind: input, shape index: {}]
  %s1 = inlined_call_operand.vmem [shape: bf16[2,100,3], index: 1, kind: input, shape index: {}]
  %s2 = inlined_call_operand.vmem [shape: bf16[2,100,3], index: 2, kind: input, shape index: {}]
  %s3 = inlined_call_operand.vmem [shape: bf16[2,100,3], index: 3, kind: input, shape index: {}]
  %s4 = inlined_call_operand.vmem [shape: bf16[9,3,8], index: 4, kind: input, shape index: {}]
  %s5 = inlined_call_operand.vmem [shape: f32[1,8], index: 5, kind: input, shape index: {}]
  %s6 = inlined_call_operand.vmem [shape: bf16[2,80,8], index: 6, kind: output, shape index: {}]
  %s7 = sld [smem:[#allocation0]]
  $region57: #{netD_forward.3} parent=0
    _
  %s9 = ssub.s32 1, %s7
  %s10 = scalar_select 0, %s9, %s7
  loop: start=0, step=1, limit=4
  $region2: #{netD_forward.3} parent=0 // loop_pre_header
    _
  $region3: #{netD_forward.3} parent=0 // loop_header
    %s12 = sphi 0, %s16
    %p13 = scmp.ge.s32.totalorder %s12, 4
    %s22 = sphi 0, %s24
    %s25 = sphi 0, %s22
    %s26 = sphi 0, %s25
    %s42 = sphi 0, %s26
    %s48 = sphi 0, %s50
    %s51 = sphi 0, %s48
    %s52 = sphi 0, %s51
    %s68 = sphi 0, %s52
    %s74 = sphi 0, %s76
    %s77 = sphi 0, %s74
    %s78 = sphi 0, %s77
    %s94 = sphi 0, %s78
    %s100 = sphi 0, %s102
    %s103 = sphi 0, %s100
    %s104 = sphi 0, %s103
    %s120 = sphi 0, %s104
    %s124 = sphi 0, %s124
    %s126 = sphi 0, %s124
    %s127 = sphi 0, %s126
    %s141 = sphi 0, %s127
    %s145 = sphi 0, %s145
    %s147 = sphi 0, %s145
    %s148 = sphi 0, %s147
    %s162 = sphi 0, %s148
    %s168 = sphi 0, %s170
    %s171 = sphi 0, %s168
    %s172 = sphi 0, %s171
    %s188 = sphi 0, %s172
  $region4: #{netD_forward.3} parent=0 // loop_header_branch
    %15 = sbr.rel (%p13) target = $region8
  $region5: #{netD_forward.3} parent=0 // loop_body
    %s17 = ssub.s32 %s12, 1
    %s18 = ssub.s32 %s12, 2
    %s19 = sadd.s32 %s12, 1
    %s20 = ssub.s32 %s12, %s19
    %p21 = scmp.eq.s32.totalorder %s20, 0
    %s23 = sadd.s32 %s22, 1
    %s24 = scalar_select %p21, %s22, %s23
    %p27 = pneg %p21
    %p28 = scmp.eq.s32.totalorder %s12, 1
    %p29 = por %p27, %p28
    %p30 = scmp.ne.s32.totalorder %s22, %s25
    %p31 = scmp.eq.s32.totalorder %s12, 0
    %p32 = por %p30, %p31
    %p33 = scmp.ne.s32.totalorder %s22, %s25
    %p34 = scmp.eq.s32.totalorder %s17, 1
    %p35 = por %p33, %p34
    %p36 = scmp.ne.s32.totalorder %s25, %s26
    %p37 = scmp.eq.s32.totalorder %s17, 0
    %p38 = por %p36, %p37
    %p39 = scmp.ne.s32.totalorder %s25, %s26
    %p40 = scmp.eq.s32.totalorder %s18, 1
    %p41 = por %p39, %p40
    %p43 = scmp.ne.s32.totalorder %s26, %s42
    %p44 = scmp.eq.s32.totalorder %s18, 0
    %p45 = por %p43, %p44
    %s46 = ssub.s32 %s12, %s19
    %p47 = scmp.eq.s32.totalorder %s46, 0
    %s49 = sadd.s32 %s48, 1
    %s50 = scalar_select %p47, %s48, %s49
    %p53 = pneg %p47
    %p54 = scmp.eq.s32.totalorder %s12, 1
    %p55 = por %p53, %p54
    %p56 = scmp.ne.s32.totalorder %s48, %s51
    %p57 = scmp.eq.s32.totalorder %s12, 0
    %p58 = por %p56, %p57
    %p59 = scmp.ne.s32.totalorder %s48, %s51
    %p60 = scmp.eq.s32.totalorder %s17, 1
    %p61 = por %p59, %p60
    %p62 = scmp.ne.s32.totalorder %s51, %s52
    %p63 = scmp.eq.s32.totalorder %s17, 0
    %p64 = por %p62, %p63
    %p65 = scmp.ne.s32.totalorder %s51, %s52
    %p66 = scmp.eq.s32.totalorder %s18, 1
    %p67 = por %p65, %p66
    %p69 = scmp.ne.s32.totalorder %s52, %s68
    %p70 = scmp.eq.s32.totalorder %s18, 0
    %p71 = por %p69, %p70
    %s72 = ssub.s32 %s12, %s19
    %p73 = scmp.eq.s32.totalorder %s72, 0
    %s75 = sadd.s32 %s74, 1
    %s76 = scalar_select %p73, %s74, %s75
    %p79 = pneg %p73
    %p80 = scmp.eq.s32.totalorder %s12, 1
    %p81 = por %p79, %p80
    %p82 = scmp.ne.s32.totalorder %s74, %s77
    %p83 = scmp.eq.s32.totalorder %s12, 0
    %p84 = por %p82, %p83
    %p85 = scmp.ne.s32.totalorder %s74, %s77
    %p86 = scmp.eq.s32.totalorder %s17, 1
    %p87 = por %p85, %p86
    %p88 = scmp.ne.s32.totalorder %s77, %s78
    %p89 = scmp.eq.s32.totalorder %s17, 0
    %p90 = por %p88, %p89
    %p91 = scmp.ne.s32.totalorder %s77, %s78
    %p92 = scmp.eq.s32.totalorder %s18, 1
    %p93 = por %p91, %p92
    %p95 = scmp.ne.s32.totalorder %s78, %s94
    %p96 = scmp.eq.s32.totalorder %s18, 0
    %p97 = por %p95, %p96
    %s98 = ssub.s32 %s12, %s19
    %p99 = scmp.eq.s32.totalorder %s98, 0
    %s101 = sadd.s32 %s100, 1
    %s102 = scalar_select %p99, %s100, %s101
    %p105 = pneg %p99
    %p106 = scmp.eq.s32.totalorder %s12, 1
    %p107 = por %p105, %p106
    %p108 = scmp.ne.s32.totalorder %s100, %s103
    %p109 = scmp.eq.s32.totalorder %s12, 0
    %p110 = por %p108, %p109
    %p111 = scmp.ne.s32.totalorder %s100, %s103
    %p112 = scmp.eq.s32.totalorder %s17, 1
    %p113 = por %p111, %p112
    %p114 = scmp.ne.s32.totalorder %s103, %s104
    %p115 = scmp.eq.s32.totalorder %s17, 0
    %p116 = por %p114, %p115
    %p117 = scmp.ne.s32.totalorder %s103, %s104
    %p118 = scmp.eq.s32.totalorder %s18, 1
    %p119 = por %p117, %p118
    %p121 = scmp.ne.s32.totalorder %s104, %s120
    %p122 = scmp.eq.s32.totalorder %s18, 0
    %p123 = por %p121, %p122
    %s125 = sadd.s32 %s124, 1
    %p128 = scmp.eq.s32.totalorder %s12, 1
    %p129 = scmp.ne.s32.totalorder %s124, %s126
    %p130 = scmp.eq.s32.totalorder %s12, 0
    %p131 = por %p129, %p130
    %p132 = scmp.ne.s32.totalorder %s124, %s126
    %p133 = scmp.eq.s32.totalorder %s17, 1
    %p134 = por %p132, %p133
    %p135 = scmp.ne.s32.totalorder %s126, %s127
    %p136 = scmp.eq.s32.totalorder %s17, 0
    %p137 = por %p135, %p136
    %p138 = scmp.ne.s32.totalorder %s126, %s127
    %p139 = scmp.eq.s32.totalorder %s18, 1
    %p140 = por %p138, %p139
    %p142 = scmp.ne.s32.totalorder %s127, %s141
    %p143 = scmp.eq.s32.totalorder %s18, 0
    %p144 = por %p142, %p143
    %s146 = sadd.s32 %s145, 1
    %p149 = scmp.eq.s32.totalorder %s12, 1
    %p150 = scmp.ne.s32.totalorder %s145, %s147
    %p151 = scmp.eq.s32.totalorder %s12, 0
    %p152 = por %p150, %p151
    %p153 = scmp.ne.s32.totalorder %s145, %s147
    %p154 = scmp.eq.s32.totalorder %s17, 1
    %p155 = por %p153, %p154
    %p156 = scmp.ne.s32.totalorder %s147, %s148
    %p157 = scmp.eq.s32.totalorder %s17, 0
    %p158 = por %p156, %p157
    %p159 = scmp.ne.s32.totalorder %s147, %s148
    %p160 = scmp.eq.s32.totalorder %s18, 1
    %p161 = por %p159, %p160
    %p163 = scmp.ne.s32.totalorder %s148, %s162
    %p164 = scmp.eq.s32.totalorder %s18, 0
    %p165 = por %p163, %p164
    %s166 = ssub.s32 %s12, %s19
    %p167 = scmp.eq.s32.totalorder %s166, 0
    %s169 = sadd.s32 %s168, 1
    %s170 = scalar_select %p167, %s168, %s169
    %p173 = pneg %p167
    %p174 = scmp.eq.s32.totalorder %s12, 1
    %p175 = por %p173, %p174
    %p176 = scmp.ne.s32.totalorder %s168, %s171
    %p177 = scmp.eq.s32.totalorder %s12, 0
    %p178 = por %p176, %p177
    %p179 = scmp.ne.s32.totalorder %s168, %s171
    %p180 = scmp.eq.s32.totalorder %s17, 1
    %p181 = por %p179, %p180
    %p182 = scmp.ne.s32.totalorder %s171, %s172
    %p183 = scmp.eq.s32.totalorder %s17, 0
    %p184 = por %p182, %p183
    %p185 = scmp.ne.s32.totalorder %s171, %s172
    %p186 = scmp.eq.s32.totalorder %s18, 1
    %p187 = por %p185, %p186
    %p189 = scmp.ne.s32.totalorder %s172, %s188
    %p190 = scmp.eq.s32.totalorder %s18, 0
    %p191 = por %p189, %p190
    %p192 = scmp.le.s32.totalorder 1, %s12
    %p193 = scmp.lt.s32.totalorder %s12, 3
    %p194 = pnand %p192, %p193
    %p195 = pneg %p194
    // Predicated region
    $region9: #{netD_forward.3} parent=5 // pred_check
      _
    $region10: #{netD_forward.3} parent=5 // pred_check_branch
      %197 = sbr.rel (%p194) target = $region12
    $region11: #{netD_forward.3} parent=5 // pred_region
      %s198 = ssub.s32 %s12, 1
      // Predicated region
      $region13: #{netD_forward.3} parent=11 // pred_check
        %p199 = pneg %p137
      $region14: #{netD_forward.3} parent=11 // pred_check_branch
        %201 = sbr.rel (%p199) target = $region16
      $region15: #{netD_forward.3} parent=11 // pred_region
        _
      $region16: #{netD_forward.3} parent=11 // pred_fallthru
        _
      // Predicated region
      $region17: #{netD_forward.3} parent=11 // pred_check
        %p202 = pneg %p158
      $region18: #{netD_forward.3} parent=11 // pred_check_branch
        %204 = sbr.rel (%p202) target = $region20
      $region19: #{netD_forward.3} parent=11 // pred_region
        _
      $region20: #{netD_forward.3} parent=11 // pred_fallthru
        _
    $region12: #{netD_forward.3} parent=5 // pred_fallthru
      _
    %p205 = scmp.lt.s32.totalorder %s12, 2
    // Predicated region
    $region21: #{netD_forward.3} parent=5 // pred_check
      %p206 = pneg %p205
    $region22: #{netD_forward.3} parent=5 // pred_check_branch
      %208 = sbr.rel (%p206) target = $region24
    $region23: #{netD_forward.3} parent=5 // pred_region
      // Predicated region
      $region25: #{netD_forward.3} parent=23 // pred_check
        %p209 = pneg %p32
      $region26: #{netD_forward.3} parent=23 // pred_check_branch
        %211 = sbr.rel (%p209) target = $region28
      $region27: #{netD_forward.3} parent=23 // pred_region
        %p212 = scmp.lt.s32.totalorder %s12, 1
        %s213 = scalar_select %p212, %s12, 1
        %s214 = smul.addr %s213, 13
        %s215 = smul.addr %s214, 4
        %s216 = scalar_lea.vmem %s0, %s215
      $region28: #{netD_forward.3} parent=23 // pred_fallthru
        _
      // Predicated region
      $region29: #{netD_forward.3} parent=23 // pred_check
        %p217 = pneg %p58
      $region30: #{netD_forward.3} parent=23 // pred_check_branch
        %219 = sbr.rel (%p217) target = $region32
      $region31: #{netD_forward.3} parent=23 // pred_region
        %p220 = scmp.lt.s32.totalorder %s12, 1
        %s221 = scalar_select %p220, %s12, 1
        %s222 = smul.addr %s221, 13
        %s223 = smul.addr %s222, 4
        %s224 = scalar_lea.vmem %s1, %s223
      $region32: #{netD_forward.3} parent=23 // pred_fallthru
        _
      // Predicated region
      $region33: #{netD_forward.3} parent=23 // pred_check
        %p225 = pneg %p84
      $region34: #{netD_forward.3} parent=23 // pred_check_branch
        %227 = sbr.rel (%p225) target = $region36
      $region35: #{netD_forward.3} parent=23 // pred_region
        %p228 = scmp.lt.s32.totalorder %s12, 1
        %s229 = scalar_select %p228, %s12, 1
        %s230 = smul.addr %s229, 13
        %s231 = smul.addr %s230, 4
        %s232 = scalar_lea.vmem %s2, %s231
      $region36: #{netD_forward.3} parent=23 // pred_fallthru
        _
      // Predicated region
      $region37: #{netD_forward.3} parent=23 // pred_check
        %p233 = pneg %p110
      $region38: #{netD_forward.3} parent=23 // pred_check_branch
        %235 = sbr.rel (%p233) target = $region40
      $region39: #{netD_forward.3} parent=23 // pred_region
        %p236 = scmp.lt.s32.totalorder %s12, 1
        %s237 = scalar_select %p236, %s12, 1
        %s238 = smul.addr %s237, 13
        %s239 = smul.addr %s238, 4
        %s240 = scalar_lea.vmem %s3, %s239
      $region40: #{netD_forward.3} parent=23 // pred_fallthru
        _
    $region24: #{netD_forward.3} parent=5 // pred_fallthru
      _
    %p241 = scmp.le.s32.totalorder 1, %s12
    %p242 = scmp.lt.s32.totalorder %s12, 3
    %p243 = pnand %p241, %p242
    %p244 = pneg %p243
    // Predicated region
    $region41: #{netD_forward.3} parent=5 // pred_check
      _
    $region42: #{netD_forward.3} parent=5 // pred_check_branch
      %246 = sbr.rel (%p243) target = $region44
    $region43: #{netD_forward.3} parent=5 // pred_region
      %s247 = ssub.s32 %s12, 1
      %p248 = scmp.lt.s32.totalorder %s17, 1
      %s249 = scalar_select %p248, %s17, 1
      %s250 = smul.addr %s249, 13
      %s251 = smul.addr %s250, 4
      %s252 = scalar_lea.vmem %s0, %s251
      %p253 = pneg %p38
      %p254 = pneg %p35
      %p255 = scmp.lt.s32.totalorder %s17, 1
      %s256 = scalar_select %p255, %s17, 1
      %s257 = smul.addr %s256, 13
      %s258 = smul.addr %s257, 4
      %s259 = scalar_lea.vmem %s1, %s258
      %p260 = pneg %p64
      %p261 = pneg %p61
      %p262 = scmp.lt.s32.totalorder %s17, 1
      %s263 = scalar_select %p262, %s17, 1
      %s264 = smul.addr %s263, 13
      %s265 = smul.addr %s264, 4
      %s266 = scalar_lea.vmem %s2, %s265
      %p267 = pneg %p90
      %p268 = pneg %p87
      %p269 = scmp.lt.s32.totalorder %s17, 1
      %s270 = scalar_select %p269, %s17, 1
      %s271 = smul.addr %s270, 13
      %s272 = smul.addr %s271, 4
      %s273 = scalar_lea.vmem %s3, %s272
      %p274 = pneg %p116
      %p275 = pneg %p113
      %p276 = pneg %p137
      %p277 = pneg %p134
      %p278 = pneg %p158
      %p279 = pneg %p155
      %p280 = pneg %p184
      %p281 = pneg %p181
      %p282 = scmp.lt.s32.totalorder %s17, 1
      %s283 = scalar_select %p282, %s17, 1
      %s284 = smul.addr %s283, 10
      %s285 = smul.addr %s284, 4
      %s286 = scalar_lea.vmem %s6, %s285
      %p287 = scmp.lt.s32.totalorder %s17, 1
      %s288 = scalar_select %p287, %s17, 1
      %s289 = smul.addr %s288, 13
      %s290 = smul.addr %s289, 4
      %s291 = scalar_lea.vmem %s0, %s290
      %p292 = scmp.lt.s32.totalorder %s17, 1
      %s293 = scalar_select %p292, %s17, 1
      %s294 = smul.addr %s293, 13
      %s295 = smul.addr %s294, 4
      %s296 = scalar_lea.vmem %s1, %s295
      %p297 = scmp.lt.s32.totalorder %s17, 1
      %s298 = scalar_select %p297, %s17, 1
      %s299 = smul.addr %s298, 13
      %s300 = smul.addr %s299, 4
      %s301 = scalar_lea.vmem %s2, %s300
      %p302 = scmp.lt.s32.totalorder %s17, 1
      %s303 = scalar_select %p302, %s17, 1
      %s304 = smul.addr %s303, 13
      %s305 = smul.addr %s304, 4
      %s306 = scalar_lea.vmem %s3, %s305
      %p307 = scmp.lt.s32.totalorder %s17, 1
      %s308 = scalar_select %p307, %s17, 1
      %s309 = smul.addr %s308, 10
      %s310 = smul.addr %s309, 4
      %s311 = scalar_lea.vmem %s6, %s310
      %v313 = vld [vmem:[%s291] sm:$0xf]
      %v314 = vld [vmem:[%s291 + $0x4] sm:$0xf]
      %v315 = vld [vmem:[%s291 + $0x8] sm:$0xf]
      %v316 = vld [vmem:[%s291 + $0xc] sm:$0xf]
      %v317 = vld [vmem:[%s291 + $0x10] sm:$0xf]
      %v318 = vld [vmem:[%s291 + $0x14] sm:$0xf]
      %v319 = vld [vmem:[%s291 + $0x18] sm:$0xf]
      %v320 = vld [vmem:[%s291 + $0x1c] sm:$0xf]
      %v321 = vld [vmem:[%s291 + $0x20] sm:$0xf]
      %v322 = vld [vmem:[%s291 + $0x24] sm:$0xf]
      %v323 = vld [vmem:[%s4] sm:$0x3]
      %v324 = vld [vmem:[%s296] sm:$0xf]
      %v325 = vld [vmem:[%s296 + $0x4] sm:$0xf]
      %v326 = vld [vmem:[%s296 + $0x8] sm:$0xf]
      %v327 = vld [vmem:[%s296 + $0xc] sm:$0xf]
      %v328 = vld [vmem:[%s296 + $0x10] sm:$0xf]
      %v329 = vld [vmem:[%s296 + $0x14] sm:$0xf]
      %v330 = vld [vmem:[%s296 + $0x18] sm:$0xf]
      %v331 = vld [vmem:[%s296 + $0x1c] sm:$0xf]
      %v332 = vld [vmem:[%s296 + $0x20] sm:$0xf]
      %v333 = vld [vmem:[%s296 + $0x24] sm:$0xf]
      %s334 = scalar_lea.vmem %s4, 2
      %v335 = vld [vmem:[%s334] sm:$0x3]
      %v346 = vunpack.c.l.b16 %v324
      %v347 = vunpack.c.l.b16 %v325
      %v348 = vunpack.c.l.b16 %v326
      %v349 = vunpack.c.l.b16 %v327
      %v350 = vunpack.c.l.b16 %v328
      %v351 = vunpack.c.l.b16 %v329
      %v352 = vunpack.c.l.b16 %v330
      %v353 = vunpack.c.l.b16 %v331
      %v354 = vunpack.c.l.b16 %v332
      %v355 = vunpack.c.l.b16 %v333
      %v356 = vpack.c.b16 %v347, %v346
      %v357 = vpack.c.b16 %v349, %v348
      %v358 = vpack.c.b16 %v351, %v350
      %v359 = vpack.c.b16 %v353, %v352
      %v360 = vpack.c.b16 %v355, %v354
      %vm361 = vcmask 23552
      %v363 = vsel %vm361, %v356, 0
      %v366 = vsel %vm361, %v357, 0
      %v369 = vsel %vm361, %v358, 0
      %v372 = vsel %vm361, %v359, 0
      %v375 = vsel %vm361, %v360, 0
      %vm377 = vcmask 1040384
      %vm378 = vcmask 1041408
      %v379 = vsel %vm377, 4294967295, 65535
      %v380 = vsel %vm378, %v379, 0
      %v382 = vand.u32 %v335, %v380
      %384 = vmatprep.subr.bf16.mxu0 0
      %385 = vmatpush1.bf16.msra.mxu0 %v382
      %386 = vmatprep.subr.bf16.mxu0 0
      %387 = vmatpush1.bf16.msra.mxu0 0
      %388 = vmatprep.subr.bf16.mxu0 0
      %389 = vmatpush1.bf16.msra.mxu0 0
      %390 = vmatprep.subr.bf16.mxu0 0
      %391 = vmatpush1.bf16.msra.mxu0 0
      %392 = vmatprep.subr.bf16.mxu0 0
      %393 = vmatpush1.bf16.msra.mxu0 0
      %394 = vmatprep.subr.bf16.mxu0 0
      %395 = vmatpush1.bf16.msra.mxu0 0
      %396 = vmatprep.subr.bf16.mxu0 0
      %397 = vmatpush1.bf16.msra.mxu0 0
      %398 = vmatprep.subr.bf16.mxu0 0
      %399 = vmatpush1.bf16.msra.mxu0 0
      %400 = vmatprep.subr.bf16.mxu0 0
      %401 = vmatpush1.bf16.msra.mxu0 0
      %402 = vmatprep.subr.bf16.mxu0 0
      %403 = vmatpush1.bf16.msra.mxu0 0
      %404 = vmatprep.subr.bf16.mxu0 0
      %405 = vmatpush1.bf16.msra.mxu0 0
      %406 = vmatprep.subr.bf16.mxu0 0
      %407 = vmatpush1.bf16.msra.mxu0 0
      %408 = vmatprep.subr.bf16.mxu0 0
      %409 = vmatpush1.bf16.msra.mxu0 0
      %410 = vmatprep.subr.bf16.mxu0 0
      %411 = vmatpush1.bf16.msra.mxu0 0
      %412 = vmatprep.subr.bf16.mxu0 0
      %413 = vmatpush1.bf16.msra.mxu0 0
      %414 = vmatprep.subr.bf16.mxu0 0
      %415 = vmatpush1.bf16.msra.mxu0 0
      %416 = vmatprep.mubr.bf16.mxu0 0
      %417 = vmatmul.mubr.bf16.gmra.mrb[0].mxu0 %v363
      %v418 = vpop.f32.mrb[0].mxu0
      %v419 = vadd.f32 0.0, %v418
      %v420 = vpop.f32.mrb[0].mxu0
      %v421 = vpop.f32.mrb[0].mxu0
      %v422 = vadd.f32 0.0, %v421
      %v423 = vpop.f32.mrb[0].mxu0
      %424 = vmatprep.mubr.bf16.mxu0 0
      %425 = vmatmul.mubr.bf16.gmra.mrb[0].mxu0 %v366
      %v426 = vpop.f32.mrb[0].mxu0
      %v427 = vadd.f32 0.0, %v426
      %v428 = vpop.f32.mrb[0].mxu0
      %v429 = vpop.f32.mrb[0].mxu0
      %v430 = vadd.f32 0.0, %v429
      %v431 = vpop.f32.mrb[0].mxu0
      %432 = vmatprep.mubr.bf16.mxu0 0
      %433 = vmatmul.mubr.bf16.gmra.mrb[0].mxu0 %v369
      %v434 = vpop.f32.mrb[0].mxu0
      %v435 = vadd.f32 0.0, %v434
      %v436 = vpop.f32.mrb[0].mxu0
      %v437 = vpop.f32.mrb[0].mxu0
      %v438 = vadd.f32 0.0, %v437
      %v439 = vpop.f32.mrb[0].mxu0
      %440 = vmatprep.mubr.bf16.mxu0 0
      %441 = vmatmul.mubr.bf16.gmra.mrb[0].mxu0 %v372
      %v442 = vpop.f32.mrb[0].mxu0
      %v443 = vadd.f32 0.0, %v442
      %v444 = vpop.f32.mrb[0].mxu0
      %v445 = vpop.f32.mrb[0].mxu0
      %v446 = vadd.f32 0.0, %v445
      %v447 = vpop.f32.mrb[0].mxu0
      %448 = vmatprep.mubr.bf16.mxu0 0
      %449 = vmatmul.mubr.bf16.gmra.mrb[0].mxu0 %v375
      %v450 = vpop.f32.mrb[0].mxu0
      %v451 = vadd.f32 0.0, %v450
      %v452 = vpop.f32.mrb[0].mxu0
      %v453 = vpop.f32.mrb[0].mxu0
      %v454 = vadd.f32 0.0, %v453
      %v455 = vpop.f32.mrb[0].mxu0
      %456 = vdwg.mxu0
      %v467 = vunpack.c.l.b16 %v313
      %v468 = vunpack.c.l.b16 %v314
      %v469 = vunpack.c.l.b16 %v315
      %v470 = vunpack.c.l.b16 %v316
      %v471 = vunpack.c.l.b16 %v317
      %v472 = vunpack.c.l.b16 %v318
      %v473 = vunpack.c.l.b16 %v319
      %v474 = vunpack.c.l.b16 %v320
      %v475 = vunpack.c.l.b16 %v321
      %v476 = vunpack.c.l.b16 %v322
      %v477 = vpack.c.b16 %v468, %v467
      %v478 = vpack.c.b16 %v470, %v469
      %v479 = vpack.c.b16 %v472, %v471
      %v480 = vpack.c.b16 %v474, %v473
      %v481 = vpack.c.b16 %v476, %v475
      %v483 = vsel %vm361, %v477, 0
      %v486 = vsel %vm361, %v478, 0
      %v489 = vsel %vm361, %v479, 0
      %v492 = vsel %vm361, %v480, 0
      %v495 = vsel %vm361, %v481, 0
      %v498 = vand.u32 %v323, %v380
      %500 = vmatprep.subr.bf16.mxu0 0
      %501 = vmatpush1.bf16.msra.mxu0 %v498
      %502 = vmatprep.subr.bf16.mxu0 0
      %503 = vmatpush1.bf16.msra.mxu0 0
      %504 = vmatprep.subr.bf16.mxu0 0
      %505 = vmatpush1.bf16.msra.mxu0 0
      %506 = vmatprep.subr.bf16.mxu0 0
      %507 = vmatpush1.bf16.msra.mxu0 0
      %508 = vmatprep.subr.bf16.mxu0 0
      %509 = vmatpush1.bf16.msra.mxu0 0
      %510 = vmatprep.subr.bf16.mxu0 0
      %511 = vmatpush1.bf16.msra.mxu0 0
      %512 = vmatprep.subr.bf16.mxu0 0
      %513 = vmatpush1.bf16.msra.mxu0 0
      %514 = vmatprep.subr.bf16.mxu0 0
      %515 = vmatpush1.bf16.msra.mxu0 0
      %516 = vmatprep.subr.bf16.mxu0 0
      %517 = vmatpush1.bf16.msra.mxu0 0
      %518 = vmatprep.subr.bf16.mxu0 0
      %519 = vmatpush1.bf16.msra.mxu0 0
      %520 = vmatprep.subr.bf16.mxu0 0
      %521 = vmatpush1.bf16.msra.mxu0 0
      %522 = vmatprep.subr.bf16.mxu0 0
      %523 = vmatpush1.bf16.msra.mxu0 0
      %524 = vmatprep.subr.bf16.mxu0 0
      %525 = vmatpush1.bf16.msra.mxu0 0
      %526 = vmatprep.subr.bf16.mxu0 0
      %527 = vmatpush1.bf16.msra.mxu0 0
      %528 = vmatprep.subr.bf16.mxu0 0
      %529 = vmatpush1.bf16.msra.mxu0 0
      %530 = vmatprep.subr.bf16.mxu0 0
      %531 = vmatpush1.bf16.msra.mxu0 0
      %532 = vmatprep.mubr.bf16.mxu0 0
      %533 = vmatmul.mubr.bf16.gmra.mrb[0].mxu0 %v483
      %v534 = vpop.f32.mrb[0].mxu0
      %v535 = vadd.f32 %v419, %v534
      %v536 = vpop.f32.mrb[0].mxu0
      %v537 = vpop.f32.mrb[0].mxu0
      %v538 = vadd.f32 %v422, %v537
      %v539 = vpop.f32.mrb[0].mxu0
      %540 = vmatprep.mubr.bf16.mxu0 0
      %541 = vmatmul.mubr.bf16.gmra.mrb[0].mxu0 %v486
      %v542 = vpop.f32.mrb[0].mxu0
      %v543 = vadd.f32 %v427, %v542
      %v544 = vpop.f32.mrb[0].mxu0
      %v545 = vpop.f32.mrb[0].mxu0
      %v546 = vadd.f32 %v430, %v545
      %v547 = vpop.f32.mrb[0].mxu0
      %548 = vmatprep.mubr.bf16.mxu0 0
      %549 = vmatmul.mubr.bf16.gmra.mrb[0].mxu0 %v489
      %v550 = vpop.f32.mrb[0].mxu0
      %v551 = vadd.f32 %v435, %v550
      %v552 = vpop.f32.mrb[0].mxu0
      %v553 = vpop.f32.mrb[0].mxu0
      %v554 = vadd.f32 %v438, %v553
      %v555 = vpop.f32.mrb[0].mxu0
      %556 = vmatprep.mubr.bf16.mxu0 0
      %557 = vmatmul.mubr.bf16.gmra.mrb[0].mxu0 %v492
      %v558 = vpop.f32.mrb[0].mxu0
      %v559 = vadd.f32 %v443, %v558
      %v560 = vpop.f32.mrb[0].mxu0
      %v561 = vpop.f32.mrb[0].mxu0
      %v562 = vadd.f32 %v446, %v561
      %v563 = vpop.f32.mrb[0].mxu0
      %564 = vmatprep.mubr.bf16.mxu0 0
      %565 = vmatmul.mubr.bf16.gmra.mrb[0].mxu0 %v495
      %v566 = vpop.f32.mrb[0].mxu0
      %v567 = vadd.f32 %v451, %v566
      %v568 = vpop.f32.mrb[0].mxu0
      %v569 = vpop.f32.mrb[0].mxu0
      %v570 = vadd.f32 %v454, %v569
      %v571 = vpop.f32.mrb[0].mxu0
      %572 = vdwg.mxu0
      %v573 = vld [vmem:[%s291] sm:$0xf]
      %v574 = vld [vmem:[%s291 + $0x4] sm:$0xf]
      %v575 = vld [vmem:[%s291 + $0x8] sm:$0xf]
      %v576 = vld [vmem:[%s291 + $0xc] sm:$0xf]
      %v577 = vld [vmem:[%s291 + $0x10] sm:$0xf]
      %v578 = vld [vmem:[%s291 + $0x14] sm:$0xf]
      %v579 = vld [vmem:[%s291 + $0x18] sm:$0xf]
      %v580 = vld [vmem:[%s291 + $0x1c] sm:$0xf]
      %v581 = vld [vmem:[%s291 + $0x20] sm:$0xf]
      %v582 = vld [vmem:[%s291 + $0x24] sm:$0xf]
      %v583 = vld [vmem:[%s291 + $0x28] sm:$0x1]
      %s584 = scalar_lea.vmem %s4, 4
      %v585 = vld [vmem:[%s584] sm:$0x3]
      %v597 = vunpack.c.l.b16 %v573
      %v598 = vunpack.c.l.b16 %v574
      %v599 = vunpack.c.l.b16 %v575
      %v600 = vunpack.c.l.b16 %v576
      %v601 = vunpack.c.l.b16 %v577
      %v602 = vunpack.c.l.b16 %v578
      %v603 = vunpack.c.l.b16 %v579
      %v604 = vunpack.c.l.b16 %v580
      %v605 = vunpack.c.l.b16 %v581
      %v606 = vunpack.c.l.b16 %v582
      %v607 = vunpack.c.l.b16 %v583
      %v608 = vpack.c.b16 %v598, %v597
      %v609 = vpack.c.b16 %v600, %v599
      %v610 = vpack.c.b16 %v602, %v601
      %v611 = vpack.c.b16 %v604, %v603
      %v612 = vpack.c.b16 %v606, %v605
      %v613 = vpack.c.b16 %v607, %v607
      %vm614 = vsmask.f32 7424
      %v616 = vshrl.u32 %v608, 16
      %v618 = vshll.u32 %v608, 16
      %v620 = vrot.slane %v618, 1
      %v621 = vor.u32 %v616, %v620
      %v623 = vshll.u32 %v609, 16
      %v625 = vrot.slane %v623, 1
      %v626 = vsel %vm614, %v621, %v625
      %v627 = vshrl.u32 %v609, 16
      %v629 = vor.u32 %v627, %v625
      %v631 = vshll.u32 %v610, 16
      %v633 = vrot.slane %v631, 1
      %v634 = vsel %vm614, %v629, %v633
      %v635 = vshrl.u32 %v610, 16
      %v637 = vor.u32 %v635, %v633
      %v639 = vshll.u32 %v611, 16
      %v641 = vrot.slane %v639, 1
      %v642 = vsel %vm614, %v637, %v641
      %v643 = vshrl.u32 %v611, 16
      %v645 = vor.u32 %v643, %v641
      %v647 = vshll.u32 %v612, 16
      %v649 = vrot.slane %v647, 1
      %v650 = vsel %vm614, %v645, %v649
      %v651 = vshrl.u32 %v612, 16
      %v653 = vor.u32 %v651, %v649
      %v655 = vshll.u32 %v613, 16
      %v657 = vrot.slane %v655, 1
      %v658 = vsel %vm614, %v653, %v657
      %v660 = vsel %vm361, %v626, 0
      %v663 = vsel %vm361, %v634, 0
      %v666 = vsel %vm361, %v642, 0
      %v669 = vsel %vm361, %v650, 0
      %v672 = vsel %vm361, %v658, 0
      %v675 = vand.u32 %v585, %v380
      %677 = vmatprep.subr.bf16.mxu0 0
      %678 = vmatpush1.bf16.msra.mxu0 %v675
      %679 = vmatprep.subr.bf16.mxu0 0
      %680 = vmatpush1.bf16.msra.mxu0 0
      %681 = vmatprep.subr.bf16.mxu0 0
      %682 = vmatpush1.bf16.msra.mxu0 0
      %683 = vmatprep.subr.bf16.mxu0 0
      %684 = vmatpush1.bf16.msra.mxu0 0
      %685 = vmatprep.subr.bf16.mxu0 0
      %686 = vmatpush1.bf16.msra.mxu0 0
      %687 = vmatprep.subr.bf16.mxu0 0
      %688 = vmatpush1.bf16.msra.mxu0 0
      %689 = vmatprep.subr.bf16.mxu0 0
      %690 = vmatpush1.bf16.msra.mxu0 0
      %691 = vmatprep.subr.bf16.mxu0 0
      %692 = vmatpush1.bf16.msra.mxu0 0
      %693 = vmatprep.subr.bf16.mxu0 0
      %694 = vmatpush1.bf16.msra.mxu0 0
      %695 = vmatprep.subr.bf16.mxu0 0
      %696 = vmatpush1.bf16.msra.mxu0 0
      %697 = vmatprep.subr.bf16.mxu0 0
      %698 = vmatpush1.bf16.msra.mxu0 0
      %699 = vmatprep.subr.bf16.mxu0 0
      %700 = vmatpush1.bf16.msra.mxu0 0
      %701 = vmatprep.subr.bf16.mxu0 0
      %702 = vmatpush1.bf16.msra.mxu0 0
      %703 = vmatprep.subr.bf16.mxu0 0
      %704 = vmatpush1.bf16.msra.mxu0 0
      %705 = vmatprep.subr.bf16.mxu0 0
      %706 = vmatpush1.bf16.msra.mxu0 0
      %707 = vmatprep.subr.bf16.mxu0 0
      %708 = vmatpush1.bf16.msra.mxu0 0
      %709 = vmatprep.mubr.bf16.mxu0 0
      %710 = vmatmul.mubr.bf16.gmra.mrb[0].mxu0 %v660
      %v711 = vpop.f32.mrb[0].mxu0
      %v712 = vadd.f32 0.0, %v711
      %v713 = vpop.f32.mrb[0].mxu0
      %v714 = vpop.f32.mrb[0].mxu0
      %v715 = vadd.f32 0.0, %v714
      %v716 = vpop.f32.mrb[0].mxu0
      %717 = vmatprep.mubr.bf16.mxu0 0
      %718 = vmatmul.mubr.bf16.gmra.mrb[0].mxu0 %v663
      %v719 = vpop.f32.mrb[0].mxu0
      %v720 = vadd.f32 0.0, %v719
      %v721 = vpop.f32.mrb[0].mxu0
      %v722 = vpop.f32.mrb[0].mxu0
      %v723 = vadd.f32 0.0, %v722
      %v724 = vpop.f32.mrb[0].mxu0
      %725 = vmatprep.mubr.bf16.mxu0 0
      %726 = vmatmul.mubr.bf16.gmra.mrb[0].mxu0 %v666
      %v727 = vpop.f32.mrb[0].mxu0
      %v728 = vadd.f32 0.0, %v727
      %v729 = vpop.f32.mrb[0].mxu0
      %v730 = vpop.f32.mrb[0].mxu0
      %v731 = vadd.f32 0.0, %v730
      %v732 = vpop.f32.mrb[0].mxu0
      %733 = vmatprep.mubr.bf16.mxu0 0
      %734 = vmatmul.mubr.bf16.gmra.mrb[0].mxu0 %v669
      %v735 = vpop.f32.mrb[0].mxu0
      %v736 = vadd.f32 0.0, %v735
      %v737 = vpop.f32.mrb[0].mxu0
      %v738 = vpop.f32.mrb[0].mxu0
      %v739 = vadd.f32 0.0, %v738
      %v740 = vpop.f32.mrb[0].mxu0
      %741 = vmatprep.mubr.bf16.mxu0 0
      %742 = vmatmul.mubr.bf16.gmra.mrb[0].mxu0 %v672
      %v743 = vpop.f32.mrb[0].mxu0
      %v744 = vadd.f32 0.0, %v743
      %v745 = vpop.f32.mrb[0].mxu0
      %v746 = vpop.f32.mrb[0].mxu0
      %v747 = vadd.f32 0.0, %v746
      %v748 = vpop.f32.mrb[0].mxu0
      %749 = vdwg.mxu0
      %v750 = vadd.f32 %v535, %v712
      %v751 = vadd.f32 %v538, %v715
      %v752 = vadd.f32 %v543, %v720
      %v753 = vadd.f32 %v546, %v723
      %v754 = vadd.f32 %v551, %v728
      %v755 = vadd.f32 %v554, %v731
      %v756 = vadd.f32 %v559, %v736
      %v757 = vadd.f32 %v562, %v739
      %v758 = vadd.f32 %v567, %v744
      %v759 = vadd.f32 %v570, %v747
      %v760 = vld [vmem:[%s301] sm:$0xf]
      %v761 = vld [vmem:[%s301 + $0x4] sm:$0xf]
      %v762 = vld [vmem:[%s301 + $0x8] sm:$0xf]
      %v763 = vld [vmem:[%s301 + $0xc] sm:$0xf]
      %v764 = vld [vmem:[%s301 + $0x10] sm:$0xf]
      %v765 = vld [vmem:[%s301 + $0x14] sm:$0xf]
      %v766 = vld [vmem:[%s301 + $0x18] sm:$0xf]
      %v767 = vld [vmem:[%s301 + $0x1c] sm:$0xf]
      %v768 = vld [vmem:[%s301 + $0x20] sm:$0xf]
      %v769 = vld [vmem:[%s301 + $0x24] sm:$0xf]
      %s770 = scalar_lea.vmem %s4, 6
      %v771 = vld [vmem:[%s770] sm:$0x3]
      %v782 = vunpack.c.l.b16 %v760
      %v783 = vunpack.c.l.b16 %v761
      %v784 = vunpack.c.l.b16 %v762
      %v785 = vunpack.c.l.b16 %v763
      %v786 = vunpack.c.l.b16 %v764
      %v787 = vunpack.c.l.b16 %v765
      %v788 = vunpack.c.l.b16 %v766
      %v789 = vunpack.c.l.b16 %v767
      %v790 = vunpack.c.l.b16 %v768
      %v791 = vunpack.c.l.b16 %v769
      %v792 = vpack.c.b16 %v783, %v782
      %v793 = vpack.c.b16 %v785, %v784
      %v794 = vpack.c.b16 %v787, %v786
      %v795 = vpack.c.b16 %v789, %v788
      %v796 = vpack.c.b16 %v791, %v790
      %v798 = vsel %vm361, %v792, 0
      %v801 = vsel %vm361, %v793, 0
      %v804 = vsel %vm361, %v794, 0
      %v807 = vsel %vm361, %v795, 0
      %v810 = vsel %vm361, %v796, 0
      %v813 = vand.u32 %v771, %v380
      %815 = vmatprep.subr.bf16.mxu0 0
      %816 = vmatpush1.bf16.msra.mxu0 %v813
      %817 = vmatprep.subr.bf16.mxu0 0
      %818 = vmatpush1.bf16.msra.mxu0 0
      %819 = vmatprep.subr.bf16.mxu0 0
      %820 = vmatpush1.bf16.msra.mxu0 0
      %821 = vmatprep.subr.bf16.mxu0 0
      %822 = vmatpush1.bf16.msra.mxu0 0
      %823 = vmatprep.subr.bf16.mxu0 0
      %824 = vmatpush1.bf16.msra.mxu0 0
      %825 = vmatprep.subr.bf16.mxu0 0
      %826 = vmatpush1.bf16.msra.mxu0 0
      %827 = vmatprep.subr.bf16.mxu0 0
      %828 = vmatpush1.bf16.msra.mxu0 0
      %829 = vmatprep.subr.bf16.mxu0 0
      %830 = vmatpush1.bf16.msra.mxu0 0
      %831 = vmatprep.subr.bf16.mxu0 0
      %832 = vmatpush1.bf16.msra.mxu0 0
      %833 = vmatprep.subr.bf16.mxu0 0
      %834 = vmatpush1.bf16.msra.mxu0 0
      %835 = vmatprep.subr.bf16.mxu0 0
      %836 = vmatpush1.bf16.msra.mxu0 0
      %837 = vmatprep.subr.bf16.mxu0 0
      %838 = vmatpush1.bf16.msra.mxu0 0
      %839 = vmatprep.subr.bf16.mxu0 0
      %840 = vmatpush1.bf16.msra.mxu0 0
      %841 = vmatprep.subr.bf16.mxu0 0
      %842 = vmatpush1.bf16.msra.mxu0 0
      %843 = vmatprep.subr.bf16.mxu0 0
      %844 = vmatpush1.bf16.msra.mxu0 0
      %845 = vmatprep.subr.bf16.mxu0 0
      %846 = vmatpush1.bf16.msra.mxu0 0
      %847 = vmatprep.mubr.bf16.mxu0 0
      %848 = vmatmul.mubr.bf16.gmra.mrb[0].mxu0 %v798
      %v849 = vpop.f32.mrb[0].mxu0
      %v850 = vadd.f32 0.0, %v849
      %v851 = vpop.f32.mrb[0].mxu0
      %v852 = vpop.f32.mrb[0].mxu0
      %v853 = vadd.f32 0.0, %v852
      %v854 = vpop.f32.mrb[0].mxu0
      %855 = vmatprep.mubr.bf16.mxu0 0
      %856 = vmatmul.mubr.bf16.gmra.mrb[0].mxu0 %v801
      %v857 = vpop.f32.mrb[0].mxu0
      %v858 = vadd.f32 0.0, %v857
      %v859 = vpop.f32.mrb[0].mxu0
      %v860 = vpop.f32.mrb[0].mxu0
      %v861 = vadd.f32 0.0, %v860
      %v862 = vpop.f32.mrb[0].mxu0
      %863 = vmatprep.mubr.bf16.mxu0 0
      %864 = vmatmul.mubr.bf16.gmra.mrb[0].mxu0 %v804
      %v865 = vpop.f32.mrb[0].mxu0
      %v866 = vadd.f32 0.0, %v865
      %v867 = vpop.f32.mrb[0].mxu0
      %v868 = vpop.f32.mrb[0].mxu0
      %v869 = vadd.f32 0.0, %v868
      %v870 = vpop.f32.mrb[0].mxu0
      %871 = vmatprep.mubr.bf16.mxu0 0
      %872 = vmatmul.mubr.bf16.gmra.mrb[0].mxu0 %v807
      %v873 = vpop.f32.mrb[0].mxu0
      %v874 = vadd.f32 0.0, %v873
      %v875 = vpop.f32.mrb[0].mxu0
      %v876 = vpop.f32.mrb[0].mxu0
      %v877 = vadd.f32 0.0, %v876
      %v878 = vpop.f32.mrb[0].mxu0
      %879 = vmatprep.mubr.bf16.mxu0 0
      %880 = vmatmul.mubr.bf16.gmra.mrb[0].mxu0 %v810
      %v881 = vpop.f32.mrb[0].mxu0
      %v882 = vadd.f32 0.0, %v881
      %v883 = vpop.f32.mrb[0].mxu0
      %v884 = vpop.f32.mrb[0].mxu0
      %v885 = vadd.f32 0.0, %v884
      %v886 = vpop.f32.mrb[0].mxu0
      %887 = vdwg.mxu0
      %v888 = vadd.f32 %v750, %v850
      %v889 = vadd.f32 %v751, %v853
      %v890 = vadd.f32 %v752, %v858
      %v891 = vadd.f32 %v753, %v861
      %v892 = vadd.f32 %v754, %v866
      %v893 = vadd.f32 %v755, %v869
      %v894 = vadd.f32 %v756, %v874
      %v895 = vadd.f32 %v757, %v877
      %v896 = vadd.f32 %v758, %v882
      %v897 = vadd.f32 %v759, %v885
      %v898 = vld [vmem:[%s306] sm:$0xf]
      %v899 = vld [vmem:[%s306 + $0x4] sm:$0xf]
      %v900 = vld [vmem:[%s306 + $0x8] sm:$0xf]
      %v901 = vld [vmem:[%s306 + $0xc] sm:$0xf]
      %v902 = vld [vmem:[%s306 + $0x10] sm:$0xf]
      %v903 = vld [vmem:[%s306 + $0x14] sm:$0xf]
      %v904 = vld [vmem:[%s306 + $0x18] sm:$0xf]
      %v905 = vld [vmem:[%s306 + $0x1c] sm:$0xf]
      %v906 = vld [vmem:[%s306 + $0x20] sm:$0xf]
      %v907 = vld [vmem:[%s306 + $0x24] sm:$0xf]
      %s908 = scalar_lea.vmem %s4, 8
      %v909 = vld [vmem:[%s908] sm:$0x3]
      %v920 = vunpack.c.l.b16 %v898
      %v921 = vunpack.c.l.b16 %v899
      %v922 = vunpack.c.l.b16 %v900
      %v923 = vunpack.c.l.b16 %v901
      %v924 = vunpack.c.l.b16 %v902
      %v925 = vunpack.c.l.b16 %v903
      %v926 = vunpack.c.l.b16 %v904
      %v927 = vunpack.c.l.b16 %v905
      %v928 = vunpack.c.l.b16 %v906
      %v929 = vunpack.c.l.b16 %v907
      %v930 = vpack.c.b16 %v921, %v920
      %v931 = vpack.c.b16 %v923, %v922
      %v932 = vpack.c.b16 %v925, %v924
      %v933 = vpack.c.b16 %v927, %v926
      %v934 = vpack.c.b16 %v929, %v928
      %v936 = vsel %vm361, %v930, 0
      %v939 = vsel %vm361, %v931, 0
      %v942 = vsel %vm361, %v932, 0
      %v945 = vsel %vm361, %v933, 0
      %v948 = vsel %vm361, %v934, 0
      %v951 = vand.u32 %v909, %v380
      %953 = vmatprep.subr.bf16.mxu0 0
      %954 = vmatpush1.bf16.msra.mxu0 %v951
      %955 = vmatprep.subr.bf16.mxu0 0
      %956 = vmatpush1.bf16.msra.mxu0 0
      %957 = vmatprep.subr.bf16.mxu0 0
      %958 = vmatpush1.bf16.msra.mxu0 0
      %959 = vmatprep.subr.bf16.mxu0 0
      %960 = vmatpush1.bf16.msra.mxu0 0
      %961 = vmatprep.subr.bf16.mxu0 0
      %962 = vmatpush1.bf16.msra.mxu0 0
      %963 = vmatprep.subr.bf16.mxu0 0
      %964 = vmatpush1.bf16.msra.mxu0 0
      %965 = vmatprep.subr.bf16.mxu0 0
      %966 = vmatpush1.bf16.msra.mxu0 0
      %967 = vmatprep.subr.bf16.mxu0 0
      %968 = vmatpush1.bf16.msra.mxu0 0
      %969 = vmatprep.subr.bf16.mxu0 0
      %970 = vmatpush1.bf16.msra.mxu0 0
      %971 = vmatprep.subr.bf16.mxu0 0
      %972 = vmatpush1.bf16.msra.mxu0 0
      %973 = vmatprep.subr.bf16.mxu0 0
      %974 = vmatpush1.bf16.msra.mxu0 0
      %975 = vmatprep.subr.bf16.mxu0 0
      %976 = vmatpush1.bf16.msra.mxu0 0
      %977 = vmatprep.subr.bf16.mxu0 0
      %978 = vmatpush1.bf16.msra.mxu0 0
      %979 = vmatprep.subr.bf16.mxu0 0
      %980 = vmatpush1.bf16.msra.mxu0 0
      %981 = vmatprep.subr.bf16.mxu0 0
      %982 = vmatpush1.bf16.msra.mxu0 0
      %983 = vmatprep.subr.bf16.mxu0 0
      %984 = vmatpush1.bf16.msra.mxu0 0
      %985 = vmatprep.mubr.bf16.mxu0 0
      %986 = vmatmul.mubr.bf16.gmra.mrb[0].mxu0 %v936
      %v987 = vpop.f32.mrb[0].mxu0
      %v988 = vadd.f32 0.0, %v987
      %v989 = vpop.f32.mrb[0].mxu0
      %v990 = vpop.f32.mrb[0].mxu0
      %v991 = vadd.f32 0.0, %v990
      %v992 = vpop.f32.mrb[0].mxu0
      %993 = vmatprep.mubr.bf16.mxu0 0
      %994 = vmatmul.mubr.bf16.gmra.mrb[0].mxu0 %v939
      %v995 = vpop.f32.mrb[0].mxu0
      %v996 = vadd.f32 0.0, %v995
      %v997 = vpop.f32.mrb[0].mxu0
      %v998 = vpop.f32.mrb[0].mxu0
      %v999 = vadd.f32 0.0, %v998
      %v1000 = vpop.f32.mrb[0].mxu0
      %1001 = vmatprep.mubr.bf16.mxu0 0
      %1002 = vmatmul.mubr.bf16.gmra.mrb[0].mxu0 %v942
      %v1003 = vpop.f32.mrb[0].mxu0
      %v1004 = vadd.f32 0.0, %v1003
      %v1005 = vpop.f32.mrb[0].mxu0
      %v1006 = vpop.f32.mrb[0].mxu0
      %v1007 = vadd.f32 0.0, %v1006
      %v1008 = vpop.f32.mrb[0].mxu0
      %1009 = vmatprep.mubr.bf16.mxu0 0
      %1010 = vmatmul.mubr.bf16.gmra.mrb[0].mxu0 %v945
      %v1011 = vpop.f32.mrb[0].mxu0
      %v1012 = vadd.f32 0.0, %v1011
      %v1013 = vpop.f32.mrb[0].mxu0
      %v1014 = vpop.f32.mrb[0].mxu0
      %v1015 = vadd.f32 0.0, %v1014
      %v1016 = vpop.f32.mrb[0].mxu0
      %1017 = vmatprep.mubr.bf16.mxu0 0
      %1018 = vmatmul.mubr.bf16.gmra.mrb[0].mxu0 %v948
      %v1019 = vpop.f32.mrb[0].mxu0
      %v1020 = vadd.f32 0.0, %v1019
      %v1021 = vpop.f32.mrb[0].mxu0
      %v1022 = vpop.f32.mrb[0].mxu0
      %v1023 = vadd.f32 0.0, %v1022
      %v1024 = vpop.f32.mrb[0].mxu0
      %1025 = vdwg.mxu0
      %v1026 = vadd.f32 %v888, %v988
      %v1027 = vadd.f32 %v889, %v991
      %v1028 = vadd.f32 %v890, %v996
      %v1029 = vadd.f32 %v891, %v999
      %v1030 = vadd.f32 %v892, %v1004
      %v1031 = vadd.f32 %v893, %v1007
      %v1032 = vadd.f32 %v894, %v1012
      %v1033 = vadd.f32 %v895, %v1015
      %v1034 = vadd.f32 %v896, %v1020
      %v1035 = vadd.f32 %v897, %v1023
      %v1036 = vld [vmem:[%s301] sm:$0xf]
      %v1037 = vld [vmem:[%s301 + $0x4] sm:$0xf]
      %v1038 = vld [vmem:[%s301 + $0x8] sm:$0xf]
      %v1039 = vld [vmem:[%s301 + $0xc] sm:$0xf]
      %v1040 = vld [vmem:[%s301 + $0x10] sm:$0xf]
      %v1041 = vld [vmem:[%s301 + $0x14] sm:$0xf]
      %v1042 = vld [vmem:[%s301 + $0x18] sm:$0xf]
      %v1043 = vld [vmem:[%s301 + $0x1c] sm:$0xf]
      %v1044 = vld [vmem:[%s301 + $0x20] sm:$0xf]
      %v1045 = vld [vmem:[%s301 + $0x24] sm:$0xf]
      %v1046 = vld [vmem:[%s301 + $0x28] sm:$0x1]
      %s1047 = scalar_lea.vmem %s4, 10
      %v1048 = vld [vmem:[%s1047] sm:$0x3]
      %v1060 = vunpack.c.l.b16 %v1036
      %v1061 = vunpack.c.l.b16 %v1037
      %v1062 = vunpack.c.l.b16 %v1038
      %v1063 = vunpack.c.l.b16 %v1039
      %v1064 = vunpack.c.l.b16 %v1040
      %v1065 = vunpack.c.l.b16 %v1041
      %v1066 = vunpack.c.l.b16 %v1042
      %v1067 = vunpack.c.l.b16 %v1043
      %v1068 = vunpack.c.l.b16 %v1044
      %v1069 = vunpack.c.l.b16 %v1045
      %v1070 = vunpack.c.l.b16 %v1046
      %v1071 = vpack.c.b16 %v1061, %v1060
      %v1072 = vpack.c.b16 %v1063, %v1062
      %v1073 = vpack.c.b16 %v1065, %v1064
      %v1074 = vpack.c.b16 %v1067, %v1066
      %v1075 = vpack.c.b16 %v1069, %v1068
      %v1076 = vpack.c.b16 %v1070, %v1070
      %v1078 = vshrl.u32 %v1071, 16
      %v1080 = vshll.u32 %v1071, 16
      %v1082 = vrot.slane %v1080, 1
      %v1083 = vor.u32 %v1078, %v1082
      %v1085 = vshll.u32 %v1072, 16
      %v1087 = vrot.slane %v1085, 1
      %v1088 = vsel %vm614, %v1083, %v1087
      %v1089 = vshrl.u32 %v1072, 16
      %v1091 = vor.u32 %v1089, %v1087
      %v1093 = vshll.u32 %v1073, 16
      %v1095 = vrot.slane %v1093, 1
      %v1096 = vsel %vm614, %v1091, %v1095
      %v1097 = vshrl.u32 %v1073, 16
      %v1099 = vor.u32 %v1097, %v1095
      %v1101 = vshll.u32 %v1074, 16
      %v1103 = vrot.slane %v1101, 1
      %v1104 = vsel %vm614, %v1099, %v1103
      %v1105 = vshrl.u32 %v1074, 16
      %v1107 = vor.u32 %v1105, %v1103
      %v1109 = vshll.u32 %v1075, 16
      %v1111 = vrot.slane %v1109, 1
      %v1112 = vsel %vm614, %v1107, %v1111
      %v1113 = vshrl.u32 %v1075, 16
      %v1115 = vor.u32 %v1113, %v1111
      %v1117 = vshll.u32 %v1076, 16
      %v1119 = vrot.slane %v1117, 1
      %v1120 = vsel %vm614, %v1115, %v1119
      %v1122 = vsel %vm361, %v1088, 0
      %v1125 = vsel %vm361, %v1096, 0
      %v1128 = vsel %vm361, %v1104, 0
      %v1131 = vsel %vm361, %v1112, 0
      %v1134 = vsel %vm361, %v1120, 0
      %v1137 = vand.u32 %v1048, %v380
      %1139 = vmatprep.subr.bf16.mxu0 0
      %1140 = vmatpush1.bf16.msra.mxu0 %v1137
      %1141 = vmatprep.subr.bf16.mxu0 0
      %1142 = vmatpush1.bf16.msra.mxu0 0
      %1143 = vmatprep.subr.bf16.mxu0 0
      %1144 = vmatpush1.bf16.msra.mxu0 0
      %1145 = vmatprep.subr.bf16.mxu0 0
      %1146 = vmatpush1.bf16.msra.mxu0 0
      %1147 = vmatprep.subr.bf16.mxu0 0
      %1148 = vmatpush1.bf16.msra.mxu0 0
      %1149 = vmatprep.subr.bf16.mxu0 0
      %1150 = vmatpush1.bf16.msra.mxu0 0
      %1151 = vmatprep.subr.bf16.mxu0 0
      %1152 = vmatpush1.bf16.msra.mxu0 0
      %1153 = vmatprep.subr.bf16.mxu0 0
      %1154 = vmatpush1.bf16.msra.mxu0 0
      %1155 = vmatprep.subr.bf16.mxu0 0
      %1156 = vmatpush1.bf16.msra.mxu0 0
      %1157 = vmatprep.subr.bf16.mxu0 0
      %1158 = vmatpush1.bf16.msra.mxu0 0
      %1159 = vmatprep.subr.bf16.mxu0 0
      %1160 = vmatpush1.bf16.msra.mxu0 0
      %1161 = vmatprep.subr.bf16.mxu0 0
      %1162 = vmatpush1.bf16.msra.mxu0 0
      %1163 = vmatprep.subr.bf16.mxu0 0
      %1164 = vmatpush1.bf16.msra.mxu0 0
      %1165 = vmatprep.subr.bf16.mxu0 0
      %1166 = vmatpush1.bf16.msra.mxu0 0
      %1167 = vmatprep.subr.bf16.mxu0 0
      %1168 = vmatpush1.bf16.msra.mxu0 0
      %1169 = vmatprep.subr.bf16.mxu0 0
      %1170 = vmatpush1.bf16.msra.mxu0 0
      %1171 = vmatprep.mubr.bf16.mxu0 0
      %1172 = vmatmul.mubr.bf16.gmra.mrb[0].mxu0 %v1122
      %v1173 = vpop.f32.mrb[0].mxu0
      %v1174 = vadd.f32 0.0, %v1173
      %v1175 = vpop.f32.mrb[0].mxu0
      %v1176 = vpop.f32.mrb[0].mxu0
      %v1177 = vadd.f32 0.0, %v1176
      %v1178 = vpop.f32.mrb[0].mxu0
      %1179 = vmatprep.mubr.bf16.mxu0 0
      %1180 = vmatmul.mubr.bf16.gmra.mrb[0].mxu0 %v1125
      %v1181 = vpop.f32.mrb[0].mxu0
      %v1182 = vadd.f32 0.0, %v1181
      %v1183 = vpop.f32.mrb[0].mxu0
      %v1184 = vpop.f32.mrb[0].mxu0
      %v1185 = vadd.f32 0.0, %v1184
      %v1186 = vpop.f32.mrb[0].mxu0
      %1187 = vmatprep.mubr.bf16.mxu0 0
      %1188 = vmatmul.mubr.bf16.gmra.mrb[0].mxu0 %v1128
      %v1189 = vpop.f32.mrb[0].mxu0
      %v1190 = vadd.f32 0.0, %v1189
      %v1191 = vpop.f32.mrb[0].mxu0
      %v1192 = vpop.f32.mrb[0].mxu0
      %v1193 = vadd.f32 0.0, %v1192
      %v1194 = vpop.f32.mrb[0].mxu0
      %1195 = vmatprep.mubr.bf16.mxu0 0
      %1196 = vmatmul.mubr.bf16.gmra.mrb[0].mxu0 %v1131
      %v1197 = vpop.f32.mrb[0].mxu0
      %v1198 = vadd.f32 0.0, %v1197
      %v1199 = vpop.f32.mrb[0].mxu0
      %v1200 = vpop.f32.mrb[0].mxu0
      %v1201 = vadd.f32 0.0, %v1200
      %v1202 = vpop.f32.mrb[0].mxu0
      %1203 = vmatprep.mubr.bf16.mxu0 0
      %1204 = vmatmul.mubr.bf16.gmra.mrb[0].mxu0 %v1134
      %v1205 = vpop.f32.mrb[0].mxu0
      %v1206 = vadd.f32 0.0, %v1205
      %v1207 = vpop.f32.mrb[0].mxu0
      %v1208 = vpop.f32.mrb[0].mxu0
      %v1209 = vadd.f32 0.0, %v1208
      %v1210 = vpop.f32.mrb[0].mxu0
      %1211 = vdwg.mxu0
      %v1212 = vadd.f32 %v1026, %v1174
      %v1213 = vadd.f32 %v1027, %v1177
      %v1214 = vadd.f32 %v1028, %v1182
      %v1215 = vadd.f32 %v1029, %v1185
      %v1216 = vadd.f32 %v1030, %v1190
      %v1217 = vadd.f32 %v1031, %v1193
      %v1218 = vadd.f32 %v1032, %v1198
      %v1219 = vadd.f32 %v1033, %v1201
      %v1220 = vadd.f32 %v1034, %v1206
      %v1221 = vadd.f32 %v1035, %v1209
      %v1222 = vld [vmem:[%s291 + $0x4] sm:$0xe]
      %v1223 = vld [vmem:[%s291 + $0x8] sm:$0xf]
      %v1224 = vld [vmem:[%s291 + $0xc] sm:$0xf]
      %v1225 = vld [vmem:[%s291 + $0x10] sm:$0xf]
      %v1226 = vld [vmem:[%s291 + $0x14] sm:$0xf]
      %v1227 = vld [vmem:[%s291 + $0x18] sm:$0xf]
      %v1228 = vld [vmem:[%s291 + $0x1c] sm:$0xf]
      %v1229 = vld [vmem:[%s291 + $0x20] sm:$0xf]
      %v1230 = vld [vmem:[%s291 + $0x24] sm:$0xf]
      %v1231 = vld [vmem:[%s291 + $0x28] sm:$0xf]
      %v1232 = vld [vmem:[%s291 + $0x2c] sm:$0x1]
      %s1233 = scalar_lea.vmem %s4, 12
      %v1234 = vld [vmem:[%s1233] sm:$0x3]
      %v1246 = vunpack.c.l.b16 %v1222
      %v1247 = vunpack.c.l.b16 %v1223
      %v1248 = vunpack.c.l.b16 %v1224
      %v1249 = vunpack.c.l.b16 %v1225
      %v1250 = vunpack.c.l.b16 %v1226
      %v1251 = vunpack.c.l.b16 %v1227
      %v1252 = vunpack.c.l.b16 %v1228
      %v1253 = vunpack.c.l.b16 %v1229
      %v1254 = vunpack.c.l.b16 %v1230
      %v1255 = vunpack.c.l.b16 %v1231
      %v1256 = vunpack.c.l.b16 %v1232
      %v1257 = vpack.c.b16 %v1247, %v1246
      %v1258 = vpack.c.b16 %v1249, %v1248
      %v1259 = vpack.c.b16 %v1251, %v1250
      %v1260 = vpack.c.b16 %v1253, %v1252
      %v1261 = vpack.c.b16 %v1255, %v1254
      %v1262 = vpack.c.b16 %v1256, %v1256
      %vm1263 = vcmask 1046528
      %v1264 = vrot.slane %v1257, 1
      %v1265 = vrot.slane %v1258, 1
      %v1266 = vsel %vm1263, %v1264, %v1265
      %v1267 = vrot.slane %v1259, 1
      %v1268 = vsel %vm1263, %v1265, %v1267
      %v1269 = vrot.slane %v1260, 1
      %v1270 = vsel %vm1263, %v1267, %v1269
      %v1271 = vrot.slane %v1261, 1
      %v1272 = vsel %vm1263, %v1269, %v1271
      %v1273 = vrot.slane %v1262, 1
      %v1274 = vsel %vm1263, %v1271, %v1273
      %v1276 = vsel %vm361, %v1266, 0
      %v1279 = vsel %vm361, %v1268, 0
      %v1282 = vsel %vm361, %v1270, 0
      %v1285 = vsel %vm361, %v1272, 0
      %v1288 = vsel %vm361, %v1274, 0
      %v1291 = vand.u32 %v1234, %v380
      %1293 = vmatprep.subr.bf16.mxu0 0
      %1294 = vmatpush1.bf16.msra.mxu0 %v1291
      %1295 = vmatprep.subr.bf16.mxu0 0
      %1296 = vmatpush1.bf16.msra.mxu0 0
      %1297 = vmatprep.subr.bf16.mxu0 0
      %1298 = vmatpush1.bf16.msra.mxu0 0
      %1299 = vmatprep.subr.bf16.mxu0 0
      %1300 = vmatpush1.bf16.msra.mxu0 0
      %1301 = vmatprep.subr.bf16.mxu0 0
      %1302 = vmatpush1.bf16.msra.mxu0 0
      %1303 = vmatprep.subr.bf16.mxu0 0
      %1304 = vmatpush1.bf16.msra.mxu0 0
      %1305 = vmatprep.subr.bf16.mxu0 0
      %1306 = vmatpush1.bf16.msra.mxu0 0
      %1307 = vmatprep.subr.bf16.mxu0 0
      %1308 = vmatpush1.bf16.msra.mxu0 0
      %1309 = vmatprep.subr.bf16.mxu0 0
      %1310 = vmatpush1.bf16.msra.mxu0 0
      %1311 = vmatprep.subr.bf16.mxu0 0
      %1312 = vmatpush1.bf16.msra.mxu0 0
      %1313 = vmatprep.subr.bf16.mxu0 0
      %1314 = vmatpush1.bf16.msra.mxu0 0
      %1315 = vmatprep.subr.bf16.mxu0 0
      %1316 = vmatpush1.bf16.msra.mxu0 0
      %1317 = vmatprep.subr.bf16.mxu0 0
      %1318 = vmatpush1.bf16.msra.mxu0 0
      %1319 = vmatprep.subr.bf16.mxu0 0
      %1320 = vmatpush1.bf16.msra.mxu0 0
      %1321 = vmatprep.subr.bf16.mxu0 0
      %1322 = vmatpush1.bf16.msra.mxu0 0
      %1323 = vmatprep.subr.bf16.mxu0 0
      %1324 = vmatpush1.bf16.msra.mxu0 0
      %1325 = vmatprep.mubr.bf16.mxu0 0
      %1326 = vmatmul.mubr.bf16.gmra.mrb[0].mxu0 %v1276
      %v1327 = vpop.f32.mrb[0].mxu0
      %v1328 = vadd.f32 0.0, %v1327
      %v1329 = vpop.f32.mrb[0].mxu0
      %v1330 = vpop.f32.mrb[0].mxu0
      %v1331 = vadd.f32 0.0, %v1330
      %v1332 = vpop.f32.mrb[0].mxu0
      %1333 = vmatprep.mubr.bf16.mxu0 0
      %1334 = vmatmul.mubr.bf16.gmra.mrb[0].mxu0 %v1279
      %v1335 = vpop.f32.mrb[0].mxu0
      %v1336 = vadd.f32 0.0, %v1335
      %v1337 = vpop.f32.mrb[0].mxu0
      %v1338 = vpop.f32.mrb[0].mxu0
      %v1339 = vadd.f32 0.0, %v1338
      %v1340 = vpop.f32.mrb[0].mxu0
      %1341 = vmatprep.mubr.bf16.mxu0 0
      %1342 = vmatmul.mubr.bf16.gmra.mrb[0].mxu0 %v1282
      %v1343 = vpop.f32.mrb[0].mxu0
      %v1344 = vadd.f32 0.0, %v1343
      %v1345 = vpop.f32.mrb[0].mxu0
      %v1346 = vpop.f32.mrb[0].mxu0
      %v1347 = vadd.f32 0.0, %v1346
      %v1348 = vpop.f32.mrb[0].mxu0
      %1349 = vmatprep.mubr.bf16.mxu0 0
      %1350 = vmatmul.mubr.bf16.gmra.mrb[0].mxu0 %v1285
      %v1351 = vpop.f32.mrb[0].mxu0
      %v1352 = vadd.f32 0.0, %v1351
      %v1353 = vpop.f32.mrb[0].mxu0
      %v1354 = vpop.f32.mrb[0].mxu0
      %v1355 = vadd.f32 0.0, %v1354
      %v1356 = vpop.f32.mrb[0].mxu0
      %1357 = vmatprep.mubr.bf16.mxu0 0
      %1358 = vmatmul.mubr.bf16.gmra.mrb[0].mxu0 %v1288
      %v1359 = vpop.f32.mrb[0].mxu0
      %v1360 = vadd.f32 0.0, %v1359
      %v1361 = vpop.f32.mrb[0].mxu0
      %v1362 = vpop.f32.mrb[0].mxu0
      %v1363 = vadd.f32 0.0, %v1362
      %v1364 = vpop.f32.mrb[0].mxu0
      %1365 = vdwg.mxu0
      %v1366 = vadd.f32 %v1212, %v1328
      %v1367 = vadd.f32 %v1213, %v1331
      %v1368 = vadd.f32 %v1214, %v1336
      %v1369 = vadd.f32 %v1215, %v1339
      %v1370 = vadd.f32 %v1216, %v1344
      %v1371 = vadd.f32 %v1217, %v1347
      %v1372 = vadd.f32 %v1218, %v1352
      %v1373 = vadd.f32 %v1219, %v1355
      %v1374 = vadd.f32 %v1220, %v1360
      %v1375 = vadd.f32 %v1221, %v1363
      %v1376 = vld [vmem:[%s296 + $0x4] sm:$0xe]
      %v1377 = vld [vmem:[%s296 + $0x8] sm:$0xf]
      %v1378 = vld [vmem:[%s296 + $0xc] sm:$0xf]
      %v1379 = vld [vmem:[%s296 + $0x10] sm:$0xf]
      %v1380 = vld [vmem:[%s296 + $0x14] sm:$0xf]
      %v1381 = vld [vmem:[%s296 + $0x18] sm:$0xf]
      %v1382 = vld [vmem:[%s296 + $0x1c] sm:$0xf]
      %v1383 = vld [vmem:[%s296 + $0x20] sm:$0xf]
      %v1384 = vld [vmem:[%s296 + $0x24] sm:$0xf]
      %v1385 = vld [vmem:[%s296 + $0x28] sm:$0xf]
      %v1386 = vld [vmem:[%s296 + $0x2c] sm:$0x1]
      %s1387 = scalar_lea.vmem %s4, 14
      %v1388 = vld [vmem:[%s1387] sm:$0x3]
      %v1400 = vunpack.c.l.b16 %v1376
      %v1401 = vunpack.c.l.b16 %v1377
      %v1402 = vunpack.c.l.b16 %v1378
      %v1403 = vunpack.c.l.b16 %v1379
      %v1404 = vunpack.c.l.b16 %v1380
      %v1405 = vunpack.c.l.b16 %v1381
      %v1406 = vunpack.c.l.b16 %v1382
      %v1407 = vunpack.c.l.b16 %v1383
      %v1408 = vunpack.c.l.b16 %v1384
      %v1409 = vunpack.c.l.b16 %v1385
      %v1410 = vunpack.c.l.b16 %v1386
      %v1411 = vpack.c.b16 %v1401, %v1400
      %v1412 = vpack.c.b16 %v1403, %v1402
      %v1413 = vpack.c.b16 %v1405, %v1404
      %v1414 = vpack.c.b16 %v1407, %v1406
      %v1415 = vpack.c.b16 %v1409, %v1408
      %v1416 = vpack.c.b16 %v1410, %v1410
      %v1417 = vrot.slane %v1411, 1
      %v1418 = vrot.slane %v1412, 1
      %v1419 = vsel %vm1263, %v1417, %v1418
      %v1420 = vrot.slane %v1413, 1
      %v1421 = vsel %vm1263, %v1418, %v1420
      %v1422 = vrot.slane %v1414, 1
      %v1423 = vsel %vm1263, %v1420, %v1422
      %v1424 = vrot.slane %v1415, 1
      %v1425 = vsel %vm1263, %v1422, %v1424
      %v1426 = vrot.slane %v1416, 1
      %v1427 = vsel %vm1263, %v1424, %v1426
      %v1429 = vsel %vm361, %v1419, 0
      %v1432 = vsel %vm361, %v1421, 0
      %v1435 = vsel %vm361, %v1423, 0
      %v1438 = vsel %vm361, %v1425, 0
      %v1441 = vsel %vm361, %v1427, 0
      %v1444 = vand.u32 %v1388, %v380
      %1446 = vmatprep.subr.bf16.mxu0 0
      %1447 = vmatpush1.bf16.msra.mxu0 %v1444
      %1448 = vmatprep.subr.bf16.mxu0 0
      %1449 = vmatpush1.bf16.msra.mxu0 0
      %1450 = vmatprep.subr.bf16.mxu0 0
      %1451 = vmatpush1.bf16.msra.mxu0 0
      %1452 = vmatprep.subr.bf16.mxu0 0
      %1453 = vmatpush1.bf16.msra.mxu0 0
      %1454 = vmatprep.subr.bf16.mxu0 0
      %1455 = vmatpush1.bf16.msra.mxu0 0
      %1456 = vmatprep.subr.bf16.mxu0 0
      %1457 = vmatpush1.bf16.msra.mxu0 0
      %1458 = vmatprep.subr.bf16.mxu0 0
      %1459 = vmatpush1.bf16.msra.mxu0 0
      %1460 = vmatprep.subr.bf16.mxu0 0
      %1461 = vmatpush1.bf16.msra.mxu0 0
      %1462 = vmatprep.subr.bf16.mxu0 0
      %1463 = vmatpush1.bf16.msra.mxu0 0
      %1464 = vmatprep.subr.bf16.mxu0 0
      %1465 = vmatpush1.bf16.msra.mxu0 0
      %1466 = vmatprep.subr.bf16.mxu0 0
      %1467 = vmatpush1.bf16.msra.mxu0 0
      %1468 = vmatprep.subr.bf16.mxu0 0
      %1469 = vmatpush1.bf16.msra.mxu0 0
      %1470 = vmatprep.subr.bf16.mxu0 0
      %1471 = vmatpush1.bf16.msra.mxu0 0
      %1472 = vmatprep.subr.bf16.mxu0 0
      %1473 = vmatpush1.bf16.msra.mxu0 0
      %1474 = vmatprep.subr.bf16.mxu0 0
      %1475 = vmatpush1.bf16.msra.mxu0 0
      %1476 = vmatprep.subr.bf16.mxu0 0
      %1477 = vmatpush1.bf16.msra.mxu0 0
      %1478 = vmatprep.mubr.bf16.mxu0 0
      %1479 = vmatmul.mubr.bf16.gmra.mrb[0].mxu0 %v1429
      %v1480 = vpop.f32.mrb[0].mxu0
      %v1481 = vadd.f32 0.0, %v1480
      %v1482 = vpop.f32.mrb[0].mxu0
      %v1483 = vpop.f32.mrb[0].mxu0
      %v1484 = vadd.f32 0.0, %v1483
      %v1485 = vpop.f32.mrb[0].mxu0
      %1486 = vmatprep.mubr.bf16.mxu0 0
      %1487 = vmatmul.mubr.bf16.gmra.mrb[0].mxu0 %v1432
      %v1488 = vpop.f32.mrb[0].mxu0
      %v1489 = vadd.f32 0.0, %v1488
      %v1490 = vpop.f32.mrb[0].mxu0
      %v1491 = vpop.f32.mrb[0].mxu0
      %v1492 = vadd.f32 0.0, %v1491
      %v1493 = vpop.f32.mrb[0].mxu0
      %1494 = vmatprep.mubr.bf16.mxu0 0
      %1495 = vmatmul.mubr.bf16.gmra.mrb[0].mxu0 %v1435
      %v1496 = vpop.f32.mrb[0].mxu0
      %v1497 = vadd.f32 0.0, %v1496
      %v1498 = vpop.f32.mrb[0].mxu0
      %v1499 = vpop.f32.mrb[0].mxu0
      %v1500 = vadd.f32 0.0, %v1499
      %v1501 = vpop.f32.mrb[0].mxu0
      %1502 = vmatprep.mubr.bf16.mxu0 0
      %1503 = vmatmul.mubr.bf16.gmra.mrb[0].mxu0 %v1438
      %v1504 = vpop.f32.mrb[0].mxu0
      %v1505 = vadd.f32 0.0, %v1504
      %v1506 = vpop.f32.mrb[0].mxu0
      %v1507 = vpop.f32.mrb[0].mxu0
      %v1508 = vadd.f32 0.0, %v1507
      %v1509 = vpop.f32.mrb[0].mxu0
      %1510 = vmatprep.mubr.bf16.mxu0 0
      %1511 = vmatmul.mubr.bf16.gmra.mrb[0].mxu0 %v1441
      %v1512 = vpop.f32.mrb[0].mxu0
      %v1513 = vadd.f32 0.0, %v1512
      %v1514 = vpop.f32.mrb[0].mxu0
      %v1515 = vpop.f32.mrb[0].mxu0
      %v1516 = vadd.f32 0.0, %v1515
      %v1517 = vpop.f32.mrb[0].mxu0
      %1518 = vdwg.mxu0
      %v1519 = vadd.f32 %v1366, %v1481
      %v1520 = vadd.f32 %v1367, %v1484
      %v1521 = vadd.f32 %v1368, %v1489
      %v1522 = vadd.f32 %v1369, %v1492
      %v1523 = vadd.f32 %v1370, %v1497
      %v1524 = vadd.f32 %v1371, %v1500
      %v1525 = vadd.f32 %v1372, %v1505
      %v1526 = vadd.f32 %v1373, %v1508
      %v1527 = vadd.f32 %v1374, %v1513
      %v1528 = vadd.f32 %v1375, %v1516
      %v1529 = vld [vmem:[%s291 + $0x2c] sm:$0x3]
      %s1530 = scalar_lea.vmem %s4, 16
      %v1531 = vld [vmem:[%s1530] sm:$0x3]
      %v1533 = vunpack.c.l.b16 %v1529
      %v1534 = vpack.c.b16 %v1533, %v1533
      %vm1535 = vsmask.f32 6400
      %v1537 = vshrl.u32 %v1257, 16
      %v1539 = vrot.slane %v1537, 1
      %v1540 = vshll.u32 %v1257, 16
      %v1542 = vrot.slane %v1540, 2
      %v1543 = vor.u32 %v1539, %v1542
      %v1545 = vshrl.u32 %v1258, 16
      %v1547 = vrot.slane %v1545, 1
      %v1548 = vshll.u32 %v1258, 16
      %v1550 = vrot.slane %v1548, 2
      %v1551 = vor.u32 %v1547, %v1550
      %v1552 = vsel %vm1535, %v1543, %v1551
      %v1554 = vshrl.u32 %v1259, 16
      %v1556 = vrot.slane %v1554, 1
      %v1557 = vshll.u32 %v1259, 16
      %v1559 = vrot.slane %v1557, 2
      %v1560 = vor.u32 %v1556, %v1559
      %v1561 = vsel %vm1535, %v1551, %v1560
      %v1563 = vshrl.u32 %v1260, 16
      %v1565 = vrot.slane %v1563, 1
      %v1566 = vshll.u32 %v1260, 16
      %v1568 = vrot.slane %v1566, 2
      %v1569 = vor.u32 %v1565, %v1568
      %v1570 = vsel %vm1535, %v1560, %v1569
      %v1572 = vshrl.u32 %v1261, 16
      %v1574 = vrot.slane %v1572, 1
      %v1575 = vshll.u32 %v1261, 16
      %v1577 = vrot.slane %v1575, 2
      %v1578 = vor.u32 %v1574, %v1577
      %v1579 = vsel %vm1535, %v1569, %v1578
      %v1581 = vshrl.u32 %v1534, 16
      %v1583 = vrot.slane %v1581, 1
      %v1584 = vshll.u32 %v1534, 16
      %v1586 = vrot.slane %v1584, 2
      %v1587 = vor.u32 %v1583, %v1586
      %v1588 = vsel %vm1535, %v1578, %v1587
      %v1590 = vsel %vm361, %v1552, 0
      %v1593 = vsel %vm361, %v1561, 0
      %v1596 = vsel %vm361, %v1570, 0
      %v1599 = vsel %vm361, %v1579, 0
      %v1602 = vsel %vm361, %v1588, 0
      %v1605 = vand.u32 %v1531, %v380
      %1607 = vmatprep.subr.bf16.mxu0 0
      %1608 = vmatpush1.bf16.msra.mxu0 %v1605
      %1609 = vmatprep.subr.bf16.mxu0 0
      %1610 = vmatpush1.bf16.msra.mxu0 0
      %1611 = vmatprep.subr.bf16.mxu0 0
      %1612 = vmatpush1.bf16.msra.mxu0 0
      %1613 = vmatprep.subr.bf16.mxu0 0
      %1614 = vmatpush1.bf16.msra.mxu0 0
      %1615 = vmatprep.subr.bf16.mxu0 0
      %1616 = vmatpush1.bf16.msra.mxu0 0
      %1617 = vmatprep.subr.bf16.mxu0 0
      %1618 = vmatpush1.bf16.msra.mxu0 0
      %1619 = vmatprep.subr.bf16.mxu0 0
      %1620 = vmatpush1.bf16.msra.mxu0 0
      %1621 = vmatprep.subr.bf16.mxu0 0
      %1622 = vmatpush1.bf16.msra.mxu0 0
      %1623 = vmatprep.subr.bf16.mxu0 0
      %1624 = vmatpush1.bf16.msra.mxu0 0
      %1625 = vmatprep.subr.bf16.mxu0 0
      %1626 = vmatpush1.bf16.msra.mxu0 0
      %1627 = vmatprep.subr.bf16.mxu0 0
      %1628 = vmatpush1.bf16.msra.mxu0 0
      %1629 = vmatprep.subr.bf16.mxu0 0
      %1630 = vmatpush1.bf16.msra.mxu0 0
      %1631 = vmatprep.subr.bf16.mxu0 0
      %1632 = vmatpush1.bf16.msra.mxu0 0
      %1633 = vmatprep.subr.bf16.mxu0 0
      %1634 = vmatpush1.bf16.msra.mxu0 0
      %1635 = vmatprep.subr.bf16.mxu0 0
      %1636 = vmatpush1.bf16.msra.mxu0 0
      %1637 = vmatprep.subr.bf16.mxu0 0
      %1638 = vmatpush1.bf16.msra.mxu0 0
      %1639 = vmatprep.mubr.bf16.mxu0 0
      %1640 = vmatmul.mubr.bf16.gmra.mrb[0].mxu0 %v1590
      %v1641 = vpop.f32.mrb[0].mxu0
      %v1642 = vadd.f32 0.0, %v1641
      %v1643 = vpop.f32.mrb[0].mxu0
      %v1644 = vpop.f32.mrb[0].mxu0
      %v1645 = vadd.f32 0.0, %v1644
      %v1646 = vpop.f32.mrb[0].mxu0
      %1647 = vmatprep.mubr.bf16.mxu0 0
      %1648 = vmatmul.mubr.bf16.gmra.mrb[0].mxu0 %v1593
      %v1649 = vpop.f32.mrb[0].mxu0
      %v1650 = vadd.f32 0.0, %v1649
      %v1651 = vpop.f32.mrb[0].mxu0
      %v1652 = vpop.f32.mrb[0].mxu0
      %v1653 = vadd.f32 0.0, %v1652
      %v1654 = vpop.f32.mrb[0].mxu0
      %1655 = vmatprep.mubr.bf16.mxu0 0
      %1656 = vmatmul.mubr.bf16.gmra.mrb[0].mxu0 %v1596
      %v1657 = vpop.f32.mrb[0].mxu0
      %v1658 = vadd.f32 0.0, %v1657
      %v1659 = vpop.f32.mrb[0].mxu0
      %v1660 = vpop.f32.mrb[0].mxu0
      %v1661 = vadd.f32 0.0, %v1660
      %v1662 = vpop.f32.mrb[0].mxu0
      %1663 = vmatprep.mubr.bf16.mxu0 0
      %1664 = vmatmul.mubr.bf16.gmra.mrb[0].mxu0 %v1599
      %v1665 = vpop.f32.mrb[0].mxu0
      %v1666 = vadd.f32 0.0, %v1665
      %v1667 = vpop.f32.mrb[0].mxu0
      %v1668 = vpop.f32.mrb[0].mxu0
      %v1669 = vadd.f32 0.0, %v1668
      %v1670 = vpop.f32.mrb[0].mxu0
      %1671 = vmatprep.mubr.bf16.mxu0 0
      %1672 = vmatmul.mubr.bf16.gmra.mrb[0].mxu0 %v1602
      %v1673 = vpop.f32.mrb[0].mxu0
      %v1674 = vadd.f32 0.0, %v1673
      %v1675 = vpop.f32.mrb[0].mxu0
      %v1676 = vpop.f32.mrb[0].mxu0
      %v1677 = vadd.f32 0.0, %v1676
      %v1678 = vpop.f32.mrb[0].mxu0
      %1679 = vdwg.mxu0
      %v1680 = vadd.f32 %v1519, %v1642
      %v1681 = vadd.f32 %v1520, %v1645
      %v1682 = vadd.f32 %v1521, %v1650
      %v1683 = vadd.f32 %v1522, %v1653
      %v1684 = vadd.f32 %v1523, %v1658
      %v1685 = vadd.f32 %v1524, %v1661
      %v1686 = vadd.f32 %v1525, %v1666
      %v1687 = vadd.f32 %v1526, %v1669
      %v1688 = vadd.f32 %v1527, %v1674
      %v1689 = vadd.f32 %v1528, %v1677
      %v1690 = vld [vmem:[%s5] sm:$0x1]
      %v1692 = vlaneseq
      %v1693 = vshrl.u32 %v1692, 7
      %v1694 = vsub.s32 0, %v1693
      %v1695 = vrot.slane %v1690, %v1694
      %v1697 = vadd.f32 %v1680, %v1695
      %v1698 = vadd.f32 %v1681, %v1695
      %v1699 = vadd.f32 %v1682, %v1695
      %v1700 = vadd.f32 %v1683, %v1695
      %v1701 = vadd.f32 %v1684, %v1695
      %v1702 = vadd.f32 %v1685, %v1695
      %v1703 = vadd.f32 %v1686, %v1695
      %v1704 = vadd.f32 %v1687, %v1695
      %v1705 = vadd.f32 %v1688, %v1695
      %v1706 = vadd.f32 %v1689, %v1695
      %vm1707 = vcmp.ge.f32.partialorder %v1697, 0.0
      %vm1708 = vcmp.ge.f32.partialorder %v1698, 0.0
      %vm1709 = vcmp.ge.f32.partialorder %v1699, 0.0
      %vm1710 = vcmp.ge.f32.partialorder %v1700, 0.0
      %vm1711 = vcmp.ge.f32.partialorder %v1701, 0.0
      %vm1712 = vcmp.ge.f32.partialorder %v1702, 0.0
      %vm1713 = vcmp.ge.f32.partialorder %v1703, 0.0
      %vm1714 = vcmp.ge.f32.partialorder %v1704, 0.0
      %vm1715 = vcmp.ge.f32.partialorder %v1705, 0.0
      %vm1716 = vcmp.ge.f32.partialorder %v1706, 0.0
      %v1717 = vmul.f32 %v1697, 0.2
      %v1718 = vmul.f32 %v1698, 0.2
      %v1719 = vmul.f32 %v1699, 0.2
      %v1720 = vmul.f32 %v1700, 0.2
      %v1721 = vmul.f32 %v1701, 0.2
      %v1722 = vmul.f32 %v1702, 0.2
      %v1723 = vmul.f32 %v1703, 0.2
      %v1724 = vmul.f32 %v1704, 0.2
      %v1725 = vmul.f32 %v1705, 0.2
      %v1726 = vmul.f32 %v1706, 0.2
      %v1727 = vsel %vm1707, %v1697, %v1717
      %v1728 = vsel %vm1708, %v1698, %v1718
      %v1729 = vsel %vm1709, %v1699, %v1719
      %v1730 = vsel %vm1710, %v1700, %v1720
      %v1731 = vsel %vm1711, %v1701, %v1721
      %v1732 = vsel %vm1712, %v1702, %v1722
      %v1733 = vsel %vm1713, %v1703, %v1723
      %v1734 = vsel %vm1714, %v1704, %v1724
      %v1735 = vsel %vm1715, %v1705, %v1725
      %v1736 = vsel %vm1716, %v1706, %v1726
      %v1737 = vpack.c.bf16 %v1728, %v1727
      %v1738 = vpack.c.bf16 %v1730, %v1729
      %v1739 = vpack.c.bf16 %v1732, %v1731
      %v1740 = vpack.c.bf16 %v1734, %v1733
      %v1741 = vpack.c.bf16 %v1736, %v1735
      %v1747 = vunpack.c.l.b16 %v1737
      %v1748 = vunpack.c.h.b16 %v1737
      %v1749 = vunpack.c.l.b16 %v1738
      %v1750 = vunpack.c.h.b16 %v1738
      %v1751 = vunpack.c.l.b16 %v1739
      %v1752 = vunpack.c.h.b16 %v1739
      %v1753 = vunpack.c.l.b16 %v1740
      %v1754 = vunpack.c.h.b16 %v1740
      %v1755 = vunpack.c.l.b16 %v1741
      %v1756 = vunpack.c.h.b16 %v1741
      %v1757 = vpack.c.b16 %v1747, %v1747
      %v1758 = vpack.c.b16 %v1748, %v1748
      %v1759 = vpack.c.b16 %v1749, %v1749
      %v1760 = vpack.c.b16 %v1750, %v1750
      %v1761 = vpack.c.b16 %v1751, %v1751
      %v1762 = vpack.c.b16 %v1752, %v1752
      %v1763 = vpack.c.b16 %v1753, %v1753
      %v1764 = vpack.c.b16 %v1754, %v1754
      %v1765 = vpack.c.b16 %v1755, %v1755
      %v1766 = vpack.c.b16 %v1756, %v1756
      %vm1777 = vcmask 60416
      %1778 = vst.msk [vmem:[%s311] sm:$0xf] %vm1777, %v1757
      %1779 = vst.msk [vmem:[%s311 + $0x4] sm:$0xf] %vm1777, %v1758
      %1780 = vst.msk [vmem:[%s311 + $0x8] sm:$0xf] %vm1777, %v1759
      %1781 = vst.msk [vmem:[%s311 + $0xc] sm:$0xf] %vm1777, %v1760
      %1782 = vst.msk [vmem:[%s311 + $0x10] sm:$0xf] %vm1777, %v1761
      %1783 = vst.msk [vmem:[%s311 + $0x14] sm:$0xf] %vm1777, %v1762
      %1784 = vst.msk [vmem:[%s311 + $0x18] sm:$0xf] %vm1777, %v1763
      %1785 = vst.msk [vmem:[%s311 + $0x1c] sm:$0xf] %vm1777, %v1764
      %1786 = vst.msk [vmem:[%s311 + $0x20] sm:$0xf] %vm1777, %v1765
      %1787 = vst.msk [vmem:[%s311 + $0x24] sm:$0xf] %vm1777, %v1766
      %p1788 = scmp.lt.s32.totalorder %s17, 1
      %s1789 = scalar_select %p1788, %s17, 1
      %s1790 = smul.addr %s1789, 10
      %s1791 = smul.addr %s1790, 4
      %s1792 = scalar_lea.vmem %s6, %s1791
      // Predicated region
      $region45: #{netD_forward.3} parent=43 // pred_check
        %p1793 = pneg %p181
      $region46: #{netD_forward.3} parent=43 // pred_check_branch
        %1795 = sbr.rel (%p1793) target = $region48
      $region47: #{netD_forward.3} parent=43 // pred_region
        _
      $region48: #{netD_forward.3} parent=43 // pred_fallthru
        _
    $region44: #{netD_forward.3} parent=5 // pred_fallthru
      _
    %p1796 = scmp.le.s32.totalorder 2, %s12
    // Predicated region
    $region49: #{netD_forward.3} parent=5 // pred_check
      %p1797 = pneg %p1796
    $region50: #{netD_forward.3} parent=5 // pred_check_branch
      %1799 = sbr.rel (%p1797) target = $region52
    $region51: #{netD_forward.3} parent=5 // pred_region
      %s1800 = ssub.s32 %s12, 2
      // Predicated region
      $region53: #{netD_forward.3} parent=51 // pred_check
        %p1801 = pneg %p187
      $region54: #{netD_forward.3} parent=51 // pred_check_branch
        %1803 = sbr.rel (%p1801) target = $region56
      $region55: #{netD_forward.3} parent=51 // pred_region
        %p1804 = scmp.lt.s32.totalorder %s18, 1
        %s1805 = scalar_select %p1804, %s18, 1
        %s1806 = smul.addr %s1805, 10
        %s1807 = smul.addr %s1806, 4
        %s1808 = scalar_lea.vmem %s6, %s1807
      $region56: #{netD_forward.3} parent=51 // pred_fallthru
        _
    $region52: #{netD_forward.3} parent=5 // pred_fallthru
      _
  $region6: #{netD_forward.3} parent=0 // loop_footer
    %s16 = sadd.s32 1, %s12
  $region7: #{netD_forward.3} parent=0 // loop_footer_branch
    %11 = sbr.rel target = $region3
  $region8: #{netD_forward.3} parent=0 // loop_exit
    _

// kernel: netD_forward.5
$region0: #{netD_forward.5}
  #allocation0 [shape = 'u32[]', space=smem, size = 0x4, offset = 0x4, fixed_abs, tag = 'smem constant byte address 0x4 - core index']
  #allocation1 [shape = 'u32[144,128]{1,0:T(1,128)}', space=vmem, size = 0x12000, scoped, tag = 'internal scratch']
  #allocation2 [shape = 'f32[18,32]{1,0:T(8,128)}', space=vmem, size = 0x3000, scoped, tag = 'scratch operand']
  #allocation3 [shape = 'f32[18,32]{1,0:T(8,128)}', space=vmem, size = 0x3000, scoped, tag = 'scratch operand']
  #allocation4 [shape = 'f32[1,1]{1,0:T(1,128)S(1)}', space=vmem, size = 0x200, scoped, tag = 'scoped memory for netD_forward.5']
  %s0 = inlined_call_operand.vmem [shape: bf16[2,16,19], index: 0, kind: input, shape index: {}]
  %s1 = inlined_call_operand.vmem [shape: bf16[2,16,19], index: 1, kind: input, shape index: {}]
  %s2 = inlined_call_operand.vmem [shape: bf16[2,16,19], index: 2, kind: input, shape index: {}]
  %s3 = inlined_call_operand.vmem [shape: bf16[2,16,19], index: 3, kind: input, shape index: {}]
  %s4 = inlined_call_operand.vmem [shape: f32[8,1], index: 4, kind: input, shape index: {}]
  %s5 = inlined_call_operand.vmem [shape: bf16[9,19,32], index: 5, kind: input, shape index: {}]
  %s6 = inlined_call_operand.vmem [shape: f32[1,32], index: 6, kind: input, shape index: {}]
  %s7 = inlined_call_operand.vmem [shape: bf16[9,32,32], index: 7, kind: input, shape index: {}]
  %s8 = inlined_call_operand.vmem [shape: f32[1,32], index: 8, kind: input, shape index: {}]
  %s9 = inlined_call_operand.vmem [shape: bf16[9,32,32], index: 9, kind: input, shape index: {}]
  %s10 = inlined_call_operand.vmem [shape: f32[1,32], index: 10, kind: input, shape index: {}]
  %s11 = inlined_call_operand.vmem [shape: bf16[9,32,1], index: 11, kind: input, shape index: {}]
  %s12 = inlined_call_operand.<no memory space> [shape: f32[1,1], index: 12, kind: input, shape index: {}]
  %s13 = inlined_call_operand.vmem [shape: f32[2,8,1], index: 13, kind: output, shape index: {}]
  %s14 = sld [smem:[#allocation0]]
  $region85: #{netD_forward.5} parent=0
    _
  %s16 = ssub.s32 1, %s14
  %s17 = scalar_select 0, %s16, %s14
  %v18 = vstv %s12
  %19 = vst [vmem:[#allocation4] sm:$0x1] %v18
  loop: start=0, step=1, limit=4
  $region2: #{netD_forward.5} parent=0 // loop_pre_header
    _
  $region3: #{netD_forward.5} parent=0 // loop_header
    %s21 = sphi 0, %s25
    %p22 = scmp.ge.s32.totalorder %s21, 4
    %s31 = sphi 0, %s33
    %s34 = sphi 0, %s31
    %s35 = sphi 0, %s34
    %s51 = sphi 0, %s35
    %s57 = sphi 0, %s59
    %s60 = sphi 0, %s57
    %s61 = sphi 0, %s60
    %s77 = sphi 0, %s61
    %s83 = sphi 0, %s85
    %s86 = sphi 0, %s83
    %s87 = sphi 0, %s86
    %s103 = sphi 0, %s87
    %s109 = sphi 0, %s111
    %s112 = sphi 0, %s109
    %s113 = sphi 0, %s112
    %s129 = sphi 0, %s113
    %s133 = sphi 0, %s133
    %s135 = sphi 0, %s133
    %s136 = sphi 0, %s135
    %s150 = sphi 0, %s136
    %s154 = sphi 0, %s154
    %s156 = sphi 0, %s154
    %s157 = sphi 0, %s156
    %s171 = sphi 0, %s157
    %s175 = sphi 0, %s175
    %s177 = sphi 0, %s175
    %s178 = sphi 0, %s177
    %s192 = sphi 0, %s178
    %s196 = sphi 0, %s196
    %s198 = sphi 0, %s196
    %s199 = sphi 0, %s198
    %s213 = sphi 0, %s199
    %s217 = sphi 0, %s217
    %s219 = sphi 0, %s217
    %s220 = sphi 0, %s219
    %s234 = sphi 0, %s220
    %s238 = sphi 0, %s238
    %s240 = sphi 0, %s238
    %s241 = sphi 0, %s240
    %s255 = sphi 0, %s241
    %s259 = sphi 0, %s259
    %s261 = sphi 0, %s259
    %s262 = sphi 0, %s261
    %s276 = sphi 0, %s262
    %s280 = sphi 0, %s280
    %s282 = sphi 0, %s280
    %s283 = sphi 0, %s282
    %s297 = sphi 0, %s283
    %s301 = sphi 0, %s301
    %s303 = sphi 0, %s301
    %s304 = sphi 0, %s303
    %s318 = sphi 0, %s304
    %s324 = sphi 0, %s326
    %s327 = sphi 0, %s324
    %s328 = sphi 0, %s327
    %s344 = sphi 0, %s328
  $region4: #{netD_forward.5} parent=0 // loop_header_branch
    %24 = sbr.rel (%p22) target = $region8
  $region5: #{netD_forward.5} parent=0 // loop_body
    %s26 = ssub.s32 %s21, 1
    %s27 = ssub.s32 %s21, 2
    %s28 = sadd.s32 %s21, 1
    %s29 = ssub.s32 %s21, %s28
    %p30 = scmp.eq.s32.totalorder %s29, 0
    %s32 = sadd.s32 %s31, 1
    %s33 = scalar_select %p30, %s31, %s32
    %p36 = pneg %p30
    %p37 = scmp.eq.s32.totalorder %s21, 1
    %p38 = por %p36, %p37
    %p39 = scmp.ne.s32.totalorder %s31, %s34
    %p40 = scmp.eq.s32.totalorder %s21, 0
    %p41 = por %p39, %p40
    %p42 = scmp.ne.s32.totalorder %s31, %s34
    %p43 = scmp.eq.s32.totalorder %s26, 1
    %p44 = por %p42, %p43
    %p45 = scmp.ne.s32.totalorder %s34, %s35
    %p46 = scmp.eq.s32.totalorder %s26, 0
    %p47 = por %p45, %p46
    %p48 = scmp.ne.s32.totalorder %s34, %s35
    %p49 = scmp.eq.s32.totalorder %s27, 1
    %p50 = por %p48, %p49
    %p52 = scmp.ne.s32.totalorder %s35, %s51
    %p53 = scmp.eq.s32.totalorder %s27, 0
    %p54 = por %p52, %p53
    %s55 = ssub.s32 %s21, %s28
    %p56 = scmp.eq.s32.totalorder %s55, 0
    %s58 = sadd.s32 %s57, 1
    %s59 = scalar_select %p56, %s57, %s58
    %p62 = pneg %p56
    %p63 = scmp.eq.s32.totalorder %s21, 1
    %p64 = por %p62, %p63
    %p65 = scmp.ne.s32.totalorder %s57, %s60
    %p66 = scmp.eq.s32.totalorder %s21, 0
    %p67 = por %p65, %p66
    %p68 = scmp.ne.s32.totalorder %s57, %s60
    %p69 = scmp.eq.s32.totalorder %s26, 1
    %p70 = por %p68, %p69
    %p71 = scmp.ne.s32.totalorder %s60, %s61
    %p72 = scmp.eq.s32.totalorder %s26, 0
    %p73 = por %p71, %p72
    %p74 = scmp.ne.s32.totalorder %s60, %s61
    %p75 = scmp.eq.s32.totalorder %s27, 1
    %p76 = por %p74, %p75
    %p78 = scmp.ne.s32.totalorder %s61, %s77
    %p79 = scmp.eq.s32.totalorder %s27, 0
    %p80 = por %p78, %p79
    %s81 = ssub.s32 %s21, %s28
    %p82 = scmp.eq.s32.totalorder %s81, 0
    %s84 = sadd.s32 %s83, 1
    %s85 = scalar_select %p82, %s83, %s84
    %p88 = pneg %p82
    %p89 = scmp.eq.s32.totalorder %s21, 1
    %p90 = por %p88, %p89
    %p91 = scmp.ne.s32.totalorder %s83, %s86
    %p92 = scmp.eq.s32.totalorder %s21, 0
    %p93 = por %p91, %p92
    %p94 = scmp.ne.s32.totalorder %s83, %s86
    %p95 = scmp.eq.s32.totalorder %s26, 1
    %p96 = por %p94, %p95
    %p97 = scmp.ne.s32.totalorder %s86, %s87
    %p98 = scmp.eq.s32.totalorder %s26, 0
    %p99 = por %p97, %p98
    %p100 = scmp.ne.s32.totalorder %s86, %s87
    %p101 = scmp.eq.s32.totalorder %s27, 1
    %p102 = por %p100, %p101
    %p104 = scmp.ne.s32.totalorder %s87, %s103
    %p105 = scmp.eq.s32.totalorder %s27, 0
    %p106 = por %p104, %p105
    %s107 = ssub.s32 %s21, %s28
    %p108 = scmp.eq.s32.totalorder %s107, 0
    %s110 = sadd.s32 %s109, 1
    %s111 = scalar_select %p108, %s109, %s110
    %p114 = pneg %p108
    %p115 = scmp.eq.s32.totalorder %s21, 1
    %p116 = por %p114, %p115
    %p117 = scmp.ne.s32.totalorder %s109, %s112
    %p118 = scmp.eq.s32.totalorder %s21, 0
    %p119 = por %p117, %p118
    %p120 = scmp.ne.s32.totalorder %s109, %s112
    %p121 = scmp.eq.s32.totalorder %s26, 1
    %p122 = por %p120, %p121
    %p123 = scmp.ne.s32.totalorder %s112, %s113
    %p124 = scmp.eq.s32.totalorder %s26, 0
    %p125 = por %p123, %p124
    %p126 = scmp.ne.s32.totalorder %s112, %s113
    %p127 = scmp.eq.s32.totalorder %s27, 1
    %p128 = por %p126, %p127
    %p130 = scmp.ne.s32.totalorder %s113, %s129
    %p131 = scmp.eq.s32.totalorder %s27, 0
    %p132 = por %p130, %p131
    %s134 = sadd.s32 %s133, 1
    %p137 = scmp.eq.s32.totalorder %s21, 1
    %p138 = scmp.ne.s32.totalorder %s133, %s135
    %p139 = scmp.eq.s32.totalorder %s21, 0
    %p140 = por %p138, %p139
    %p141 = scmp.ne.s32.totalorder %s133, %s135
    %p142 = scmp.eq.s32.totalorder %s26, 1
    %p143 = por %p141, %p142
    %p144 = scmp.ne.s32.totalorder %s135, %s136
    %p145 = scmp.eq.s32.totalorder %s26, 0
    %p146 = por %p144, %p145
    %p147 = scmp.ne.s32.totalorder %s135, %s136
    %p148 = scmp.eq.s32.totalorder %s27, 1
    %p149 = por %p147, %p148
    %p151 = scmp.ne.s32.totalorder %s136, %s150
    %p152 = scmp.eq.s32.totalorder %s27, 0
    %p153 = por %p151, %p152
    %s155 = sadd.s32 %s154, 1
    %p158 = scmp.eq.s32.totalorder %s21, 1
    %p159 = scmp.ne.s32.totalorder %s154, %s156
    %p160 = scmp.eq.s32.totalorder %s21, 0
    %p161 = por %p159, %p160
    %p162 = scmp.ne.s32.totalorder %s154, %s156
    %p163 = scmp.eq.s32.totalorder %s26, 1
    %p164 = por %p162, %p163
    %p165 = scmp.ne.s32.totalorder %s156, %s157
    %p166 = scmp.eq.s32.totalorder %s26, 0
    %p167 = por %p165, %p166
    %p168 = scmp.ne.s32.totalorder %s156, %s157
    %p169 = scmp.eq.s32.totalorder %s27, 1
    %p170 = por %p168, %p169
    %p172 = scmp.ne.s32.totalorder %s157, %s171
    %p173 = scmp.eq.s32.totalorder %s27, 0
    %p174 = por %p172, %p173
    %s176 = sadd.s32 %s175, 1
    %p179 = scmp.eq.s32.totalorder %s21, 1
    %p180 = scmp.ne.s32.totalorder %s175, %s177
    %p181 = scmp.eq.s32.totalorder %s21, 0
    %p182 = por %p180, %p181
    %p183 = scmp.ne.s32.totalorder %s175, %s177
    %p184 = scmp.eq.s32.totalorder %s26, 1
    %p185 = por %p183, %p184
    %p186 = scmp.ne.s32.totalorder %s177, %s178
    %p187 = scmp.eq.s32.totalorder %s26, 0
    %p188 = por %p186, %p187
    %p189 = scmp.ne.s32.totalorder %s177, %s178
    %p190 = scmp.eq.s32.totalorder %s27, 1
    %p191 = por %p189, %p190
    %p193 = scmp.ne.s32.totalorder %s178, %s192
    %p194 = scmp.eq.s32.totalorder %s27, 0
    %p195 = por %p193, %p194
    %s197 = sadd.s32 %s196, 1
    %p200 = scmp.eq.s32.totalorder %s21, 1
    %p201 = scmp.ne.s32.totalorder %s196, %s198
    %p202 = scmp.eq.s32.totalorder %s21, 0
    %p203 = por %p201, %p202
    %p204 = scmp.ne.s32.totalorder %s196, %s198
    %p205 = scmp.eq.s32.totalorder %s26, 1
    %p206 = por %p204, %p205
    %p207 = scmp.ne.s32.totalorder %s198, %s199
    %p208 = scmp.eq.s32.totalorder %s26, 0
    %p209 = por %p207, %p208
    %p210 = scmp.ne.s32.totalorder %s198, %s199
    %p211 = scmp.eq.s32.totalorder %s27, 1
    %p212 = por %p210, %p211
    %p214 = scmp.ne.s32.totalorder %s199, %s213
    %p215 = scmp.eq.s32.totalorder %s27, 0
    %p216 = por %p214, %p215
    %s218 = sadd.s32 %s217, 1
    %p221 = scmp.eq.s32.totalorder %s21, 1
    %p222 = scmp.ne.s32.totalorder %s217, %s219
    %p223 = scmp.eq.s32.totalorder %s21, 0
    %p224 = por %p222, %p223
    %p225 = scmp.ne.s32.totalorder %s217, %s219
    %p226 = scmp.eq.s32.totalorder %s26, 1
    %p227 = por %p225, %p226
    %p228 = scmp.ne.s32.totalorder %s219, %s220
    %p229 = scmp.eq.s32.totalorder %s26, 0
    %p230 = por %p228, %p229
    %p231 = scmp.ne.s32.totalorder %s219, %s220
    %p232 = scmp.eq.s32.totalorder %s27, 1
    %p233 = por %p231, %p232
    %p235 = scmp.ne.s32.totalorder %s220, %s234
    %p236 = scmp.eq.s32.totalorder %s27, 0
    %p237 = por %p235, %p236
    %s239 = sadd.s32 %s238, 1
    %p242 = scmp.eq.s32.totalorder %s21, 1
    %p243 = scmp.ne.s32.totalorder %s238, %s240
    %p244 = scmp.eq.s32.totalorder %s21, 0
    %p245 = por %p243, %p244
    %p246 = scmp.ne.s32.totalorder %s238, %s240
    %p247 = scmp.eq.s32.totalorder %s26, 1
    %p248 = por %p246, %p247
    %p249 = scmp.ne.s32.totalorder %s240, %s241
    %p250 = scmp.eq.s32.totalorder %s26, 0
    %p251 = por %p249, %p250
    %p252 = scmp.ne.s32.totalorder %s240, %s241
    %p253 = scmp.eq.s32.totalorder %s27, 1
    %p254 = por %p252, %p253
    %p256 = scmp.ne.s32.totalorder %s241, %s255
    %p257 = scmp.eq.s32.totalorder %s27, 0
    %p258 = por %p256, %p257
    %s260 = sadd.s32 %s259, 1
    %p263 = scmp.eq.s32.totalorder %s21, 1
    %p264 = scmp.ne.s32.totalorder %s259, %s261
    %p265 = scmp.eq.s32.totalorder %s21, 0
    %p266 = por %p264, %p265
    %p267 = scmp.ne.s32.totalorder %s259, %s261
    %p268 = scmp.eq.s32.totalorder %s26, 1
    %p269 = por %p267, %p268
    %p270 = scmp.ne.s32.totalorder %s261, %s262
    %p271 = scmp.eq.s32.totalorder %s26, 0
    %p272 = por %p270, %p271
    %p273 = scmp.ne.s32.totalorder %s261, %s262
    %p274 = scmp.eq.s32.totalorder %s27, 1
    %p275 = por %p273, %p274
    %p277 = scmp.ne.s32.totalorder %s262, %s276
    %p278 = scmp.eq.s32.totalorder %s27, 0
    %p279 = por %p277, %p278
    %s281 = sadd.s32 %s280, 1
    %p284 = scmp.eq.s32.totalorder %s21, 1
    %p285 = scmp.ne.s32.totalorder %s280, %s282
    %p286 = scmp.eq.s32.totalorder %s21, 0
    %p287 = por %p285, %p286
    %p288 = scmp.ne.s32.totalorder %s280, %s282
    %p289 = scmp.eq.s32.totalorder %s26, 1
    %p290 = por %p288, %p289
    %p291 = scmp.ne.s32.totalorder %s282, %s283
    %p292 = scmp.eq.s32.totalorder %s26, 0
    %p293 = por %p291, %p292
    %p294 = scmp.ne.s32.totalorder %s282, %s283
    %p295 = scmp.eq.s32.totalorder %s27, 1
    %p296 = por %p294, %p295
    %p298 = scmp.ne.s32.totalorder %s283, %s297
    %p299 = scmp.eq.s32.totalorder %s27, 0
    %p300 = por %p298, %p299
    %s302 = sadd.s32 %s301, 1
    %p305 = scmp.eq.s32.totalorder %s21, 1
    %p306 = scmp.ne.s32.totalorder %s301, %s303
    %p307 = scmp.eq.s32.totalorder %s21, 0
    %p308 = por %p306, %p307
    %p309 = scmp.ne.s32.totalorder %s301, %s303
    %p310 = scmp.eq.s32.totalorder %s26, 1
    %p311 = por %p309, %p310
    %p312 = scmp.ne.s32.totalorder %s303, %s304
    %p313 = scmp.eq.s32.totalorder %s26, 0
    %p314 = por %p312, %p313
    %p315 = scmp.ne.s32.totalorder %s303, %s304
    %p316 = scmp.eq.s32.totalorder %s27, 1
    %p317 = por %p315, %p316
    %p319 = scmp.ne.s32.totalorder %s304, %s318
    %p320 = scmp.eq.s32.totalorder %s27, 0
    %p321 = por %p319, %p320
    %s322 = ssub.s32 %s21, %s28
    %p323 = scmp.eq.s32.totalorder %s322, 0
    %s325 = sadd.s32 %s324, 1
    %s326 = scalar_select %p323, %s324, %s325
    %p329 = pneg %p323
    %p330 = scmp.eq.s32.totalorder %s21, 1
    %p331 = por %p329, %p330
    %p332 = scmp.ne.s32.totalorder %s324, %s327
    %p333 = scmp.eq.s32.totalorder %s21, 0
    %p334 = por %p332, %p333
    %p335 = scmp.ne.s32.totalorder %s324, %s327
    %p336 = scmp.eq.s32.totalorder %s26, 1
    %p337 = por %p335, %p336
    %p338 = scmp.ne.s32.totalorder %s327, %s328
    %p339 = scmp.eq.s32.totalorder %s26, 0
    %p340 = por %p338, %p339
    %p341 = scmp.ne.s32.totalorder %s327, %s328
    %p342 = scmp.eq.s32.totalorder %s27, 1
    %p343 = por %p341, %p342
    %p345 = scmp.ne.s32.totalorder %s328, %s344
    %p346 = scmp.eq.s32.totalorder %s27, 0
    %p347 = por %p345, %p346
    %p348 = scmp.le.s32.totalorder 1, %s21
    %p349 = scmp.lt.s32.totalorder %s21, 3
    %p350 = pnand %p348, %p349
    %p351 = pneg %p350
    // Predicated region
    $region9: #{netD_forward.5} parent=5 // pred_check
      _
    $region10: #{netD_forward.5} parent=5 // pred_check_branch
      %353 = sbr.rel (%p350) target = $region12
    $region11: #{netD_forward.5} parent=5 // pred_region
      %s354 = ssub.s32 %s21, 1
      // Predicated region
      $region13: #{netD_forward.5} parent=11 // pred_check
        %p355 = pneg %p146
      $region14: #{netD_forward.5} parent=11 // pred_check_branch
        %357 = sbr.rel (%p355) target = $region16
      $region15: #{netD_forward.5} parent=11 // pred_region
        _
      $region16: #{netD_forward.5} parent=11 // pred_fallthru
        _
      // Predicated region
      $region17: #{netD_forward.5} parent=11 // pred_check
        %p358 = pneg %p167
      $region18: #{netD_forward.5} parent=11 // pred_check_branch
        %360 = sbr.rel (%p358) target = $region20
      $region19: #{netD_forward.5} parent=11 // pred_region
        _
      $region20: #{netD_forward.5} parent=11 // pred_fallthru
        _
      // Predicated region
      $region21: #{netD_forward.5} parent=11 // pred_check
        %p361 = pneg %p188
      $region22: #{netD_forward.5} parent=11 // pred_check_branch
        %363 = sbr.rel (%p361) target = $region24
      $region23: #{netD_forward.5} parent=11 // pred_region
        _
      $region24: #{netD_forward.5} parent=11 // pred_fallthru
        _
      // Predicated region
      $region25: #{netD_forward.5} parent=11 // pred_check
        %p364 = pneg %p209
      $region26: #{netD_forward.5} parent=11 // pred_check_branch
        %366 = sbr.rel (%p364) target = $region28
      $region27: #{netD_forward.5} parent=11 // pred_region
        _
      $region28: #{netD_forward.5} parent=11 // pred_fallthru
        _
      // Predicated region
      $region29: #{netD_forward.5} parent=11 // pred_check
        %p367 = pneg %p230
      $region30: #{netD_forward.5} parent=11 // pred_check_branch
        %369 = sbr.rel (%p367) target = $region32
      $region31: #{netD_forward.5} parent=11 // pred_region
        _
      $region32: #{netD_forward.5} parent=11 // pred_fallthru
        _
      // Predicated region
      $region33: #{netD_forward.5} parent=11 // pred_check
        %p370 = pneg %p251
      $region34: #{netD_forward.5} parent=11 // pred_check_branch
        %372 = sbr.rel (%p370) target = $region36
      $region35: #{netD_forward.5} parent=11 // pred_region
        _
      $region36: #{netD_forward.5} parent=11 // pred_fallthru
        _
      // Predicated region
      $region37: #{netD_forward.5} parent=11 // pred_check
        %p373 = pneg %p272
      $region38: #{netD_forward.5} parent=11 // pred_check_branch
        %375 = sbr.rel (%p373) target = $region40
      $region39: #{netD_forward.5} parent=11 // pred_region
        _
      $region40: #{netD_forward.5} parent=11 // pred_fallthru
        _
      // Predicated region
      $region41: #{netD_forward.5} parent=11 // pred_check
        %p376 = pneg %p293
      $region42: #{netD_forward.5} parent=11 // pred_check_branch
        %378 = sbr.rel (%p376) target = $region44
      $region43: #{netD_forward.5} parent=11 // pred_region
        _
      $region44: #{netD_forward.5} parent=11 // pred_fallthru
        _
      // Predicated region
      $region45: #{netD_forward.5} parent=11 // pred_check
        %p379 = pneg %p314
      $region46: #{netD_forward.5} parent=11 // pred_check_branch
        %381 = sbr.rel (%p379) target = $region48
      $region47: #{netD_forward.5} parent=11 // pred_region
        _
      $region48: #{netD_forward.5} parent=11 // pred_fallthru
        _
    $region12: #{netD_forward.5} parent=5 // pred_fallthru
      _
    %p382 = scmp.lt.s32.totalorder %s21, 2
    // Predicated region
    $region49: #{netD_forward.5} parent=5 // pred_check
      %p383 = pneg %p382
    $region50: #{netD_forward.5} parent=5 // pred_check_branch
      %385 = sbr.rel (%p383) target = $region52
    $region51: #{netD_forward.5} parent=5 // pred_region
      // Predicated region
      $region53: #{netD_forward.5} parent=51 // pred_check
        %p386 = pneg %p41
      $region54: #{netD_forward.5} parent=51 // pred_check_branch
        %388 = sbr.rel (%p386) target = $region56
      $region55: #{netD_forward.5} parent=51 // pred_region
        %p389 = scmp.lt.s32.totalorder %s21, 1
        %s390 = scalar_select %p389, %s21, 1
        %s391 = smul.addr %s390, 2
        %s392 = smul.addr %s391, 4
        %s393 = scalar_lea.vmem %s0, %s392
      $region56: #{netD_forward.5} parent=51 // pred_fallthru
        _
      // Predicated region
      $region57: #{netD_forward.5} parent=51 // pred_check
        %p394 = pneg %p67
      $region58: #{netD_forward.5} parent=51 // pred_check_branch
        %396 = sbr.rel (%p394) target = $region60
      $region59: #{netD_forward.5} parent=51 // pred_region
        %p397 = scmp.lt.s32.totalorder %s21, 1
        %s398 = scalar_select %p397, %s21, 1
        %s399 = smul.addr %s398, 2
        %s400 = smul.addr %s399, 4
        %s401 = scalar_lea.vmem %s1, %s400
      $region60: #{netD_forward.5} parent=51 // pred_fallthru
        _
      // Predicated region
      $region61: #{netD_forward.5} parent=51 // pred_check
        %p402 = pneg %p93
      $region62: #{netD_forward.5} parent=51 // pred_check_branch
        %404 = sbr.rel (%p402) target = $region64
      $region63: #{netD_forward.5} parent=51 // pred_region
        %p405 = scmp.lt.s32.totalorder %s21, 1
        %s406 = scalar_select %p405, %s21, 1
        %s407 = smul.addr %s406, 2
        %s408 = smul.addr %s407, 4
        %s409 = scalar_lea.vmem %s2, %s408
      $region64: #{netD_forward.5} parent=51 // pred_fallthru
        _
      // Predicated region
      $region65: #{netD_forward.5} parent=51 // pred_check
        %p410 = pneg %p119
      $region66: #{netD_forward.5} parent=51 // pred_check_branch
        %412 = sbr.rel (%p410) target = $region68
      $region67: #{netD_forward.5} parent=51 // pred_region
        %p413 = scmp.lt.s32.totalorder %s21, 1
        %s414 = scalar_select %p413, %s21, 1
        %s415 = smul.addr %s414, 2
        %s416 = smul.addr %s415, 4
        %s417 = scalar_lea.vmem %s3, %s416
      $region68: #{netD_forward.5} parent=51 // pred_fallthru
        _
    $region52: #{netD_forward.5} parent=5 // pred_fallthru
      _
    %p418 = scmp.le.s32.totalorder 1, %s21
    %p419 = scmp.lt.s32.totalorder %s21, 3
    %p420 = pnand %p418, %p419
    %p421 = pneg %p420
    // Predicated region
    $region69: #{netD_forward.5} parent=5 // pred_check
      _
    $region70: #{netD_forward.5} parent=5 // pred_check_branch
      %423 = sbr.rel (%p420) target = $region72
    $region71: #{netD_forward.5} parent=5 // pred_region
      %s424 = ssub.s32 %s21, 1
      %p425 = scmp.lt.s32.totalorder %s26, 1
      %s426 = scalar_select %p425, %s26, 1
      %s427 = smul.addr %s426, 2
      %s428 = smul.addr %s427, 4
      %s429 = scalar_lea.vmem %s0, %s428
      %p430 = pneg %p47
      %p431 = pneg %p44
      %p432 = scmp.lt.s32.totalorder %s26, 1
      %s433 = scalar_select %p432, %s26, 1
      %s434 = smul.addr %s433, 2
      %s435 = smul.addr %s434, 4
      %s436 = scalar_lea.vmem %s1, %s435
      %p437 = pneg %p73
      %p438 = pneg %p70
      %p439 = scmp.lt.s32.totalorder %s26, 1
      %s440 = scalar_select %p439, %s26, 1
      %s441 = smul.addr %s440, 2
      %s442 = smul.addr %s441, 4
      %s443 = scalar_lea.vmem %s2, %s442
      %p444 = pneg %p99
      %p445 = pneg %p96
      %p446 = scmp.lt.s32.totalorder %s26, 1
      %s447 = scalar_select %p446, %s26, 1
      %s448 = smul.addr %s447, 2
      %s449 = smul.addr %s448, 4
      %s450 = scalar_lea.vmem %s3, %s449
      %p451 = pneg %p125
      %p452 = pneg %p122
      %p453 = pneg %p146
      %p454 = pneg %p143
      %p455 = pneg %p167
      %p456 = pneg %p164
      %p457 = pneg %p188
      %p458 = pneg %p185
      %p459 = pneg %p209
      %p460 = pneg %p206
      %p461 = pneg %p230
      %p462 = pneg %p227
      %p463 = pneg %p251
      %p464 = pneg %p248
      %p465 = pneg %p272
      %p466 = pneg %p269
      %p467 = pneg %p293
      %p468 = pneg %p290
      %p469 = pneg %p314
      %p470 = pneg %p311
      %p471 = pneg %p340
      %p472 = pneg %p337
      %p473 = scmp.lt.s32.totalorder %s26, 1
      %s474 = scalar_select %p473, %s26, 1
      %s475 = smul.addr %s474, 8
      %s476 = scalar_lea.vmem %s13, %s475
      %p477 = scmp.lt.s32.totalorder %s26, 1
      %s478 = scalar_select %p477, %s26, 1
      %s479 = smul.addr %s478, 2
      %s480 = smul.addr %s479, 4
      %s481 = scalar_lea.vmem %s0, %s480
      %p482 = scmp.lt.s32.totalorder %s26, 1
      %s483 = scalar_select %p482, %s26, 1
      %s484 = smul.addr %s483, 2
      %s485 = smul.addr %s484, 4
      %s486 = scalar_lea.vmem %s1, %s485
      %p487 = scmp.lt.s32.totalorder %s26, 1
      %s488 = scalar_select %p487, %s26, 1
      %s489 = smul.addr %s488, 2
      %s490 = smul.addr %s489, 4
      %s491 = scalar_lea.vmem %s2, %s490
      %p492 = scmp.lt.s32.totalorder %s26, 1
      %s493 = scalar_select %p492, %s26, 1
      %s494 = smul.addr %s493, 2
      %s495 = smul.addr %s494, 4
      %s496 = scalar_lea.vmem %s3, %s495
      %p497 = scmp.lt.s32.totalorder %s26, 1
      %s498 = scalar_select %p497, %s26, 1
      %s499 = smul.addr %s498, 8
      %s500 = scalar_lea.vmem %s13, %s499
      %v502 = vld [vmem:[%s4] sm:$0xff]
      %vm503 = vcmask 261120
      %504 = vst.msk [vmem:[#allocation2] sm:$0xff] %vm503, 0.0
      %505 = vst.msk [vmem:[#allocation2 + $0x8] sm:$0xff] %vm503, 0.0
      %vm506 = vcmask 254976
      %507 = vst.msk [vmem:[#allocation2 + $0x10] sm:$0x3] %vm506, 0.0
      %508 = vst.msk [vmem:[#allocation3] sm:$0xff] %vm503, 0.0
      %509 = vst.msk [vmem:[#allocation3 + $0x8] sm:$0xff] %vm503, 0.0
      %510 = vst.msk [vmem:[#allocation3 + $0x10] sm:$0x3] %vm506, 0.0
      %v511 = vld [vmem:[%s481] sm:$0xf]
      %v512 = vld [vmem:[%s5] sm:$0xf]
      %v513 = vld [vmem:[%s5 + $0x4] sm:$0xf]
      %v514 = vld [vmem:[%s5 + $0x8] sm:$0x3]
      %v515 = vld [vmem:[%s486] sm:$0xf]
      %s516 = scalar_lea.vmem %s5, 12
      %v517 = vld [vmem:[%s516] sm:$0xf]
      %v518 = vld [vmem:[%s516 + $0x4] sm:$0xf]
      %v519 = vld [vmem:[%s516 + $0x8] sm:$0x3]
      %v523 = vunpack.c.l.b16 %v517
      %v524 = vunpack.c.l.b16 %v518
      %v525 = vunpack.c.l.b16 %v519
      %v526 = vpack.c.b16 %v524, %v523
      %v527 = vpack.c.b16 %v525, %v525
      %vm529 = vcmask 154624
      %v531 = vsel %vm529, %v515, 0
      %vm533 = vcmask 1040384
      %vm534 = vcmask 1041408
      %v535 = vsel %vm533, 4294967295, 65535
      %v536 = vsel %vm534, %v535, 0
      %v538 = vand.u32 %v527, %v536
      %540 = vmatprep.subr.bf16.mxu0 0
      %541 = vmatpush1.bf16.msra.mxu0 %v526
      %542 = vmatprep.subr.bf16.mxu0 0
      %543 = vmatpush1.bf16.msra.mxu0 %v538
      %544 = vmatprep.subr.bf16.mxu0 0
      %545 = vmatpush1.bf16.msra.mxu0 0
      %546 = vmatprep.subr.bf16.mxu0 0
      %547 = vmatpush1.bf16.msra.mxu0 0
      %548 = vmatprep.subr.bf16.mxu0 0
      %549 = vmatpush1.bf16.msra.mxu0 0
      %550 = vmatprep.subr.bf16.mxu0 0
      %551 = vmatpush1.bf16.msra.mxu0 0
      %552 = vmatprep.subr.bf16.mxu0 0
      %553 = vmatpush1.bf16.msra.mxu0 0
      %554 = vmatprep.subr.bf16.mxu0 0
      %555 = vmatpush1.bf16.msra.mxu0 0
      %556 = vmatprep.subr.bf16.mxu0 0
      %557 = vmatpush1.bf16.msra.mxu0 0
      %558 = vmatprep.subr.bf16.mxu0 0
      %559 = vmatpush1.bf16.msra.mxu0 0
      %560 = vmatprep.subr.bf16.mxu0 0
      %561 = vmatpush1.bf16.msra.mxu0 0
      %562 = vmatprep.subr.bf16.mxu0 0
      %563 = vmatpush1.bf16.msra.mxu0 0
      %564 = vmatprep.subr.bf16.mxu0 0
      %565 = vmatpush1.bf16.msra.mxu0 0
      %566 = vmatprep.subr.bf16.mxu0 0
      %567 = vmatpush1.bf16.msra.mxu0 0
      %568 = vmatprep.subr.bf16.mxu0 0
      %569 = vmatpush1.bf16.msra.mxu0 0
      %570 = vmatprep.subr.bf16.mxu0 0
      %571 = vmatpush1.bf16.msra.mxu0 0
      %572 = vmatprep.mubr.bf16.mxu0 0
      %573 = vmatmul.mubr.bf16.gmra.mrb[0].mxu0 %v531
      %v574 = vpop.f32.mrb[0].mxu0
      %v575 = vadd.f32 0.0, %v574
      %v576 = vpop.f32.mrb[0].mxu0
      %v577 = vpop.f32.mrb[0].mxu0
      %v578 = vpop.f32.mrb[0].mxu0
      %579 = vdwg.mxu0
      %v583 = vunpack.c.l.b16 %v512
      %v584 = vunpack.c.l.b16 %v513
      %v585 = vunpack.c.l.b16 %v514
      %v586 = vpack.c.b16 %v584, %v583
      %v587 = vpack.c.b16 %v585, %v585
      %v590 = vsel %vm529, %v511, 0
      %v593 = vand.u32 %v587, %v536
      %595 = vmatprep.subr.bf16.mxu0 0
      %596 = vmatpush1.bf16.msra.mxu0 %v586
      %597 = vmatprep.subr.bf16.mxu0 0
      %598 = vmatpush1.bf16.msra.mxu0 %v593
      %599 = vmatprep.subr.bf16.mxu0 0
      %600 = vmatpush1.bf16.msra.mxu0 0
      %601 = vmatprep.subr.bf16.mxu0 0
      %602 = vmatpush1.bf16.msra.mxu0 0
      %603 = vmatprep.subr.bf16.mxu0 0
      %604 = vmatpush1.bf16.msra.mxu0 0
      %605 = vmatprep.subr.bf16.mxu0 0
      %606 = vmatpush1.bf16.msra.mxu0 0
      %607 = vmatprep.subr.bf16.mxu0 0
      %608 = vmatpush1.bf16.msra.mxu0 0
      %609 = vmatprep.subr.bf16.mxu0 0
      %610 = vmatpush1.bf16.msra.mxu0 0
      %611 = vmatprep.subr.bf16.mxu0 0
      %612 = vmatpush1.bf16.msra.mxu0 0
      %613 = vmatprep.subr.bf16.mxu0 0
      %614 = vmatpush1.bf16.msra.mxu0 0
      %615 = vmatprep.subr.bf16.mxu0 0
      %616 = vmatpush1.bf16.msra.mxu0 0
      %617 = vmatprep.subr.bf16.mxu0 0
      %618 = vmatpush1.bf16.msra.mxu0 0
      %619 = vmatprep.subr.bf16.mxu0 0
      %620 = vmatpush1.bf16.msra.mxu0 0
      %621 = vmatprep.subr.bf16.mxu0 0
      %622 = vmatpush1.bf16.msra.mxu0 0
      %623 = vmatprep.subr.bf16.mxu0 0
      %624 = vmatpush1.bf16.msra.mxu0 0
      %625 = vmatprep.subr.bf16.mxu0 0
      %626 = vmatpush1.bf16.msra.mxu0 0
      %627 = vmatprep.mubr.bf16.mxu0 0
      %628 = vmatmul.mubr.bf16.gmra.mrb[0].mxu0 %v590
      %v629 = vpop.f32.mrb[0].mxu0
      %v630 = vadd.f32 %v575, %v629
      %v631 = vpop.f32.mrb[0].mxu0
      %v632 = vpop.f32.mrb[0].mxu0
      %v633 = vpop.f32.mrb[0].mxu0
      %634 = vdwg.mxu0
      %v635 = vld [vmem:[%s481] sm:$0xf]
      %v636 = vld [vmem:[%s481 + $0x4] sm:$0x1]
      %s637 = scalar_lea.vmem %s5, 24
      %v638 = vld [vmem:[%s637] sm:$0xf]
      %v639 = vld [vmem:[%s637 + $0x4] sm:$0xf]
      %v640 = vld [vmem:[%s637 + $0x8] sm:$0x3]
      %v643 = vunpack.c.l.b16 %v635
      %v644 = vunpack.c.l.b16 %v636
      %v645 = vpack.c.b16 %v644, %v643
      %v647 = vshrl.u32 %v645, 16
      %v649 = vshll.u32 %v645, 16
      %v651 = vrot.slane %v649, 1
      %v652 = vor.u32 %v647, %v651
      %v656 = vunpack.c.l.b16 %v638
      %v657 = vunpack.c.l.b16 %v639
      %v658 = vunpack.c.l.b16 %v640
      %v659 = vpack.c.b16 %v657, %v656
      %v660 = vpack.c.b16 %v658, %v658
      %v663 = vsel %vm529, %v652, 0
      %v666 = vand.u32 %v660, %v536
      %668 = vmatprep.subr.bf16.mxu0 0
      %669 = vmatpush1.bf16.msra.mxu0 %v659
      %670 = vmatprep.subr.bf16.mxu0 0
      %671 = vmatpush1.bf16.msra.mxu0 %v666
      %672 = vmatprep.subr.bf16.mxu0 0
      %673 = vmatpush1.bf16.msra.mxu0 0
      %674 = vmatprep.subr.bf16.mxu0 0
      %675 = vmatpush1.bf16.msra.mxu0 0
      %676 = vmatprep.subr.bf16.mxu0 0
      %677 = vmatpush1.bf16.msra.mxu0 0
      %678 = vmatprep.subr.bf16.mxu0 0
      %679 = vmatpush1.bf16.msra.mxu0 0
      %680 = vmatprep.subr.bf16.mxu0 0
      %681 = vmatpush1.bf16.msra.mxu0 0
      %682 = vmatprep.subr.bf16.mxu0 0
      %683 = vmatpush1.bf16.msra.mxu0 0
      %684 = vmatprep.subr.bf16.mxu0 0
      %685 = vmatpush1.bf16.msra.mxu0 0
      %686 = vmatprep.subr.bf16.mxu0 0
      %687 = vmatpush1.bf16.msra.mxu0 0
      %688 = vmatprep.subr.bf16.mxu0 0
      %689 = vmatpush1.bf16.msra.mxu0 0
      %690 = vmatprep.subr.bf16.mxu0 0
      %691 = vmatpush1.bf16.msra.mxu0 0
      %692 = vmatprep.subr.bf16.mxu0 0
      %693 = vmatpush1.bf16.msra.mxu0 0
      %694 = vmatprep.subr.bf16.mxu0 0
      %695 = vmatpush1.bf16.msra.mxu0 0
      %696 = vmatprep.subr.bf16.mxu0 0
      %697 = vmatpush1.bf16.msra.mxu0 0
      %698 = vmatprep.subr.bf16.mxu0 0
      %699 = vmatpush1.bf16.msra.mxu0 0
      %700 = vmatprep.mubr.bf16.mxu0 0
      %701 = vmatmul.mubr.bf16.gmra.mrb[0].mxu0 %v663
      %v702 = vpop.f32.mrb[0].mxu0
      %v703 = vadd.f32 0.0, %v702
      %v704 = vpop.f32.mrb[0].mxu0
      %v705 = vpop.f32.mrb[0].mxu0
      %v706 = vpop.f32.mrb[0].mxu0
      %707 = vdwg.mxu0
      %v708 = vadd.f32 %v630, %v703
      %v709 = vld [vmem:[%s491] sm:$0xf]
      %s710 = scalar_lea.vmem %s5, 36
      %v711 = vld [vmem:[%s710] sm:$0xf]
      %v712 = vld [vmem:[%s710 + $0x4] sm:$0xf]
      %v713 = vld [vmem:[%s710 + $0x8] sm:$0x3]
      %v717 = vunpack.c.l.b16 %v711
      %v718 = vunpack.c.l.b16 %v712
      %v719 = vunpack.c.l.b16 %v713
      %v720 = vpack.c.b16 %v718, %v717
      %v721 = vpack.c.b16 %v719, %v719
      %v724 = vsel %vm529, %v709, 0
      %v727 = vand.u32 %v721, %v536
      %729 = vmatprep.subr.bf16.mxu0 0
      %730 = vmatpush1.bf16.msra.mxu0 %v720
      %731 = vmatprep.subr.bf16.mxu0 0
      %732 = vmatpush1.bf16.msra.mxu0 %v727
      %733 = vmatprep.subr.bf16.mxu0 0
      %734 = vmatpush1.bf16.msra.mxu0 0
      %735 = vmatprep.subr.bf16.mxu0 0
      %736 = vmatpush1.bf16.msra.mxu0 0
      %737 = vmatprep.subr.bf16.mxu0 0
      %738 = vmatpush1.bf16.msra.mxu0 0
      %739 = vmatprep.subr.bf16.mxu0 0
      %740 = vmatpush1.bf16.msra.mxu0 0
      %741 = vmatprep.subr.bf16.mxu0 0
      %742 = vmatpush1.bf16.msra.mxu0 0
      %743 = vmatprep.subr.bf16.mxu0 0
      %744 = vmatpush1.bf16.msra.mxu0 0
      %745 = vmatprep.subr.bf16.mxu0 0
      %746 = vmatpush1.bf16.msra.mxu0 0
      %747 = vmatprep.subr.bf16.mxu0 0
      %748 = vmatpush1.bf16.msra.mxu0 0
      %749 = vmatprep.subr.bf16.mxu0 0
      %750 = vmatpush1.bf16.msra.mxu0 0
      %751 = vmatprep.subr.bf16.mxu0 0
      %752 = vmatpush1.bf16.msra.mxu0 0
      %753 = vmatprep.subr.bf16.mxu0 0
      %754 = vmatpush1.bf16.msra.mxu0 0
      %755 = vmatprep.subr.bf16.mxu0 0
      %756 = vmatpush1.bf16.msra.mxu0 0
      %757 = vmatprep.subr.bf16.mxu0 0
      %758 = vmatpush1.bf16.msra.mxu0 0
      %759 = vmatprep.subr.bf16.mxu0 0
      %760 = vmatpush1.bf16.msra.mxu0 0
      %761 = vmatprep.mubr.bf16.mxu0 0
      %762 = vmatmul.mubr.bf16.gmra.mrb[0].mxu0 %v724
      %v763 = vpop.f32.mrb[0].mxu0
      %v764 = vadd.f32 0.0, %v763
      %v765 = vpop.f32.mrb[0].mxu0
      %v766 = vpop.f32.mrb[0].mxu0
      %v767 = vpop.f32.mrb[0].mxu0
      %768 = vdwg.mxu0
      %v769 = vadd.f32 %v708, %v764
      %v770 = vld [vmem:[%s496] sm:$0xf]
      %s771 = scalar_lea.vmem %s5, 48
      %v772 = vld [vmem:[%s771] sm:$0xf]
      %v773 = vld [vmem:[%s771 + $0x4] sm:$0xf]
      %v774 = vld [vmem:[%s771 + $0x8] sm:$0x3]
      %v778 = vunpack.c.l.b16 %v772
      %v779 = vunpack.c.l.b16 %v773
      %v780 = vunpack.c.l.b16 %v774
      %v781 = vpack.c.b16 %v779, %v778
      %v782 = vpack.c.b16 %v780, %v780
      %v785 = vsel %vm529, %v770, 0
      %v788 = vand.u32 %v782, %v536
      %790 = vmatprep.subr.bf16.mxu0 0
      %791 = vmatpush1.bf16.msra.mxu0 %v781
      %792 = vmatprep.subr.bf16.mxu0 0
      %793 = vmatpush1.bf16.msra.mxu0 %v788
      %794 = vmatprep.subr.bf16.mxu0 0
      %795 = vmatpush1.bf16.msra.mxu0 0
      %796 = vmatprep.subr.bf16.mxu0 0
      %797 = vmatpush1.bf16.msra.mxu0 0
      %798 = vmatprep.subr.bf16.mxu0 0
      %799 = vmatpush1.bf16.msra.mxu0 0
      %800 = vmatprep.subr.bf16.mxu0 0
      %801 = vmatpush1.bf16.msra.mxu0 0
      %802 = vmatprep.subr.bf16.mxu0 0
      %803 = vmatpush1.bf16.msra.mxu0 0
      %804 = vmatprep.subr.bf16.mxu0 0
      %805 = vmatpush1.bf16.msra.mxu0 0
      %806 = vmatprep.subr.bf16.mxu0 0
      %807 = vmatpush1.bf16.msra.mxu0 0
      %808 = vmatprep.subr.bf16.mxu0 0
      %809 = vmatpush1.bf16.msra.mxu0 0
      %810 = vmatprep.subr.bf16.mxu0 0
      %811 = vmatpush1.bf16.msra.mxu0 0
      %812 = vmatprep.subr.bf16.mxu0 0
      %813 = vmatpush1.bf16.msra.mxu0 0
      %814 = vmatprep.subr.bf16.mxu0 0
      %815 = vmatpush1.bf16.msra.mxu0 0
      %816 = vmatprep.subr.bf16.mxu0 0
      %817 = vmatpush1.bf16.msra.mxu0 0
      %818 = vmatprep.subr.bf16.mxu0 0
      %819 = vmatpush1.bf16.msra.mxu0 0
      %820 = vmatprep.subr.bf16.mxu0 0
      %821 = vmatpush1.bf16.msra.mxu0 0
      %822 = vmatprep.mubr.bf16.mxu0 0
      %823 = vmatmul.mubr.bf16.gmra.mrb[0].mxu0 %v785
      %v824 = vpop.f32.mrb[0].mxu0
      %v825 = vadd.f32 0.0, %v824
      %v826 = vpop.f32.mrb[0].mxu0
      %v827 = vpop.f32.mrb[0].mxu0
      %v828 = vpop.f32.mrb[0].mxu0
      %829 = vdwg.mxu0
      %v830 = vadd.f32 %v769, %v825
      %v831 = vld [vmem:[%s491] sm:$0xf]
      %v832 = vld [vmem:[%s491 + $0x4] sm:$0x1]
      %s833 = scalar_lea.vmem %s5, 60
      %v834 = vld [vmem:[%s833] sm:$0xf]
      %v835 = vld [vmem:[%s833 + $0x4] sm:$0xf]
      %v836 = vld [vmem:[%s833 + $0x8] sm:$0x3]
      %v839 = vunpack.c.l.b16 %v831
      %v840 = vunpack.c.l.b16 %v832
      %v841 = vpack.c.b16 %v840, %v839
      %v843 = vshrl.u32 %v841, 16
      %v845 = vshll.u32 %v841, 16
      %v847 = vrot.slane %v845, 1
      %v848 = vor.u32 %v843, %v847
      %v852 = vunpack.c.l.b16 %v834
      %v853 = vunpack.c.l.b16 %v835
      %v854 = vunpack.c.l.b16 %v836
      %v855 = vpack.c.b16 %v853, %v852
      %v856 = vpack.c.b16 %v854, %v854
      %v859 = vsel %vm529, %v848, 0
      %v862 = vand.u32 %v856, %v536
      %864 = vmatprep.subr.bf16.mxu0 0
      %865 = vmatpush1.bf16.msra.mxu0 %v855
      %866 = vmatprep.subr.bf16.mxu0 0
      %867 = vmatpush1.bf16.msra.mxu0 %v862
      %868 = vmatprep.subr.bf16.mxu0 0
      %869 = vmatpush1.bf16.msra.mxu0 0
      %870 = vmatprep.subr.bf16.mxu0 0
      %871 = vmatpush1.bf16.msra.mxu0 0
      %872 = vmatprep.subr.bf16.mxu0 0
      %873 = vmatpush1.bf16.msra.mxu0 0
      %874 = vmatprep.subr.bf16.mxu0 0
      %875 = vmatpush1.bf16.msra.mxu0 0
      %876 = vmatprep.subr.bf16.mxu0 0
      %877 = vmatpush1.bf16.msra.mxu0 0
      %878 = vmatprep.subr.bf16.mxu0 0
      %879 = vmatpush1.bf16.msra.mxu0 0
      %880 = vmatprep.subr.bf16.mxu0 0
      %881 = vmatpush1.bf16.msra.mxu0 0
      %882 = vmatprep.subr.bf16.mxu0 0
      %883 = vmatpush1.bf16.msra.mxu0 0
      %884 = vmatprep.subr.bf16.mxu0 0
      %885 = vmatpush1.bf16.msra.mxu0 0
      %886 = vmatprep.subr.bf16.mxu0 0
      %887 = vmatpush1.bf16.msra.mxu0 0
      %888 = vmatprep.subr.bf16.mxu0 0
      %889 = vmatpush1.bf16.msra.mxu0 0
      %890 = vmatprep.subr.bf16.mxu0 0
      %891 = vmatpush1.bf16.msra.mxu0 0
      %892 = vmatprep.subr.bf16.mxu0 0
      %893 = vmatpush1.bf16.msra.mxu0 0
      %894 = vmatprep.subr.bf16.mxu0 0
      %895 = vmatpush1.bf16.msra.mxu0 0
      %896 = vmatprep.mubr.bf16.mxu0 0
      %897 = vmatmul.mubr.bf16.gmra.mrb[0].mxu0 %v859
      %v898 = vpop.f32.mrb[0].mxu0
      %v899 = vadd.f32 0.0, %v898
      %v900 = vpop.f32.mrb[0].mxu0
      %v901 = vpop.f32.mrb[0].mxu0
      %v902 = vpop.f32.mrb[0].mxu0
      %903 = vdwg.mxu0
      %v904 = vadd.f32 %v830, %v899
      %v905 = vld [vmem:[%s481] sm:$0xc]
      %v906 = vld [vmem:[%s481 + $0x4] sm:$0x3]
      %s907 = scalar_lea.vmem %s5, 72
      %v908 = vld [vmem:[%s907] sm:$0xf]
      %v909 = vld [vmem:[%s907 + $0x4] sm:$0xf]
      %v910 = vld [vmem:[%s907 + $0x8] sm:$0x3]
      %v913 = vunpack.c.l.b16 %v905
      %v914 = vunpack.c.l.b16 %v906
      %v915 = vpack.c.b16 %v914, %v913
      %v916 = vrot.slane %v915, 2
      %v920 = vunpack.c.l.b16 %v908
      %v921 = vunpack.c.l.b16 %v909
      %v922 = vunpack.c.l.b16 %v910
      %v923 = vpack.c.b16 %v921, %v920
      %v924 = vpack.c.b16 %v922, %v922
      %v927 = vsel %vm529, %v916, 0
      %v930 = vand.u32 %v924, %v536
      %932 = vmatprep.subr.bf16.mxu0 0
      %933 = vmatpush1.bf16.msra.mxu0 %v923
      %934 = vmatprep.subr.bf16.mxu0 0
      %935 = vmatpush1.bf16.msra.mxu0 %v930
      %936 = vmatprep.subr.bf16.mxu0 0
      %937 = vmatpush1.bf16.msra.mxu0 0
      %938 = vmatprep.subr.bf16.mxu0 0
      %939 = vmatpush1.bf16.msra.mxu0 0
      %940 = vmatprep.subr.bf16.mxu0 0
      %941 = vmatpush1.bf16.msra.mxu0 0
      %942 = vmatprep.subr.bf16.mxu0 0
      %943 = vmatpush1.bf16.msra.mxu0 0
      %944 = vmatprep.subr.bf16.mxu0 0
      %945 = vmatpush1.bf16.msra.mxu0 0
      %946 = vmatprep.subr.bf16.mxu0 0
      %947 = vmatpush1.bf16.msra.mxu0 0
      %948 = vmatprep.subr.bf16.mxu0 0
      %949 = vmatpush1.bf16.msra.mxu0 0
      %950 = vmatprep.subr.bf16.mxu0 0
      %951 = vmatpush1.bf16.msra.mxu0 0
      %952 = vmatprep.subr.bf16.mxu0 0
      %953 = vmatpush1.bf16.msra.mxu0 0
      %954 = vmatprep.subr.bf16.mxu0 0
      %955 = vmatpush1.bf16.msra.mxu0 0
      %956 = vmatprep.subr.bf16.mxu0 0
      %957 = vmatpush1.bf16.msra.mxu0 0
      %958 = vmatprep.subr.bf16.mxu0 0
      %959 = vmatpush1.bf16.msra.mxu0 0
      %960 = vmatprep.subr.bf16.mxu0 0
      %961 = vmatpush1.bf16.msra.mxu0 0
      %962 = vmatprep.subr.bf16.mxu0 0
      %963 = vmatpush1.bf16.msra.mxu0 0
      %964 = vmatprep.mubr.bf16.mxu0 0
      %965 = vmatmul.mubr.bf16.gmra.mrb[0].mxu0 %v927
      %v966 = vpop.f32.mrb[0].mxu0
      %v967 = vadd.f32 0.0, %v966
      %v968 = vpop.f32.mrb[0].mxu0
      %v969 = vpop.f32.mrb[0].mxu0
      %v970 = vpop.f32.mrb[0].mxu0
      %971 = vdwg.mxu0
      %v972 = vadd.f32 %v904, %v967
      %v973 = vld [vmem:[%s486] sm:$0xc]
      %v974 = vld [vmem:[%s486 + $0x4] sm:$0x3]
      %s975 = scalar_lea.vmem %s5, 84
      %v976 = vld [vmem:[%s975] sm:$0xf]
      %v977 = vld [vmem:[%s975 + $0x4] sm:$0xf]
      %v978 = vld [vmem:[%s975 + $0x8] sm:$0x3]
      %v981 = vunpack.c.l.b16 %v973
      %v982 = vunpack.c.l.b16 %v974
      %v983 = vpack.c.b16 %v982, %v981
      %v984 = vrot.slane %v983, 2
      %v988 = vunpack.c.l.b16 %v976
      %v989 = vunpack.c.l.b16 %v977
      %v990 = vunpack.c.l.b16 %v978
      %v991 = vpack.c.b16 %v989, %v988
      %v992 = vpack.c.b16 %v990, %v990
      %v995 = vsel %vm529, %v984, 0
      %v998 = vand.u32 %v992, %v536
      %1000 = vmatprep.subr.bf16.mxu0 0
      %1001 = vmatpush1.bf16.msra.mxu0 %v991
      %1002 = vmatprep.subr.bf16.mxu0 0
      %1003 = vmatpush1.bf16.msra.mxu0 %v998
      %1004 = vmatprep.subr.bf16.mxu0 0
      %1005 = vmatpush1.bf16.msra.mxu0 0
      %1006 = vmatprep.subr.bf16.mxu0 0
      %1007 = vmatpush1.bf16.msra.mxu0 0
      %1008 = vmatprep.subr.bf16.mxu0 0
      %1009 = vmatpush1.bf16.msra.mxu0 0
      %1010 = vmatprep.subr.bf16.mxu0 0
      %1011 = vmatpush1.bf16.msra.mxu0 0
      %1012 = vmatprep.subr.bf16.mxu0 0
      %1013 = vmatpush1.bf16.msra.mxu0 0
      %1014 = vmatprep.subr.bf16.mxu0 0
      %1015 = vmatpush1.bf16.msra.mxu0 0
      %1016 = vmatprep.subr.bf16.mxu0 0
      %1017 = vmatpush1.bf16.msra.mxu0 0
      %1018 = vmatprep.subr.bf16.mxu0 0
      %1019 = vmatpush1.bf16.msra.mxu0 0
      %1020 = vmatprep.subr.bf16.mxu0 0
      %1021 = vmatpush1.bf16.msra.mxu0 0
      %1022 = vmatprep.subr.bf16.mxu0 0
      %1023 = vmatpush1.bf16.msra.mxu0 0
      %1024 = vmatprep.subr.bf16.mxu0 0
      %1025 = vmatpush1.bf16.msra.mxu0 0
      %1026 = vmatprep.subr.bf16.mxu0 0
      %1027 = vmatpush1.bf16.msra.mxu0 0
      %1028 = vmatprep.subr.bf16.mxu0 0
      %1029 = vmatpush1.bf16.msra.mxu0 0
      %1030 = vmatprep.subr.bf16.mxu0 0
      %1031 = vmatpush1.bf16.msra.mxu0 0
      %1032 = vmatprep.mubr.bf16.mxu0 0
      %1033 = vmatmul.mubr.bf16.gmra.mrb[0].mxu0 %v995
      %v1034 = vpop.f32.mrb[0].mxu0
      %v1035 = vadd.f32 0.0, %v1034
      %v1036 = vpop.f32.mrb[0].mxu0
      %v1037 = vpop.f32.mrb[0].mxu0
      %v1038 = vpop.f32.mrb[0].mxu0
      %1039 = vdwg.mxu0
      %v1040 = vadd.f32 %v972, %v1035
      %v1041 = vld [vmem:[%s481 + $0x4] sm:$0x7]
      %s1042 = scalar_lea.vmem %s5, 96
      %v1043 = vld [vmem:[%s1042] sm:$0xf]
      %v1044 = vld [vmem:[%s1042 + $0x4] sm:$0xf]
      %v1045 = vld [vmem:[%s1042 + $0x8] sm:$0x3]
      %v1047 = vunpack.c.l.b16 %v1041
      %v1048 = vpack.c.b16 %v1047, %v913
      %v1050 = vshrl.u32 %v1048, 16
      %v1052 = vrot.slane %v1050, 2
      %v1053 = vshll.u32 %v1048, 16
      %v1055 = vrot.slane %v1053, 3
      %v1056 = vor.u32 %v1052, %v1055
      %v1060 = vunpack.c.l.b16 %v1043
      %v1061 = vunpack.c.l.b16 %v1044
      %v1062 = vunpack.c.l.b16 %v1045
      %v1063 = vpack.c.b16 %v1061, %v1060
      %v1064 = vpack.c.b16 %v1062, %v1062
      %v1067 = vsel %vm529, %v1056, 0
      %v1070 = vand.u32 %v1064, %v536
      %1072 = vmatprep.subr.bf16.mxu0 0
      %1073 = vmatpush1.bf16.msra.mxu0 %v1063
      %1074 = vmatprep.subr.bf16.mxu0 0
      %1075 = vmatpush1.bf16.msra.mxu0 %v1070
      %1076 = vmatprep.subr.bf16.mxu0 0
      %1077 = vmatpush1.bf16.msra.mxu0 0
      %1078 = vmatprep.subr.bf16.mxu0 0
      %1079 = vmatpush1.bf16.msra.mxu0 0
      %1080 = vmatprep.subr.bf16.mxu0 0
      %1081 = vmatpush1.bf16.msra.mxu0 0
      %1082 = vmatprep.subr.bf16.mxu0 0
      %1083 = vmatpush1.bf16.msra.mxu0 0
      %1084 = vmatprep.subr.bf16.mxu0 0
      %1085 = vmatpush1.bf16.msra.mxu0 0
      %1086 = vmatprep.subr.bf16.mxu0 0
      %1087 = vmatpush1.bf16.msra.mxu0 0
      %1088 = vmatprep.subr.bf16.mxu0 0
      %1089 = vmatpush1.bf16.msra.mxu0 0
      %1090 = vmatprep.subr.bf16.mxu0 0
      %1091 = vmatpush1.bf16.msra.mxu0 0
      %1092 = vmatprep.subr.bf16.mxu0 0
      %1093 = vmatpush1.bf16.msra.mxu0 0
      %1094 = vmatprep.subr.bf16.mxu0 0
      %1095 = vmatpush1.bf16.msra.mxu0 0
      %1096 = vmatprep.subr.bf16.mxu0 0
      %1097 = vmatpush1.bf16.msra.mxu0 0
      %1098 = vmatprep.subr.bf16.mxu0 0
      %1099 = vmatpush1.bf16.msra.mxu0 0
      %1100 = vmatprep.subr.bf16.mxu0 0
      %1101 = vmatpush1.bf16.msra.mxu0 0
      %1102 = vmatprep.subr.bf16.mxu0 0
      %1103 = vmatpush1.bf16.msra.mxu0 0
      %1104 = vmatprep.mubr.bf16.mxu0 0
      %1105 = vmatmul.mubr.bf16.gmra.mrb[0].mxu0 %v1067
      %v1106 = vpop.f32.mrb[0].mxu0
      %v1107 = vadd.f32 0.0, %v1106
      %v1108 = vpop.f32.mrb[0].mxu0
      %v1109 = vpop.f32.mrb[0].mxu0
      %v1110 = vpop.f32.mrb[0].mxu0
      %1111 = vdwg.mxu0
      %v1112 = vadd.f32 %v1040, %v1107
      %v1113 = vld [vmem:[%s6] sm:$0x1]
      %v1115 = vlaneseq
      %v1116 = vshrl.u32 %v1115, 7
      %v1117 = vsub.s32 0, %v1116
      %v1118 = vrot.slane %v1113, %v1117
      %v1120 = vadd.f32 %v1112, %v1118
      %vm1121 = vcmp.ge.f32.partialorder %v1120, 0.0
      %v1122 = vmul.f32 %v1120, 0.2
      %v1123 = vsel %vm1121, %v1120, %v1122
      %1125 = vset.pattern.permute.xlu0 0
      %1126 = vperm.xlu0 %1125, %v502
      %v1127 = vpop.permute.xlu0 %1126
      %v1129 = vmul.f32 %v1123, %v1127
      %1130 = vst.msk [vmem:[#allocation2 + $0x5] sm:$0xff] %vm503, %v1129
      %v1131 = vld [vmem:[#allocation2] sm:$0xff]
      %v1132 = vld [vmem:[%s7] sm:$0xf]
      %v1133 = vld [vmem:[%s7 + $0x4] sm:$0xf]
      %v1134 = vld [vmem:[%s7 + $0x8] sm:$0xf]
      %v1135 = vld [vmem:[%s7 + $0xc] sm:$0xf]
      %v1136 = vld [vmem:[#allocation2 + $0x1] sm:$0xff]
      %s1137 = scalar_lea.vmem %s7, 16
      %v1138 = vld [vmem:[%s1137] sm:$0xf]
      %v1139 = vld [vmem:[%s1137 + $0x4] sm:$0xf]
      %v1140 = vld [vmem:[%s1137 + $0x8] sm:$0xf]
      %v1141 = vld [vmem:[%s1137 + $0xc] sm:$0xf]
      %v1146 = vunpack.c.l.b16 %v1138
      %v1147 = vunpack.c.l.b16 %v1139
      %v1148 = vunpack.c.l.b16 %v1140
      %v1149 = vunpack.c.l.b16 %v1141
      %v1150 = vpack.c.b16 %v1147, %v1146
      %v1151 = vpack.c.b16 %v1149, %v1148
      %v1155 = vsel %vm503, %v1136, 0
      %1157 = vmatprep.subr.bf16.mxu0 0
      %1158 = vmatpush1.bf16.msra.mxu0 %v1150
      %1159 = vmatprep.subr.bf16.mxu0 0
      %1160 = vmatpush1.bf16.msra.mxu0 %v1151
      %1161 = vmatprep.subr.bf16.mxu0 0
      %1162 = vmatpush1.bf16.msra.mxu0 0
      %1163 = vmatprep.subr.bf16.mxu0 0
      %1164 = vmatpush1.bf16.msra.mxu0 0
      %1165 = vmatprep.subr.bf16.mxu0 0
      %1166 = vmatpush1.bf16.msra.mxu0 0
      %1167 = vmatprep.subr.bf16.mxu0 0
      %1168 = vmatpush1.bf16.msra.mxu0 0
      %1169 = vmatprep.subr.bf16.mxu0 0
      %1170 = vmatpush1.bf16.msra.mxu0 0
      %1171 = vmatprep.subr.bf16.mxu0 0
      %1172 = vmatpush1.bf16.msra.mxu0 0
      %1173 = vmatprep.subr.bf16.mxu0 0
      %1174 = vmatpush1.bf16.msra.mxu0 0
      %1175 = vmatprep.subr.bf16.mxu0 0
      %1176 = vmatpush1.bf16.msra.mxu0 0
      %1177 = vmatprep.subr.bf16.mxu0 0
      %1178 = vmatpush1.bf16.msra.mxu0 0
      %1179 = vmatprep.subr.bf16.mxu0 0
      %1180 = vmatpush1.bf16.msra.mxu0 0
      %1181 = vmatprep.subr.bf16.mxu0 0
      %1182 = vmatpush1.bf16.msra.mxu0 0
      %1183 = vmatprep.subr.bf16.mxu0 0
      %1184 = vmatpush1.bf16.msra.mxu0 0
      %1185 = vmatprep.subr.bf16.mxu0 0
      %1186 = vmatpush1.bf16.msra.mxu0 0
      %1187 = vmatprep.subr.bf16.mxu0 0
      %1188 = vmatpush1.bf16.msra.mxu0 0
      %1189 = vmatprep.mubr.f32.mxu0 0.0
      %1190 = vmatmul.mubr.f32.gmra.mrb[0].mxu0 %v1155
      %v1191 = vpop.f32.mrb[0].mxu0
      %v1192 = vadd.f32 0.0, %v1191
      %v1193 = vpop.f32.mrb[0].mxu0
      %1194 = vdwg.mxu0
      %v1199 = vunpack.c.l.b16 %v1132
      %v1200 = vunpack.c.l.b16 %v1133
      %v1201 = vunpack.c.l.b16 %v1134
      %v1202 = vunpack.c.l.b16 %v1135
      %v1203 = vpack.c.b16 %v1200, %v1199
      %v1204 = vpack.c.b16 %v1202, %v1201
      %v1208 = vsel %vm503, %v1131, 0
      %1210 = vmatprep.subr.bf16.mxu0 0
      %1211 = vmatpush1.bf16.msra.mxu0 %v1203
      %1212 = vmatprep.subr.bf16.mxu0 0
      %1213 = vmatpush1.bf16.msra.mxu0 %v1204
      %1214 = vmatprep.subr.bf16.mxu0 0
      %1215 = vmatpush1.bf16.msra.mxu0 0
      %1216 = vmatprep.subr.bf16.mxu0 0
      %1217 = vmatpush1.bf16.msra.mxu0 0
      %1218 = vmatprep.subr.bf16.mxu0 0
      %1219 = vmatpush1.bf16.msra.mxu0 0
      %1220 = vmatprep.subr.bf16.mxu0 0
      %1221 = vmatpush1.bf16.msra.mxu0 0
      %1222 = vmatprep.subr.bf16.mxu0 0
      %1223 = vmatpush1.bf16.msra.mxu0 0
      %1224 = vmatprep.subr.bf16.mxu0 0
      %1225 = vmatpush1.bf16.msra.mxu0 0
      %1226 = vmatprep.subr.bf16.mxu0 0
      %1227 = vmatpush1.bf16.msra.mxu0 0
      %1228 = vmatprep.subr.bf16.mxu0 0
      %1229 = vmatpush1.bf16.msra.mxu0 0
      %1230 = vmatprep.subr.bf16.mxu0 0
      %1231 = vmatpush1.bf16.msra.mxu0 0
      %1232 = vmatprep.subr.bf16.mxu0 0
      %1233 = vmatpush1.bf16.msra.mxu0 0
      %1234 = vmatprep.subr.bf16.mxu0 0
      %1235 = vmatpush1.bf16.msra.mxu0 0
      %1236 = vmatprep.subr.bf16.mxu0 0
      %1237 = vmatpush1.bf16.msra.mxu0 0
      %1238 = vmatprep.subr.bf16.mxu0 0
      %1239 = vmatpush1.bf16.msra.mxu0 0
      %1240 = vmatprep.subr.bf16.mxu0 0
      %1241 = vmatpush1.bf16.msra.mxu0 0
      %1242 = vmatprep.mubr.f32.mxu0 0.0
      %1243 = vmatmul.mubr.f32.gmra.mrb[0].mxu0 %v1208
      %v1244 = vpop.f32.mrb[0].mxu0
      %v1245 = vadd.f32 %v1192, %v1244
      %v1246 = vpop.f32.mrb[0].mxu0
      %1247 = vdwg.mxu0
      %v1248 = vld [vmem:[#allocation2 + $0x2] sm:$0xff]
      %s1249 = scalar_lea.vmem %s7, 32
      %v1250 = vld [vmem:[%s1249] sm:$0xf]
      %v1251 = vld [vmem:[%s1249 + $0x4] sm:$0xf]
      %v1252 = vld [vmem:[%s1249 + $0x8] sm:$0xf]
      %v1253 = vld [vmem:[%s1249 + $0xc] sm:$0xf]
      %v1258 = vunpack.c.l.b16 %v1250
      %v1259 = vunpack.c.l.b16 %v1251
      %v1260 = vunpack.c.l.b16 %v1252
      %v1261 = vunpack.c.l.b16 %v1253
      %v1262 = vpack.c.b16 %v1259, %v1258
      %v1263 = vpack.c.b16 %v1261, %v1260
      %v1267 = vsel %vm503, %v1248, 0
      %1269 = vmatprep.subr.bf16.mxu0 0
      %1270 = vmatpush1.bf16.msra.mxu0 %v1262
      %1271 = vmatprep.subr.bf16.mxu0 0
      %1272 = vmatpush1.bf16.msra.mxu0 %v1263
      %1273 = vmatprep.subr.bf16.mxu0 0
      %1274 = vmatpush1.bf16.msra.mxu0 0
      %1275 = vmatprep.subr.bf16.mxu0 0
      %1276 = vmatpush1.bf16.msra.mxu0 0
      %1277 = vmatprep.subr.bf16.mxu0 0
      %1278 = vmatpush1.bf16.msra.mxu0 0
      %1279 = vmatprep.subr.bf16.mxu0 0
      %1280 = vmatpush1.bf16.msra.mxu0 0
      %1281 = vmatprep.subr.bf16.mxu0 0
      %1282 = vmatpush1.bf16.msra.mxu0 0
      %1283 = vmatprep.subr.bf16.mxu0 0
      %1284 = vmatpush1.bf16.msra.mxu0 0
      %1285 = vmatprep.subr.bf16.mxu0 0
      %1286 = vmatpush1.bf16.msra.mxu0 0
      %1287 = vmatprep.subr.bf16.mxu0 0
      %1288 = vmatpush1.bf16.msra.mxu0 0
      %1289 = vmatprep.subr.bf16.mxu0 0
      %1290 = vmatpush1.bf16.msra.mxu0 0
      %1291 = vmatprep.subr.bf16.mxu0 0
      %1292 = vmatpush1.bf16.msra.mxu0 0
      %1293 = vmatprep.subr.bf16.mxu0 0
      %1294 = vmatpush1.bf16.msra.mxu0 0
      %1295 = vmatprep.subr.bf16.mxu0 0
      %1296 = vmatpush1.bf16.msra.mxu0 0
      %1297 = vmatprep.subr.bf16.mxu0 0
      %1298 = vmatpush1.bf16.msra.mxu0 0
      %1299 = vmatprep.subr.bf16.mxu0 0
      %1300 = vmatpush1.bf16.msra.mxu0 0
      %1301 = vmatprep.mubr.f32.mxu0 0.0
      %1302 = vmatmul.mubr.f32.gmra.mrb[0].mxu0 %v1267
      %v1303 = vpop.f32.mrb[0].mxu0
      %v1304 = vadd.f32 0.0, %v1303
      %v1305 = vpop.f32.mrb[0].mxu0
      %1306 = vdwg.mxu0
      %v1307 = vadd.f32 %v1245, %v1304
      %v1308 = vld [vmem:[#allocation2 + $0x4] sm:$0xff]
      %s1309 = scalar_lea.vmem %s7, 48
      %v1310 = vld [vmem:[%s1309] sm:$0xf]
      %v1311 = vld [vmem:[%s1309 + $0x4] sm:$0xf]
      %v1312 = vld [vmem:[%s1309 + $0x8] sm:$0xf]
      %v1313 = vld [vmem:[%s1309 + $0xc] sm:$0xf]
      %v1318 = vunpack.c.l.b16 %v1310
      %v1319 = vunpack.c.l.b16 %v1311
      %v1320 = vunpack.c.l.b16 %v1312
      %v1321 = vunpack.c.l.b16 %v1313
      %v1322 = vpack.c.b16 %v1319, %v1318
      %v1323 = vpack.c.b16 %v1321, %v1320
      %v1327 = vsel %vm503, %v1308, 0
      %1329 = vmatprep.subr.bf16.mxu0 0
      %1330 = vmatpush1.bf16.msra.mxu0 %v1322
      %1331 = vmatprep.subr.bf16.mxu0 0
      %1332 = vmatpush1.bf16.msra.mxu0 %v1323
      %1333 = vmatprep.subr.bf16.mxu0 0
      %1334 = vmatpush1.bf16.msra.mxu0 0
      %1335 = vmatprep.subr.bf16.mxu0 0
      %1336 = vmatpush1.bf16.msra.mxu0 0
      %1337 = vmatprep.subr.bf16.mxu0 0
      %1338 = vmatpush1.bf16.msra.mxu0 0
      %1339 = vmatprep.subr.bf16.mxu0 0
      %1340 = vmatpush1.bf16.msra.mxu0 0
      %1341 = vmatprep.subr.bf16.mxu0 0
      %1342 = vmatpush1.bf16.msra.mxu0 0
      %1343 = vmatprep.subr.bf16.mxu0 0
      %1344 = vmatpush1.bf16.msra.mxu0 0
      %1345 = vmatprep.subr.bf16.mxu0 0
      %1346 = vmatpush1.bf16.msra.mxu0 0
      %1347 = vmatprep.subr.bf16.mxu0 0
      %1348 = vmatpush1.bf16.msra.mxu0 0
      %1349 = vmatprep.subr.bf16.mxu0 0
      %1350 = vmatpush1.bf16.msra.mxu0 0
      %1351 = vmatprep.subr.bf16.mxu0 0
      %1352 = vmatpush1.bf16.msra.mxu0 0
      %1353 = vmatprep.subr.bf16.mxu0 0
      %1354 = vmatpush1.bf16.msra.mxu0 0
      %1355 = vmatprep.subr.bf16.mxu0 0
      %1356 = vmatpush1.bf16.msra.mxu0 0
      %1357 = vmatprep.subr.bf16.mxu0 0
      %1358 = vmatpush1.bf16.msra.mxu0 0
      %1359 = vmatprep.subr.bf16.mxu0 0
      %1360 = vmatpush1.bf16.msra.mxu0 0
      %1361 = vmatprep.mubr.f32.mxu0 0.0
      %1362 = vmatmul.mubr.f32.gmra.mrb[0].mxu0 %v1327
      %v1363 = vpop.f32.mrb[0].mxu0
      %v1364 = vadd.f32 0.0, %v1363
      %v1365 = vpop.f32.mrb[0].mxu0
      %1366 = vdwg.mxu0
      %v1367 = vadd.f32 %v1307, %v1364
      %v1368 = vld [vmem:[#allocation2 + $0x5] sm:$0xff]
      %s1369 = scalar_lea.vmem %s7, 64
      %v1370 = vld [vmem:[%s1369] sm:$0xf]
      %v1371 = vld [vmem:[%s1369 + $0x4] sm:$0xf]
      %v1372 = vld [vmem:[%s1369 + $0x8] sm:$0xf]
      %v1373 = vld [vmem:[%s1369 + $0xc] sm:$0xf]
      %v1378 = vunpack.c.l.b16 %v1370
      %v1379 = vunpack.c.l.b16 %v1371
      %v1380 = vunpack.c.l.b16 %v1372
      %v1381 = vunpack.c.l.b16 %v1373
      %v1382 = vpack.c.b16 %v1379, %v1378
      %v1383 = vpack.c.b16 %v1381, %v1380
      %v1387 = vsel %vm503, %v1368, 0
      %1389 = vmatprep.subr.bf16.mxu0 0
      %1390 = vmatpush1.bf16.msra.mxu0 %v1382
      %1391 = vmatprep.subr.bf16.mxu0 0
      %1392 = vmatpush1.bf16.msra.mxu0 %v1383
      %1393 = vmatprep.subr.bf16.mxu0 0
      %1394 = vmatpush1.bf16.msra.mxu0 0
      %1395 = vmatprep.subr.bf16.mxu0 0
      %1396 = vmatpush1.bf16.msra.mxu0 0
      %1397 = vmatprep.subr.bf16.mxu0 0
      %1398 = vmatpush1.bf16.msra.mxu0 0
      %1399 = vmatprep.subr.bf16.mxu0 0
      %1400 = vmatpush1.bf16.msra.mxu0 0
      %1401 = vmatprep.subr.bf16.mxu0 0
      %1402 = vmatpush1.bf16.msra.mxu0 0
      %1403 = vmatprep.subr.bf16.mxu0 0
      %1404 = vmatpush1.bf16.msra.mxu0 0
      %1405 = vmatprep.subr.bf16.mxu0 0
      %1406 = vmatpush1.bf16.msra.mxu0 0
      %1407 = vmatprep.subr.bf16.mxu0 0
      %1408 = vmatpush1.bf16.msra.mxu0 0
      %1409 = vmatprep.subr.bf16.mxu0 0
      %1410 = vmatpush1.bf16.msra.mxu0 0
      %1411 = vmatprep.subr.bf16.mxu0 0
      %1412 = vmatpush1.bf16.msra.mxu0 0
      %1413 = vmatprep.subr.bf16.mxu0 0
      %1414 = vmatpush1.bf16.msra.mxu0 0
      %1415 = vmatprep.subr.bf16.mxu0 0
      %1416 = vmatpush1.bf16.msra.mxu0 0
      %1417 = vmatprep.subr.bf16.mxu0 0
      %1418 = vmatpush1.bf16.msra.mxu0 0
      %1419 = vmatprep.subr.bf16.mxu0 0
      %1420 = vmatpush1.bf16.msra.mxu0 0
      %1421 = vmatprep.mubr.f32.mxu0 0.0
      %1422 = vmatmul.mubr.f32.gmra.mrb[0].mxu0 %v1387
      %v1423 = vpop.f32.mrb[0].mxu0
      %v1424 = vadd.f32 0.0, %v1423
      %v1425 = vpop.f32.mrb[0].mxu0
      %1426 = vdwg.mxu0
      %v1427 = vadd.f32 %v1367, %v1424
      %v1428 = vld [vmem:[#allocation2 + $0x6] sm:$0xff]
      %s1429 = scalar_lea.vmem %s7, 80
      %v1430 = vld [vmem:[%s1429] sm:$0xf]
      %v1431 = vld [vmem:[%s1429 + $0x4] sm:$0xf]
      %v1432 = vld [vmem:[%s1429 + $0x8] sm:$0xf]
      %v1433 = vld [vmem:[%s1429 + $0xc] sm:$0xf]
      %v1438 = vunpack.c.l.b16 %v1430
      %v1439 = vunpack.c.l.b16 %v1431
      %v1440 = vunpack.c.l.b16 %v1432
      %v1441 = vunpack.c.l.b16 %v1433
      %v1442 = vpack.c.b16 %v1439, %v1438
      %v1443 = vpack.c.b16 %v1441, %v1440
      %v1447 = vsel %vm503, %v1428, 0
      %1449 = vmatprep.subr.bf16.mxu0 0
      %1450 = vmatpush1.bf16.msra.mxu0 %v1442
      %1451 = vmatprep.subr.bf16.mxu0 0
      %1452 = vmatpush1.bf16.msra.mxu0 %v1443
      %1453 = vmatprep.subr.bf16.mxu0 0
      %1454 = vmatpush1.bf16.msra.mxu0 0
      %1455 = vmatprep.subr.bf16.mxu0 0
      %1456 = vmatpush1.bf16.msra.mxu0 0
      %1457 = vmatprep.subr.bf16.mxu0 0
      %1458 = vmatpush1.bf16.msra.mxu0 0
      %1459 = vmatprep.subr.bf16.mxu0 0
      %1460 = vmatpush1.bf16.msra.mxu0 0
      %1461 = vmatprep.subr.bf16.mxu0 0
      %1462 = vmatpush1.bf16.msra.mxu0 0
      %1463 = vmatprep.subr.bf16.mxu0 0
      %1464 = vmatpush1.bf16.msra.mxu0 0
      %1465 = vmatprep.subr.bf16.mxu0 0
      %1466 = vmatpush1.bf16.msra.mxu0 0
      %1467 = vmatprep.subr.bf16.mxu0 0
      %1468 = vmatpush1.bf16.msra.mxu0 0
      %1469 = vmatprep.subr.bf16.mxu0 0
      %1470 = vmatpush1.bf16.msra.mxu0 0
      %1471 = vmatprep.subr.bf16.mxu0 0
      %1472 = vmatpush1.bf16.msra.mxu0 0
      %1473 = vmatprep.subr.bf16.mxu0 0
      %1474 = vmatpush1.bf16.msra.mxu0 0
      %1475 = vmatprep.subr.bf16.mxu0 0
      %1476 = vmatpush1.bf16.msra.mxu0 0
      %1477 = vmatprep.subr.bf16.mxu0 0
      %1478 = vmatpush1.bf16.msra.mxu0 0
      %1479 = vmatprep.subr.bf16.mxu0 0
      %1480 = vmatpush1.bf16.msra.mxu0 0
      %1481 = vmatprep.mubr.f32.mxu0 0.0
      %1482 = vmatmul.mubr.f32.gmra.mrb[0].mxu0 %v1447
      %v1483 = vpop.f32.mrb[0].mxu0
      %v1484 = vadd.f32 0.0, %v1483
      %v1485 = vpop.f32.mrb[0].mxu0
      %1486 = vdwg.mxu0
      %v1487 = vadd.f32 %v1427, %v1484
      %v1488 = vld [vmem:[#allocation2 + $0x8] sm:$0xff]
      %s1489 = scalar_lea.vmem %s7, 96
      %v1490 = vld [vmem:[%s1489] sm:$0xf]
      %v1491 = vld [vmem:[%s1489 + $0x4] sm:$0xf]
      %v1492 = vld [vmem:[%s1489 + $0x8] sm:$0xf]
      %v1493 = vld [vmem:[%s1489 + $0xc] sm:$0xf]
      %v1498 = vunpack.c.l.b16 %v1490
      %v1499 = vunpack.c.l.b16 %v1491
      %v1500 = vunpack.c.l.b16 %v1492
      %v1501 = vunpack.c.l.b16 %v1493
      %v1502 = vpack.c.b16 %v1499, %v1498
      %v1503 = vpack.c.b16 %v1501, %v1500
      %v1507 = vsel %vm503, %v1488, 0
      %1509 = vmatprep.subr.bf16.mxu0 0
      %1510 = vmatpush1.bf16.msra.mxu0 %v1502
      %1511 = vmatprep.subr.bf16.mxu0 0
      %1512 = vmatpush1.bf16.msra.mxu0 %v1503
      %1513 = vmatprep.subr.bf16.mxu0 0
      %1514 = vmatpush1.bf16.msra.mxu0 0
      %1515 = vmatprep.subr.bf16.mxu0 0
      %1516 = vmatpush1.bf16.msra.mxu0 0
      %1517 = vmatprep.subr.bf16.mxu0 0
      %1518 = vmatpush1.bf16.msra.mxu0 0
      %1519 = vmatprep.subr.bf16.mxu0 0
      %1520 = vmatpush1.bf16.msra.mxu0 0
      %1521 = vmatprep.subr.bf16.mxu0 0
      %1522 = vmatpush1.bf16.msra.mxu0 0
      %1523 = vmatprep.subr.bf16.mxu0 0
      %1524 = vmatpush1.bf16.msra.mxu0 0
      %1525 = vmatprep.subr.bf16.mxu0 0
      %1526 = vmatpush1.bf16.msra.mxu0 0
      %1527 = vmatprep.subr.bf16.mxu0 0
      %1528 = vmatpush1.bf16.msra.mxu0 0
      %1529 = vmatprep.subr.bf16.mxu0 0
      %1530 = vmatpush1.bf16.msra.mxu0 0
      %1531 = vmatprep.subr.bf16.mxu0 0
      %1532 = vmatpush1.bf16.msra.mxu0 0
      %1533 = vmatprep.subr.bf16.mxu0 0
      %1534 = vmatpush1.bf16.msra.mxu0 0
      %1535 = vmatprep.subr.bf16.mxu0 0
      %1536 = vmatpush1.bf16.msra.mxu0 0
      %1537 = vmatprep.subr.bf16.mxu0 0
      %1538 = vmatpush1.bf16.msra.mxu0 0
      %1539 = vmatprep.subr.bf16.mxu0 0
      %1540 = vmatpush1.bf16.msra.mxu0 0
      %1541 = vmatprep.mubr.f32.mxu0 0.0
      %1542 = vmatmul.mubr.f32.gmra.mrb[0].mxu0 %v1507
      %v1543 = vpop.f32.mrb[0].mxu0
      %v1544 = vadd.f32 0.0, %v1543
      %v1545 = vpop.f32.mrb[0].mxu0
      %1546 = vdwg.mxu0
      %v1547 = vadd.f32 %v1487, %v1544
      %v1548 = vld [vmem:[#allocation2 + $0x9] sm:$0xff]
      %s1549 = scalar_lea.vmem %s7, 112
      %v1550 = vld [vmem:[%s1549] sm:$0xf]
      %v1551 = vld [vmem:[%s1549 + $0x4] sm:$0xf]
      %v1552 = vld [vmem:[%s1549 + $0x8] sm:$0xf]
      %v1553 = vld [vmem:[%s1549 + $0xc] sm:$0xf]
      %v1558 = vunpack.c.l.b16 %v1550
      %v1559 = vunpack.c.l.b16 %v1551
      %v1560 = vunpack.c.l.b16 %v1552
      %v1561 = vunpack.c.l.b16 %v1553
      %v1562 = vpack.c.b16 %v1559, %v1558
      %v1563 = vpack.c.b16 %v1561, %v1560
      %v1567 = vsel %vm503, %v1548, 0
      %1569 = vmatprep.subr.bf16.mxu0 0
      %1570 = vmatpush1.bf16.msra.mxu0 %v1562
      %1571 = vmatprep.subr.bf16.mxu0 0
      %1572 = vmatpush1.bf16.msra.mxu0 %v1563
      %1573 = vmatprep.subr.bf16.mxu0 0
      %1574 = vmatpush1.bf16.msra.mxu0 0
      %1575 = vmatprep.subr.bf16.mxu0 0
      %1576 = vmatpush1.bf16.msra.mxu0 0
      %1577 = vmatprep.subr.bf16.mxu0 0
      %1578 = vmatpush1.bf16.msra.mxu0 0
      %1579 = vmatprep.subr.bf16.mxu0 0
      %1580 = vmatpush1.bf16.msra.mxu0 0
      %1581 = vmatprep.subr.bf16.mxu0 0
      %1582 = vmatpush1.bf16.msra.mxu0 0
      %1583 = vmatprep.subr.bf16.mxu0 0
      %1584 = vmatpush1.bf16.msra.mxu0 0
      %1585 = vmatprep.subr.bf16.mxu0 0
      %1586 = vmatpush1.bf16.msra.mxu0 0
      %1587 = vmatprep.subr.bf16.mxu0 0
      %1588 = vmatpush1.bf16.msra.mxu0 0
      %1589 = vmatprep.subr.bf16.mxu0 0
      %1590 = vmatpush1.bf16.msra.mxu0 0
      %1591 = vmatprep.subr.bf16.mxu0 0
      %1592 = vmatpush1.bf16.msra.mxu0 0
      %1593 = vmatprep.subr.bf16.mxu0 0
      %1594 = vmatpush1.bf16.msra.mxu0 0
      %1595 = vmatprep.subr.bf16.mxu0 0
      %1596 = vmatpush1.bf16.msra.mxu0 0
      %1597 = vmatprep.subr.bf16.mxu0 0
      %1598 = vmatpush1.bf16.msra.mxu0 0
      %1599 = vmatprep.subr.bf16.mxu0 0
      %1600 = vmatpush1.bf16.msra.mxu0 0
      %1601 = vmatprep.mubr.f32.mxu0 0.0
      %1602 = vmatmul.mubr.f32.gmra.mrb[0].mxu0 %v1567
      %v1603 = vpop.f32.mrb[0].mxu0
      %v1604 = vadd.f32 0.0, %v1603
      %v1605 = vpop.f32.mrb[0].mxu0
      %1606 = vdwg.mxu0
      %v1607 = vadd.f32 %v1547, %v1604
      %v1608 = vld [vmem:[#allocation2 + $0xa] sm:$0xff]
      %s1609 = scalar_lea.vmem %s7, 128
      %v1610 = vld [vmem:[%s1609] sm:$0xf]
      %v1611 = vld [vmem:[%s1609 + $0x4] sm:$0xf]
      %v1612 = vld [vmem:[%s1609 + $0x8] sm:$0xf]
      %v1613 = vld [vmem:[%s1609 + $0xc] sm:$0xf]
      %v1618 = vunpack.c.l.b16 %v1610
      %v1619 = vunpack.c.l.b16 %v1611
      %v1620 = vunpack.c.l.b16 %v1612
      %v1621 = vunpack.c.l.b16 %v1613
      %v1622 = vpack.c.b16 %v1619, %v1618
      %v1623 = vpack.c.b16 %v1621, %v1620
      %v1627 = vsel %vm503, %v1608, 0
      %1629 = vmatprep.subr.bf16.mxu0 0
      %1630 = vmatpush1.bf16.msra.mxu0 %v1622
      %1631 = vmatprep.subr.bf16.mxu0 0
      %1632 = vmatpush1.bf16.msra.mxu0 %v1623
      %1633 = vmatprep.subr.bf16.mxu0 0
      %1634 = vmatpush1.bf16.msra.mxu0 0
      %1635 = vmatprep.subr.bf16.mxu0 0
      %1636 = vmatpush1.bf16.msra.mxu0 0
      %1637 = vmatprep.subr.bf16.mxu0 0
      %1638 = vmatpush1.bf16.msra.mxu0 0
      %1639 = vmatprep.subr.bf16.mxu0 0
      %1640 = vmatpush1.bf16.msra.mxu0 0
      %1641 = vmatprep.subr.bf16.mxu0 0
      %1642 = vmatpush1.bf16.msra.mxu0 0
      %1643 = vmatprep.subr.bf16.mxu0 0
      %1644 = vmatpush1.bf16.msra.mxu0 0
      %1645 = vmatprep.subr.bf16.mxu0 0
      %1646 = vmatpush1.bf16.msra.mxu0 0
      %1647 = vmatprep.subr.bf16.mxu0 0
      %1648 = vmatpush1.bf16.msra.mxu0 0
      %1649 = vmatprep.subr.bf16.mxu0 0
      %1650 = vmatpush1.bf16.msra.mxu0 0
      %1651 = vmatprep.subr.bf16.mxu0 0
      %1652 = vmatpush1.bf16.msra.mxu0 0
      %1653 = vmatprep.subr.bf16.mxu0 0
      %1654 = vmatpush1.bf16.msra.mxu0 0
      %1655 = vmatprep.subr.bf16.mxu0 0
      %1656 = vmatpush1.bf16.msra.mxu0 0
      %1657 = vmatprep.subr.bf16.mxu0 0
      %1658 = vmatpush1.bf16.msra.mxu0 0
      %1659 = vmatprep.subr.bf16.mxu0 0
      %1660 = vmatpush1.bf16.msra.mxu0 0
      %1661 = vmatprep.mubr.f32.mxu0 0.0
      %1662 = vmatmul.mubr.f32.gmra.mrb[0].mxu0 %v1627
      %v1663 = vpop.f32.mrb[0].mxu0
      %v1664 = vadd.f32 0.0, %v1663
      %v1665 = vpop.f32.mrb[0].mxu0
      %1666 = vdwg.mxu0
      %v1667 = vadd.f32 %v1607, %v1664
      %v1668 = vld [vmem:[%s8] sm:$0x1]
      %v1670 = vlaneseq
      %v1671 = vshrl.u32 %v1670, 7
      %v1672 = vsub.s32 0, %v1671
      %v1673 = vrot.slane %v1668, %v1672
      %v1675 = vadd.f32 %v1667, %v1673
      %vm1676 = vcmp.ge.f32.partialorder %v1675, 0.0
      %v1677 = vmul.f32 %v1675, 0.2
      %v1678 = vsel %vm1676, %v1675, %v1677
      %v1679 = vmul.f32 %v1678, %v1127
      %1680 = vst.msk [vmem:[#allocation3 + $0x5] sm:$0xff] %vm503, %v1679
      %v1681 = vld [vmem:[#allocation3] sm:$0xff]
      %v1682 = vld [vmem:[%s9] sm:$0xf]
      %v1683 = vld [vmem:[%s9 + $0x4] sm:$0xf]
      %v1684 = vld [vmem:[%s9 + $0x8] sm:$0xf]
      %v1685 = vld [vmem:[%s9 + $0xc] sm:$0xf]
      %v1686 = vld [vmem:[#allocation3 + $0x1] sm:$0xff]
      %s1687 = scalar_lea.vmem %s9, 16
      %v1688 = vld [vmem:[%s1687] sm:$0xf]
      %v1689 = vld [vmem:[%s1687 + $0x4] sm:$0xf]
      %v1690 = vld [vmem:[%s1687 + $0x8] sm:$0xf]
      %v1691 = vld [vmem:[%s1687 + $0xc] sm:$0xf]
      %v1696 = vunpack.c.l.b16 %v1688
      %v1697 = vunpack.c.l.b16 %v1689
      %v1698 = vunpack.c.l.b16 %v1690
      %v1699 = vunpack.c.l.b16 %v1691
      %v1700 = vpack.c.b16 %v1697, %v1696
      %v1701 = vpack.c.b16 %v1699, %v1698
      %v1705 = vsel %vm503, %v1686, 0
      %1707 = vmatprep.subr.bf16.mxu0 0
      %1708 = vmatpush1.bf16.msra.mxu0 %v1700
      %1709 = vmatprep.subr.bf16.mxu0 0
      %1710 = vmatpush1.bf16.msra.mxu0 %v1701
      %1711 = vmatprep.subr.bf16.mxu0 0
      %1712 = vmatpush1.bf16.msra.mxu0 0
      %1713 = vmatprep.subr.bf16.mxu0 0
      %1714 = vmatpush1.bf16.msra.mxu0 0
      %1715 = vmatprep.subr.bf16.mxu0 0
      %1716 = vmatpush1.bf16.msra.mxu0 0
      %1717 = vmatprep.subr.bf16.mxu0 0
      %1718 = vmatpush1.bf16.msra.mxu0 0
      %1719 = vmatprep.subr.bf16.mxu0 0
      %1720 = vmatpush1.bf16.msra.mxu0 0
      %1721 = vmatprep.subr.bf16.mxu0 0
      %1722 = vmatpush1.bf16.msra.mxu0 0
      %1723 = vmatprep.subr.bf16.mxu0 0
      %1724 = vmatpush1.bf16.msra.mxu0 0
      %1725 = vmatprep.subr.bf16.mxu0 0
      %1726 = vmatpush1.bf16.msra.mxu0 0
      %1727 = vmatprep.subr.bf16.mxu0 0
      %1728 = vmatpush1.bf16.msra.mxu0 0
      %1729 = vmatprep.subr.bf16.mxu0 0
      %1730 = vmatpush1.bf16.msra.mxu0 0
      %1731 = vmatprep.subr.bf16.mxu0 0
      %1732 = vmatpush1.bf16.msra.mxu0 0
      %1733 = vmatprep.subr.bf16.mxu0 0
      %1734 = vmatpush1.bf16.msra.mxu0 0
      %1735 = vmatprep.subr.bf16.mxu0 0
      %1736 = vmatpush1.bf16.msra.mxu0 0
      %1737 = vmatprep.subr.bf16.mxu0 0
      %1738 = vmatpush1.bf16.msra.mxu0 0
      %1739 = vmatprep.mubr.f32.mxu0 0.0
      %1740 = vmatmul.mubr.f32.gmra.mrb[0].mxu0 %v1705
      %v1741 = vpop.f32.mrb[0].mxu0
      %v1742 = vadd.f32 0.0, %v1741
      %v1743 = vpop.f32.mrb[0].mxu0
      %1744 = vdwg.mxu0
      %v1749 = vunpack.c.l.b16 %v1682
      %v1750 = vunpack.c.l.b16 %v1683
      %v1751 = vunpack.c.l.b16 %v1684
      %v1752 = vunpack.c.l.b16 %v1685
      %v1753 = vpack.c.b16 %v1750, %v1749
      %v1754 = vpack.c.b16 %v1752, %v1751
      %v1758 = vsel %vm503, %v1681, 0
      %1760 = vmatprep.subr.bf16.mxu0 0
      %1761 = vmatpush1.bf16.msra.mxu0 %v1753
      %1762 = vmatprep.subr.bf16.mxu0 0
      %1763 = vmatpush1.bf16.msra.mxu0 %v1754
      %1764 = vmatprep.subr.bf16.mxu0 0
      %1765 = vmatpush1.bf16.msra.mxu0 0
      %1766 = vmatprep.subr.bf16.mxu0 0
      %1767 = vmatpush1.bf16.msra.mxu0 0
      %1768 = vmatprep.subr.bf16.mxu0 0
      %1769 = vmatpush1.bf16.msra.mxu0 0
      %1770 = vmatprep.subr.bf16.mxu0 0
      %1771 = vmatpush1.bf16.msra.mxu0 0
      %1772 = vmatprep.subr.bf16.mxu0 0
      %1773 = vmatpush1.bf16.msra.mxu0 0
      %1774 = vmatprep.subr.bf16.mxu0 0
      %1775 = vmatpush1.bf16.msra.mxu0 0
      %1776 = vmatprep.subr.bf16.mxu0 0
      %1777 = vmatpush1.bf16.msra.mxu0 0
      %1778 = vmatprep.subr.bf16.mxu0 0
      %1779 = vmatpush1.bf16.msra.mxu0 0
      %1780 = vmatprep.subr.bf16.mxu0 0
      %1781 = vmatpush1.bf16.msra.mxu0 0
      %1782 = vmatprep.subr.bf16.mxu0 0
      %1783 = vmatpush1.bf16.msra.mxu0 0
      %1784 = vmatprep.subr.bf16.mxu0 0
      %1785 = vmatpush1.bf16.msra.mxu0 0
      %1786 = vmatprep.subr.bf16.mxu0 0
      %1787 = vmatpush1.bf16.msra.mxu0 0
      %1788 = vmatprep.subr.bf16.mxu0 0
      %1789 = vmatpush1.bf16.msra.mxu0 0
      %1790 = vmatprep.subr.bf16.mxu0 0
      %1791 = vmatpush1.bf16.msra.mxu0 0
      %1792 = vmatprep.mubr.f32.mxu0 0.0
      %1793 = vmatmul.mubr.f32.gmra.mrb[0].mxu0 %v1758
      %v1794 = vpop.f32.mrb[0].mxu0
      %v1795 = vadd.f32 %v1742, %v1794
      %v1796 = vpop.f32.mrb[0].mxu0
      %1797 = vdwg.mxu0
      %v1798 = vld [vmem:[#allocation3 + $0x2] sm:$0xff]
      %s1799 = scalar_lea.vmem %s9, 32
      %v1800 = vld [vmem:[%s1799] sm:$0xf]
      %v1801 = vld [vmem:[%s1799 + $0x4] sm:$0xf]
      %v1802 = vld [vmem:[%s1799 + $0x8] sm:$0xf]
      %v1803 = vld [vmem:[%s1799 + $0xc] sm:$0xf]
      %v1808 = vunpack.c.l.b16 %v1800
      %v1809 = vunpack.c.l.b16 %v1801
      %v1810 = vunpack.c.l.b16 %v1802
      %v1811 = vunpack.c.l.b16 %v1803
      %v1812 = vpack.c.b16 %v1809, %v1808
      %v1813 = vpack.c.b16 %v1811, %v1810
      %v1817 = vsel %vm503, %v1798, 0
      %1819 = vmatprep.subr.bf16.mxu0 0
      %1820 = vmatpush1.bf16.msra.mxu0 %v1812
      %1821 = vmatprep.subr.bf16.mxu0 0
      %1822 = vmatpush1.bf16.msra.mxu0 %v1813
      %1823 = vmatprep.subr.bf16.mxu0 0
      %1824 = vmatpush1.bf16.msra.mxu0 0
      %1825 = vmatprep.subr.bf16.mxu0 0
      %1826 = vmatpush1.bf16.msra.mxu0 0
      %1827 = vmatprep.subr.bf16.mxu0 0
      %1828 = vmatpush1.bf16.msra.mxu0 0
      %1829 = vmatprep.subr.bf16.mxu0 0
      %1830 = vmatpush1.bf16.msra.mxu0 0
      %1831 = vmatprep.subr.bf16.mxu0 0
      %1832 = vmatpush1.bf16.msra.mxu0 0
      %1833 = vmatprep.subr.bf16.mxu0 0
      %1834 = vmatpush1.bf16.msra.mxu0 0
      %1835 = vmatprep.subr.bf16.mxu0 0
      %1836 = vmatpush1.bf16.msra.mxu0 0
      %1837 = vmatprep.subr.bf16.mxu0 0
      %1838 = vmatpush1.bf16.msra.mxu0 0
      %1839 = vmatprep.subr.bf16.mxu0 0
      %1840 = vmatpush1.bf16.msra.mxu0 0
      %1841 = vmatprep.subr.bf16.mxu0 0
      %1842 = vmatpush1.bf16.msra.mxu0 0
      %1843 = vmatprep.subr.bf16.mxu0 0
      %1844 = vmatpush1.bf16.msra.mxu0 0
      %1845 = vmatprep.subr.bf16.mxu0 0
      %1846 = vmatpush1.bf16.msra.mxu0 0
      %1847 = vmatprep.subr.bf16.mxu0 0
      %1848 = vmatpush1.bf16.msra.mxu0 0
      %1849 = vmatprep.subr.bf16.mxu0 0
      %1850 = vmatpush1.bf16.msra.mxu0 0
      %1851 = vmatprep.mubr.f32.mxu0 0.0
      %1852 = vmatmul.mubr.f32.gmra.mrb[0].mxu0 %v1817
      %v1853 = vpop.f32.mrb[0].mxu0
      %v1854 = vadd.f32 0.0, %v1853
      %v1855 = vpop.f32.mrb[0].mxu0
      %1856 = vdwg.mxu0
      %v1857 = vadd.f32 %v1795, %v1854
      %v1858 = vld [vmem:[#allocation3 + $0x4] sm:$0xff]
      %s1859 = scalar_lea.vmem %s9, 48
      %v1860 = vld [vmem:[%s1859] sm:$0xf]
      %v1861 = vld [vmem:[%s1859 + $0x4] sm:$0xf]
      %v1862 = vld [vmem:[%s1859 + $0x8] sm:$0xf]
      %v1863 = vld [vmem:[%s1859 + $0xc] sm:$0xf]
      %v1868 = vunpack.c.l.b16 %v1860
      %v1869 = vunpack.c.l.b16 %v1861
      %v1870 = vunpack.c.l.b16 %v1862
      %v1871 = vunpack.c.l.b16 %v1863
      %v1872 = vpack.c.b16 %v1869, %v1868
      %v1873 = vpack.c.b16 %v1871, %v1870
      %v1877 = vsel %vm503, %v1858, 0
      %1879 = vmatprep.subr.bf16.mxu0 0
      %1880 = vmatpush1.bf16.msra.mxu0 %v1872
      %1881 = vmatprep.subr.bf16.mxu0 0
      %1882 = vmatpush1.bf16.msra.mxu0 %v1873
      %1883 = vmatprep.subr.bf16.mxu0 0
      %1884 = vmatpush1.bf16.msra.mxu0 0
      %1885 = vmatprep.subr.bf16.mxu0 0
      %1886 = vmatpush1.bf16.msra.mxu0 0
      %1887 = vmatprep.subr.bf16.mxu0 0
      %1888 = vmatpush1.bf16.msra.mxu0 0
      %1889 = vmatprep.subr.bf16.mxu0 0
      %1890 = vmatpush1.bf16.msra.mxu0 0
      %1891 = vmatprep.subr.bf16.mxu0 0
      %1892 = vmatpush1.bf16.msra.mxu0 0
      %1893 = vmatprep.subr.bf16.mxu0 0
      %1894 = vmatpush1.bf16.msra.mxu0 0
      %1895 = vmatprep.subr.bf16.mxu0 0
      %1896 = vmatpush1.bf16.msra.mxu0 0
      %1897 = vmatprep.subr.bf16.mxu0 0
      %1898 = vmatpush1.bf16.msra.mxu0 0
      %1899 = vmatprep.subr.bf16.mxu0 0
      %1900 = vmatpush1.bf16.msra.mxu0 0
      %1901 = vmatprep.subr.bf16.mxu0 0
      %1902 = vmatpush1.bf16.msra.mxu0 0
      %1903 = vmatprep.subr.bf16.mxu0 0
      %1904 = vmatpush1.bf16.msra.mxu0 0
      %1905 = vmatprep.subr.bf16.mxu0 0
      %1906 = vmatpush1.bf16.msra.mxu0 0
      %1907 = vmatprep.subr.bf16.mxu0 0
      %1908 = vmatpush1.bf16.msra.mxu0 0
      %1909 = vmatprep.subr.bf16.mxu0 0
      %1910 = vmatpush1.bf16.msra.mxu0 0
      %1911 = vmatprep.mubr.f32.mxu0 0.0
      %1912 = vmatmul.mubr.f32.gmra.mrb[0].mxu0 %v1877
      %v1913 = vpop.f32.mrb[0].mxu0
      %v1914 = vadd.f32 0.0, %v1913
      %v1915 = vpop.f32.mrb[0].mxu0
      %1916 = vdwg.mxu0
      %v1917 = vadd.f32 %v1857, %v1914
      %v1918 = vld [vmem:[#allocation3 + $0x5] sm:$0xff]
      %s1919 = scalar_lea.vmem %s9, 64
      %v1920 = vld [vmem:[%s1919] sm:$0xf]
      %v1921 = vld [vmem:[%s1919 + $0x4] sm:$0xf]
      %v1922 = vld [vmem:[%s1919 + $0x8] sm:$0xf]
      %v1923 = vld [vmem:[%s1919 + $0xc] sm:$0xf]
      %v1928 = vunpack.c.l.b16 %v1920
      %v1929 = vunpack.c.l.b16 %v1921
      %v1930 = vunpack.c.l.b16 %v1922
      %v1931 = vunpack.c.l.b16 %v1923
      %v1932 = vpack.c.b16 %v1929, %v1928
      %v1933 = vpack.c.b16 %v1931, %v1930
      %v1937 = vsel %vm503, %v1918, 0
      %1939 = vmatprep.subr.bf16.mxu0 0
      %1940 = vmatpush1.bf16.msra.mxu0 %v1932
      %1941 = vmatprep.subr.bf16.mxu0 0
      %1942 = vmatpush1.bf16.msra.mxu0 %v1933
      %1943 = vmatprep.subr.bf16.mxu0 0
      %1944 = vmatpush1.bf16.msra.mxu0 0
      %1945 = vmatprep.subr.bf16.mxu0 0
      %1946 = vmatpush1.bf16.msra.mxu0 0
      %1947 = vmatprep.subr.bf16.mxu0 0
      %1948 = vmatpush1.bf16.msra.mxu0 0
      %1949 = vmatprep.subr.bf16.mxu0 0
      %1950 = vmatpush1.bf16.msra.mxu0 0
      %1951 = vmatprep.subr.bf16.mxu0 0
      %1952 = vmatpush1.bf16.msra.mxu0 0
      %1953 = vmatprep.subr.bf16.mxu0 0
      %1954 = vmatpush1.bf16.msra.mxu0 0
      %1955 = vmatprep.subr.bf16.mxu0 0
      %1956 = vmatpush1.bf16.msra.mxu0 0
      %1957 = vmatprep.subr.bf16.mxu0 0
      %1958 = vmatpush1.bf16.msra.mxu0 0
      %1959 = vmatprep.subr.bf16.mxu0 0
      %1960 = vmatpush1.bf16.msra.mxu0 0
      %1961 = vmatprep.subr.bf16.mxu0 0
      %1962 = vmatpush1.bf16.msra.mxu0 0
      %1963 = vmatprep.subr.bf16.mxu0 0
      %1964 = vmatpush1.bf16.msra.mxu0 0
      %1965 = vmatprep.subr.bf16.mxu0 0
      %1966 = vmatpush1.bf16.msra.mxu0 0
      %1967 = vmatprep.subr.bf16.mxu0 0
      %1968 = vmatpush1.bf16.msra.mxu0 0
      %1969 = vmatprep.subr.bf16.mxu0 0
      %1970 = vmatpush1.bf16.msra.mxu0 0
      %1971 = vmatprep.mubr.f32.mxu0 0.0
      %1972 = vmatmul.mubr.f32.gmra.mrb[0].mxu0 %v1937
      %v1973 = vpop.f32.mrb[0].mxu0
      %v1974 = vadd.f32 0.0, %v1973
      %v1975 = vpop.f32.mrb[0].mxu0
      %1976 = vdwg.mxu0
      %v1977 = vadd.f32 %v1917, %v1974
      %v1978 = vld [vmem:[#allocation3 + $0x6] sm:$0xff]
      %s1979 = scalar_lea.vmem %s9, 80
      %v1980 = vld [vmem:[%s1979] sm:$0xf]
      %v1981 = vld [vmem:[%s1979 + $0x4] sm:$0xf]
      %v1982 = vld [vmem:[%s1979 + $0x8] sm:$0xf]
      %v1983 = vld [vmem:[%s1979 + $0xc] sm:$0xf]
      %v1988 = vunpack.c.l.b16 %v1980
      %v1989 = vunpack.c.l.b16 %v1981
      %v1990 = vunpack.c.l.b16 %v1982
      %v1991 = vunpack.c.l.b16 %v1983
      %v1992 = vpack.c.b16 %v1989, %v1988
      %v1993 = vpack.c.b16 %v1991, %v1990
      %v1997 = vsel %vm503, %v1978, 0
      %1999 = vmatprep.subr.bf16.mxu0 0
      %2000 = vmatpush1.bf16.msra.mxu0 %v1992
      %2001 = vmatprep.subr.bf16.mxu0 0
      %2002 = vmatpush1.bf16.msra.mxu0 %v1993
      %2003 = vmatprep.subr.bf16.mxu0 0
      %2004 = vmatpush1.bf16.msra.mxu0 0
      %2005 = vmatprep.subr.bf16.mxu0 0
      %2006 = vmatpush1.bf16.msra.mxu0 0
      %2007 = vmatprep.subr.bf16.mxu0 0
      %2008 = vmatpush1.bf16.msra.mxu0 0
      %2009 = vmatprep.subr.bf16.mxu0 0
      %2010 = vmatpush1.bf16.msra.mxu0 0
      %2011 = vmatprep.subr.bf16.mxu0 0
      %2012 = vmatpush1.bf16.msra.mxu0 0
      %2013 = vmatprep.subr.bf16.mxu0 0
      %2014 = vmatpush1.bf16.msra.mxu0 0
      %2015 = vmatprep.subr.bf16.mxu0 0
      %2016 = vmatpush1.bf16.msra.mxu0 0
      %2017 = vmatprep.subr.bf16.mxu0 0
      %2018 = vmatpush1.bf16.msra.mxu0 0
      %2019 = vmatprep.subr.bf16.mxu0 0
      %2020 = vmatpush1.bf16.msra.mxu0 0
      %2021 = vmatprep.subr.bf16.mxu0 0
      %2022 = vmatpush1.bf16.msra.mxu0 0
      %2023 = vmatprep.subr.bf16.mxu0 0
      %2024 = vmatpush1.bf16.msra.mxu0 0
      %2025 = vmatprep.subr.bf16.mxu0 0
      %2026 = vmatpush1.bf16.msra.mxu0 0
      %2027 = vmatprep.subr.bf16.mxu0 0
      %2028 = vmatpush1.bf16.msra.mxu0 0
      %2029 = vmatprep.subr.bf16.mxu0 0
      %2030 = vmatpush1.bf16.msra.mxu0 0
      %2031 = vmatprep.mubr.f32.mxu0 0.0
      %2032 = vmatmul.mubr.f32.gmra.mrb[0].mxu0 %v1997
      %v2033 = vpop.f32.mrb[0].mxu0
      %v2034 = vadd.f32 0.0, %v2033
      %v2035 = vpop.f32.mrb[0].mxu0
      %2036 = vdwg.mxu0
      %v2037 = vadd.f32 %v1977, %v2034
      %v2038 = vld [vmem:[#allocation3 + $0x8] sm:$0xff]
      %s2039 = scalar_lea.vmem %s9, 96
      %v2040 = vld [vmem:[%s2039] sm:$0xf]
      %v2041 = vld [vmem:[%s2039 + $0x4] sm:$0xf]
      %v2042 = vld [vmem:[%s2039 + $0x8] sm:$0xf]
      %v2043 = vld [vmem:[%s2039 + $0xc] sm:$0xf]
      %v2048 = vunpack.c.l.b16 %v2040
      %v2049 = vunpack.c.l.b16 %v2041
      %v2050 = vunpack.c.l.b16 %v2042
      %v2051 = vunpack.c.l.b16 %v2043
      %v2052 = vpack.c.b16 %v2049, %v2048
      %v2053 = vpack.c.b16 %v2051, %v2050
      %v2057 = vsel %vm503, %v2038, 0
      %2059 = vmatprep.subr.bf16.mxu0 0
      %2060 = vmatpush1.bf16.msra.mxu0 %v2052
      %2061 = vmatprep.subr.bf16.mxu0 0
      %2062 = vmatpush1.bf16.msra.mxu0 %v2053
      %2063 = vmatprep.subr.bf16.mxu0 0
      %2064 = vmatpush1.bf16.msra.mxu0 0
      %2065 = vmatprep.subr.bf16.mxu0 0
      %2066 = vmatpush1.bf16.msra.mxu0 0
      %2067 = vmatprep.subr.bf16.mxu0 0
      %2068 = vmatpush1.bf16.msra.mxu0 0
      %2069 = vmatprep.subr.bf16.mxu0 0
      %2070 = vmatpush1.bf16.msra.mxu0 0
      %2071 = vmatprep.subr.bf16.mxu0 0
      %2072 = vmatpush1.bf16.msra.mxu0 0
      %2073 = vmatprep.subr.bf16.mxu0 0
      %2074 = vmatpush1.bf16.msra.mxu0 0
      %2075 = vmatprep.subr.bf16.mxu0 0
      %2076 = vmatpush1.bf16.msra.mxu0 0
      %2077 = vmatprep.subr.bf16.mxu0 0
      %2078 = vmatpush1.bf16.msra.mxu0 0
      %2079 = vmatprep.subr.bf16.mxu0 0
      %2080 = vmatpush1.bf16.msra.mxu0 0
      %2081 = vmatprep.subr.bf16.mxu0 0
      %2082 = vmatpush1.bf16.msra.mxu0 0
      %2083 = vmatprep.subr.bf16.mxu0 0
      %2084 = vmatpush1.bf16.msra.mxu0 0
      %2085 = vmatprep.subr.bf16.mxu0 0
      %2086 = vmatpush1.bf16.msra.mxu0 0
      %2087 = vmatprep.subr.bf16.mxu0 0
      %2088 = vmatpush1.bf16.msra.mxu0 0
      %2089 = vmatprep.subr.bf16.mxu0 0
      %2090 = vmatpush1.bf16.msra.mxu0 0
      %2091 = vmatprep.mubr.f32.mxu0 0.0
      %2092 = vmatmul.mubr.f32.gmra.mrb[0].mxu0 %v2057
      %v2093 = vpop.f32.mrb[0].mxu0
      %v2094 = vadd.f32 0.0, %v2093
      %v2095 = vpop.f32.mrb[0].mxu0
      %2096 = vdwg.mxu0
      %v2097 = vadd.f32 %v2037, %v2094
      %v2098 = vld [vmem:[#allocation3 + $0x9] sm:$0xff]
      %s2099 = scalar_lea.vmem %s9, 112
      %v2100 = vld [vmem:[%s2099] sm:$0xf]
      %v2101 = vld [vmem:[%s2099 + $0x4] sm:$0xf]
      %v2102 = vld [vmem:[%s2099 + $0x8] sm:$0xf]
      %v2103 = vld [vmem:[%s2099 + $0xc] sm:$0xf]
      %v2108 = vunpack.c.l.b16 %v2100
      %v2109 = vunpack.c.l.b16 %v2101
      %v2110 = vunpack.c.l.b16 %v2102
      %v2111 = vunpack.c.l.b16 %v2103
      %v2112 = vpack.c.b16 %v2109, %v2108
      %v2113 = vpack.c.b16 %v2111, %v2110
      %v2117 = vsel %vm503, %v2098, 0
      %2119 = vmatprep.subr.bf16.mxu0 0
      %2120 = vmatpush1.bf16.msra.mxu0 %v2112
      %2121 = vmatprep.subr.bf16.mxu0 0
      %2122 = vmatpush1.bf16.msra.mxu0 %v2113
      %2123 = vmatprep.subr.bf16.mxu0 0
      %2124 = vmatpush1.bf16.msra.mxu0 0
      %2125 = vmatprep.subr.bf16.mxu0 0
      %2126 = vmatpush1.bf16.msra.mxu0 0
      %2127 = vmatprep.subr.bf16.mxu0 0
      %2128 = vmatpush1.bf16.msra.mxu0 0
      %2129 = vmatprep.subr.bf16.mxu0 0
      %2130 = vmatpush1.bf16.msra.mxu0 0
      %2131 = vmatprep.subr.bf16.mxu0 0
      %2132 = vmatpush1.bf16.msra.mxu0 0
      %2133 = vmatprep.subr.bf16.mxu0 0
      %2134 = vmatpush1.bf16.msra.mxu0 0
      %2135 = vmatprep.subr.bf16.mxu0 0
      %2136 = vmatpush1.bf16.msra.mxu0 0
      %2137 = vmatprep.subr.bf16.mxu0 0
      %2138 = vmatpush1.bf16.msra.mxu0 0
      %2139 = vmatprep.subr.bf16.mxu0 0
      %2140 = vmatpush1.bf16.msra.mxu0 0
      %2141 = vmatprep.subr.bf16.mxu0 0
      %2142 = vmatpush1.bf16.msra.mxu0 0
      %2143 = vmatprep.subr.bf16.mxu0 0
      %2144 = vmatpush1.bf16.msra.mxu0 0
      %2145 = vmatprep.subr.bf16.mxu0 0
      %2146 = vmatpush1.bf16.msra.mxu0 0
      %2147 = vmatprep.subr.bf16.mxu0 0
      %2148 = vmatpush1.bf16.msra.mxu0 0
      %2149 = vmatprep.subr.bf16.mxu0 0
      %2150 = vmatpush1.bf16.msra.mxu0 0
      %2151 = vmatprep.mubr.f32.mxu0 0.0
      %2152 = vmatmul.mubr.f32.gmra.mrb[0].mxu0 %v2117
      %v2153 = vpop.f32.mrb[0].mxu0
      %v2154 = vadd.f32 0.0, %v2153
      %v2155 = vpop.f32.mrb[0].mxu0
      %2156 = vdwg.mxu0
      %v2157 = vadd.f32 %v2097, %v2154
      %v2158 = vld [vmem:[#allocation3 + $0xa] sm:$0xff]
      %s2159 = scalar_lea.vmem %s9, 128
      %v2160 = vld [vmem:[%s2159] sm:$0xf]
      %v2161 = vld [vmem:[%s2159 + $0x4] sm:$0xf]
      %v2162 = vld [vmem:[%s2159 + $0x8] sm:$0xf]
      %v2163 = vld [vmem:[%s2159 + $0xc] sm:$0xf]
      %v2168 = vunpack.c.l.b16 %v2160
      %v2169 = vunpack.c.l.b16 %v2161
      %v2170 = vunpack.c.l.b16 %v2162
      %v2171 = vunpack.c.l.b16 %v2163
      %v2172 = vpack.c.b16 %v2169, %v2168
      %v2173 = vpack.c.b16 %v2171, %v2170
      %v2177 = vsel %vm503, %v2158, 0
      %2179 = vmatprep.subr.bf16.mxu0 0
      %2180 = vmatpush1.bf16.msra.mxu0 %v2172
      %2181 = vmatprep.subr.bf16.mxu0 0
      %2182 = vmatpush1.bf16.msra.mxu0 %v2173
      %2183 = vmatprep.subr.bf16.mxu0 0
      %2184 = vmatpush1.bf16.msra.mxu0 0
      %2185 = vmatprep.subr.bf16.mxu0 0
      %2186 = vmatpush1.bf16.msra.mxu0 0
      %2187 = vmatprep.subr.bf16.mxu0 0
      %2188 = vmatpush1.bf16.msra.mxu0 0
      %2189 = vmatprep.subr.bf16.mxu0 0
      %2190 = vmatpush1.bf16.msra.mxu0 0
      %2191 = vmatprep.subr.bf16.mxu0 0
      %2192 = vmatpush1.bf16.msra.mxu0 0
      %2193 = vmatprep.subr.bf16.mxu0 0
      %2194 = vmatpush1.bf16.msra.mxu0 0
      %2195 = vmatprep.subr.bf16.mxu0 0
      %2196 = vmatpush1.bf16.msra.mxu0 0
      %2197 = vmatprep.subr.bf16.mxu0 0
      %2198 = vmatpush1.bf16.msra.mxu0 0
      %2199 = vmatprep.subr.bf16.mxu0 0
      %2200 = vmatpush1.bf16.msra.mxu0 0
      %2201 = vmatprep.subr.bf16.mxu0 0
      %2202 = vmatpush1.bf16.msra.mxu0 0
      %2203 = vmatprep.subr.bf16.mxu0 0
      %2204 = vmatpush1.bf16.msra.mxu0 0
      %2205 = vmatprep.subr.bf16.mxu0 0
      %2206 = vmatpush1.bf16.msra.mxu0 0
      %2207 = vmatprep.subr.bf16.mxu0 0
      %2208 = vmatpush1.bf16.msra.mxu0 0
      %2209 = vmatprep.subr.bf16.mxu0 0
      %2210 = vmatpush1.bf16.msra.mxu0 0
      %2211 = vmatprep.mubr.f32.mxu0 0.0
      %2212 = vmatmul.mubr.f32.gmra.mrb[0].mxu0 %v2177
      %v2213 = vpop.f32.mrb[0].mxu0
      %v2214 = vadd.f32 0.0, %v2213
      %v2215 = vpop.f32.mrb[0].mxu0
      %2216 = vdwg.mxu0
      %v2217 = vadd.f32 %v2157, %v2214
      %v2218 = vld [vmem:[%s10] sm:$0x1]
      %v2220 = vlaneseq
      %v2221 = vshrl.u32 %v2220, 7
      %v2222 = vsub.s32 0, %v2221
      %v2223 = vrot.slane %v2218, %v2222
      %v2225 = vadd.f32 %v2217, %v2223
      %v2226 = vld [vmem:[#allocation2 + $0x5] sm:$0xff]
      %v2227 = vadd.f32 %v2225, %v2226
      %v2228 = vmul.f32 %v2227, %v1127
      %2229 = vst.msk [vmem:[#allocation2 + $0x5] sm:$0xff] %vm503, %v2228
      %v2230 = vld [vmem:[#allocation2] sm:$0xff]
      %v2231 = vld [vmem:[%s11] sm:$0xf]
      %v2232 = vld [vmem:[%s11 + $0x4] sm:$0xf]
      %v2233 = vld [vmem:[%s11 + $0x8] sm:$0xf]
      %v2234 = vld [vmem:[%s11 + $0xc] sm:$0xf]
      %v2235 = vld [vmem:[#allocation2 + $0x1] sm:$0xff]
      %s2236 = scalar_lea.vmem %s11, 16
      %v2237 = vld [vmem:[%s2236] sm:$0xf]
      %v2238 = vld [vmem:[%s2236 + $0x4] sm:$0xf]
      %v2239 = vld [vmem:[%s2236 + $0x8] sm:$0xf]
      %v2240 = vld [vmem:[%s2236 + $0xc] sm:$0xf]
      %v2245 = vunpack.c.l.b16 %v2237
      %v2246 = vunpack.c.l.b16 %v2238
      %v2247 = vunpack.c.l.b16 %v2239
      %v2248 = vunpack.c.l.b16 %v2240
      %v2249 = vpack.c.b16 %v2246, %v2245
      %v2250 = vpack.c.b16 %v2248, %v2247
      %v2254 = vsel %vm503, %v2235, 0
      %2256 = vmatprep.subr.bf16.mxu0 0
      %2257 = vmatpush1.bf16.msra.mxu0 %v2249
      %2258 = vmatprep.subr.bf16.mxu0 0
      %2259 = vmatpush1.bf16.msra.mxu0 %v2250
      %2260 = vmatprep.subr.bf16.mxu0 0
      %2261 = vmatpush1.bf16.msra.mxu0 0
      %2262 = vmatprep.subr.bf16.mxu0 0
      %2263 = vmatpush1.bf16.msra.mxu0 0
      %2264 = vmatprep.subr.bf16.mxu0 0
      %2265 = vmatpush1.bf16.msra.mxu0 0
      %2266 = vmatprep.subr.bf16.mxu0 0
      %2267 = vmatpush1.bf16.msra.mxu0 0
      %2268 = vmatprep.subr.bf16.mxu0 0
      %2269 = vmatpush1.bf16.msra.mxu0 0
      %2270 = vmatprep.subr.bf16.mxu0 0
      %2271 = vmatpush1.bf16.msra.mxu0 0
      %2272 = vmatprep.subr.bf16.mxu0 0
      %2273 = vmatpush1.bf16.msra.mxu0 0
      %2274 = vmatprep.subr.bf16.mxu0 0
      %2275 = vmatpush1.bf16.msra.mxu0 0
      %2276 = vmatprep.subr.bf16.mxu0 0
      %2277 = vmatpush1.bf16.msra.mxu0 0
      %2278 = vmatprep.subr.bf16.mxu0 0
      %2279 = vmatpush1.bf16.msra.mxu0 0
      %2280 = vmatprep.subr.bf16.mxu0 0
      %2281 = vmatpush1.bf16.msra.mxu0 0
      %2282 = vmatprep.subr.bf16.mxu0 0
      %2283 = vmatpush1.bf16.msra.mxu0 0
      %2284 = vmatprep.subr.bf16.mxu0 0
      %2285 = vmatpush1.bf16.msra.mxu0 0
      %2286 = vmatprep.subr.bf16.mxu0 0
      %2287 = vmatpush1.bf16.msra.mxu0 0
      %2288 = vmatprep.mubr.f32.mxu0 0.0
      %2289 = vmatmul.mubr.f32.gmra.mrb[0].mxu0 %v2254
      %v2290 = vpop.f32.mrb[0].mxu0
      %v2291 = vadd.f32 0.0, %v2290
      %v2292 = vpop.f32.mrb[0].mxu0
      %2293 = vdwg.mxu0
      %v2298 = vunpack.c.l.b16 %v2231
      %v2299 = vunpack.c.l.b16 %v2232
      %v2300 = vunpack.c.l.b16 %v2233
      %v2301 = vunpack.c.l.b16 %v2234
      %v2302 = vpack.c.b16 %v2299, %v2298
      %v2303 = vpack.c.b16 %v2301, %v2300
      %v2307 = vsel %vm503, %v2230, 0
      %2309 = vmatprep.subr.bf16.mxu0 0
      %2310 = vmatpush1.bf16.msra.mxu0 %v2302
      %2311 = vmatprep.subr.bf16.mxu0 0
      %2312 = vmatpush1.bf16.msra.mxu0 %v2303
      %2313 = vmatprep.subr.bf16.mxu0 0
      %2314 = vmatpush1.bf16.msra.mxu0 0
      %2315 = vmatprep.subr.bf16.mxu0 0
      %2316 = vmatpush1.bf16.msra.mxu0 0
      %2317 = vmatprep.subr.bf16.mxu0 0
      %2318 = vmatpush1.bf16.msra.mxu0 0
      %2319 = vmatprep.subr.bf16.mxu0 0
      %2320 = vmatpush1.bf16.msra.mxu0 0
      %2321 = vmatprep.subr.bf16.mxu0 0
      %2322 = vmatpush1.bf16.msra.mxu0 0
      %2323 = vmatprep.subr.bf16.mxu0 0
      %2324 = vmatpush1.bf16.msra.mxu0 0
      %2325 = vmatprep.subr.bf16.mxu0 0
      %2326 = vmatpush1.bf16.msra.mxu0 0
      %2327 = vmatprep.subr.bf16.mxu0 0
      %2328 = vmatpush1.bf16.msra.mxu0 0
      %2329 = vmatprep.subr.bf16.mxu0 0
      %2330 = vmatpush1.bf16.msra.mxu0 0
      %2331 = vmatprep.subr.bf16.mxu0 0
      %2332 = vmatpush1.bf16.msra.mxu0 0
      %2333 = vmatprep.subr.bf16.mxu0 0
      %2334 = vmatpush1.bf16.msra.mxu0 0
      %2335 = vmatprep.subr.bf16.mxu0 0
      %2336 = vmatpush1.bf16.msra.mxu0 0
      %2337 = vmatprep.subr.bf16.mxu0 0
      %2338 = vmatpush1.bf16.msra.mxu0 0
      %2339 = vmatprep.subr.bf16.mxu0 0
      %2340 = vmatpush1.bf16.msra.mxu0 0
      %2341 = vmatprep.mubr.f32.mxu0 0.0
      %2342 = vmatmul.mubr.f32.gmra.mrb[0].mxu0 %v2307
      %v2343 = vpop.f32.mrb[0].mxu0
      %v2344 = vadd.f32 %v2291, %v2343
      %v2345 = vpop.f32.mrb[0].mxu0
      %2346 = vdwg.mxu0
      %v2347 = vld [vmem:[#allocation2 + $0x2] sm:$0xff]
      %s2348 = scalar_lea.vmem %s11, 32
      %v2349 = vld [vmem:[%s2348] sm:$0xf]
      %v2350 = vld [vmem:[%s2348 + $0x4] sm:$0xf]
      %v2351 = vld [vmem:[%s2348 + $0x8] sm:$0xf]
      %v2352 = vld [vmem:[%s2348 + $0xc] sm:$0xf]
      %v2357 = vunpack.c.l.b16 %v2349
      %v2358 = vunpack.c.l.b16 %v2350
      %v2359 = vunpack.c.l.b16 %v2351
      %v2360 = vunpack.c.l.b16 %v2352
      %v2361 = vpack.c.b16 %v2358, %v2357
      %v2362 = vpack.c.b16 %v2360, %v2359
      %v2366 = vsel %vm503, %v2347, 0
      %2368 = vmatprep.subr.bf16.mxu0 0
      %2369 = vmatpush1.bf16.msra.mxu0 %v2361
      %2370 = vmatprep.subr.bf16.mxu0 0
      %2371 = vmatpush1.bf16.msra.mxu0 %v2362
      %2372 = vmatprep.subr.bf16.mxu0 0
      %2373 = vmatpush1.bf16.msra.mxu0 0
      %2374 = vmatprep.subr.bf16.mxu0 0
      %2375 = vmatpush1.bf16.msra.mxu0 0
      %2376 = vmatprep.subr.bf16.mxu0 0
      %2377 = vmatpush1.bf16.msra.mxu0 0
      %2378 = vmatprep.subr.bf16.mxu0 0
      %2379 = vmatpush1.bf16.msra.mxu0 0
      %2380 = vmatprep.subr.bf16.mxu0 0
      %2381 = vmatpush1.bf16.msra.mxu0 0
      %2382 = vmatprep.subr.bf16.mxu0 0
      %2383 = vmatpush1.bf16.msra.mxu0 0
      %2384 = vmatprep.subr.bf16.mxu0 0
      %2385 = vmatpush1.bf16.msra.mxu0 0
      %2386 = vmatprep.subr.bf16.mxu0 0
      %2387 = vmatpush1.bf16.msra.mxu0 0
      %2388 = vmatprep.subr.bf16.mxu0 0
      %2389 = vmatpush1.bf16.msra.mxu0 0
      %2390 = vmatprep.subr.bf16.mxu0 0
      %2391 = vmatpush1.bf16.msra.mxu0 0
      %2392 = vmatprep.subr.bf16.mxu0 0
      %2393 = vmatpush1.bf16.msra.mxu0 0
      %2394 = vmatprep.subr.bf16.mxu0 0
      %2395 = vmatpush1.bf16.msra.mxu0 0
      %2396 = vmatprep.subr.bf16.mxu0 0
      %2397 = vmatpush1.bf16.msra.mxu0 0
      %2398 = vmatprep.subr.bf16.mxu0 0
      %2399 = vmatpush1.bf16.msra.mxu0 0
      %2400 = vmatprep.mubr.f32.mxu0 0.0
      %2401 = vmatmul.mubr.f32.gmra.mrb[0].mxu0 %v2366
      %v2402 = vpop.f32.mrb[0].mxu0
      %v2403 = vadd.f32 0.0, %v2402
      %v2404 = vpop.f32.mrb[0].mxu0
      %2405 = vdwg.mxu0
      %v2406 = vadd.f32 %v2344, %v2403
      %v2407 = vld [vmem:[#allocation2 + $0x4] sm:$0xff]
      %s2408 = scalar_lea.vmem %s11, 48
      %v2409 = vld [vmem:[%s2408] sm:$0xf]
      %v2410 = vld [vmem:[%s2408 + $0x4] sm:$0xf]
      %v2411 = vld [vmem:[%s2408 + $0x8] sm:$0xf]
      %v2412 = vld [vmem:[%s2408 + $0xc] sm:$0xf]
      %v2417 = vunpack.c.l.b16 %v2409
      %v2418 = vunpack.c.l.b16 %v2410
      %v2419 = vunpack.c.l.b16 %v2411
      %v2420 = vunpack.c.l.b16 %v2412
      %v2421 = vpack.c.b16 %v2418, %v2417
      %v2422 = vpack.c.b16 %v2420, %v2419
      %v2426 = vsel %vm503, %v2407, 0
      %2428 = vmatprep.subr.bf16.mxu0 0
      %2429 = vmatpush1.bf16.msra.mxu0 %v2421
      %2430 = vmatprep.subr.bf16.mxu0 0
      %2431 = vmatpush1.bf16.msra.mxu0 %v2422
      %2432 = vmatprep.subr.bf16.mxu0 0
      %2433 = vmatpush1.bf16.msra.mxu0 0
      %2434 = vmatprep.subr.bf16.mxu0 0
      %2435 = vmatpush1.bf16.msra.mxu0 0
      %2436 = vmatprep.subr.bf16.mxu0 0
      %2437 = vmatpush1.bf16.msra.mxu0 0
      %2438 = vmatprep.subr.bf16.mxu0 0
      %2439 = vmatpush1.bf16.msra.mxu0 0
      %2440 = vmatprep.subr.bf16.mxu0 0
      %2441 = vmatpush1.bf16.msra.mxu0 0
      %2442 = vmatprep.subr.bf16.mxu0 0
      %2443 = vmatpush1.bf16.msra.mxu0 0
      %2444 = vmatprep.subr.bf16.mxu0 0
      %2445 = vmatpush1.bf16.msra.mxu0 0
      %2446 = vmatprep.subr.bf16.mxu0 0
      %2447 = vmatpush1.bf16.msra.mxu0 0
      %2448 = vmatprep.subr.bf16.mxu0 0
      %2449 = vmatpush1.bf16.msra.mxu0 0
      %2450 = vmatprep.subr.bf16.mxu0 0
      %2451 = vmatpush1.bf16.msra.mxu0 0
      %2452 = vmatprep.subr.bf16.mxu0 0
      %2453 = vmatpush1.bf16.msra.mxu0 0
      %2454 = vmatprep.subr.bf16.mxu0 0
      %2455 = vmatpush1.bf16.msra.mxu0 0
      %2456 = vmatprep.subr.bf16.mxu0 0
      %2457 = vmatpush1.bf16.msra.mxu0 0
      %2458 = vmatprep.subr.bf16.mxu0 0
      %2459 = vmatpush1.bf16.msra.mxu0 0
      %2460 = vmatprep.mubr.f32.mxu0 0.0
      %2461 = vmatmul.mubr.f32.gmra.mrb[0].mxu0 %v2426
      %v2462 = vpop.f32.mrb[0].mxu0
      %v2463 = vadd.f32 0.0, %v2462
      %v2464 = vpop.f32.mrb[0].mxu0
      %2465 = vdwg.mxu0
      %v2466 = vadd.f32 %v2406, %v2463
      %v2467 = vld [vmem:[#allocation2 + $0x5] sm:$0xff]
      %s2468 = scalar_lea.vmem %s11, 64
      %v2469 = vld [vmem:[%s2468] sm:$0xf]
      %v2470 = vld [vmem:[%s2468 + $0x4] sm:$0xf]
      %v2471 = vld [vmem:[%s2468 + $0x8] sm:$0xf]
      %v2472 = vld [vmem:[%s2468 + $0xc] sm:$0xf]
      %v2477 = vunpack.c.l.b16 %v2469
      %v2478 = vunpack.c.l.b16 %v2470
      %v2479 = vunpack.c.l.b16 %v2471
      %v2480 = vunpack.c.l.b16 %v2472
      %v2481 = vpack.c.b16 %v2478, %v2477
      %v2482 = vpack.c.b16 %v2480, %v2479
      %v2486 = vsel %vm503, %v2467, 0
      %2488 = vmatprep.subr.bf16.mxu0 0
      %2489 = vmatpush1.bf16.msra.mxu0 %v2481
      %2490 = vmatprep.subr.bf16.mxu0 0
      %2491 = vmatpush1.bf16.msra.mxu0 %v2482
      %2492 = vmatprep.subr.bf16.mxu0 0
      %2493 = vmatpush1.bf16.msra.mxu0 0
      %2494 = vmatprep.subr.bf16.mxu0 0
      %2495 = vmatpush1.bf16.msra.mxu0 0
      %2496 = vmatprep.subr.bf16.mxu0 0
      %2497 = vmatpush1.bf16.msra.mxu0 0
      %2498 = vmatprep.subr.bf16.mxu0 0
      %2499 = vmatpush1.bf16.msra.mxu0 0
      %2500 = vmatprep.subr.bf16.mxu0 0
      %2501 = vmatpush1.bf16.msra.mxu0 0
      %2502 = vmatprep.subr.bf16.mxu0 0
      %2503 = vmatpush1.bf16.msra.mxu0 0
      %2504 = vmatprep.subr.bf16.mxu0 0
      %2505 = vmatpush1.bf16.msra.mxu0 0
      %2506 = vmatprep.subr.bf16.mxu0 0
      %2507 = vmatpush1.bf16.msra.mxu0 0
      %2508 = vmatprep.subr.bf16.mxu0 0
      %2509 = vmatpush1.bf16.msra.mxu0 0
      %2510 = vmatprep.subr.bf16.mxu0 0
      %2511 = vmatpush1.bf16.msra.mxu0 0
      %2512 = vmatprep.subr.bf16.mxu0 0
      %2513 = vmatpush1.bf16.msra.mxu0 0
      %2514 = vmatprep.subr.bf16.mxu0 0
      %2515 = vmatpush1.bf16.msra.mxu0 0
      %2516 = vmatprep.subr.bf16.mxu0 0
      %2517 = vmatpush1.bf16.msra.mxu0 0
      %2518 = vmatprep.subr.bf16.mxu0 0
      %2519 = vmatpush1.bf16.msra.mxu0 0
      %2520 = vmatprep.mubr.f32.mxu0 0.0
      %2521 = vmatmul.mubr.f32.gmra.mrb[0].mxu0 %v2486
      %v2522 = vpop.f32.mrb[0].mxu0
      %v2523 = vadd.f32 0.0, %v2522
      %v2524 = vpop.f32.mrb[0].mxu0
      %2525 = vdwg.mxu0
      %v2526 = vadd.f32 %v2466, %v2523
      %v2527 = vld [vmem:[#allocation2 + $0x6] sm:$0xff]
      %s2528 = scalar_lea.vmem %s11, 80
      %v2529 = vld [vmem:[%s2528] sm:$0xf]
      %v2530 = vld [vmem:[%s2528 + $0x4] sm:$0xf]
      %v2531 = vld [vmem:[%s2528 + $0x8] sm:$0xf]
      %v2532 = vld [vmem:[%s2528 + $0xc] sm:$0xf]
      %v2537 = vunpack.c.l.b16 %v2529
      %v2538 = vunpack.c.l.b16 %v2530
      %v2539 = vunpack.c.l.b16 %v2531
      %v2540 = vunpack.c.l.b16 %v2532
      %v2541 = vpack.c.b16 %v2538, %v2537
      %v2542 = vpack.c.b16 %v2540, %v2539
      %v2546 = vsel %vm503, %v2527, 0
      %2548 = vmatprep.subr.bf16.mxu0 0
      %2549 = vmatpush1.bf16.msra.mxu0 %v2541
      %2550 = vmatprep.subr.bf16.mxu0 0
      %2551 = vmatpush1.bf16.msra.mxu0 %v2542
      %2552 = vmatprep.subr.bf16.mxu0 0
      %2553 = vmatpush1.bf16.msra.mxu0 0
      %2554 = vmatprep.subr.bf16.mxu0 0
      %2555 = vmatpush1.bf16.msra.mxu0 0
      %2556 = vmatprep.subr.bf16.mxu0 0
      %2557 = vmatpush1.bf16.msra.mxu0 0
      %2558 = vmatprep.subr.bf16.mxu0 0
      %2559 = vmatpush1.bf16.msra.mxu0 0
      %2560 = vmatprep.subr.bf16.mxu0 0
      %2561 = vmatpush1.bf16.msra.mxu0 0
      %2562 = vmatprep.subr.bf16.mxu0 0
      %2563 = vmatpush1.bf16.msra.mxu0 0
      %2564 = vmatprep.subr.bf16.mxu0 0
      %2565 = vmatpush1.bf16.msra.mxu0 0
      %2566 = vmatprep.subr.bf16.mxu0 0
      %2567 = vmatpush1.bf16.msra.mxu0 0
      %2568 = vmatprep.subr.bf16.mxu0 0
      %2569 = vmatpush1.bf16.msra.mxu0 0
      %2570 = vmatprep.subr.bf16.mxu0 0
      %2571 = vmatpush1.bf16.msra.mxu0 0
      %2572 = vmatprep.subr.bf16.mxu0 0
      %2573 = vmatpush1.bf16.msra.mxu0 0
      %2574 = vmatprep.subr.bf16.mxu0 0
      %2575 = vmatpush1.bf16.msra.mxu0 0
      %2576 = vmatprep.subr.bf16.mxu0 0
      %2577 = vmatpush1.bf16.msra.mxu0 0
      %2578 = vmatprep.subr.bf16.mxu0 0
      %2579 = vmatpush1.bf16.msra.mxu0 0
      %2580 = vmatprep.mubr.f32.mxu0 0.0
      %2581 = vmatmul.mubr.f32.gmra.mrb[0].mxu0 %v2546
      %v2582 = vpop.f32.mrb[0].mxu0
      %v2583 = vadd.f32 0.0, %v2582
      %v2584 = vpop.f32.mrb[0].mxu0
      %2585 = vdwg.mxu0
      %v2586 = vadd.f32 %v2526, %v2583
      %v2587 = vld [vmem:[#allocation2 + $0x8] sm:$0xff]
      %s2588 = scalar_lea.vmem %s11, 96
      %v2589 = vld [vmem:[%s2588] sm:$0xf]
      %v2590 = vld [vmem:[%s2588 + $0x4] sm:$0xf]
      %v2591 = vld [vmem:[%s2588 + $0x8] sm:$0xf]
      %v2592 = vld [vmem:[%s2588 + $0xc] sm:$0xf]
      %v2597 = vunpack.c.l.b16 %v2589
      %v2598 = vunpack.c.l.b16 %v2590
      %v2599 = vunpack.c.l.b16 %v2591
      %v2600 = vunpack.c.l.b16 %v2592
      %v2601 = vpack.c.b16 %v2598, %v2597
      %v2602 = vpack.c.b16 %v2600, %v2599
      %v2606 = vsel %vm503, %v2587, 0
      %2608 = vmatprep.subr.bf16.mxu0 0
      %2609 = vmatpush1.bf16.msra.mxu0 %v2601
      %2610 = vmatprep.subr.bf16.mxu0 0
      %2611 = vmatpush1.bf16.msra.mxu0 %v2602
      %2612 = vmatprep.subr.bf16.mxu0 0
      %2613 = vmatpush1.bf16.msra.mxu0 0
      %2614 = vmatprep.subr.bf16.mxu0 0
      %2615 = vmatpush1.bf16.msra.mxu0 0
      %2616 = vmatprep.subr.bf16.mxu0 0
      %2617 = vmatpush1.bf16.msra.mxu0 0
      %2618 = vmatprep.subr.bf16.mxu0 0
      %2619 = vmatpush1.bf16.msra.mxu0 0
      %2620 = vmatprep.subr.bf16.mxu0 0
      %2621 = vmatpush1.bf16.msra.mxu0 0
      %2622 = vmatprep.subr.bf16.mxu0 0
      %2623 = vmatpush1.bf16.msra.mxu0 0
      %2624 = vmatprep.subr.bf16.mxu0 0
      %2625 = vmatpush1.bf16.msra.mxu0 0
      %2626 = vmatprep.subr.bf16.mxu0 0
      %2627 = vmatpush1.bf16.msra.mxu0 0
      %2628 = vmatprep.subr.bf16.mxu0 0
      %2629 = vmatpush1.bf16.msra.mxu0 0
      %2630 = vmatprep.subr.bf16.mxu0 0
      %2631 = vmatpush1.bf16.msra.mxu0 0
      %2632 = vmatprep.subr.bf16.mxu0 0
      %2633 = vmatpush1.bf16.msra.mxu0 0
      %2634 = vmatprep.subr.bf16.mxu0 0
      %2635 = vmatpush1.bf16.msra.mxu0 0
      %2636 = vmatprep.subr.bf16.mxu0 0
      %2637 = vmatpush1.bf16.msra.mxu0 0
      %2638 = vmatprep.subr.bf16.mxu0 0
      %2639 = vmatpush1.bf16.msra.mxu0 0
      %2640 = vmatprep.mubr.f32.mxu0 0.0
      %2641 = vmatmul.mubr.f32.gmra.mrb[0].mxu0 %v2606
      %v2642 = vpop.f32.mrb[0].mxu0
      %v2643 = vadd.f32 0.0, %v2642
      %v2644 = vpop.f32.mrb[0].mxu0
      %2645 = vdwg.mxu0
      %v2646 = vadd.f32 %v2586, %v2643
      %v2647 = vld [vmem:[#allocation2 + $0x9] sm:$0xff]
      %s2648 = scalar_lea.vmem %s11, 112
      %v2649 = vld [vmem:[%s2648] sm:$0xf]
      %v2650 = vld [vmem:[%s2648 + $0x4] sm:$0xf]
      %v2651 = vld [vmem:[%s2648 + $0x8] sm:$0xf]
      %v2652 = vld [vmem:[%s2648 + $0xc] sm:$0xf]
      %v2657 = vunpack.c.l.b16 %v2649
      %v2658 = vunpack.c.l.b16 %v2650
      %v2659 = vunpack.c.l.b16 %v2651
      %v2660 = vunpack.c.l.b16 %v2652
      %v2661 = vpack.c.b16 %v2658, %v2657
      %v2662 = vpack.c.b16 %v2660, %v2659
      %v2666 = vsel %vm503, %v2647, 0
      %2668 = vmatprep.subr.bf16.mxu0 0
      %2669 = vmatpush1.bf16.msra.mxu0 %v2661
      %2670 = vmatprep.subr.bf16.mxu0 0
      %2671 = vmatpush1.bf16.msra.mxu0 %v2662
      %2672 = vmatprep.subr.bf16.mxu0 0
      %2673 = vmatpush1.bf16.msra.mxu0 0
      %2674 = vmatprep.subr.bf16.mxu0 0
      %2675 = vmatpush1.bf16.msra.mxu0 0
      %2676 = vmatprep.subr.bf16.mxu0 0
      %2677 = vmatpush1.bf16.msra.mxu0 0
      %2678 = vmatprep.subr.bf16.mxu0 0
      %2679 = vmatpush1.bf16.msra.mxu0 0
      %2680 = vmatprep.subr.bf16.mxu0 0
      %2681 = vmatpush1.bf16.msra.mxu0 0
      %2682 = vmatprep.subr.bf16.mxu0 0
      %2683 = vmatpush1.bf16.msra.mxu0 0
      %2684 = vmatprep.subr.bf16.mxu0 0
      %2685 = vmatpush1.bf16.msra.mxu0 0
      %2686 = vmatprep.subr.bf16.mxu0 0
      %2687 = vmatpush1.bf16.msra.mxu0 0
      %2688 = vmatprep.subr.bf16.mxu0 0
      %2689 = vmatpush1.bf16.msra.mxu0 0
      %2690 = vmatprep.subr.bf16.mxu0 0
      %2691 = vmatpush1.bf16.msra.mxu0 0
      %2692 = vmatprep.subr.bf16.mxu0 0
      %2693 = vmatpush1.bf16.msra.mxu0 0
      %2694 = vmatprep.subr.bf16.mxu0 0
      %2695 = vmatpush1.bf16.msra.mxu0 0
      %2696 = vmatprep.subr.bf16.mxu0 0
      %2697 = vmatpush1.bf16.msra.mxu0 0
      %2698 = vmatprep.subr.bf16.mxu0 0
      %2699 = vmatpush1.bf16.msra.mxu0 0
      %2700 = vmatprep.mubr.f32.mxu0 0.0
      %2701 = vmatmul.mubr.f32.gmra.mrb[0].mxu0 %v2666
      %v2702 = vpop.f32.mrb[0].mxu0
      %v2703 = vadd.f32 0.0, %v2702
      %v2704 = vpop.f32.mrb[0].mxu0
      %2705 = vdwg.mxu0
      %v2706 = vadd.f32 %v2646, %v2703
      %v2707 = vld [vmem:[#allocation2 + $0xa] sm:$0xff]
      %s2708 = scalar_lea.vmem %s11, 128
      %v2709 = vld [vmem:[%s2708] sm:$0xf]
      %v2710 = vld [vmem:[%s2708 + $0x4] sm:$0xf]
      %v2711 = vld [vmem:[%s2708 + $0x8] sm:$0xf]
      %v2712 = vld [vmem:[%s2708 + $0xc] sm:$0xf]
      %v2717 = vunpack.c.l.b16 %v2709
      %v2718 = vunpack.c.l.b16 %v2710
      %v2719 = vunpack.c.l.b16 %v2711
      %v2720 = vunpack.c.l.b16 %v2712
      %v2721 = vpack.c.b16 %v2718, %v2717
      %v2722 = vpack.c.b16 %v2720, %v2719
      %v2726 = vsel %vm503, %v2707, 0
      %2728 = vmatprep.subr.bf16.mxu0 0
      %2729 = vmatpush1.bf16.msra.mxu0 %v2721
      %2730 = vmatprep.subr.bf16.mxu0 0
      %2731 = vmatpush1.bf16.msra.mxu0 %v2722
      %2732 = vmatprep.subr.bf16.mxu0 0
      %2733 = vmatpush1.bf16.msra.mxu0 0
      %2734 = vmatprep.subr.bf16.mxu0 0
      %2735 = vmatpush1.bf16.msra.mxu0 0
      %2736 = vmatprep.subr.bf16.mxu0 0
      %2737 = vmatpush1.bf16.msra.mxu0 0
      %2738 = vmatprep.subr.bf16.mxu0 0
      %2739 = vmatpush1.bf16.msra.mxu0 0
      %2740 = vmatprep.subr.bf16.mxu0 0
      %2741 = vmatpush1.bf16.msra.mxu0 0
      %2742 = vmatprep.subr.bf16.mxu0 0
      %2743 = vmatpush1.bf16.msra.mxu0 0
      %2744 = vmatprep.subr.bf16.mxu0 0
      %2745 = vmatpush1.bf16.msra.mxu0 0
      %2746 = vmatprep.subr.bf16.mxu0 0
      %2747 = vmatpush1.bf16.msra.mxu0 0
      %2748 = vmatprep.subr.bf16.mxu0 0
      %2749 = vmatpush1.bf16.msra.mxu0 0
      %2750 = vmatprep.subr.bf16.mxu0 0
      %2751 = vmatpush1.bf16.msra.mxu0 0
      %2752 = vmatprep.subr.bf16.mxu0 0
      %2753 = vmatpush1.bf16.msra.mxu0 0
      %2754 = vmatprep.subr.bf16.mxu0 0
      %2755 = vmatpush1.bf16.msra.mxu0 0
      %2756 = vmatprep.subr.bf16.mxu0 0
      %2757 = vmatpush1.bf16.msra.mxu0 0
      %2758 = vmatprep.subr.bf16.mxu0 0
      %2759 = vmatpush1.bf16.msra.mxu0 0
      %2760 = vmatprep.mubr.f32.mxu0 0.0
      %2761 = vmatmul.mubr.f32.gmra.mrb[0].mxu0 %v2726
      %v2762 = vpop.f32.mrb[0].mxu0
      %v2763 = vadd.f32 0.0, %v2762
      %v2764 = vpop.f32.mrb[0].mxu0
      %2765 = vdwg.mxu0
      %v2766 = vadd.f32 %v2706, %v2763
      %v2767 = vld [vmem:[#allocation4] sm:$0x1]
      %v2769 = vlaneseq
      %v2770 = vshrl.u32 %v2769, 7
      %v2771 = vsub.s32 0, %v2770
      %v2772 = vrot.slane %v2767, %v2771
      %v2774 = vadd.f32 %v2766, %v2772
      %vm2775 = vcmask 7168
      %2776 = vst.msk [vmem:[%s500] sm:$0xff] %vm2775, %v2774
      %p2777 = scmp.lt.s32.totalorder %s26, 1
      %s2778 = scalar_select %p2777, %s26, 1
      %s2779 = smul.addr %s2778, 8
      %s2780 = scalar_lea.vmem %s13, %s2779
      // Predicated region
      $region73: #{netD_forward.5} parent=71 // pred_check
        %p2781 = pneg %p337
      $region74: #{netD_forward.5} parent=71 // pred_check_branch
        %2783 = sbr.rel (%p2781) target = $region76
      $region75: #{netD_forward.5} parent=71 // pred_region
        _
      $region76: #{netD_forward.5} parent=71 // pred_fallthru
        _
    $region72: #{netD_forward.5} parent=5 // pred_fallthru
      _
    %p2784 = scmp.le.s32.totalorder 2, %s21
    // Predicated region
    $region77: #{netD_forward.5} parent=5 // pred_check
      %p2785 = pneg %p2784
    $region78: #{netD_forward.5} parent=5 // pred_check_branch
      %2787 = sbr.rel (%p2785) target = $region80
    $region79: #{netD_forward.5} parent=5 // pred_region
      %s2788 = ssub.s32 %s21, 2
      // Predicated region
      $region81: #{netD_forward.5} parent=79 // pred_check
        %p2789 = pneg %p343
      $region82: #{netD_forward.5} parent=79 // pred_check_branch
        %2791 = sbr.rel (%p2789) target = $region84
      $region83: #{netD_forward.5} parent=79 // pred_region
        %p2792 = scmp.lt.s32.totalorder %s27, 1
        %s2793 = scalar_select %p2792, %s27, 1
        %s2794 = smul.addr %s2793, 8
        %s2795 = scalar_lea.vmem %s13, %s2794
      $region84: #{netD_forward.5} parent=79 // pred_fallthru
        _
    $region80: #{netD_forward.5} parent=5 // pred_fallthru
      _
  $region6: #{netD_forward.5} parent=0 // loop_footer
    %s25 = sadd.s32 1, %s21
  $region7: #{netD_forward.5} parent=0 // loop_footer_branch
    %20 = sbr.rel target = $region3
  $region8: #{netD_forward.5} parent=0 // loop_exit
    _

</llo_original>
